<compile_context>
chip_gen: v5e
topology: v5e:2x2
jax: 0.10.0
libtpu: 0.0.40
codegen_flags: <defaults>
</compile_context>

<pallas_src>
import functools
import math

import jax
import jax.numpy as jnp
import numpy as np
from jax import lax
from jax.experimental import pallas as pl
from jax.experimental.pallas import tpu as pltpu


_DILATIONS = (1, 3, 9)
_HALO_PAD = 27           # max single-conv halo: 3 * 9
_RES_HALO = 39           # cumulative residual halo: 3 + 9 + 27


def _cdiv(a, b):
    return -(-a // b)


def _snake(x, alpha, recip_alpha):
    s = jnp.sin(alpha * x)
    return x + recip_alpha * (s * s)


# --------------------------------- kernel -----------------------------------

def _decoder_block_kernel(xw_ref, a0_ref, ra0_ref, wt_ref, bt_ref, rr_ref,
                          aa_ref, raa_ref, w7_ref, b7_ref,
                          ab_ref, rab_ref, w1_ref, b1_ref,
                          o_ref, pad_ref, *,
                          stride, t_out, halo_u, nq, l_out_true):
    f32 = jnp.float32
    bf16 = jnp.bfloat16
    c_out = o_ref.shape[0]
    w = t_out + 2 * halo_u                      # u-window width (output columns)

    # shared lane iota for phase select + sequence mask
    lane = lax.broadcasted_iota(jnp.int32, (1, w), 1)

    # ---- Snake1d(input_dim) on the x window (f32 elementwise) --------------
    xw = xw_ref[...].astype(f32)                                  # (Cin, NQ+2)
    xs = _snake(xw, a0_ref[...], ra0_ref[...]).astype(bf16)

    # ---- polyphase WNConvTranspose1d: one tap-folded bf16 MXU matmul -------
    # X3 stacks the three x shifts (q-1, q, q+1) along the contraction dim.
    x3 = jnp.concatenate(
        [xs[:, 0:nq], xs[:, 1:nq + 1], xs[:, 2:nq + 2]], axis=0)
    u_ph = jnp.dot(wt_ref[...], x3, preferred_element_type=f32)   # (s*Cout, NQ)

    if stride == 1:
        u = u_ph
    else:
        # Spread every phase to output resolution with a 0/1 repeat matrix
        # (f32 MXU, exact) and interleave via a lane-phase select.
        e_all = jnp.dot(u_ph, rr_ref[...], preferred_element_type=f32)
        phase = lane % stride
        u = jnp.zeros((c_out, w), f32)
        for p in range(stride):
            u = u + jnp.where(phase == p,
                              e_all[p * c_out:(p + 1) * c_out, :], 0.0)
    u = u + bt_ref[...]

    # ---- mask columns outside the true sequence ----------------------------
    start = pl.program_id(1) * t_out - halo_u
    col = lane + start
    in_seq = jnp.logical_and(col >= 0, col < l_out_true)
    y = jnp.where(in_seq, u, 0.0)

    # ---- three ResidualUnits: tap-folded k=7 convs from a padded scratch ---
    zeros_halo = jnp.zeros((c_out, _HALO_PAD), pad_ref.dtype)
    pad_ref[:, 0:_HALO_PAD] = zeros_halo
    pad_ref[:, _HALO_PAD + w:2 * _HALO_PAD + w] = zeros_halo

    for i, d in enumerate(_DILATIONS):
        res = y
        h = _snake(y, aa_ref[i], raa_ref[i])
        pad_ref[:, _HALO_PAD:_HALO_PAD + w] = h.astype(pad_ref.dtype)
        taps = [pad_ref[:, _HALO_PAD - 3 * d + t * d:
                        _HALO_PAD - 3 * d + t * d + w] for t in range(7)]
        s_op = jnp.concatenate(taps, axis=0)                       # (7*Cout, W) bf16
        h = jnp.dot(w7_ref[i], s_op, preferred_element_type=f32) + b7_ref[i]
        h = _snake(h, ab_ref[i], rab_ref[i])
        h = jnp.dot(w1_ref[i], h.astype(bf16),
                    preferred_element_type=f32) + b1_ref[i]
        # ResidualUnit crop is a no-op (same-length convs); re-mask so the next
        # conv sees exact zeros outside the true sequence.
        y = jnp.where(in_seq, res + h, 0.0)

    o_ref[...] = y[:, halo_u:halo_u + t_out].astype(o_ref.dtype)


# ---------------------------- parameter folding ------------------------------

def prepare_kernel_params(p, stride):
    """Fold / transpose / bf16-cast PyTorch-layout weights for the kernel."""
    c_in, c_out, _k = p["wt_pt"].shape
    pad_t = stride // 2 + stride % 2

    # Transposed conv, polyphase tap-folded weight: (stride*Cout, 3*Cin);
    # column block (j+1) multiplies x[:, q + j], j in {-1, 0, +1}.
    wt_fold = jnp.zeros((stride * c_out, 3 * c_in), jnp.float32)
    for ph in range(stride):
        t_a = (ph + pad_t) % stride
        j_a = (ph + pad_t) // stride
        for t, j in ((t_a, j_a), (t_a + stride, j_a - 1)):
            blk = jnp.transpose(p["wt_pt"][:, :, t])               # (Cout, Cin)
            wt_fold = wt_fold.at[ph * c_out:(ph + 1) * c_out,
                                 (j + 1) * c_in:(j + 2) * c_in].set(blk)

    # Residual k=7 convs, tap-folded: (3, Cout, 7*Cout), contraction = t*Cout + c.
    tmp = jnp.transpose(p["ra_w7_pt"], (0, 3, 2, 1)).reshape(3, 7 * c_out, c_out)
    w7_fold = jnp.transpose(tmp, (0, 2, 1))
    w1_mat = p["ra_w1_pt"][..., 0]                                 # (3, Cout, Cout)

    eps = 1e-9
    return {
        "alpha0": p["alpha0"], "ralpha0": 1.0 / (p["alpha0"] + eps),
        "wt_fold": wt_fold.astype(jnp.bfloat16), "bt": p["bt"],
        "aa": p["ra_aa"], "raa": 1.0 / (p["ra_aa"] + eps),
        "w7": w7_fold.astype(jnp.bfloat16), "b7": p["ra_b7"],
        "ab": p["ra_ab"], "rab": 1.0 / (p["ra_ab"] + eps),
        "w1": w1_mat.astype(jnp.bfloat16), "b1": p["ra_b1"],
    }


def _const_spec(arr, single_buffer):
    nd = arr.ndim
    idx = lambda b, t, _nd=nd: (0,) * _nd
    if single_buffer:
        return pl.BlockSpec(arr.shape, idx, pipeline_mode=pl.Buffered(1))
    return pl.BlockSpec(arr.shape, idx)


# --------------------------------- wrapper -----------------------------------

def decoder_block_pallas(x, params, *, stride):
    b, c_in, l = x.shape
    kp = prepare_kernel_params(params, stride)
    c_out = kp["bt"].shape[0]
    l_out = l * stride

    # ---- L tiling: output tile is a multiple of 128 lanes and of the stride
    lane_lcm = 128 * stride // math.gcd(128, stride)
    per_tile = max(1, min(_cdiv(l_out, lane_lcm), max(1, 1024 // lane_lcm)))
    t_out = lane_lcm * per_tile
    n_tiles = _cdiv(l_out, t_out)
    l_out_pad = n_tiles * t_out
    t_in = t_out // stride

    halo_u = _cdiv(_RES_HALO, stride) * stride      # residual halo, stride-aligned
    halo_q = halo_u // stride
    w = t_out + 2 * halo_u
    nq = t_in + 2 * halo_q
    win = nq + 2                                    # x window (needs q-1 .. q+1)

    # ---- zero-padded, per-tile halo'd input windows (materialized in HBM) ---
    pad_left = halo_q + 1
    pad_right = (l_out_pad // stride) - l + halo_q + 1
    xpad = jnp.pad(x.astype(jnp.float32), ((0, 0), (0, 0), (pad_left, pad_right)))
    x_win = jnp.stack(
        [xpad[:, :, t * t_in:t * t_in + win] for t in range(n_tiles)], axis=1)

    # ---- 0/1 phase-spread ("interleave") matrix -----------------------------
    if stride > 1:
        rrep = (jnp.arange(w)[None, :] // stride ==
                jnp.arange(nq)[:, None]).astype(jnp.float32)
    else:
        rrep = jnp.zeros((8, 128), jnp.float32)     # unused when stride == 1

    consts = [kp["alpha0"], kp["ralpha0"], kp["wt_fold"], kp["bt"], rrep,
              kp["aa"], kp["raa"], kp["w7"], kp["b7"],
              kp["ab"], kp["rab"], kp["w1"], kp["b1"]]

    kernel = functools.partial(
        _decoder_block_kernel, stride=stride, t_out=t_out, halo_u=halo_u,
        nq=nq, l_out_true=l_out)

    # rough per-step VMEM working-set estimate (advisory)
    est = (2 * c_in * win * 4 + 2 * c_out * t_out * 4
           + 2 * sum(int(a.size) * a.dtype.itemsize for a in consts)
           + c_out * (w + 2 * _HALO_PAD) * 2
           + (3 * c_in * nq + 7 * c_out * w) * 2
           + (stride * c_out * (nq + w) + 8 * c_out * w) * 4)
    vmem_limit = int(min(max(2 * est + (8 << 20), 32 << 20), 64 << 20))

    def _build(single_buffer_consts):
        in_specs = ([pl.BlockSpec((None, None, c_in, win),
                                  lambda bb, tt: (bb, tt, 0, 0))] +
                    [_const_spec(a, single_buffer_consts) for a in consts])
        return pl.pallas_call(
            kernel,
            out_shape=jax.ShapeDtypeStruct((b, c_out, l_out_pad), jnp.float32),
            grid=(b, n_tiles),
            in_specs=in_specs,
            out_specs=pl.BlockSpec((None, c_out, t_out),
                                   lambda bb, tt: (bb, 0, tt)),
            scratch_shapes=[pltpu.VMEM((c_out, w + 2 * _HALO_PAD), jnp.bfloat16)],
            compiler_params=pltpu.CompilerParams(
                dimension_semantics=("parallel", "parallel"),
                vmem_limit_bytes=vmem_limit),
        )

    try:
        out = _build(True)(x_win, *consts)
        out = jax.block_until_ready(out)   # surface runtime errors before fallback
    except Exception:
        # pl.Buffered(1) not supported on this jax build -> default buffering.
        out = _build(False)(x_win, *consts)

    return out[:, :, :l_out]


# --------------------------- parameter construction --------------------------

def _wn(v, g):
    nrm = jnp.sqrt(jnp.sum(v * v, axis=(1, 2), keepdims=True))
    return g * v / nrm


def init_params(key, input_dim, output_dim, stride):
    k = 2 * stride
    keys = jax.random.split(key, 32)
    it = iter(keys)

    alpha0 = 1.0 + 0.1 * jax.random.normal(next(it), (input_dim, 1))

    vt = 0.1 * jax.random.normal(next(it), (input_dim, output_dim, k))
    gt = jax.random.uniform(next(it), (input_dim, 1, 1), minval=0.5, maxval=1.5)
    wt_pt = _wn(vt, gt)                                       # (Cin, Cout, K)
    bt = 0.1 * jax.random.normal(next(it), (output_dim, 1))

    aa, w7, b7, ab, w1, b1 = [], [], [], [], [], []
    for _d in _DILATIONS:
        aa.append(1.0 + 0.1 * jax.random.normal(next(it), (output_dim, 1)))
        v7 = 0.1 * jax.random.normal(next(it), (output_dim, output_dim, 7))
        g7 = jax.random.uniform(next(it), (output_dim, 1, 1), minval=0.5, maxval=1.5)
        w7.append(_wn(v7, g7))
        b7.append(0.1 * jax.random.normal(next(it), (output_dim, 1)))
        ab.append(1.0 + 0.1 * jax.random.normal(next(it), (output_dim, 1)))
        v1 = 0.1 * jax.random.normal(next(it), (output_dim, output_dim, 1))
        g1 = jax.random.uniform(next(it), (output_dim, 1, 1), minval=0.5, maxval=1.5)
        w1.append(_wn(v1, g1))
        b1.append(0.1 * jax.random.normal(next(it), (output_dim, 1)))

    return {
        "alpha0": alpha0, "wt_pt": wt_pt, "bt": bt,
        "ra_aa": jnp.stack(aa), "ra_w7_pt": jnp.stack(w7), "ra_b7": jnp.stack(b7),
        "ra_ab": jnp.stack(ab), "ra_w1_pt": jnp.stack(w1), "ra_b1": jnp.stack(b1),
    }


# ------------------------------ pure-JAX reference ---------------------------

def _snake_ref(x, alpha):
    return x + (1.0 / (alpha + 1e-9)) * jnp.sin(alpha * x) ** 2


def _conv1d_ref(x, w, bias, dilation, padding):
    y = lax.conv_general_dilated(
        x, w, window_strides=(1,), padding=[(padding, padding)],
        rhs_dilation=(dilation,), dimension_numbers=("NCH", "OIH", "NCH"))
    return y + bias[None]


def _convtranspose1d_ref(x, w, bias, stride, padding, output_padding):
    k = w.shape[2]
    w_flip = jnp.transpose(jnp.flip(w, axis=2), (1, 0, 2))    # (Cout, Cin, K)
    y = lax.conv_general_dilated(
        x, w_flip, window_strides=(1,),
        padding=[(k - 1 - padding, k - 1 - padding + output_padding)],
        lhs_dilation=(stride,), dimension_numbers=("NCH", "OIH", "NCH"))
    return y + bias[None]


def decoder_block_ref(x, p, stride):
    y = _snake_ref(x, p["alpha0"][None])
    y = _convtranspose1d_ref(y, p["wt_pt"], p["bt"], stride,
                             stride // 2 + stride % 2, stride % 2)
    for i, d in enumerate(_DILATIONS):
        res = y
        h = _snake_ref(y, p["ra_aa"][i][None])
        h = _conv1d_ref(h, p["ra_w7_pt"][i], p["ra_b7"][i], d, 3 * d)
        h = _snake_ref(h, p["ra_ab"][i][None])
        h = _conv1d_ref(h, p["ra_w1_pt"][i], p["ra_b1"][i], 1, 0)
        y = res + h   # ResidualUnit crop is a no-op (same-length convs)
    return y


# ----------------------------------- main ------------------------------------

if __name__ == "__main__":
    key = jax.random.PRNGKey(0)
    kx, kparam = jax.random.split(key)
    batch, input_dim, output_dim, length, stride = 2, 16, 8, 16, 2

    x = jax.random.normal(kx, (batch, input_dim, length), jnp.float32)
    params = init_params(kparam, input_dim, output_dim, stride)

    out = decoder_block_pallas(x, params, stride=stride)
    out = jax.block_until_ready(out)

    ref = decoder_block_ref(x, params, stride)
    assert out.shape == (batch, output_dim, length * stride), out.shape
    # bf16 matmul operands (f32 accumulation) -> loosened tolerance.
    np.testing.assert_allclose(np.asarray(out), np.asarray(ref),
                               rtol=5e-2, atol=5e-2)
    print("KERNEL_OK")
</pallas_src>

<mosaic_0001>
module attributes {stable_mosaic.version = 11 : i64} {
  func.func @_decoder_block_kernel(%arg0: i32, %arg1: i32, %arg2: memref<1x1x16x106xf32, #tpu.memory_space<vmem>>, %arg3: memref<16x1xf32, #tpu.memory_space<vmem>>, %arg4: memref<16x1xf32, #tpu.memory_space<vmem>>, %arg5: memref<16x48xbf16, #tpu.memory_space<vmem>>, %arg6: memref<8x1xf32, #tpu.memory_space<vmem>>, %arg7: memref<104x208xf32, #tpu.memory_space<vmem>>, %arg8: memref<3x8x1xf32, #tpu.memory_space<vmem>>, %arg9: memref<3x8x1xf32, #tpu.memory_space<vmem>>, %arg10: memref<3x8x56xbf16, #tpu.memory_space<vmem>>, %arg11: memref<3x8x1xf32, #tpu.memory_space<vmem>>, %arg12: memref<3x8x1xf32, #tpu.memory_space<vmem>>, %arg13: memref<3x8x1xf32, #tpu.memory_space<vmem>>, %arg14: memref<3x8x8xbf16, #tpu.memory_space<vmem>>, %arg15: memref<3x8x1xf32, #tpu.memory_space<vmem>>, %arg16: memref<1x8x128xf32, #tpu.memory_space<vmem>>, %arg17: memref<8x262xbf16, #tpu.memory_space<vmem>>) attributes {dimension_semantics = [#tpu.dimension_semantics<parallel>, #tpu.dimension_semantics<parallel>], iteration_bounds = array<i64: 2, 1>, scalar_prefetch = 0 : i64, scratch_operands = 1 : i64, tpu.core_type = #tpu.core_type<tc>, window_params = [{transform_indices = @transform_0, window_bounds = array<i64: 1, 1, 16, 106>}, {pipeline_mode = #tpu.pipeline_mode<synchronous>, transform_indices = @transform_1, window_bounds = array<i64: 16, 1>}, {pipeline_mode = #tpu.pipeline_mode<synchronous>, transform_indices = @transform_2, window_bounds = array<i64: 16, 1>}, {pipeline_mode = #tpu.pipeline_mode<synchronous>, transform_indices = @transform_3, window_bounds = array<i64: 16, 48>}, {pipeline_mode = #tpu.pipeline_mode<synchronous>, transform_indices = @transform_4, window_bounds = array<i64: 8, 1>}, {pipeline_mode = #tpu.pipeline_mode<synchronous>, transform_indices = @transform_5, window_bounds = array<i64: 104, 208>}, {pipeline_mode = #tpu.pipeline_mode<synchronous>, transform_indices = @transform_6, window_bounds = array<i64: 3, 8, 1>}, {pipeline_mode = #tpu.pipeline_mode<synchronous>, transform_indices = @transform_7, window_bounds = array<i64: 3, 8, 1>}, {pipeline_mode = #tpu.pipeline_mode<synchronous>, transform_indices = @transform_8, window_bounds = array<i64: 3, 8, 56>}, {pipeline_mode = #tpu.pipeline_mode<synchronous>, transform_indices = @transform_9, window_bounds = array<i64: 3, 8, 1>}, {pipeline_mode = #tpu.pipeline_mode<synchronous>, transform_indices = @transform_10, window_bounds = array<i64: 3, 8, 1>}, {pipeline_mode = #tpu.pipeline_mode<synchronous>, transform_indices = @transform_11, window_bounds = array<i64: 3, 8, 1>}, {pipeline_mode = #tpu.pipeline_mode<synchronous>, transform_indices = @transform_12, window_bounds = array<i64: 3, 8, 8>}, {pipeline_mode = #tpu.pipeline_mode<synchronous>, transform_indices = @transform_13, window_bounds = array<i64: 3, 8, 1>}, {transform_indices = @transform_14, window_bounds = array<i64: 1, 8, 128>}]} {
    %0 = tpu.iota {dimensions = array<i32: 1>} : vector<1x208xi32>
    %c0 = arith.constant 0 : index
    %c0_0 = arith.constant 0 : index
    %c0_1 = arith.constant 0 : index
    %c0_2 = arith.constant 0 : index
    %1 = vector.load %arg2[%c0, %c0_0, %c0_1, %c0_2] : memref<1x1x16x106xf32, #tpu.memory_space<vmem>>, vector<1x1x16x106xf32>
    %2 = vector.shape_cast %1 : vector<1x1x16x106xf32> to vector<16x106xf32>
    %c0_3 = arith.constant 0 : index
    %c0_4 = arith.constant 0 : index
    %3 = vector.load %arg3[%c0_3, %c0_4] : memref<16x1xf32, #tpu.memory_space<vmem>>, vector<16x1xf32>
    %c0_5 = arith.constant 0 : index
    %c0_6 = arith.constant 0 : index
    %4 = vector.load %arg4[%c0_5, %c0_6] : memref<16x1xf32, #tpu.memory_space<vmem>>, vector<16x1xf32>
    %5 = vector.broadcast %3 : vector<16x1xf32> to vector<16x106xf32>
    %6 = arith.mulf %5, %2 : vector<16x106xf32>
    %7 = math.sin %6 : vector<16x106xf32>
    %8 = arith.mulf %7, %7 : vector<16x106xf32>
    %9 = vector.broadcast %4 : vector<16x1xf32> to vector<16x106xf32>
    %10 = arith.mulf %9, %8 : vector<16x106xf32>
    %11 = arith.addf %2, %10 : vector<16x106xf32>
    %12 = arith.truncf %11 : vector<16x106xf32> to vector<16x106xbf16>
    %13 = vector.extract_strided_slice %12 {offsets = [0, 0], sizes = [16, 104], strides = [1, 1]} : vector<16x106xbf16> to vector<16x104xbf16>
    %14 = vector.extract_strided_slice %12 {offsets = [0, 1], sizes = [16, 104], strides = [1, 1]} : vector<16x106xbf16> to vector<16x104xbf16>
    %15 = vector.extract_strided_slice %12 {offsets = [0, 2], sizes = [16, 104], strides = [1, 1]} : vector<16x106xbf16> to vector<16x104xbf16>
    %16 = tpu.concatenate %13, %14, %15 in 0 : vector<16x104xbf16>, vector<16x104xbf16>, vector<16x104xbf16> -> vector<48x104xbf16>
    %c0_7 = arith.constant 0 : index
    %c0_8 = arith.constant 0 : index
    %17 = vector.load %arg5[%c0_7, %c0_8] : memref<16x48xbf16, #tpu.memory_space<vmem>>, vector<16x48xbf16>
    %cst = arith.constant dense<0.000000e+00> : vector<16x104xf32>
    %18 = tpu.matmul %17, %16, %cst {dimension_numbers = #tpu.dot_dimension_numbers<[1], [0], [0], [1], [0, 0, 1, 1], [], []>} : vector<16x48xbf16>, vector<48x104xbf16>, vector<16x104xf32> -> vector<16x104xf32>
    %c0_9 = arith.constant 0 : index
    %c0_10 = arith.constant 0 : index
    %19 = vector.load %arg7[%c0_9, %c0_10] : memref<104x208xf32, #tpu.memory_space<vmem>>, vector<104x208xf32>
    %cst_11 = arith.constant dense<0.000000e+00> : vector<16x208xf32>
    %20 = tpu.matmul %18, %19, %cst_11 {dimension_numbers = #tpu.dot_dimension_numbers<[1], [0], [0], [1], [0, 0, 1, 1], [], []>} : vector<16x104xf32>, vector<104x208xf32>, vector<16x208xf32> -> vector<16x208xf32>
    %c2_i32 = arith.constant 2 : i32
    %c0_i32 = arith.constant 0 : i32
    %21 = arith.cmpi eq, %c2_i32, %c0_i32 : i32
    %c1_i32 = arith.constant 1 : i32
    %22 = arith.select %21, %c1_i32, %c2_i32 : i32
    %23 = vector.broadcast %22 : i32 to vector<1x208xi32>
    %24 = arith.remsi %0, %23 : vector<1x208xi32>
    %c0_i32_12 = arith.constant 0 : i32
    %25 = vector.broadcast %c0_i32_12 : i32 to vector<1x208xi32>
    %26 = arith.cmpi ne, %24, %25 : vector<1x208xi32>
    %c0_i32_13 = arith.constant 0 : i32
    %27 = vector.broadcast %c0_i32_13 : i32 to vector<1x208xi32>
    %28 = arith.cmpi slt, %24, %27 : vector<1x208xi32>
    %c0_i32_14 = arith.constant 0 : i32
    %29 = arith.cmpi slt, %22, %c0_i32_14 : i32
    %30 = vector.broadcast %29 : i1 to vector<1x208xi1>
    %31 = vector.broadcast %30 : vector<1x208xi1> to vector<1x208xi1>
    %32 = arith.xori %28, %31 : vector<1x208xi1>
    %33 = arith.andi %32, %26 : vector<1x208xi1>
    %34 = vector.broadcast %22 : i32 to vector<1x208xi32>
    %35 = arith.addi %24, %34 : vector<1x208xi32>
    %36 = arith.select %33, %35, %24 : vector<1x208xi1>, vector<1x208xi32>
    %cst_15 = arith.constant 0.000000e+00 : f32
    %37 = vector.broadcast %cst_15 : f32 to vector<8x208xf32>
    %c0_i32_16 = arith.constant 0 : i32
    %38 = vector.broadcast %c0_i32_16 : i32 to vector<1x208xi32>
    %39 = arith.cmpi eq, %36, %38 : vector<1x208xi32>
    %40 = vector.extract_strided_slice %20 {offsets = [0, 0], sizes = [8, 208], strides = [1, 1]} : vector<16x208xf32> to vector<8x208xf32>
    %cst_17 = arith.constant 0.000000e+00 : f32
    %41 = vector.shape_cast %39 : vector<1x208xi1> to vector<1x208xi1>
    %42 = vector.broadcast %41 : vector<1x208xi1> to vector<8x208xi1>
    %43 = vector.broadcast %cst_17 : f32 to vector<8x208xf32>
    %44 = arith.select %42, %40, %43 : vector<8x208xi1>, vector<8x208xf32>
    %45 = arith.addf %37, %44 : vector<8x208xf32>
    %c1_i32_18 = arith.constant 1 : i32
    %46 = vector.broadcast %c1_i32_18 : i32 to vector<1x208xi32>
    %47 = arith.cmpi eq, %36, %46 : vector<1x208xi32>
    %48 = vector.extract_strided_slice %20 {offsets = [8, 0], sizes = [8, 208], strides = [1, 1]} : vector<16x208xf32> to vector<8x208xf32>
    %cst_19 = arith.constant 0.000000e+00 : f32
    %49 = vector.shape_cast %47 : vector<1x208xi1> to vector<1x208xi1>
    %50 = vector.broadcast %49 : vector<1x208xi1> to vector<8x208xi1>
    %51 = vector.broadcast %cst_19 : f32 to vector<8x208xf32>
    %52 = arith.select %50, %48, %51 : vector<8x208xi1>, vector<8x208xf32>
    %53 = arith.addf %45, %52 : vector<8x208xf32>
    %c0_20 = arith.constant 0 : index
    %c0_21 = arith.constant 0 : index
    %54 = vector.load %arg6[%c0_20, %c0_21] : memref<8x1xf32, #tpu.memory_space<vmem>>, vector<8x1xf32>
    %55 = vector.broadcast %54 : vector<8x1xf32> to vector<8x208xf32>
    %56 = arith.addf %53, %55 : vector<8x208xf32>
    %c128_i32 = arith.constant 128 : i32
    %57 = arith.muli %arg1, %c128_i32 : i32
    %c40_i32 = arith.constant 40 : i32
    %58 = arith.subi %57, %c40_i32 : i32
    %59 = vector.broadcast %58 : i32 to vector<1x208xi32>
    %60 = arith.addi %0, %59 : vector<1x208xi32>
    %c0_i32_22 = arith.constant 0 : i32
    %61 = vector.broadcast %c0_i32_22 : i32 to vector<1x208xi32>
    %62 = arith.cmpi sge, %60, %61 : vector<1x208xi32>
    %c32_i32 = arith.constant 32 : i32
    %63 = vector.broadcast %c32_i32 : i32 to vector<1x208xi32>
    %64 = arith.cmpi slt, %60, %63 : vector<1x208xi32>
    %65 = arith.andi %62, %64 : vector<1x208xi1>
    %cst_23 = arith.constant 0.000000e+00 : f32
    %66 = vector.shape_cast %65 : vector<1x208xi1> to vector<1x208xi1>
    %67 = vector.broadcast %66 : vector<1x208xi1> to vector<8x208xi1>
    %68 = vector.broadcast %cst_23 : f32 to vector<8x208xf32>
    %69 = arith.select %67, %56, %68 : vector<8x208xi1>, vector<8x208xf32>
    %cst_24 = arith.constant 0.000000e+00 : bf16
    %70 = vector.broadcast %cst_24 : bf16 to vector<8x27xbf16>
    %c0_25 = arith.constant 0 : index
    %c0_26 = arith.constant 0 : index
    %71 = vector.load %arg17[%c0_25, %c0_26] : memref<8x262xbf16, #tpu.memory_space<vmem>>, vector<8x27xbf16>
    tpu.vector_store %arg17[%c0_25, %c0_26], %70 {strides = array<i32>} : memref<8x262xbf16, #tpu.memory_space<vmem>>, vector<8x27xbf16>,
    %c0_27 = arith.constant 0 : index
    %c235 = arith.constant 235 : index
    %72 = vector.load %arg17[%c0_27, %c235] : memref<8x262xbf16, #tpu.memory_space<vmem>>, vector<8x27xbf16>
    tpu.vector_store %arg17[%c0_27, %c235], %70 {strides = array<i32>} : memref<8x262xbf16, #tpu.memory_space<vmem>>, vector<8x27xbf16>,
    %c0_28 = arith.constant 0 : index
    %c0_29 = arith.constant 0 : index
    %c0_30 = arith.constant 0 : index
    %73 = vector.load %arg8[%c0_28, %c0_29, %c0_30] : memref<3x8x1xf32, #tpu.memory_space<vmem>>, vector<1x8x1xf32>
    %74 = vector.shape_cast %73 : vector<1x8x1xf32> to vector<8x1xf32>
    %c0_31 = arith.constant 0 : index
    %c0_32 = arith.constant 0 : index
    %c0_33 = arith.constant 0 : index
    %75 = vector.load %arg9[%c0_31, %c0_32, %c0_33] : memref<3x8x1xf32, #tpu.memory_space<vmem>>, vector<1x8x1xf32>
    %76 = vector.shape_cast %75 : vector<1x8x1xf32> to vector<8x1xf32>
    %77 = vector.broadcast %74 : vector<8x1xf32> to vector<8x208xf32>
    %78 = arith.mulf %77, %69 : vector<8x208xf32>
    %79 = math.sin %78 : vector<8x208xf32>
    %80 = arith.mulf %79, %79 : vector<8x208xf32>
    %81 = vector.broadcast %76 : vector<8x1xf32> to vector<8x208xf32>
    %82 = arith.mulf %81, %80 : vector<8x208xf32>
    %83 = arith.addf %69, %82 : vector<8x208xf32>
    %84 = arith.truncf %83 : vector<8x208xf32> to vector<8x208xbf16>
    %c0_34 = arith.constant 0 : index
    %c27 = arith.constant 27 : index
    %85 = vector.load %arg17[%c0_34, %c27] : memref<8x262xbf16, #tpu.memory_space<vmem>>, vector<8x208xbf16>
    tpu.vector_store %arg17[%c0_34, %c27], %84 {strides = array<i32>} : memref<8x262xbf16, #tpu.memory_space<vmem>>, vector<8x208xbf16>,
    %c0_35 = arith.constant 0 : index
    %c24 = arith.constant 24 : index
    %86 = vector.load %arg17[%c0_35, %c24] : memref<8x262xbf16, #tpu.memory_space<vmem>>, vector<8x208xbf16>
    %c0_36 = arith.constant 0 : index
    %c25 = arith.constant 25 : index
    %87 = vector.load %arg17[%c0_36, %c25] : memref<8x262xbf16, #tpu.memory_space<vmem>>, vector<8x208xbf16>
    %c0_37 = arith.constant 0 : index
    %c26 = arith.constant 26 : index
    %88 = vector.load %arg17[%c0_37, %c26] : memref<8x262xbf16, #tpu.memory_space<vmem>>, vector<8x208xbf16>
    %c0_38 = arith.constant 0 : index
    %c27_39 = arith.constant 27 : index
    %89 = vector.load %arg17[%c0_38, %c27_39] : memref<8x262xbf16, #tpu.memory_space<vmem>>, vector<8x208xbf16>
    %c0_40 = arith.constant 0 : index
    %c28 = arith.constant 28 : index
    %90 = vector.load %arg17[%c0_40, %c28] : memref<8x262xbf16, #tpu.memory_space<vmem>>, vector<8x208xbf16>
    %c0_41 = arith.constant 0 : index
    %c29 = arith.constant 29 : index
    %91 = vector.load %arg17[%c0_41, %c29] : memref<8x262xbf16, #tpu.memory_space<vmem>>, vector<8x208xbf16>
    %c0_42 = arith.constant 0 : index
    %c30 = arith.constant 30 : index
    %92 = vector.load %arg17[%c0_42, %c30] : memref<8x262xbf16, #tpu.memory_space<vmem>>, vector<8x208xbf16>
    %93 = tpu.concatenate %86, %87, %88, %89, %90, %91, %92 in 0 : vector<8x208xbf16>, vector<8x208xbf16>, vector<8x208xbf16>, vector<8x208xbf16>, vector<8x208xbf16>, vector<8x208xbf16>, vector<8x208xbf16> -> vector<56x208xbf16>
    %c0_43 = arith.constant 0 : index
    %c0_44 = arith.constant 0 : index
    %c0_45 = arith.constant 0 : index
    %94 = vector.load %arg10[%c0_43, %c0_44, %c0_45] : memref<3x8x56xbf16, #tpu.memory_space<vmem>>, vector<1x8x56xbf16>
    %95 = vector.shape_cast %94 : vector<1x8x56xbf16> to vector<8x56xbf16>
    %cst_46 = arith.constant dense<0.000000e+00> : vector<8x208xf32>
    %96 = tpu.matmul %95, %93, %cst_46 {dimension_numbers = #tpu.dot_dimension_numbers<[1], [0], [0], [1], [0, 0, 1, 1], [], []>} : vector<8x56xbf16>, vector<56x208xbf16>, vector<8x208xf32> -> vector<8x208xf32>
    %c0_47 = arith.constant 0 : index
    %c0_48 = arith.constant 0 : index
    %c0_49 = arith.constant 0 : index
    %97 = vector.load %arg11[%c0_47, %c0_48, %c0_49] : memref<3x8x1xf32, #tpu.memory_space<vmem>>, vector<1x8x1xf32>
    %98 = vector.shape_cast %97 : vector<1x8x1xf32> to vector<8x1xf32>
    %99 = vector.broadcast %98 : vector<8x1xf32> to vector<8x208xf32>
    %100 = arith.addf %96, %99 : vector<8x208xf32>
    %c0_50 = arith.constant 0 : index
    %c0_51 = arith.constant 0 : index
    %c0_52 = arith.constant 0 : index
    %101 = vector.load %arg12[%c0_50, %c0_51, %c0_52] : memref<3x8x1xf32, #tpu.memory_space<vmem>>, vector<1x8x1xf32>
    %102 = vector.shape_cast %101 : vector<1x8x1xf32> to vector<8x1xf32>
    %c0_53 = arith.constant 0 : index
    %c0_54 = arith.constant 0 : index
    %c0_55 = arith.constant 0 : index
    %103 = vector.load %arg13[%c0_53, %c0_54, %c0_55] : memref<3x8x1xf32, #tpu.memory_space<vmem>>, vector<1x8x1xf32>
    %104 = vector.shape_cast %103 : vector<1x8x1xf32> to vector<8x1xf32>
    %105 = vector.broadcast %102 : vector<8x1xf32> to vector<8x208xf32>
    %106 = arith.mulf %105, %100 : vector<8x208xf32>
    %107 = math.sin %106 : vector<8x208xf32>
    %108 = arith.mulf %107, %107 : vector<8x208xf32>
    %109 = vector.broadcast %104 : vector<8x1xf32> to vector<8x208xf32>
    %110 = arith.mulf %109, %108 : vector<8x208xf32>
    %111 = arith.addf %100, %110 : vector<8x208xf32>
    %c0_56 = arith.constant 0 : index
    %c0_57 = arith.constant 0 : index
    %c0_58 = arith.constant 0 : index
    %112 = vector.load %arg14[%c0_56, %c0_57, %c0_58] : memref<3x8x8xbf16, #tpu.memory_space<vmem>>, vector<1x8x8xbf16>
    %113 = vector.shape_cast %112 : vector<1x8x8xbf16> to vector<8x8xbf16>
    %114 = arith.truncf %111 : vector<8x208xf32> to vector<8x208xbf16>
    %cst_59 = arith.constant dense<0.000000e+00> : vector<8x208xf32>
    %115 = tpu.matmul %113, %114, %cst_59 {dimension_numbers = #tpu.dot_dimension_numbers<[1], [0], [0], [1], [0, 0, 1, 1], [], []>} : vector<8x8xbf16>, vector<8x208xbf16>, vector<8x208xf32> -> vector<8x208xf32>
    %c0_60 = arith.constant 0 : index
    %c0_61 = arith.constant 0 : index
    %c0_62 = arith.constant 0 : index
    %116 = vector.load %arg15[%c0_60, %c0_61, %c0_62] : memref<3x8x1xf32, #tpu.memory_space<vmem>>, vector<1x8x1xf32>
    %117 = vector.shape_cast %116 : vector<1x8x1xf32> to vector<8x1xf32>
    %118 = vector.broadcast %117 : vector<8x1xf32> to vector<8x208xf32>
    %119 = arith.addf %115, %118 : vector<8x208xf32>
    %120 = arith.addf %69, %119 : vector<8x208xf32>
    %cst_63 = arith.constant 0.000000e+00 : f32
    %121 = vector.shape_cast %65 : vector<1x208xi1> to vector<1x208xi1>
    %122 = vector.broadcast %121 : vector<1x208xi1> to vector<8x208xi1>
    %123 = vector.broadcast %cst_63 : f32 to vector<8x208xf32>
    %124 = arith.select %122, %120, %123 : vector<8x208xi1>, vector<8x208xf32>
    %c1 = arith.constant 1 : index
    %c0_64 = arith.constant 0 : index
    %c0_65 = arith.constant 0 : index
    %125 = vector.load %arg8[%c1, %c0_64, %c0_65] : memref<3x8x1xf32, #tpu.memory_space<vmem>>, vector<1x8x1xf32>
    %126 = vector.shape_cast %125 : vector<1x8x1xf32> to vector<8x1xf32>
    %c1_66 = arith.constant 1 : index
    %c0_67 = arith.constant 0 : index
    %c0_68 = arith.constant 0 : index
    %127 = vector.load %arg9[%c1_66, %c0_67, %c0_68] : memref<3x8x1xf32, #tpu.memory_space<vmem>>, vector<1x8x1xf32>
    %128 = vector.shape_cast %127 : vector<1x8x1xf32> to vector<8x1xf32>
    %129 = vector.broadcast %126 : vector<8x1xf32> to vector<8x208xf32>
    %130 = arith.mulf %129, %124 : vector<8x208xf32>
    %131 = math.sin %130 : vector<8x208xf32>
    %132 = arith.mulf %131, %131 : vector<8x208xf32>
    %133 = vector.broadcast %128 : vector<8x1xf32> to vector<8x208xf32>
    %134 = arith.mulf %133, %132 : vector<8x208xf32>
    %135 = arith.addf %124, %134 : vector<8x208xf32>
    %136 = arith.truncf %135 : vector<8x208xf32> to vector<8x208xbf16>
    %c0_69 = arith.constant 0 : index
    %c27_70 = arith.constant 27 : index
    %137 = vector.load %arg17[%c0_69, %c27_70] : memref<8x262xbf16, #tpu.memory_space<vmem>>, vector<8x208xbf16>
    tpu.vector_store %arg17[%c0_69, %c27_70], %136 {strides = array<i32>} : memref<8x262xbf16, #tpu.memory_space<vmem>>, vector<8x208xbf16>,
    %c0_71 = arith.constant 0 : index
    %c18 = arith.constant 18 : index
    %138 = vector.load %arg17[%c0_71, %c18] : memref<8x262xbf16, #tpu.memory_space<vmem>>, vector<8x208xbf16>
    %c0_72 = arith.constant 0 : index
    %c21 = arith.constant 21 : index
    %139 = vector.load %arg17[%c0_72, %c21] : memref<8x262xbf16, #tpu.memory_space<vmem>>, vector<8x208xbf16>
    %c0_73 = arith.constant 0 : index
    %c24_74 = arith.constant 24 : index
    %140 = vector.load %arg17[%c0_73, %c24_74] : memref<8x262xbf16, #tpu.memory_space<vmem>>, vector<8x208xbf16>
    %c0_75 = arith.constant 0 : index
    %c27_76 = arith.constant 27 : index
    %141 = vector.load %arg17[%c0_75, %c27_76] : memref<8x262xbf16, #tpu.memory_space<vmem>>, vector<8x208xbf16>
    %c0_77 = arith.constant 0 : index
    %c30_78 = arith.constant 30 : index
    %142 = vector.load %arg17[%c0_77, %c30_78] : memref<8x262xbf16, #tpu.memory_space<vmem>>, vector<8x208xbf16>
    %c0_79 = arith.constant 0 : index
    %c33 = arith.constant 33 : index
    %143 = vector.load %arg17[%c0_79, %c33] : memref<8x262xbf16, #tpu.memory_space<vmem>>, vector<8x208xbf16>
    %c0_80 = arith.constant 0 : index
    %c36 = arith.constant 36 : index
    %144 = vector.load %arg17[%c0_80, %c36] : memref<8x262xbf16, #tpu.memory_space<vmem>>, vector<8x208xbf16>
    %145 = tpu.concatenate %138, %139, %140, %141, %142, %143, %144 in 0 : vector<8x208xbf16>, vector<8x208xbf16>, vector<8x208xbf16>, vector<8x208xbf16>, vector<8x208xbf16>, vector<8x208xbf16>, vector<8x208xbf16> -> vector<56x208xbf16>
    %c1_81 = arith.constant 1 : index
    %c0_82 = arith.constant 0 : index
    %c0_83 = arith.constant 0 : index
    %146 = vector.load %arg10[%c1_81, %c0_82, %c0_83] : memref<3x8x56xbf16, #tpu.memory_space<vmem>>, vector<1x8x56xbf16>
    %147 = vector.shape_cast %146 : vector<1x8x56xbf16> to vector<8x56xbf16>
    %cst_84 = arith.constant dense<0.000000e+00> : vector<8x208xf32>
    %148 = tpu.matmul %147, %145, %cst_84 {dimension_numbers = #tpu.dot_dimension_numbers<[1], [0], [0], [1], [0, 0, 1, 1], [], []>} : vector<8x56xbf16>, vector<56x208xbf16>, vector<8x208xf32> -> vector<8x208xf32>
    %c1_85 = arith.constant 1 : index
    %c0_86 = arith.constant 0 : index
    %c0_87 = arith.constant 0 : index
    %149 = vector.load %arg11[%c1_85, %c0_86, %c0_87] : memref<3x8x1xf32, #tpu.memory_space<vmem>>, vector<1x8x1xf32>
    %150 = vector.shape_cast %149 : vector<1x8x1xf32> to vector<8x1xf32>
    %151 = vector.broadcast %150 : vector<8x1xf32> to vector<8x208xf32>
    %152 = arith.addf %148, %151 : vector<8x208xf32>
    %c1_88 = arith.constant 1 : index
    %c0_89 = arith.constant 0 : index
    %c0_90 = arith.constant 0 : index
    %153 = vector.load %arg12[%c1_88, %c0_89, %c0_90] : memref<3x8x1xf32, #tpu.memory_space<vmem>>, vector<1x8x1xf32>
    %154 = vector.shape_cast %153 : vector<1x8x1xf32> to vector<8x1xf32>
    %c1_91 = arith.constant 1 : index
    %c0_92 = arith.constant 0 : index
    %c0_93 = arith.constant 0 : index
    %155 = vector.load %arg13[%c1_91, %c0_92, %c0_93] : memref<3x8x1xf32, #tpu.memory_space<vmem>>, vector<1x8x1xf32>
    %156 = vector.shape_cast %155 : vector<1x8x1xf32> to vector<8x1xf32>
    %157 = vector.broadcast %154 : vector<8x1xf32> to vector<8x208xf32>
    %158 = arith.mulf %157, %152 : vector<8x208xf32>
    %159 = math.sin %158 : vector<8x208xf32>
    %160 = arith.mulf %159, %159 : vector<8x208xf32>
    %161 = vector.broadcast %156 : vector<8x1xf32> to vector<8x208xf32>
    %162 = arith.mulf %161, %160 : vector<8x208xf32>
    %163 = arith.addf %152, %162 : vector<8x208xf32>
    %c1_94 = arith.constant 1 : index
    %c0_95 = arith.constant 0 : index
    %c0_96 = arith.constant 0 : index
    %164 = vector.load %arg14[%c1_94, %c0_95, %c0_96] : memref<3x8x8xbf16, #tpu.memory_space<vmem>>, vector<1x8x8xbf16>
    %165 = vector.shape_cast %164 : vector<1x8x8xbf16> to vector<8x8xbf16>
    %166 = arith.truncf %163 : vector<8x208xf32> to vector<8x208xbf16>
    %cst_97 = arith.constant dense<0.000000e+00> : vector<8x208xf32>
    %167 = tpu.matmul %165, %166, %cst_97 {dimension_numbers = #tpu.dot_dimension_numbers<[1], [0], [0], [1], [0, 0, 1, 1], [], []>} : vector<8x8xbf16>, vector<8x208xbf16>, vector<8x208xf32> -> vector<8x208xf32>
    %c1_98 = arith.constant 1 : index
    %c0_99 = arith.constant 0 : index
    %c0_100 = arith.constant 0 : index
    %168 = vector.load %arg15[%c1_98, %c0_99, %c0_100] : memref<3x8x1xf32, #tpu.memory_space<vmem>>, vector<1x8x1xf32>
    %169 = vector.shape_cast %168 : vector<1x8x1xf32> to vector<8x1xf32>
    %170 = vector.broadcast %169 : vector<8x1xf32> to vector<8x208xf32>
    %171 = arith.addf %167, %170 : vector<8x208xf32>
    %172 = arith.addf %124, %171 : vector<8x208xf32>
    %cst_101 = arith.constant 0.000000e+00 : f32
    %173 = vector.shape_cast %65 : vector<1x208xi1> to vector<1x208xi1>
    %174 = vector.broadcast %173 : vector<1x208xi1> to vector<8x208xi1>
    %175 = vector.broadcast %cst_101 : f32 to vector<8x208xf32>
    %176 = arith.select %174, %172, %175 : vector<8x208xi1>, vector<8x208xf32>
    %c2 = arith.constant 2 : index
    %c0_102 = arith.constant 0 : index
    %c0_103 = arith.constant 0 : index
    %177 = vector.load %arg8[%c2, %c0_102, %c0_103] : memref<3x8x1xf32, #tpu.memory_space<vmem>>, vector<1x8x1xf32>
    %178 = vector.shape_cast %177 : vector<1x8x1xf32> to vector<8x1xf32>
    %c2_104 = arith.constant 2 : index
    %c0_105 = arith.constant 0 : index
    %c0_106 = arith.constant 0 : index
    %179 = vector.load %arg9[%c2_104, %c0_105, %c0_106] : memref<3x8x1xf32, #tpu.memory_space<vmem>>, vector<1x8x1xf32>
    %180 = vector.shape_cast %179 : vector<1x8x1xf32> to vector<8x1xf32>
    %181 = vector.broadcast %178 : vector<8x1xf32> to vector<8x208xf32>
    %182 = arith.mulf %181, %176 : vector<8x208xf32>
    %183 = math.sin %182 : vector<8x208xf32>
    %184 = arith.mulf %183, %183 : vector<8x208xf32>
    %185 = vector.broadcast %180 : vector<8x1xf32> to vector<8x208xf32>
    %186 = arith.mulf %185, %184 : vector<8x208xf32>
    %187 = arith.addf %176, %186 : vector<8x208xf32>
    %188 = arith.truncf %187 : vector<8x208xf32> to vector<8x208xbf16>
    %c0_107 = arith.constant 0 : index
    %c27_108 = arith.constant 27 : index
    %189 = vector.load %arg17[%c0_107, %c27_108] : memref<8x262xbf16, #tpu.memory_space<vmem>>, vector<8x208xbf16>
    tpu.vector_store %arg17[%c0_107, %c27_108], %188 {strides = array<i32>} : memref<8x262xbf16, #tpu.memory_space<vmem>>, vector<8x208xbf16>,
    %c0_109 = arith.constant 0 : index
    %c0_110 = arith.constant 0 : index
    %190 = vector.load %arg17[%c0_109, %c0_110] : memref<8x262xbf16, #tpu.memory_space<vmem>>, vector<8x208xbf16>
    %c0_111 = arith.constant 0 : index
    %c9 = arith.constant 9 : index
    %191 = vector.load %arg17[%c0_111, %c9] : memref<8x262xbf16, #tpu.memory_space<vmem>>, vector<8x208xbf16>
    %c0_112 = arith.constant 0 : index
    %c18_113 = arith.constant 18 : index
    %192 = vector.load %arg17[%c0_112, %c18_113] : memref<8x262xbf16, #tpu.memory_space<vmem>>, vector<8x208xbf16>
    %c0_114 = arith.constant 0 : index
    %c27_115 = arith.constant 27 : index
    %193 = vector.load %arg17[%c0_114, %c27_115] : memref<8x262xbf16, #tpu.memory_space<vmem>>, vector<8x208xbf16>
    %c0_116 = arith.constant 0 : index
    %c36_117 = arith.constant 36 : index
    %194 = vector.load %arg17[%c0_116, %c36_117] : memref<8x262xbf16, #tpu.memory_space<vmem>>, vector<8x208xbf16>
    %c0_118 = arith.constant 0 : index
    %c45 = arith.constant 45 : index
    %195 = vector.load %arg17[%c0_118, %c45] : memref<8x262xbf16, #tpu.memory_space<vmem>>, vector<8x208xbf16>
    %c0_119 = arith.constant 0 : index
    %c54 = arith.constant 54 : index
    %196 = vector.load %arg17[%c0_119, %c54] : memref<8x262xbf16, #tpu.memory_space<vmem>>, vector<8x208xbf16>
    %197 = tpu.concatenate %190, %191, %192, %193, %194, %195, %196 in 0 : vector<8x208xbf16>, vector<8x208xbf16>, vector<8x208xbf16>, vector<8x208xbf16>, vector<8x208xbf16>, vector<8x208xbf16>, vector<8x208xbf16> -> vector<56x208xbf16>
    %c2_120 = arith.constant 2 : index
    %c0_121 = arith.constant 0 : index
    %c0_122 = arith.constant 0 : index
    %198 = vector.load %arg10[%c2_120, %c0_121, %c0_122] : memref<3x8x56xbf16, #tpu.memory_space<vmem>>, vector<1x8x56xbf16>
    %199 = vector.shape_cast %198 : vector<1x8x56xbf16> to vector<8x56xbf16>
    %cst_123 = arith.constant dense<0.000000e+00> : vector<8x208xf32>
    %200 = tpu.matmul %199, %197, %cst_123 {dimension_numbers = #tpu.dot_dimension_numbers<[1], [0], [0], [1], [0, 0, 1, 1], [], []>} : vector<8x56xbf16>, vector<56x208xbf16>, vector<8x208xf32> -> vector<8x208xf32>
    %c2_124 = arith.constant 2 : index
    %c0_125 = arith.constant 0 : index
    %c0_126 = arith.constant 0 : index
    %201 = vector.load %arg11[%c2_124, %c0_125, %c0_126] : memref<3x8x1xf32, #tpu.memory_space<vmem>>, vector<1x8x1xf32>
    %202 = vector.shape_cast %201 : vector<1x8x1xf32> to vector<8x1xf32>
    %203 = vector.broadcast %202 : vector<8x1xf32> to vector<8x208xf32>
    %204 = arith.addf %200, %203 : vector<8x208xf32>
    %c2_127 = arith.constant 2 : index
    %c0_128 = arith.constant 0 : index
    %c0_129 = arith.constant 0 : index
    %205 = vector.load %arg12[%c2_127, %c0_128, %c0_129] : memref<3x8x1xf32, #tpu.memory_space<vmem>>, vector<1x8x1xf32>
    %206 = vector.shape_cast %205 : vector<1x8x1xf32> to vector<8x1xf32>
    %c2_130 = arith.constant 2 : index
    %c0_131 = arith.constant 0 : index
    %c0_132 = arith.constant 0 : index
    %207 = vector.load %arg13[%c2_130, %c0_131, %c0_132] : memref<3x8x1xf32, #tpu.memory_space<vmem>>, vector<1x8x1xf32>
    %208 = vector.shape_cast %207 : vector<1x8x1xf32> to vector<8x1xf32>
    %209 = vector.broadcast %206 : vector<8x1xf32> to vector<8x208xf32>
    %210 = arith.mulf %209, %204 : vector<8x208xf32>
    %211 = math.sin %210 : vector<8x208xf32>
    %212 = arith.mulf %211, %211 : vector<8x208xf32>
    %213 = vector.broadcast %208 : vector<8x1xf32> to vector<8x208xf32>
    %214 = arith.mulf %213, %212 : vector<8x208xf32>
    %215 = arith.addf %204, %214 : vector<8x208xf32>
    %c2_133 = arith.constant 2 : index
    %c0_134 = arith.constant 0 : index
    %c0_135 = arith.constant 0 : index
    %216 = vector.load %arg14[%c2_133, %c0_134, %c0_135] : memref<3x8x8xbf16, #tpu.memory_space<vmem>>, vector<1x8x8xbf16>
    %217 = vector.shape_cast %216 : vector<1x8x8xbf16> to vector<8x8xbf16>
    %218 = arith.truncf %215 : vector<8x208xf32> to vector<8x208xbf16>
    %cst_136 = arith.constant dense<0.000000e+00> : vector<8x208xf32>
    %219 = tpu.matmul %217, %218, %cst_136 {dimension_numbers = #tpu.dot_dimension_numbers<[1], [0], [0], [1], [0, 0, 1, 1], [], []>} : vector<8x8xbf16>, vector<8x208xbf16>, vector<8x208xf32> -> vector<8x208xf32>
    %c2_137 = arith.constant 2 : index
    %c0_138 = arith.constant 0 : index
    %c0_139 = arith.constant 0 : index
    %220 = vector.load %arg15[%c2_137, %c0_138, %c0_139] : memref<3x8x1xf32, #tpu.memory_space<vmem>>, vector<1x8x1xf32>
    %221 = vector.shape_cast %220 : vector<1x8x1xf32> to vector<8x1xf32>
    %222 = vector.broadcast %221 : vector<8x1xf32> to vector<8x208xf32>
    %223 = arith.addf %219, %222 : vector<8x208xf32>
    %224 = arith.addf %176, %223 : vector<8x208xf32>
    %cst_140 = arith.constant 0.000000e+00 : f32
    %225 = vector.shape_cast %65 : vector<1x208xi1> to vector<1x208xi1>
    %226 = vector.broadcast %225 : vector<1x208xi1> to vector<8x208xi1>
    %227 = vector.broadcast %cst_140 : f32 to vector<8x208xf32>
    %228 = arith.select %226, %224, %227 : vector<8x208xi1>, vector<8x208xf32>
    %229 = vector.extract_strided_slice %228 {offsets = [0, 40], sizes = [8, 128], strides = [1, 1]} : vector<8x208xf32> to vector<8x128xf32>
    %c0_141 = arith.constant 0 : index
    %c0_142 = arith.constant 0 : index
    %c0_143 = arith.constant 0 : index
    %230 = vector.load %arg16[%c0_141, %c0_142, %c0_143] : memref<1x8x128xf32, #tpu.memory_space<vmem>>, vector<1x8x128xf32>
    %231 = vector.shape_cast %230 : vector<1x8x128xf32> to vector<8x128xf32>
    %232 = vector.shape_cast %229 : vector<8x128xf32> to vector<1x8x128xf32>
    tpu.vector_store %arg16[%c0_141, %c0_142, %c0_143], %232 {strides = array<i32>} : memref<1x8x128xf32, #tpu.memory_space<vmem>>, vector<1x8x128xf32>,
    return
  }
  func.func @transform_0(%arg0: i32, %arg1: i32) -> (i32, i32, i32, i32) {
    %c0_i32 = arith.constant 0 : i32
    %c0_i32_0 = arith.constant 0 : i32
    %c0_i32_1 = arith.constant 0 : i32
    return %arg0, %arg1, %c0_i32, %c0_i32_0 : i32, i32, i32, i32
  }
  func.func @transform_1(%arg0: i32, %arg1: i32) -> (i32, i32) {
    %c0_i32 = arith.constant 0 : i32
    %c0_i32_0 = arith.constant 0 : i32
    %c0_i32_1 = arith.constant 0 : i32
    return %c0_i32, %c0_i32_0 : i32, i32
  }
  func.func @transform_2(%arg0: i32, %arg1: i32) -> (i32, i32) {
    %c0_i32 = arith.constant 0 : i32
    %c0_i32_0 = arith.constant 0 : i32
    %c0_i32_1 = arith.constant 0 : i32
    return %c0_i32, %c0_i32_0 : i32, i32
  }
  func.func @transform_3(%arg0: i32, %arg1: i32) -> (i32, i32) {
    %c0_i32 = arith.constant 0 : i32
    %c0_i32_0 = arith.constant 0 : i32
    %c0_i32_1 = arith.constant 0 : i32
    return %c0_i32, %c0_i32_0 : i32, i32
  }
  func.func @transform_4(%arg0: i32, %arg1: i32) -> (i32, i32) {
    %c0_i32 = arith.constant 0 : i32
    %c0_i32_0 = arith.constant 0 : i32
    %c0_i32_1 = arith.constant 0 : i32
    return %c0_i32, %c0_i32_0 : i32, i32
  }
  func.func @transform_5(%arg0: i32, %arg1: i32) -> (i32, i32) {
    %c0_i32 = arith.constant 0 : i32
    %c0_i32_0 = arith.constant 0 : i32
    %c0_i32_1 = arith.constant 0 : i32
    return %c0_i32, %c0_i32_0 : i32, i32
  }
  func.func @transform_6(%arg0: i32, %arg1: i32) -> (i32, i32, i32) {
    %c0_i32 = arith.constant 0 : i32
    %c0_i32_0 = arith.constant 0 : i32
    %c0_i32_1 = arith.constant 0 : i32
    %c0_i32_2 = arith.constant 0 : i32
    return %c0_i32, %c0_i32_0, %c0_i32_1 : i32, i32, i32
  }
  func.func @transform_7(%arg0: i32, %arg1: i32) -> (i32, i32, i32) {
    %c0_i32 = arith.constant 0 : i32
    %c0_i32_0 = arith.constant 0 : i32
    %c0_i32_1 = arith.constant 0 : i32
    %c0_i32_2 = arith.constant 0 : i32
    return %c0_i32, %c0_i32_0, %c0_i32_1 : i32, i32, i32
  }
  func.func @transform_8(%arg0: i32, %arg1: i32) -> (i32, i32, i32) {
    %c0_i32 = arith.constant 0 : i32
    %c0_i32_0 = arith.constant 0 : i32
    %c0_i32_1 = arith.constant 0 : i32
    %c0_i32_2 = arith.constant 0 : i32
    return %c0_i32, %c0_i32_0, %c0_i32_1 : i32, i32, i32
  }
  func.func @transform_9(%arg0: i32, %arg1: i32) -> (i32, i32, i32) {
    %c0_i32 = arith.constant 0 : i32
    %c0_i32_0 = arith.constant 0 : i32
    %c0_i32_1 = arith.constant 0 : i32
    %c0_i32_2 = arith.constant 0 : i32
    return %c0_i32, %c0_i32_0, %c0_i32_1 : i32, i32, i32
  }
  func.func @transform_10(%arg0: i32, %arg1: i32) -> (i32, i32, i32) {
    %c0_i32 = arith.constant 0 : i32
    %c0_i32_0 = arith.constant 0 : i32
    %c0_i32_1 = arith.constant 0 : i32
    %c0_i32_2 = arith.constant 0 : i32
    return %c0_i32, %c0_i32_0, %c0_i32_1 : i32, i32, i32
  }
  func.func @transform_11(%arg0: i32, %arg1: i32) -> (i32, i32, i32) {
    %c0_i32 = arith.constant 0 : i32
    %c0_i32_0 = arith.constant 0 : i32
    %c0_i32_1 = arith.constant 0 : i32
    %c0_i32_2 = arith.constant 0 : i32
    return %c0_i32, %c0_i32_0, %c0_i32_1 : i32, i32, i32
  }
  func.func @transform_12(%arg0: i32, %arg1: i32) -> (i32, i32, i32) {
    %c0_i32 = arith.constant 0 : i32
    %c0_i32_0 = arith.constant 0 : i32
    %c0_i32_1 = arith.constant 0 : i32
    %c0_i32_2 = arith.constant 0 : i32
    return %c0_i32, %c0_i32_0, %c0_i32_1 : i32, i32, i32
  }
  func.func @transform_13(%arg0: i32, %arg1: i32) -> (i32, i32, i32) {
    %c0_i32 = arith.constant 0 : i32
    %c0_i32_0 = arith.constant 0 : i32
    %c0_i32_1 = arith.constant 0 : i32
    %c0_i32_2 = arith.constant 0 : i32
    return %c0_i32, %c0_i32_0, %c0_i32_1 : i32, i32, i32
  }
  func.func @transform_14(%arg0: i32, %arg1: i32) -> (i32, i32, i32) {
    %c0_i32 = arith.constant 0 : i32
    %c0_i32_0 = arith.constant 0 : i32
    return %arg0, %c0_i32, %arg1 : i32, i32, i32
  }
}

module attributes {stable_mosaic.version = 11 : i64} {
  func.func @_decoder_block_kernel(%arg0: i32, %arg1: i32, %arg2: memref<1x1x16x106xf32, #tpu.memory_space<vmem>>, %arg3: memref<16x1xf32, #tpu.memory_space<vmem>>, %arg4: memref<16x1xf32, #tpu.memory_space<vmem>>, %arg5: memref<16x48xbf16, #tpu.memory_space<vmem>>, %arg6: memref<8x1xf32, #tpu.memory_space<vmem>>, %arg7: memref<104x208xf32, #tpu.memory_space<vmem>>, %arg8: memref<3x8x1xf32, #tpu.memory_space<vmem>>, %arg9: memref<3x8x1xf32, #tpu.memory_space<vmem>>, %arg10: memref<3x8x56xbf16, #tpu.memory_space<vmem>>, %arg11: memref<3x8x1xf32, #tpu.memory_space<vmem>>, %arg12: memref<3x8x1xf32, #tpu.memory_space<vmem>>, %arg13: memref<3x8x1xf32, #tpu.memory_space<vmem>>, %arg14: memref<3x8x8xbf16, #tpu.memory_space<vmem>>, %arg15: memref<3x8x1xf32, #tpu.memory_space<vmem>>, %arg16: memref<1x8x128xf32, #tpu.memory_space<vmem>>, %arg17: memref<8x262xbf16, #tpu.memory_space<vmem>>) attributes {dimension_semantics = [#tpu.dimension_semantics<parallel>, #tpu.dimension_semantics<parallel>], iteration_bounds = array<i64: 2, 1>, scalar_prefetch = 0 : i64, scratch_operands = 1 : i64, tpu.core_type = #tpu.core_type<tc>, window_params = [{transform_indices = @transform_0, window_bounds = array<i64: 1, 1, 16, 106>}, {pipeline_mode = #tpu.pipeline_mode<synchronous>, transform_indices = @transform_1, window_bounds = array<i64: 16, 1>}, {pipeline_mode = #tpu.pipeline_mode<synchronous>, transform_indices = @transform_2, window_bounds = array<i64: 16, 1>}, {pipeline_mode = #tpu.pipeline_mode<synchronous>, transform_indices = @transform_3, window_bounds = array<i64: 16, 48>}, {pipeline_mode = #tpu.pipeline_mode<synchronous>, transform_indices = @transform_4, window_bounds = array<i64: 8, 1>}, {pipeline_mode = #tpu.pipeline_mode<synchronous>, transform_indices = @transform_5, window_bounds = array<i64: 104, 208>}, {pipeline_mode = #tpu.pipeline_mode<synchronous>, transform_indices = @transform_6, window_bounds = array<i64: 3, 8, 1>}, {pipeline_mode = #tpu.pipeline_mode<synchronous>, transform_indices = @transform_7, window_bounds = array<i64: 3, 8, 1>}, {pipeline_mode = #tpu.pipeline_mode<synchronous>, transform_indices = @transform_8, window_bounds = array<i64: 3, 8, 56>}, {pipeline_mode = #tpu.pipeline_mode<synchronous>, transform_indices = @transform_9, window_bounds = array<i64: 3, 8, 1>}, {pipeline_mode = #tpu.pipeline_mode<synchronous>, transform_indices = @transform_10, window_bounds = array<i64: 3, 8, 1>}, {pipeline_mode = #tpu.pipeline_mode<synchronous>, transform_indices = @transform_11, window_bounds = array<i64: 3, 8, 1>}, {pipeline_mode = #tpu.pipeline_mode<synchronous>, transform_indices = @transform_12, window_bounds = array<i64: 3, 8, 8>}, {pipeline_mode = #tpu.pipeline_mode<synchronous>, transform_indices = @transform_13, window_bounds = array<i64: 3, 8, 1>}, {transform_indices = @transform_14, window_bounds = array<i64: 1, 8, 128>}]} {
    %0 = tpu.iota {dimensions = array<i32: 1>} : vector<1x208xi32>
    %c0 = arith.constant 0 : index
    %c0_0 = arith.constant 0 : index
    %c0_1 = arith.constant 0 : index
    %c0_2 = arith.constant 0 : index
    %1 = vector.load %arg2[%c0, %c0_0, %c0_1, %c0_2] : memref<1x1x16x106xf32, #tpu.memory_space<vmem>>, vector<1x1x16x106xf32>
    %2 = vector.shape_cast %1 : vector<1x1x16x106xf32> to vector<16x106xf32>
    %c0_3 = arith.constant 0 : index
    %c0_4 = arith.constant 0 : index
    %3 = vector.load %arg3[%c0_3, %c0_4] : memref<16x1xf32, #tpu.memory_space<vmem>>, vector<16x1xf32>
    %c0_5 = arith.constant 0 : index
    %c0_6 = arith.constant 0 : index
    %4 = vector.load %arg4[%c0_5, %c0_6] : memref<16x1xf32, #tpu.memory_space<vmem>>, vector<16x1xf32>
    %5 = vector.broadcast %3 : vector<16x1xf32> to vector<16x106xf32>
    %6 = arith.mulf %5, %2 : vector<16x106xf32>
    %7 = math.sin %6 : vector<16x106xf32>
    %8 = arith.mulf %7, %7 : vector<16x106xf32>
    %9 = vector.broadcast %4 : vector<16x1xf32> to vector<16x106xf32>
    %10 = arith.mulf %9, %8 : vector<16x106xf32>
    %11 = arith.addf %2, %10 : vector<16x106xf32>
    %12 = arith.truncf %11 : vector<16x106xf32> to vector<16x106xbf16>
    %13 = vector.extract_strided_slice %12 {offsets = [0, 0], sizes = [16, 104], strides = [1, 1]} : vector<16x106xbf16> to vector<16x104xbf16>
    %14 = vector.extract_strided_slice %12 {offsets = [0, 1], sizes = [16, 104], strides = [1, 1]} : vector<16x106xbf16> to vector<16x104xbf16>
    %15 = vector.extract_strided_slice %12 {offsets = [0, 2], sizes = [16, 104], strides = [1, 1]} : vector<16x106xbf16> to vector<16x104xbf16>
    %16 = tpu.concatenate %13, %14, %15 in 0 : vector<16x104xbf16>, vector<16x104xbf16>, vector<16x104xbf16> -> vector<48x104xbf16>
    %c0_7 = arith.constant 0 : index
    %c0_8 = arith.constant 0 : index
    %17 = vector.load %arg5[%c0_7, %c0_8] : memref<16x48xbf16, #tpu.memory_space<vmem>>, vector<16x48xbf16>
    %cst = arith.constant dense<0.000000e+00> : vector<16x104xf32>
    %18 = tpu.matmul %17, %16, %cst {dimension_numbers = #tpu.dot_dimension_numbers<[1], [0], [0], [1], [0, 0, 1, 1], [], []>} : vector<16x48xbf16>, vector<48x104xbf16>, vector<16x104xf32> -> vector<16x104xf32>
    %c0_9 = arith.constant 0 : index
    %c0_10 = arith.constant 0 : index
    %19 = vector.load %arg7[%c0_9, %c0_10] : memref<104x208xf32, #tpu.memory_space<vmem>>, vector<104x208xf32>
    %cst_11 = arith.constant dense<0.000000e+00> : vector<16x208xf32>
    %20 = tpu.matmul %18, %19, %cst_11 {dimension_numbers = #tpu.dot_dimension_numbers<[1], [0], [0], [1], [0, 0, 1, 1], [], []>} : vector<16x104xf32>, vector<104x208xf32>, vector<16x208xf32> -> vector<16x208xf32>
    %c2_i32 = arith.constant 2 : i32
    %c0_i32 = arith.constant 0 : i32
    %21 = arith.cmpi eq, %c2_i32, %c0_i32 : i32
    %c1_i32 = arith.constant 1 : i32
    %22 = arith.select %21, %c1_i32, %c2_i32 : i32
    %23 = vector.broadcast %22 : i32 to vector<1x208xi32>
    %24 = arith.remsi %0, %23 : vector<1x208xi32>
    %c0_i32_12 = arith.constant 0 : i32
    %25 = vector.broadcast %c0_i32_12 : i32 to vector<1x208xi32>
    %26 = arith.cmpi ne, %24, %25 : vector<1x208xi32>
    %c0_i32_13 = arith.constant 0 : i32
    %27 = vector.broadcast %c0_i32_13 : i32 to vector<1x208xi32>
    %28 = arith.cmpi slt, %24, %27 : vector<1x208xi32>
    %c0_i32_14 = arith.constant 0 : i32
    %29 = arith.cmpi slt, %22, %c0_i32_14 : i32
    %30 = vector.broadcast %29 : i1 to vector<1x208xi1>
    %31 = vector.broadcast %30 : vector<1x208xi1> to vector<1x208xi1>
    %32 = arith.xori %28, %31 : vector<1x208xi1>
    %33 = arith.andi %32, %26 : vector<1x208xi1>
    %34 = vector.broadcast %22 : i32 to vector<1x208xi32>
    %35 = arith.addi %24, %34 : vector<1x208xi32>
    %36 = arith.select %33, %35, %24 : vector<1x208xi1>, vector<1x208xi32>
    %cst_15 = arith.constant 0.000000e+00 : f32
    %37 = vector.broadcast %cst_15 : f32 to vector<8x208xf32>
    %c0_i32_16 = arith.constant 0 : i32
    %38 = vector.broadcast %c0_i32_16 : i32 to vector<1x208xi32>
    %39 = arith.cmpi eq, %36, %38 : vector<1x208xi32>
    %40 = vector.extract_strided_slice %20 {offsets = [0, 0], sizes = [8, 208], strides = [1, 1]} : vector<16x208xf32> to vector<8x208xf32>
    %cst_17 = arith.constant 0.000000e+00 : f32
    %41 = vector.shape_cast %39 : vector<1x208xi1> to vector<1x208xi1>
    %42 = vector.broadcast %41 : vector<1x208xi1> to vector<8x208xi1>
    %43 = vector.broadcast %cst_17 : f32 to vector<8x208xf32>
    %44 = arith.select %42, %40, %43 : vector<8x208xi1>, vector<8x208xf32>
    %45 = arith.addf %37, %44 : vector<8x208xf32>
    %c1_i32_18 = arith.constant 1 : i32
    %46 = vector.broadcast %c1_i32_18 : i32 to vector<1x208xi32>
    %47 = arith.cmpi eq, %36, %46 : vector<1x208xi32>
    %48 = vector.extract_strided_slice %20 {offsets = [8, 0], sizes = [8, 208], strides = [1, 1]} : vector<16x208xf32> to vector<8x208xf32>
    %cst_19 = arith.constant 0.000000e+00 : f32
    %49 = vector.shape_cast %47 : vector<1x208xi1> to vector<1x208xi1>
    %50 = vector.broadcast %49 : vector<1x208xi1> to vector<8x208xi1>
    %51 = vector.broadcast %cst_19 : f32 to vector<8x208xf32>
    %52 = arith.select %50, %48, %51 : vector<8x208xi1>, vector<8x208xf32>
    %53 = arith.addf %45, %52 : vector<8x208xf32>
    %c0_20 = arith.constant 0 : index
    %c0_21 = arith.constant 0 : index
    %54 = vector.load %arg6[%c0_20, %c0_21] : memref<8x1xf32, #tpu.memory_space<vmem>>, vector<8x1xf32>
    %55 = vector.broadcast %54 : vector<8x1xf32> to vector<8x208xf32>
    %56 = arith.addf %53, %55 : vector<8x208xf32>
    %c128_i32 = arith.constant 128 : i32
    %57 = arith.muli %arg1, %c128_i32 : i32
    %c40_i32 = arith.constant 40 : i32
    %58 = arith.subi %57, %c40_i32 : i32
    %59 = vector.broadcast %58 : i32 to vector<1x208xi32>
    %60 = arith.addi %0, %59 : vector<1x208xi32>
    %c0_i32_22 = arith.constant 0 : i32
    %61 = vector.broadcast %c0_i32_22 : i32 to vector<1x208xi32>
    %62 = arith.cmpi sge, %60, %61 : vector<1x208xi32>
    %c32_i32 = arith.constant 32 : i32
    %63 = vector.broadcast %c32_i32 : i32 to vector<1x208xi32>
    %64 = arith.cmpi slt, %60, %63 : vector<1x208xi32>
    %65 = arith.andi %62, %64 : vector<1x208xi1>
    %cst_23 = arith.constant 0.000000e+00 : f32
    %66 = vector.shape_cast %65 : vector<1x208xi1> to vector<1x208xi1>
    %67 = vector.broadcast %66 : vector<1x208xi1> to vector<8x208xi1>
    %68 = vector.broadcast %cst_23 : f32 to vector<8x208xf32>
    %69 = arith.select %67, %56, %68 : vector<8x208xi1>, vector<8x208xf32>
    %cst_24 = arith.constant 0.000000e+00 : bf16
    %70 = vector.broadcast %cst_24 : bf16 to vector<8x27xbf16>
    %c0_25 = arith.constant 0 : index
    %c0_26 = arith.constant 0 : index
    %71 = vector.load %arg17[%c0_25, %c0_26] : memref<8x262xbf16, #tpu.memory_space<vmem>>, vector<8x27xbf16>
    tpu.vector_store %arg17[%c0_25, %c0_26], %70 {strides = array<i32>} : memref<8x262xbf16, #tpu.memory_space<vmem>>, vector<8x27xbf16>,
    %c0_27 = arith.constant 0 : index
    %c235 = arith.constant 235 : index
    %72 = vector.load %arg17[%c0_27, %c235] : memref<8x262xbf16, #tpu.memory_space<vmem>>, vector<8x27xbf16>
    tpu.vector_store %arg17[%c0_27, %c235], %70 {strides = array<i32>} : memref<8x262xbf16, #tpu.memory_space<vmem>>, vector<8x27xbf16>,
    %c0_28 = arith.constant 0 : index
    %c0_29 = arith.constant 0 : index
    %c0_30 = arith.constant 0 : index
    %73 = vector.load %arg8[%c0_28, %c0_29, %c0_30] : memref<3x8x1xf32, #tpu.memory_space<vmem>>, vector<1x8x1xf32>
    %74 = vector.shape_cast %73 : vector<1x8x1xf32> to vector<8x1xf32>
    %c0_31 = arith.constant 0 : index
    %c0_32 = arith.constant 0 : index
    %c0_33 = arith.constant 0 : index
    %75 = vector.load %arg9[%c0_31, %c0_32, %c0_33] : memref<3x8x1xf32, #tpu.memory_space<vmem>>, vector<1x8x1xf32>
    %76 = vector.shape_cast %75 : vector<1x8x1xf32> to vector<8x1xf32>
    %77 = vector.broadcast %74 : vector<8x1xf32> to vector<8x208xf32>
    %78 = arith.mulf %77, %69 : vector<8x208xf32>
    %79 = math.sin %78 : vector<8x208xf32>
    %80 = arith.mulf %79, %79 : vector<8x208xf32>
    %81 = vector.broadcast %76 : vector<8x1xf32> to vector<8x208xf32>
    %82 = arith.mulf %81, %80 : vector<8x208xf32>
    %83 = arith.addf %69, %82 : vector<8x208xf32>
    %84 = arith.truncf %83 : vector<8x208xf32> to vector<8x208xbf16>
    %c0_34 = arith.constant 0 : index
    %c27 = arith.constant 27 : index
    %85 = vector.load %arg17[%c0_34, %c27] : memref<8x262xbf16, #tpu.memory_space<vmem>>, vector<8x208xbf16>
    tpu.vector_store %arg17[%c0_34, %c27], %84 {strides = array<i32>} : memref<8x262xbf16, #tpu.memory_space<vmem>>, vector<8x208xbf16>,
    %c0_35 = arith.constant 0 : index
    %c24 = arith.constant 24 : index
    %86 = vector.load %arg17[%c0_35, %c24] : memref<8x262xbf16, #tpu.memory_space<vmem>>, vector<8x208xbf16>
    %c0_36 = arith.constant 0 : index
    %c25 = arith.constant 25 : index
    %87 = vector.load %arg17[%c0_36, %c25] : memref<8x262xbf16, #tpu.memory_space<vmem>>, vector<8x208xbf16>
    %c0_37 = arith.constant 0 : index
    %c26 = arith.constant 26 : index
    %88 = vector.load %arg17[%c0_37, %c26] : memref<8x262xbf16, #tpu.memory_space<vmem>>, vector<8x208xbf16>
    %c0_38 = arith.constant 0 : index
    %c27_39 = arith.constant 27 : index
    %89 = vector.load %arg17[%c0_38, %c27_39] : memref<8x262xbf16, #tpu.memory_space<vmem>>, vector<8x208xbf16>
    %c0_40 = arith.constant 0 : index
    %c28 = arith.constant 28 : index
    %90 = vector.load %arg17[%c0_40, %c28] : memref<8x262xbf16, #tpu.memory_space<vmem>>, vector<8x208xbf16>
    %c0_41 = arith.constant 0 : index
    %c29 = arith.constant 29 : index
    %91 = vector.load %arg17[%c0_41, %c29] : memref<8x262xbf16, #tpu.memory_space<vmem>>, vector<8x208xbf16>
    %c0_42 = arith.constant 0 : index
    %c30 = arith.constant 30 : index
    %92 = vector.load %arg17[%c0_42, %c30] : memref<8x262xbf16, #tpu.memory_space<vmem>>, vector<8x208xbf16>
    %93 = tpu.concatenate %86, %87, %88, %89, %90, %91, %92 in 0 : vector<8x208xbf16>, vector<8x208xbf16>, vector<8x208xbf16>, vector<8x208xbf16>, vector<8x208xbf16>, vector<8x208xbf16>, vector<8x208xbf16> -> vector<56x208xbf16>
    %c0_43 = arith.constant 0 : index
    %c0_44 = arith.constant 0 : index
    %c0_45 = arith.constant 0 : index
    %94 = vector.load %arg10[%c0_43, %c0_44, %c0_45] : memref<3x8x56xbf16, #tpu.memory_space<vmem>>, vector<1x8x56xbf16>
    %95 = vector.shape_cast %94 : vector<1x8x56xbf16> to vector<8x56xbf16>
    %cst_46 = arith.constant dense<0.000000e+00> : vector<8x208xf32>
    %96 = tpu.matmul %95, %93, %cst_46 {dimension_numbers = #tpu.dot_dimension_numbers<[1], [0], [0], [1], [0, 0, 1, 1], [], []>} : vector<8x56xbf16>, vector<56x208xbf16>, vector<8x208xf32> -> vector<8x208xf32>
    %c0_47 = arith.constant 0 : index
    %c0_48 = arith.constant 0 : index
    %c0_49 = arith.constant 0 : index
    %97 = vector.load %arg11[%c0_47, %c0_48, %c0_49] : memref<3x8x1xf32, #tpu.memory_space<vmem>>, vector<1x8x1xf32>
    %98 = vector.shape_cast %97 : vector<1x8x1xf32> to vector<8x1xf32>
    %99 = vector.broadcast %98 : vector<8x1xf32> to vector<8x208xf32>
    %100 = arith.addf %96, %99 : vector<8x208xf32>
    %c0_50 = arith.constant 0 : index
    %c0_51 = arith.constant 0 : index
    %c0_52 = arith.constant 0 : index
    %101 = vector.load %arg12[%c0_50, %c0_51, %c0_52] : memref<3x8x1xf32, #tpu.memory_space<vmem>>, vector<1x8x1xf32>
    %102 = vector.shape_cast %101 : vector<1x8x1xf32> to vector<8x1xf32>
    %c0_53 = arith.constant 0 : index
    %c0_54 = arith.constant 0 : index
    %c0_55 = arith.constant 0 : index
    %103 = vector.load %arg13[%c0_53, %c0_54, %c0_55] : memref<3x8x1xf32, #tpu.memory_space<vmem>>, vector<1x8x1xf32>
    %104 = vector.shape_cast %103 : vector<1x8x1xf32> to vector<8x1xf32>
    %105 = vector.broadcast %102 : vector<8x1xf32> to vector<8x208xf32>
    %106 = arith.mulf %105, %100 : vector<8x208xf32>
    %107 = math.sin %106 : vector<8x208xf32>
    %108 = arith.mulf %107, %107 : vector<8x208xf32>
    %109 = vector.broadcast %104 : vector<8x1xf32> to vector<8x208xf32>
    %110 = arith.mulf %109, %108 : vector<8x208xf32>
    %111 = arith.addf %100, %110 : vector<8x208xf32>
    %c0_56 = arith.constant 0 : index
    %c0_57 = arith.constant 0 : index
    %c0_58 = arith.constant 0 : index
    %112 = vector.load %arg14[%c0_56, %c0_57, %c0_58] : memref<3x8x8xbf16, #tpu.memory_space<vmem>>, vector<1x8x8xbf16>
    %113 = vector.shape_cast %112 : vector<1x8x8xbf16> to vector<8x8xbf16>
    %114 = arith.truncf %111 : vector<8x208xf32> to vector<8x208xbf16>
    %cst_59 = arith.constant dense<0.000000e+00> : vector<8x208xf32>
    %115 = tpu.matmul %113, %114, %cst_59 {dimension_numbers = #tpu.dot_dimension_numbers<[1], [0], [0], [1], [0, 0, 1, 1], [], []>} : vector<8x8xbf16>, vector<8x208xbf16>, vector<8x208xf32> -> vector<8x208xf32>
    %c0_60 = arith.constant 0 : index
    %c0_61 = arith.constant 0 : index
    %c0_62 = arith.constant 0 : index
    %116 = vector.load %arg15[%c0_60, %c0_61, %c0_62] : memref<3x8x1xf32, #tpu.memory_space<vmem>>, vector<1x8x1xf32>
    %117 = vector.shape_cast %116 : vector<1x8x1xf32> to vector<8x1xf32>
    %118 = vector.broadcast %117 : vector<8x1xf32> to vector<8x208xf32>
    %119 = arith.addf %115, %118 : vector<8x208xf32>
    %120 = arith.addf %69, %119 : vector<8x208xf32>
    %cst_63 = arith.constant 0.000000e+00 : f32
    %121 = vector.shape_cast %65 : vector<1x208xi1> to vector<1x208xi1>
    %122 = vector.broadcast %121 : vector<1x208xi1> to vector<8x208xi1>
    %123 = vector.broadcast %cst_63 : f32 to vector<8x208xf32>
    %124 = arith.select %122, %120, %123 : vector<8x208xi1>, vector<8x208xf32>
    %c1 = arith.constant 1 : index
    %c0_64 = arith.constant 0 : index
    %c0_65 = arith.constant 0 : index
    %125 = vector.load %arg8[%c1, %c0_64, %c0_65] : memref<3x8x1xf32, #tpu.memory_space<vmem>>, vector<1x8x1xf32>
    %126 = vector.shape_cast %125 : vector<1x8x1xf32> to vector<8x1xf32>
    %c1_66 = arith.constant 1 : index
    %c0_67 = arith.constant 0 : index
    %c0_68 = arith.constant 0 : index
    %127 = vector.load %arg9[%c1_66, %c0_67, %c0_68] : memref<3x8x1xf32, #tpu.memory_space<vmem>>, vector<1x8x1xf32>
    %128 = vector.shape_cast %127 : vector<1x8x1xf32> to vector<8x1xf32>
    %129 = vector.broadcast %126 : vector<8x1xf32> to vector<8x208xf32>
    %130 = arith.mulf %129, %124 : vector<8x208xf32>
    %131 = math.sin %130 : vector<8x208xf32>
    %132 = arith.mulf %131, %131 : vector<8x208xf32>
    %133 = vector.broadcast %128 : vector<8x1xf32> to vector<8x208xf32>
    %134 = arith.mulf %133, %132 : vector<8x208xf32>
    %135 = arith.addf %124, %134 : vector<8x208xf32>
    %136 = arith.truncf %135 : vector<8x208xf32> to vector<8x208xbf16>
    %c0_69 = arith.constant 0 : index
    %c27_70 = arith.constant 27 : index
    %137 = vector.load %arg17[%c0_69, %c27_70] : memref<8x262xbf16, #tpu.memory_space<vmem>>, vector<8x208xbf16>
    tpu.vector_store %arg17[%c0_69, %c27_70], %136 {strides = array<i32>} : memref<8x262xbf16, #tpu.memory_space<vmem>>, vector<8x208xbf16>,
    %c0_71 = arith.constant 0 : index
    %c18 = arith.constant 18 : index
    %138 = vector.load %arg17[%c0_71, %c18] : memref<8x262xbf16, #tpu.memory_space<vmem>>, vector<8x208xbf16>
    %c0_72 = arith.constant 0 : index
    %c21 = arith.constant 21 : index
    %139 = vector.load %arg17[%c0_72, %c21] : memref<8x262xbf16, #tpu.memory_space<vmem>>, vector<8x208xbf16>
    %c0_73 = arith.constant 0 : index
    %c24_74 = arith.constant 24 : index
    %140 = vector.load %arg17[%c0_73, %c24_74] : memref<8x262xbf16, #tpu.memory_space<vmem>>, vector<8x208xbf16>
    %c0_75 = arith.constant 0 : index
    %c27_76 = arith.constant 27 : index
    %141 = vector.load %arg17[%c0_75, %c27_76] : memref<8x262xbf16, #tpu.memory_space<vmem>>, vector<8x208xbf16>
    %c0_77 = arith.constant 0 : index
    %c30_78 = arith.constant 30 : index
    %142 = vector.load %arg17[%c0_77, %c30_78] : memref<8x262xbf16, #tpu.memory_space<vmem>>, vector<8x208xbf16>
    %c0_79 = arith.constant 0 : index
    %c33 = arith.constant 33 : index
    %143 = vector.load %arg17[%c0_79, %c33] : memref<8x262xbf16, #tpu.memory_space<vmem>>, vector<8x208xbf16>
    %c0_80 = arith.constant 0 : index
    %c36 = arith.constant 36 : index
    %144 = vector.load %arg17[%c0_80, %c36] : memref<8x262xbf16, #tpu.memory_space<vmem>>, vector<8x208xbf16>
    %145 = tpu.concatenate %138, %139, %140, %141, %142, %143, %144 in 0 : vector<8x208xbf16>, vector<8x208xbf16>, vector<8x208xbf16>, vector<8x208xbf16>, vector<8x208xbf16>, vector<8x208xbf16>, vector<8x208xbf16> -> vector<56x208xbf16>
    %c1_81 = arith.constant 1 : index
    %c0_82 = arith.constant 0 : index
    %c0_83 = arith.constant 0 : index
    %146 = vector.load %arg10[%c1_81, %c0_82, %c0_83] : memref<3x8x56xbf16, #tpu.memory_space<vmem>>, vector<1x8x56xbf16>
    %147 = vector.shape_cast %146 : vector<1x8x56xbf16> to vector<8x56xbf16>
    %cst_84 = arith.constant dense<0.000000e+00> : vector<8x208xf32>
    %148 = tpu.matmul %147, %145, %cst_84 {dimension_numbers = #tpu.dot_dimension_numbers<[1], [0], [0], [1], [0, 0, 1, 1], [], []>} : vector<8x56xbf16>, vector<56x208xbf16>, vector<8x208xf32> -> vector<8x208xf32>
    %c1_85 = arith.constant 1 : index
    %c0_86 = arith.constant 0 : index
    %c0_87 = arith.constant 0 : index
    %149 = vector.load %arg11[%c1_85, %c0_86, %c0_87] : memref<3x8x1xf32, #tpu.memory_space<vmem>>, vector<1x8x1xf32>
    %150 = vector.shape_cast %149 : vector<1x8x1xf32> to vector<8x1xf32>
    %151 = vector.broadcast %150 : vector<8x1xf32> to vector<8x208xf32>
    %152 = arith.addf %148, %151 : vector<8x208xf32>
    %c1_88 = arith.constant 1 : index
    %c0_89 = arith.constant 0 : index
    %c0_90 = arith.constant 0 : index
    %153 = vector.load %arg12[%c1_88, %c0_89, %c0_90] : memref<3x8x1xf32, #tpu.memory_space<vmem>>, vector<1x8x1xf32>
    %154 = vector.shape_cast %153 : vector<1x8x1xf32> to vector<8x1xf32>
    %c1_91 = arith.constant 1 : index
    %c0_92 = arith.constant 0 : index
    %c0_93 = arith.constant 0 : index
    %155 = vector.load %arg13[%c1_91, %c0_92, %c0_93] : memref<3x8x1xf32, #tpu.memory_space<vmem>>, vector<1x8x1xf32>
    %156 = vector.shape_cast %155 : vector<1x8x1xf32> to vector<8x1xf32>
    %157 = vector.broadcast %154 : vector<8x1xf32> to vector<8x208xf32>
    %158 = arith.mulf %157, %152 : vector<8x208xf32>
    %159 = math.sin %158 : vector<8x208xf32>
    %160 = arith.mulf %159, %159 : vector<8x208xf32>
    %161 = vector.broadcast %156 : vector<8x1xf32> to vector<8x208xf32>
    %162 = arith.mulf %161, %160 : vector<8x208xf32>
    %163 = arith.addf %152, %162 : vector<8x208xf32>
    %c1_94 = arith.constant 1 : index
    %c0_95 = arith.constant 0 : index
    %c0_96 = arith.constant 0 : index
    %164 = vector.load %arg14[%c1_94, %c0_95, %c0_96] : memref<3x8x8xbf16, #tpu.memory_space<vmem>>, vector<1x8x8xbf16>
    %165 = vector.shape_cast %164 : vector<1x8x8xbf16> to vector<8x8xbf16>
    %166 = arith.truncf %163 : vector<8x208xf32> to vector<8x208xbf16>
    %cst_97 = arith.constant dense<0.000000e+00> : vector<8x208xf32>
    %167 = tpu.matmul %165, %166, %cst_97 {dimension_numbers = #tpu.dot_dimension_numbers<[1], [0], [0], [1], [0, 0, 1, 1], [], []>} : vector<8x8xbf16>, vector<8x208xbf16>, vector<8x208xf32> -> vector<8x208xf32>
    %c1_98 = arith.constant 1 : index
    %c0_99 = arith.constant 0 : index
    %c0_100 = arith.constant 0 : index
    %168 = vector.load %arg15[%c1_98, %c0_99, %c0_100] : memref<3x8x1xf32, #tpu.memory_space<vmem>>, vector<1x8x1xf32>
    %169 = vector.shape_cast %168 : vector<1x8x1xf32> to vector<8x1xf32>
    %170 = vector.broadcast %169 : vector<8x1xf32> to vector<8x208xf32>
    %171 = arith.addf %167, %170 : vector<8x208xf32>
    %172 = arith.addf %124, %171 : vector<8x208xf32>
    %cst_101 = arith.constant 0.000000e+00 : f32
    %173 = vector.shape_cast %65 : vector<1x208xi1> to vector<1x208xi1>
    %174 = vector.broadcast %173 : vector<1x208xi1> to vector<8x208xi1>
    %175 = vector.broadcast %cst_101 : f32 to vector<8x208xf32>
    %176 = arith.select %174, %172, %175 : vector<8x208xi1>, vector<8x208xf32>
    %c2 = arith.constant 2 : index
    %c0_102 = arith.constant 0 : index
    %c0_103 = arith.constant 0 : index
    %177 = vector.load %arg8[%c2, %c0_102, %c0_103] : memref<3x8x1xf32, #tpu.memory_space<vmem>>, vector<1x8x1xf32>
    %178 = vector.shape_cast %177 : vector<1x8x1xf32> to vector<8x1xf32>
    %c2_104 = arith.constant 2 : index
    %c0_105 = arith.constant 0 : index
    %c0_106 = arith.constant 0 : index
    %179 = vector.load %arg9[%c2_104, %c0_105, %c0_106] : memref<3x8x1xf32, #tpu.memory_space<vmem>>, vector<1x8x1xf32>
    %180 = vector.shape_cast %179 : vector<1x8x1xf32> to vector<8x1xf32>
    %181 = vector.broadcast %178 : vector<8x1xf32> to vector<8x208xf32>
    %182 = arith.mulf %181, %176 : vector<8x208xf32>
    %183 = math.sin %182 : vector<8x208xf32>
    %184 = arith.mulf %183, %183 : vector<8x208xf32>
    %185 = vector.broadcast %180 : vector<8x1xf32> to vector<8x208xf32>
    %186 = arith.mulf %185, %184 : vector<8x208xf32>
    %187 = arith.addf %176, %186 : vector<8x208xf32>
    %188 = arith.truncf %187 : vector<8x208xf32> to vector<8x208xbf16>
    %c0_107 = arith.constant 0 : index
    %c27_108 = arith.constant 27 : index
    %189 = vector.load %arg17[%c0_107, %c27_108] : memref<8x262xbf16, #tpu.memory_space<vmem>>, vector<8x208xbf16>
    tpu.vector_store %arg17[%c0_107, %c27_108], %188 {strides = array<i32>} : memref<8x262xbf16, #tpu.memory_space<vmem>>, vector<8x208xbf16>,
    %c0_109 = arith.constant 0 : index
    %c0_110 = arith.constant 0 : index
    %190 = vector.load %arg17[%c0_109, %c0_110] : memref<8x262xbf16, #tpu.memory_space<vmem>>, vector<8x208xbf16>
    %c0_111 = arith.constant 0 : index
    %c9 = arith.constant 9 : index
    %191 = vector.load %arg17[%c0_111, %c9] : memref<8x262xbf16, #tpu.memory_space<vmem>>, vector<8x208xbf16>
    %c0_112 = arith.constant 0 : index
    %c18_113 = arith.constant 18 : index
    %192 = vector.load %arg17[%c0_112, %c18_113] : memref<8x262xbf16, #tpu.memory_space<vmem>>, vector<8x208xbf16>
    %c0_114 = arith.constant 0 : index
    %c27_115 = arith.constant 27 : index
    %193 = vector.load %arg17[%c0_114, %c27_115] : memref<8x262xbf16, #tpu.memory_space<vmem>>, vector<8x208xbf16>
    %c0_116 = arith.constant 0 : index
    %c36_117 = arith.constant 36 : index
    %194 = vector.load %arg17[%c0_116, %c36_117] : memref<8x262xbf16, #tpu.memory_space<vmem>>, vector<8x208xbf16>
    %c0_118 = arith.constant 0 : index
    %c45 = arith.constant 45 : index
    %195 = vector.load %arg17[%c0_118, %c45] : memref<8x262xbf16, #tpu.memory_space<vmem>>, vector<8x208xbf16>
    %c0_119 = arith.constant 0 : index
    %c54 = arith.constant 54 : index
    %196 = vector.load %arg17[%c0_119, %c54] : memref<8x262xbf16, #tpu.memory_space<vmem>>, vector<8x208xbf16>
    %197 = tpu.concatenate %190, %191, %192, %193, %194, %195, %196 in 0 : vector<8x208xbf16>, vector<8x208xbf16>, vector<8x208xbf16>, vector<8x208xbf16>, vector<8x208xbf16>, vector<8x208xbf16>, vector<8x208xbf16> -> vector<56x208xbf16>
    %c2_120 = arith.constant 2 : index
    %c0_121 = arith.constant 0 : index
    %c0_122 = arith.constant 0 : index
    %198 = vector.load %arg10[%c2_120, %c0_121, %c0_122] : memref<3x8x56xbf16, #tpu.memory_space<vmem>>, vector<1x8x56xbf16>
    %199 = vector.shape_cast %198 : vector<1x8x56xbf16> to vector<8x56xbf16>
    %cst_123 = arith.constant dense<0.000000e+00> : vector<8x208xf32>
    %200 = tpu.matmul %199, %197, %cst_123 {dimension_numbers = #tpu.dot_dimension_numbers<[1], [0], [0], [1], [0, 0, 1, 1], [], []>} : vector<8x56xbf16>, vector<56x208xbf16>, vector<8x208xf32> -> vector<8x208xf32>
    %c2_124 = arith.constant 2 : index
    %c0_125 = arith.constant 0 : index
    %c0_126 = arith.constant 0 : index
    %201 = vector.load %arg11[%c2_124, %c0_125, %c0_126] : memref<3x8x1xf32, #tpu.memory_space<vmem>>, vector<1x8x1xf32>
    %202 = vector.shape_cast %201 : vector<1x8x1xf32> to vector<8x1xf32>
    %203 = vector.broadcast %202 : vector<8x1xf32> to vector<8x208xf32>
    %204 = arith.addf %200, %203 : vector<8x208xf32>
    %c2_127 = arith.constant 2 : index
    %c0_128 = arith.constant 0 : index
    %c0_129 = arith.constant 0 : index
    %205 = vector.load %arg12[%c2_127, %c0_128, %c0_129] : memref<3x8x1xf32, #tpu.memory_space<vmem>>, vector<1x8x1xf32>
    %206 = vector.shape_cast %205 : vector<1x8x1xf32> to vector<8x1xf32>
    %c2_130 = arith.constant 2 : index
    %c0_131 = arith.constant 0 : index
    %c0_132 = arith.constant 0 : index
    %207 = vector.load %arg13[%c2_130, %c0_131, %c0_132] : memref<3x8x1xf32, #tpu.memory_space<vmem>>, vector<1x8x1xf32>
    %208 = vector.shape_cast %207 : vector<1x8x1xf32> to vector<8x1xf32>
    %209 = vector.broadcast %206 : vector<8x1xf32> to vector<8x208xf32>
    %210 = arith.mulf %209, %204 : vector<8x208xf32>
    %211 = math.sin %210 : vector<8x208xf32>
    %212 = arith.mulf %211, %211 : vector<8x208xf32>
    %213 = vector.broadcast %208 : vector<8x1xf32> to vector<8x208xf32>
    %214 = arith.mulf %213, %212 : vector<8x208xf32>
    %215 = arith.addf %204, %214 : vector<8x208xf32>
    %c2_133 = arith.constant 2 : index
    %c0_134 = arith.constant 0 : index
    %c0_135 = arith.constant 0 : index
    %216 = vector.load %arg14[%c2_133, %c0_134, %c0_135] : memref<3x8x8xbf16, #tpu.memory_space<vmem>>, vector<1x8x8xbf16>
    %217 = vector.shape_cast %216 : vector<1x8x8xbf16> to vector<8x8xbf16>
    %218 = arith.truncf %215 : vector<8x208xf32> to vector<8x208xbf16>
    %cst_136 = arith.constant dense<0.000000e+00> : vector<8x208xf32>
    %219 = tpu.matmul %217, %218, %cst_136 {dimension_numbers = #tpu.dot_dimension_numbers<[1], [0], [0], [1], [0, 0, 1, 1], [], []>} : vector<8x8xbf16>, vector<8x208xbf16>, vector<8x208xf32> -> vector<8x208xf32>
    %c2_137 = arith.constant 2 : index
    %c0_138 = arith.constant 0 : index
    %c0_139 = arith.constant 0 : index
    %220 = vector.load %arg15[%c2_137, %c0_138, %c0_139] : memref<3x8x1xf32, #tpu.memory_space<vmem>>, vector<1x8x1xf32>
    %221 = vector.shape_cast %220 : vector<1x8x1xf32> to vector<8x1xf32>
    %222 = vector.broadcast %221 : vector<8x1xf32> to vector<8x208xf32>
    %223 = arith.addf %219, %222 : vector<8x208xf32>
    %224 = arith.addf %176, %223 : vector<8x208xf32>
    %cst_140 = arith.constant 0.000000e+00 : f32
    %225 = vector.shape_cast %65 : vector<1x208xi1> to vector<1x208xi1>
    %226 = vector.broadcast %225 : vector<1x208xi1> to vector<8x208xi1>
    %227 = vector.broadcast %cst_140 : f32 to vector<8x208xf32>
    %228 = arith.select %226, %224, %227 : vector<8x208xi1>, vector<8x208xf32>
    %229 = vector.extract_strided_slice %228 {offsets = [0, 40], sizes = [8, 128], strides = [1, 1]} : vector<8x208xf32> to vector<8x128xf32>
    %c0_141 = arith.constant 0 : index
    %c0_142 = arith.constant 0 : index
    %c0_143 = arith.constant 0 : index
    %230 = vector.load %arg16[%c0_141, %c0_142, %c0_143] : memref<1x8x128xf32, #tpu.memory_space<vmem>>, vector<1x8x128xf32>
    %231 = vector.shape_cast %230 : vector<1x8x128xf32> to vector<8x128xf32>
    %232 = vector.shape_cast %229 : vector<8x128xf32> to vector<1x8x128xf32>
    tpu.vector_store %arg16[%c0_141, %c0_142, %c0_143], %232 {strides = array<i32>} : memref<1x8x128xf32, #tpu.memory_space<vmem>>, vector<1x8x128xf32>,
    return
  }
  func.func @transform_0(%arg0: i32, %arg1: i32) -> (i32, i32, i32, i32) {
    %c0_i32 = arith.constant 0 : i32
    %c0_i32_0 = arith.constant 0 : i32
    %c0_i32_1 = arith.constant 0 : i32
    return %arg0, %arg1, %c0_i32, %c0_i32_0 : i32, i32, i32, i32
  }
  func.func @transform_1(%arg0: i32, %arg1: i32) -> (i32, i32) {
    %c0_i32 = arith.constant 0 : i32
    %c0_i32_0 = arith.constant 0 : i32
    %c0_i32_1 = arith.constant 0 : i32
    return %c0_i32, %c0_i32_0 : i32, i32
  }
  func.func @transform_2(%arg0: i32, %arg1: i32) -> (i32, i32) {
    %c0_i32 = arith.constant 0 : i32
    %c0_i32_0 = arith.constant 0 : i32
    %c0_i32_1 = arith.constant 0 : i32
    return %c0_i32, %c0_i32_0 : i32, i32
  }
  func.func @transform_3(%arg0: i32, %arg1: i32) -> (i32, i32) {
    %c0_i32 = arith.constant 0 : i32
    %c0_i32_0 = arith.constant 0 : i32
    %c0_i32_1 = arith.constant 0 : i32
    return %c0_i32, %c0_i32_0 : i32, i32
  }
  func.func @transform_4(%arg0: i32, %arg1: i32) -> (i32, i32) {
    %c0_i32 = arith.constant 0 : i32
    %c0_i32_0 = arith.constant 0 : i32
    %c0_i32_1 = arith.constant 0 : i32
    return %c0_i32, %c0_i32_0 : i32, i32
  }
  func.func @transform_5(%arg0: i32, %arg1: i32) -> (i32, i32) {
    %c0_i32 = arith.constant 0 : i32
    %c0_i32_0 = arith.constant 0 : i32
    %c0_i32_1 = arith.constant 0 : i32
    return %c0_i32, %c0_i32_0 : i32, i32
  }
  func.func @transform_6(%arg0: i32, %arg1: i32) -> (i32, i32, i32) {
    %c0_i32 = arith.constant 0 : i32
    %c0_i32_0 = arith.constant 0 : i32
    %c0_i32_1 = arith.constant 0 : i32
    %c0_i32_2 = arith.constant 0 : i32
    return %c0_i32, %c0_i32_0, %c0_i32_1 : i32, i32, i32
  }
  func.func @transform_7(%arg0: i32, %arg1: i32) -> (i32, i32, i32) {
    %c0_i32 = arith.constant 0 : i32
    %c0_i32_0 = arith.constant 0 : i32
    %c0_i32_1 = arith.constant 0 : i32
    %c0_i32_2 = arith.constant 0 : i32
    return %c0_i32, %c0_i32_0, %c0_i32_1 : i32, i32, i32
  }
  func.func @transform_8(%arg0: i32, %arg1: i32) -> (i32, i32, i32) {
    %c0_i32 = arith.constant 0 : i32
    %c0_i32_0 = arith.constant 0 : i32
    %c0_i32_1 = arith.constant 0 : i32
    %c0_i32_2 = arith.constant 0 : i32
    return %c0_i32, %c0_i32_0, %c0_i32_1 : i32, i32, i32
  }
  func.func @transform_9(%arg0: i32, %arg1: i32) -> (i32, i32, i32) {
    %c0_i32 = arith.constant 0 : i32
    %c0_i32_0 = arith.constant 0 : i32
    %c0_i32_1 = arith.constant 0 : i32
    %c0_i32_2 = arith.constant 0 : i32
    return %c0_i32, %c0_i32_0, %c0_i32_1 : i32, i32, i32
  }
  func.func @transform_10(%arg0: i32, %arg1: i32) -> (i32, i32, i32) {
    %c0_i32 = arith.constant 0 : i32
    %c0_i32_0 = arith.constant 0 : i32
    %c0_i32_1 = arith.constant 0 : i32
    %c0_i32_2 = arith.constant 0 : i32
    return %c0_i32, %c0_i32_0, %c0_i32_1 : i32, i32, i32
  }
  func.func @transform_11(%arg0: i32, %arg1: i32) -> (i32, i32, i32) {
    %c0_i32 = arith.constant 0 : i32
    %c0_i32_0 = arith.constant 0 : i32
    %c0_i32_1 = arith.constant 0 : i32
    %c0_i32_2 = arith.constant 0 : i32
    return %c0_i32, %c0_i32_0, %c0_i32_1 : i32, i32, i32
  }
  func.func @transform_12(%arg0: i32, %arg1: i32) -> (i32, i32, i32) {
    %c0_i32 = arith.constant 0 : i32
    %c0_i32_0 = arith.constant 0 : i32
    %c0_i32_1 = arith.constant 0 : i32
    %c0_i32_2 = arith.constant 0 : i32
    return %c0_i32, %c0_i32_0, %c0_i32_1 : i32, i32, i32
  }
  func.func @transform_13(%arg0: i32, %arg1: i32) -> (i32, i32, i32) {
    %c0_i32 = arith.constant 0 : i32
    %c0_i32_0 = arith.constant 0 : i32
    %c0_i32_1 = arith.constant 0 : i32
    %c0_i32_2 = arith.constant 0 : i32
    return %c0_i32, %c0_i32_0, %c0_i32_1 : i32, i32, i32
  }
  func.func @transform_14(%arg0: i32, %arg1: i32) -> (i32, i32, i32) {
    %c0_i32 = arith.constant 0 : i32
    %c0_i32_0 = arith.constant 0 : i32
    return %arg0, %c0_i32, %arg1 : i32, i32, i32
  }
}

</mosaic_0001>

<llo_original>
// kernel: tpu_custom_call.1
$region0: #{tpu_custom_call.1}
  #allocation0 [shape = 'u32[]', space=smem, size = 0x4, offset = 0x4, fixed_abs, tag = 'smem constant byte address 0x4 - core index']
  #allocation1 [shape = 'u32[72,128]{1,0:T(1,128)}', space=vmem, size = 0x9000, scoped, tag = 'internal scratch']
  #allocation2 [shape = 'bf16[8,262]{1,0:T(8,128)(2,1)}', space=vmem, size = 0x1800, scoped, tag = 'scratch operand']
  %s0 = inlined_call_operand.vmem [shape: f32[2,1,16,106], index: 0, kind: input, shape index: {}]
  %s1 = inlined_call_operand.vmem [shape: f32[16,1], index: 1, kind: input, shape index: {}]
  %s2 = inlined_call_operand.vmem [shape: f32[16,1], index: 2, kind: input, shape index: {}]
  %s3 = inlined_call_operand.vmem [shape: bf16[16,48], index: 3, kind: input, shape index: {}]
  %s4 = inlined_call_operand.vmem [shape: f32[8,1], index: 4, kind: input, shape index: {}]
  %s5 = inlined_call_operand.hbm [shape: f32[104,208], index: 5, kind: input, shape index: {}]
  %s6 = inlined_call_operand.vmem [shape: f32[3,8,1], index: 6, kind: input, shape index: {}]
  %s7 = inlined_call_operand.vmem [shape: f32[3,8,1], index: 7, kind: input, shape index: {}]
  %s8 = inlined_call_operand.vmem [shape: bf16[3,8,56], index: 8, kind: input, shape index: {}]
  %s9 = inlined_call_operand.vmem [shape: f32[3,8,1], index: 9, kind: input, shape index: {}]
  %s10 = inlined_call_operand.vmem [shape: f32[3,8,1], index: 10, kind: input, shape index: {}]
  %s11 = inlined_call_operand.vmem [shape: f32[3,8,1], index: 11, kind: input, shape index: {}]
  %s12 = inlined_call_operand.vmem [shape: bf16[3,8,8], index: 12, kind: input, shape index: {}]
  %s13 = inlined_call_operand.vmem [shape: f32[3,8,1], index: 13, kind: input, shape index: {}]
  %s14 = inlined_call_operand.hbm [shape: f32[2,8,128], index: 14, kind: output, shape index: {}]
  %s15 = sld [smem:[#allocation0]]
  $region93: #{tpu_custom_call.1} parent=0
    _
  %s17 = ssub.s32 1, %s15
  %s18 = scalar_select 0, %s17, %s15
  $region1: #{tpu_custom_call.1} parent=0
    #allocation3 [shape = 'u8[106496]{0}', space=vmem, size = 0x1a000, scoped, tag = 'input window, operand 5, single buffered']
    #allocation4 [shape = 's32[2]{0}', space=sflag, size = 0x8, scoped, tag = 'scoped memory for tpu_custom_call.1']
    #allocation5 [shape = 's32[2]{0}', space=sflag, size = 0x8, scoped, tag = 'scoped memory for tpu_custom_call.1']
    #allocation6 [shape = 'u8[8192]{0}', space=vmem, size = 0x2000, scoped, tag = 'output window, operand 0']
    %19 = vsyncpa [#allocation4], 0
    %20 = vsyncpa [#allocation5], 0
    %s21 = scalar_lea.sflag [#allocation5], 1
    %22 = vsyncpa %s21, 0
    loop: start=0, step=1, limit=4
    $region2: #{tpu_custom_call.1} parent=1 // loop_pre_header
      _
    $region3: #{tpu_custom_call.1} parent=1 // loop_header
      %s24 = sphi 0, %s28
      %p25 = scmp.ge.s32.totalorder %s24, 4
      %s31 = sphi 0, %s43
      %s32 = sphi 0, %s39
      %s33 = sphi 0, %s31
      %s34 = sphi 0, %s32
      %s35 = sphi 0, %s33
      %s36 = sphi 0, %s34
      %s48 = sphi 0, %s50
      %s51 = sphi 0, %s48
      %s52 = sphi 0, %s51
      %s68 = sphi 0, %s52
      %s72 = sphi 0, %s72
      %s74 = sphi 0, %s72
      %s75 = sphi 0, %s74
      %s89 = sphi 0, %s75
      %s93 = sphi 0, %s93
      %s95 = sphi 0, %s93
      %s96 = sphi 0, %s95
      %s110 = sphi 0, %s96
      %s114 = sphi 0, %s114
      %s116 = sphi 0, %s114
      %s117 = sphi 0, %s116
      %s131 = sphi 0, %s117
      %s135 = sphi 0, %s135
      %s137 = sphi 0, %s135
      %s138 = sphi 0, %s137
      %s152 = sphi 0, %s138
      %s156 = sphi 0, %s156
      %s158 = sphi 0, %s156
      %s159 = sphi 0, %s158
      %s173 = sphi 0, %s159
      %s177 = sphi 0, %s177
      %s179 = sphi 0, %s177
      %s180 = sphi 0, %s179
      %s194 = sphi 0, %s180
      %s198 = sphi 0, %s198
      %s200 = sphi 0, %s198
      %s201 = sphi 0, %s200
      %s215 = sphi 0, %s201
      %s219 = sphi 0, %s219
      %s221 = sphi 0, %s219
      %s222 = sphi 0, %s221
      %s236 = sphi 0, %s222
      %s240 = sphi 0, %s240
      %s242 = sphi 0, %s240
      %s243 = sphi 0, %s242
      %s257 = sphi 0, %s243
      %s261 = sphi 0, %s261
      %s263 = sphi 0, %s261
      %s264 = sphi 0, %s263
      %s278 = sphi 0, %s264
      %s282 = sphi 0, %s282
      %s284 = sphi 0, %s282
      %s285 = sphi 0, %s284
      %s299 = sphi 0, %s285
      %s303 = sphi 0, %s303
      %s305 = sphi 0, %s303
      %s306 = sphi 0, %s305
      %s320 = sphi 0, %s306
      %s324 = sphi 0, %s324
      %s326 = sphi 0, %s324
      %s327 = sphi 0, %s326
      %s341 = sphi 0, %s327
      %s349 = sphi 0, %s351
      %s352 = sphi 0, %s349
      %s353 = sphi 0, %s352
      %s369 = sphi 0, %s353
    $region4: #{tpu_custom_call.1} parent=1 // loop_header_branch
      %27 = sbr.rel (%p25) target = $region8
    $region5: #{tpu_custom_call.1} parent=1 // loop_body
      %s29 = ssub.s32 %s24, 1
      %s30 = ssub.s32 %s24, 2
      %s37 = sadd.s32 1, %s32
      %p38 = scmp.ge.s32.totalorder %s37, 1
      %s39 = scalar_select %p38, 0, %s37
      %s40 = sadd.s32 1, %s31
      %s41 = scalar_select %p38, %s40, %s31
      %p42 = scmp.ge.s32.totalorder %s41, 2
      %s43 = scalar_select %p42, 0, %s41
      %s44 = ssub.s32 %s31, %s43
      %s45 = ssub.s32 %s32, %s39
      %s46 = sor.u32 %s44, %s45
      %p47 = scmp.eq.s32.totalorder %s46, 0
      %s49 = sadd.s32 %s48, 1
      %s50 = scalar_select %p47, %s48, %s49
      %p53 = pneg %p47
      %p54 = scmp.eq.s32.totalorder %s24, 1
      %p55 = por %p53, %p54
      %p56 = scmp.ne.s32.totalorder %s48, %s51
      %p57 = scmp.eq.s32.totalorder %s24, 0
      %p58 = por %p56, %p57
      %p59 = scmp.ne.s32.totalorder %s48, %s51
      %p60 = scmp.eq.s32.totalorder %s29, 1
      %p61 = por %p59, %p60
      %p62 = scmp.ne.s32.totalorder %s51, %s52
      %p63 = scmp.eq.s32.totalorder %s29, 0
      %p64 = por %p62, %p63
      %p65 = scmp.ne.s32.totalorder %s51, %s52
      %p66 = scmp.eq.s32.totalorder %s30, 1
      %p67 = por %p65, %p66
      %p69 = scmp.ne.s32.totalorder %s52, %s68
      %p70 = scmp.eq.s32.totalorder %s30, 0
      %p71 = por %p69, %p70
      %s73 = sadd.s32 %s72, 1
      %p76 = scmp.eq.s32.totalorder %s24, 1
      %p77 = scmp.ne.s32.totalorder %s72, %s74
      %p78 = scmp.eq.s32.totalorder %s24, 0
      %p79 = por %p77, %p78
      %p80 = scmp.ne.s32.totalorder %s72, %s74
      %p81 = scmp.eq.s32.totalorder %s29, 1
      %p82 = por %p80, %p81
      %p83 = scmp.ne.s32.totalorder %s74, %s75
      %p84 = scmp.eq.s32.totalorder %s29, 0
      %p85 = por %p83, %p84
      %p86 = scmp.ne.s32.totalorder %s74, %s75
      %p87 = scmp.eq.s32.totalorder %s30, 1
      %p88 = por %p86, %p87
      %p90 = scmp.ne.s32.totalorder %s75, %s89
      %p91 = scmp.eq.s32.totalorder %s30, 0
      %p92 = por %p90, %p91
      %s94 = sadd.s32 %s93, 1
      %p97 = scmp.eq.s32.totalorder %s24, 1
      %p98 = scmp.ne.s32.totalorder %s93, %s95
      %p99 = scmp.eq.s32.totalorder %s24, 0
      %p100 = por %p98, %p99
      %p101 = scmp.ne.s32.totalorder %s93, %s95
      %p102 = scmp.eq.s32.totalorder %s29, 1
      %p103 = por %p101, %p102
      %p104 = scmp.ne.s32.totalorder %s95, %s96
      %p105 = scmp.eq.s32.totalorder %s29, 0
      %p106 = por %p104, %p105
      %p107 = scmp.ne.s32.totalorder %s95, %s96
      %p108 = scmp.eq.s32.totalorder %s30, 1
      %p109 = por %p107, %p108
      %p111 = scmp.ne.s32.totalorder %s96, %s110
      %p112 = scmp.eq.s32.totalorder %s30, 0
      %p113 = por %p111, %p112
      %s115 = sadd.s32 %s114, 1
      %p118 = scmp.eq.s32.totalorder %s24, 1
      %p119 = scmp.ne.s32.totalorder %s114, %s116
      %p120 = scmp.eq.s32.totalorder %s24, 0
      %p121 = por %p119, %p120
      %p122 = scmp.ne.s32.totalorder %s114, %s116
      %p123 = scmp.eq.s32.totalorder %s29, 1
      %p124 = por %p122, %p123
      %p125 = scmp.ne.s32.totalorder %s116, %s117
      %p126 = scmp.eq.s32.totalorder %s29, 0
      %p127 = por %p125, %p126
      %p128 = scmp.ne.s32.totalorder %s116, %s117
      %p129 = scmp.eq.s32.totalorder %s30, 1
      %p130 = por %p128, %p129
      %p132 = scmp.ne.s32.totalorder %s117, %s131
      %p133 = scmp.eq.s32.totalorder %s30, 0
      %p134 = por %p132, %p133
      %s136 = sadd.s32 %s135, 1
      %p139 = scmp.eq.s32.totalorder %s24, 1
      %p140 = scmp.ne.s32.totalorder %s135, %s137
      %p141 = scmp.eq.s32.totalorder %s24, 0
      %p142 = por %p140, %p141
      %p143 = scmp.ne.s32.totalorder %s135, %s137
      %p144 = scmp.eq.s32.totalorder %s29, 1
      %p145 = por %p143, %p144
      %p146 = scmp.ne.s32.totalorder %s137, %s138
      %p147 = scmp.eq.s32.totalorder %s29, 0
      %p148 = por %p146, %p147
      %p149 = scmp.ne.s32.totalorder %s137, %s138
      %p150 = scmp.eq.s32.totalorder %s30, 1
      %p151 = por %p149, %p150
      %p153 = scmp.ne.s32.totalorder %s138, %s152
      %p154 = scmp.eq.s32.totalorder %s30, 0
      %p155 = por %p153, %p154
      %s157 = sadd.s32 %s156, 1
      %p160 = scmp.eq.s32.totalorder %s24, 1
      %p161 = scmp.ne.s32.totalorder %s156, %s158
      %p162 = scmp.eq.s32.totalorder %s24, 0
      %p163 = por %p161, %p162
      %p164 = scmp.ne.s32.totalorder %s156, %s158
      %p165 = scmp.eq.s32.totalorder %s29, 1
      %p166 = por %p164, %p165
      %p167 = scmp.ne.s32.totalorder %s158, %s159
      %p168 = scmp.eq.s32.totalorder %s29, 0
      %p169 = por %p167, %p168
      %p170 = scmp.ne.s32.totalorder %s158, %s159
      %p171 = scmp.eq.s32.totalorder %s30, 1
      %p172 = por %p170, %p171
      %p174 = scmp.ne.s32.totalorder %s159, %s173
      %p175 = scmp.eq.s32.totalorder %s30, 0
      %p176 = por %p174, %p175
      %s178 = sadd.s32 %s177, 1
      %p181 = scmp.eq.s32.totalorder %s24, 1
      %p182 = scmp.ne.s32.totalorder %s177, %s179
      %p183 = scmp.eq.s32.totalorder %s24, 0
      %p184 = por %p182, %p183
      %p185 = scmp.ne.s32.totalorder %s177, %s179
      %p186 = scmp.eq.s32.totalorder %s29, 1
      %p187 = por %p185, %p186
      %p188 = scmp.ne.s32.totalorder %s179, %s180
      %p189 = scmp.eq.s32.totalorder %s29, 0
      %p190 = por %p188, %p189
      %p191 = scmp.ne.s32.totalorder %s179, %s180
      %p192 = scmp.eq.s32.totalorder %s30, 1
      %p193 = por %p191, %p192
      %p195 = scmp.ne.s32.totalorder %s180, %s194
      %p196 = scmp.eq.s32.totalorder %s30, 0
      %p197 = por %p195, %p196
      %s199 = sadd.s32 %s198, 1
      %p202 = scmp.eq.s32.totalorder %s24, 1
      %p203 = scmp.ne.s32.totalorder %s198, %s200
      %p204 = scmp.eq.s32.totalorder %s24, 0
      %p205 = por %p203, %p204
      %p206 = scmp.ne.s32.totalorder %s198, %s200
      %p207 = scmp.eq.s32.totalorder %s29, 1
      %p208 = por %p206, %p207
      %p209 = scmp.ne.s32.totalorder %s200, %s201
      %p210 = scmp.eq.s32.totalorder %s29, 0
      %p211 = por %p209, %p210
      %p212 = scmp.ne.s32.totalorder %s200, %s201
      %p213 = scmp.eq.s32.totalorder %s30, 1
      %p214 = por %p212, %p213
      %p216 = scmp.ne.s32.totalorder %s201, %s215
      %p217 = scmp.eq.s32.totalorder %s30, 0
      %p218 = por %p216, %p217
      %s220 = sadd.s32 %s219, 1
      %p223 = scmp.eq.s32.totalorder %s24, 1
      %p224 = scmp.ne.s32.totalorder %s219, %s221
      %p225 = scmp.eq.s32.totalorder %s24, 0
      %p226 = por %p224, %p225
      %p227 = scmp.ne.s32.totalorder %s219, %s221
      %p228 = scmp.eq.s32.totalorder %s29, 1
      %p229 = por %p227, %p228
      %p230 = scmp.ne.s32.totalorder %s221, %s222
      %p231 = scmp.eq.s32.totalorder %s29, 0
      %p232 = por %p230, %p231
      %p233 = scmp.ne.s32.totalorder %s221, %s222
      %p234 = scmp.eq.s32.totalorder %s30, 1
      %p235 = por %p233, %p234
      %p237 = scmp.ne.s32.totalorder %s222, %s236
      %p238 = scmp.eq.s32.totalorder %s30, 0
      %p239 = por %p237, %p238
      %s241 = sadd.s32 %s240, 1
      %p244 = scmp.eq.s32.totalorder %s24, 1
      %p245 = scmp.ne.s32.totalorder %s240, %s242
      %p246 = scmp.eq.s32.totalorder %s24, 0
      %p247 = por %p245, %p246
      %p248 = scmp.ne.s32.totalorder %s240, %s242
      %p249 = scmp.eq.s32.totalorder %s29, 1
      %p250 = por %p248, %p249
      %p251 = scmp.ne.s32.totalorder %s242, %s243
      %p252 = scmp.eq.s32.totalorder %s29, 0
      %p253 = por %p251, %p252
      %p254 = scmp.ne.s32.totalorder %s242, %s243
      %p255 = scmp.eq.s32.totalorder %s30, 1
      %p256 = por %p254, %p255
      %p258 = scmp.ne.s32.totalorder %s243, %s257
      %p259 = scmp.eq.s32.totalorder %s30, 0
      %p260 = por %p258, %p259
      %s262 = sadd.s32 %s261, 1
      %p265 = scmp.eq.s32.totalorder %s24, 1
      %p266 = scmp.ne.s32.totalorder %s261, %s263
      %p267 = scmp.eq.s32.totalorder %s24, 0
      %p268 = por %p266, %p267
      %p269 = scmp.ne.s32.totalorder %s261, %s263
      %p270 = scmp.eq.s32.totalorder %s29, 1
      %p271 = por %p269, %p270
      %p272 = scmp.ne.s32.totalorder %s263, %s264
      %p273 = scmp.eq.s32.totalorder %s29, 0
      %p274 = por %p272, %p273
      %p275 = scmp.ne.s32.totalorder %s263, %s264
      %p276 = scmp.eq.s32.totalorder %s30, 1
      %p277 = por %p275, %p276
      %p279 = scmp.ne.s32.totalorder %s264, %s278
      %p280 = scmp.eq.s32.totalorder %s30, 0
      %p281 = por %p279, %p280
      %s283 = sadd.s32 %s282, 1
      %p286 = scmp.eq.s32.totalorder %s24, 1
      %p287 = scmp.ne.s32.totalorder %s282, %s284
      %p288 = scmp.eq.s32.totalorder %s24, 0
      %p289 = por %p287, %p288
      %p290 = scmp.ne.s32.totalorder %s282, %s284
      %p291 = scmp.eq.s32.totalorder %s29, 1
      %p292 = por %p290, %p291
      %p293 = scmp.ne.s32.totalorder %s284, %s285
      %p294 = scmp.eq.s32.totalorder %s29, 0
      %p295 = por %p293, %p294
      %p296 = scmp.ne.s32.totalorder %s284, %s285
      %p297 = scmp.eq.s32.totalorder %s30, 1
      %p298 = por %p296, %p297
      %p300 = scmp.ne.s32.totalorder %s285, %s299
      %p301 = scmp.eq.s32.totalorder %s30, 0
      %p302 = por %p300, %p301
      %s304 = sadd.s32 %s303, 1
      %p307 = scmp.eq.s32.totalorder %s24, 1
      %p308 = scmp.ne.s32.totalorder %s303, %s305
      %p309 = scmp.eq.s32.totalorder %s24, 0
      %p310 = por %p308, %p309
      %p311 = scmp.ne.s32.totalorder %s303, %s305
      %p312 = scmp.eq.s32.totalorder %s29, 1
      %p313 = por %p311, %p312
      %p314 = scmp.ne.s32.totalorder %s305, %s306
      %p315 = scmp.eq.s32.totalorder %s29, 0
      %p316 = por %p314, %p315
      %p317 = scmp.ne.s32.totalorder %s305, %s306
      %p318 = scmp.eq.s32.totalorder %s30, 1
      %p319 = por %p317, %p318
      %p321 = scmp.ne.s32.totalorder %s306, %s320
      %p322 = scmp.eq.s32.totalorder %s30, 0
      %p323 = por %p321, %p322
      %s325 = sadd.s32 %s324, 1
      %p328 = scmp.eq.s32.totalorder %s24, 1
      %p329 = scmp.ne.s32.totalorder %s324, %s326
      %p330 = scmp.eq.s32.totalorder %s24, 0
      %p331 = por %p329, %p330
      %p332 = scmp.ne.s32.totalorder %s324, %s326
      %p333 = scmp.eq.s32.totalorder %s29, 1
      %p334 = por %p332, %p333
      %p335 = scmp.ne.s32.totalorder %s326, %s327
      %p336 = scmp.eq.s32.totalorder %s29, 0
      %p337 = por %p335, %p336
      %p338 = scmp.ne.s32.totalorder %s326, %s327
      %p339 = scmp.eq.s32.totalorder %s30, 1
      %p340 = por %p338, %p339
      %p342 = scmp.ne.s32.totalorder %s327, %s341
      %p343 = scmp.eq.s32.totalorder %s30, 0
      %p344 = por %p342, %p343
      %s345 = ssub.s32 %s31, %s43
      %s346 = ssub.s32 %s32, %s39
      %s347 = sor.u32 %s345, %s346
      %p348 = scmp.eq.s32.totalorder %s347, 0
      %s350 = sadd.s32 %s349, 1
      %s351 = scalar_select %p348, %s349, %s350
      %p354 = pneg %p348
      %p355 = scmp.eq.s32.totalorder %s24, 1
      %p356 = por %p354, %p355
      %p357 = scmp.ne.s32.totalorder %s349, %s352
      %p358 = scmp.eq.s32.totalorder %s24, 0
      %p359 = por %p357, %p358
      %p360 = scmp.ne.s32.totalorder %s349, %s352
      %p361 = scmp.eq.s32.totalorder %s29, 1
      %p362 = por %p360, %p361
      %p363 = scmp.ne.s32.totalorder %s352, %s353
      %p364 = scmp.eq.s32.totalorder %s29, 0
      %p365 = por %p363, %p364
      %p366 = scmp.ne.s32.totalorder %s352, %s353
      %p367 = scmp.eq.s32.totalorder %s30, 1
      %p368 = por %p366, %p367
      %p370 = scmp.ne.s32.totalorder %s353, %s369
      %p371 = scmp.eq.s32.totalorder %s30, 0
      %p372 = por %p370, %p371
      %p373 = scmp.le.s32.totalorder 1, %s24
      %p374 = scmp.lt.s32.totalorder %s24, 3
      %p375 = pnand %p373, %p374
      %p376 = pneg %p375
      // Predicated region
      $region9: #{tpu_custom_call.1} parent=5 // pred_check
        _
      $region10: #{tpu_custom_call.1} parent=5 // pred_check_branch
        %378 = sbr.rel (%p375) target = $region12
      $region11: #{tpu_custom_call.1} parent=5 // pred_region
        %s379 = ssub.s32 %s24, 1
        // Predicated region
        $region13: #{tpu_custom_call.1} parent=11 // pred_check
          %p380 = pneg %p85
        $region14: #{tpu_custom_call.1} parent=11 // pred_check_branch
          %382 = sbr.rel (%p380) target = $region16
        $region15: #{tpu_custom_call.1} parent=11 // pred_region
          _
        $region16: #{tpu_custom_call.1} parent=11 // pred_fallthru
          _
        // Predicated region
        $region17: #{tpu_custom_call.1} parent=11 // pred_check
          %p383 = pneg %p106
        $region18: #{tpu_custom_call.1} parent=11 // pred_check_branch
          %385 = sbr.rel (%p383) target = $region20
        $region19: #{tpu_custom_call.1} parent=11 // pred_region
          _
        $region20: #{tpu_custom_call.1} parent=11 // pred_fallthru
          _
        // Predicated region
        $region21: #{tpu_custom_call.1} parent=11 // pred_check
          %p386 = pneg %p127
        $region22: #{tpu_custom_call.1} parent=11 // pred_check_branch
          %388 = sbr.rel (%p386) target = $region24
        $region23: #{tpu_custom_call.1} parent=11 // pred_region
          _
        $region24: #{tpu_custom_call.1} parent=11 // pred_fallthru
          _
        // Predicated region
        $region25: #{tpu_custom_call.1} parent=11 // pred_check
          %p389 = pneg %p148
        $region26: #{tpu_custom_call.1} parent=11 // pred_check_branch
          %391 = sbr.rel (%p389) target = $region28
        $region27: #{tpu_custom_call.1} parent=11 // pred_region
          _
        $region28: #{tpu_custom_call.1} parent=11 // pred_fallthru
          _
        // Predicated region
        $region29: #{tpu_custom_call.1} parent=11 // pred_check
          %p392 = pneg %p169
        $region30: #{tpu_custom_call.1} parent=11 // pred_check_branch
          %394 = sbr.rel (%p392) target = $region32
        $region31: #{tpu_custom_call.1} parent=11 // pred_region
          %396 = vsyncadd [#allocation4], 0
          %s397 = sshll.u32 %s5, 4
          %s398 = int_to_ptr.hbm [resolvable:$true] %s397
          %s399 = sshll.u32 [#allocation3], 4
          %s400 = int_to_ptr.vmem [resolvable:$true] %s399
          %405 = dma.hbm_to_vmem [thread:$0]  %s398, 3328, %s400, [#allocation4], 256, 256, 16
        $region32: #{tpu_custom_call.1} parent=11 // pred_fallthru
          _
        // Predicated region
        $region33: #{tpu_custom_call.1} parent=11 // pred_check
          %p406 = pneg %p190
        $region34: #{tpu_custom_call.1} parent=11 // pred_check_branch
          %408 = sbr.rel (%p406) target = $region36
        $region35: #{tpu_custom_call.1} parent=11 // pred_region
          _
        $region36: #{tpu_custom_call.1} parent=11 // pred_fallthru
          _
        // Predicated region
        $region37: #{tpu_custom_call.1} parent=11 // pred_check
          %p409 = pneg %p211
        $region38: #{tpu_custom_call.1} parent=11 // pred_check_branch
          %411 = sbr.rel (%p409) target = $region40
        $region39: #{tpu_custom_call.1} parent=11 // pred_region
          _
        $region40: #{tpu_custom_call.1} parent=11 // pred_fallthru
          _
        // Predicated region
        $region41: #{tpu_custom_call.1} parent=11 // pred_check
          %p412 = pneg %p232
        $region42: #{tpu_custom_call.1} parent=11 // pred_check_branch
          %414 = sbr.rel (%p412) target = $region44
        $region43: #{tpu_custom_call.1} parent=11 // pred_region
          _
        $region44: #{tpu_custom_call.1} parent=11 // pred_fallthru
          _
        // Predicated region
        $region45: #{tpu_custom_call.1} parent=11 // pred_check
          %p415 = pneg %p253
        $region46: #{tpu_custom_call.1} parent=11 // pred_check_branch
          %417 = sbr.rel (%p415) target = $region48
        $region47: #{tpu_custom_call.1} parent=11 // pred_region
          _
        $region48: #{tpu_custom_call.1} parent=11 // pred_fallthru
          _
        // Predicated region
        $region49: #{tpu_custom_call.1} parent=11 // pred_check
          %p418 = pneg %p274
        $region50: #{tpu_custom_call.1} parent=11 // pred_check_branch
          %420 = sbr.rel (%p418) target = $region52
        $region51: #{tpu_custom_call.1} parent=11 // pred_region
          _
        $region52: #{tpu_custom_call.1} parent=11 // pred_fallthru
          _
        // Predicated region
        $region53: #{tpu_custom_call.1} parent=11 // pred_check
          %p421 = pneg %p295
        $region54: #{tpu_custom_call.1} parent=11 // pred_check_branch
          %423 = sbr.rel (%p421) target = $region56
        $region55: #{tpu_custom_call.1} parent=11 // pred_region
          _
        $region56: #{tpu_custom_call.1} parent=11 // pred_fallthru
          _
        // Predicated region
        $region57: #{tpu_custom_call.1} parent=11 // pred_check
          %p424 = pneg %p316
        $region58: #{tpu_custom_call.1} parent=11 // pred_check_branch
          %426 = sbr.rel (%p424) target = $region60
        $region59: #{tpu_custom_call.1} parent=11 // pred_region
          _
        $region60: #{tpu_custom_call.1} parent=11 // pred_fallthru
          _
        // Predicated region
        $region61: #{tpu_custom_call.1} parent=11 // pred_check
          %p427 = pneg %p337
        $region62: #{tpu_custom_call.1} parent=11 // pred_check_branch
          %429 = sbr.rel (%p427) target = $region64
        $region63: #{tpu_custom_call.1} parent=11 // pred_region
          _
        $region64: #{tpu_custom_call.1} parent=11 // pred_fallthru
          _
      $region12: #{tpu_custom_call.1} parent=5 // pred_fallthru
        _
      %p430 = scmp.lt.s32.totalorder %s24, 2
      // Predicated region
      $region65: #{tpu_custom_call.1} parent=5 // pred_check
        %p431 = pneg %p430
      $region66: #{tpu_custom_call.1} parent=5 // pred_check_branch
        %433 = sbr.rel (%p431) target = $region68
      $region67: #{tpu_custom_call.1} parent=5 // pred_region
        // Predicated region
        $region69: #{tpu_custom_call.1} parent=67 // pred_check
          %p434 = pneg %p58
        $region70: #{tpu_custom_call.1} parent=67 // pred_check_branch
          %436 = sbr.rel (%p434) target = $region72
        $region71: #{tpu_custom_call.1} parent=67 // pred_region
          %p437 = scmp.lt.s32.totalorder %s31, 1
          %s438 = scalar_select %p437, %s31, 1
          %p439 = scmp.lt.s32.totalorder %s32, 0
          %s440 = scalar_select %p439, %s32, 0
          %s441 = smul.addr %s440, 2
          %s442 = smul.addr %s438, 2
          %s443 = sadd.s32 %s441, %s442
          %s444 = smul.addr %s443, 8
          %s445 = scalar_lea.vmem %s0, %s444
        $region72: #{tpu_custom_call.1} parent=67 // pred_fallthru
          _
      $region68: #{tpu_custom_call.1} parent=5 // pred_fallthru
        _
      %p446 = scmp.le.s32.totalorder 1, %s24
      %p447 = scmp.lt.s32.totalorder %s24, 3
      %p448 = pnand %p446, %p447
      %p449 = pneg %p448
      // Predicated region
      $region73: #{tpu_custom_call.1} parent=5 // pred_check
        _
      $region74: #{tpu_custom_call.1} parent=5 // pred_check_branch
        %451 = sbr.rel (%p448) target = $region76
      $region75: #{tpu_custom_call.1} parent=5 // pred_region
        %s452 = ssub.s32 %s24, 1
        // Predicated region
        $region77: #{tpu_custom_call.1} parent=75 // pred_check
          %p453 = pneg %p169
        $region78: #{tpu_custom_call.1} parent=75 // pred_check_branch
          %455 = sbr.rel (%p453) target = $region80
        $region79: #{tpu_custom_call.1} parent=75 // pred_region
          %457 = dma.done [#allocation4], 3328
        $region80: #{tpu_custom_call.1} parent=75 // pred_fallthru
          _
        %p458 = scmp.lt.s32.totalorder %s33, 1
        %s459 = scalar_select %p458, %s33, 1
        %p460 = scmp.lt.s32.totalorder %s34, 0
        %s461 = scalar_select %p460, %s34, 0
        %s462 = smul.addr %s461, 2
        %s463 = smul.addr %s459, 2
        %s464 = sadd.s32 %s462, %s463
        %s465 = smul.addr %s464, 8
        %s466 = scalar_lea.vmem %s0, %s465
        %p467 = pneg %p64
        %p468 = pneg %p61
        %p469 = pneg %p85
        %p470 = pneg %p82
        %p471 = pneg %p106
        %p472 = pneg %p103
        %p473 = pneg %p127
        %p474 = pneg %p124
        %p475 = pneg %p148
        %p476 = pneg %p145
        %p477 = pneg %p169
        %p478 = pneg %p166
        %p479 = pneg %p190
        %p480 = pneg %p187
        %p481 = pneg %p211
        %p482 = pneg %p208
        %p483 = pneg %p232
        %p484 = pneg %p229
        %p485 = pneg %p253
        %p486 = pneg %p250
        %p487 = pneg %p274
        %p488 = pneg %p271
        %p489 = pneg %p295
        %p490 = pneg %p292
        %p491 = pneg %p316
        %p492 = pneg %p313
        %p493 = pneg %p337
        %p494 = pneg %p334
        %p495 = pneg %p365
        %p496 = pneg %p362
        %s497 = sand.u32 %s352, 1
        %s498 = scalar_lea.sflag [#allocation5], %s497
        %s499 = sand.u32 %s352, 1
        %s500 = smul.addr %s499, 8
        %s501 = scalar_lea.vmem [#allocation6], %s500
        %p502 = scmp.lt.s32.totalorder %s33, 1
        %s503 = scalar_select %p502, %s33, 1
        %p504 = scmp.lt.s32.totalorder %s34, 0
        %s505 = scalar_select %p504, %s34, 0
        %s506 = smul.addr %s505, 2
        %s507 = smul.addr %s503, 2
        %s508 = sadd.s32 %s506, %s507
        %s509 = smul.addr %s508, 8
        %s510 = scalar_lea.vmem %s0, %s509
        %v512 = vlaneseq
        %v513 = vand.u32 %v512, 127
        %v514 = vadd.s32 %v513, 128
        %v515 = vld [vmem:[%s510] sm:$0xff]
        %v516 = vld [vmem:[%s510 + $0x8] sm:$0xff]
        %v517 = vld [vmem:[%s1] sm:$0xff]
        %v518 = vld [vmem:[%s1 + $0x8] sm:$0xff]
        %v519 = vld [vmem:[%s2] sm:$0xff]
        %v520 = vld [vmem:[%s2 + $0x8] sm:$0xff]
        %522 = vset.pattern.permute.xlu0 0
        %523 = vperm.xlu0 %522, %v517
        %v524 = vpop.permute.xlu0 %523
        %527 = vset.pattern.permute.xlu0 0
        %528 = vperm.xlu0 %527, %v518
        %v529 = vpop.permute.xlu0 %528
        %v531 = vmul.f32 %v524, %v515
        %v532 = vmul.f32 %v529, %v516
        %v533 = vand.u32 2147483647, %v531
        %vm534 = vcmp.le.f32.partialorder %v533, 0.7853982
        %vm535 = vcmp.lt.s32.totalorder %v531, 0
        %v536 = vand.u32 %v531, 2139095040
        %v537 = vshrl.u32 %v536, 23
        %v538 = vsub.s32 %v537, 127
        %v539 = vand.u32 2147483647, %v531
        %v540 = vand.u32 %v539, 8388607
        %v541 = vor.u32 %v540, 8388608
        %v542 = vsub.s32 0, %v541
        %v543 = vadd.s32 %v538, 1
        %vm544 = vcmp.gt.s32.totalorder %v543, 0
        %v545 = vsel %vm544, %v543, 0
        %v546 = vshrl.u32 %v545, 5
        %v547 = vand.u32 %v545, 31
        %v548 = vsub.s32 32, %v547
        %v549 = vshrl.u32 683565275, %v548
        %v550 = vshll.u32 683565275, %v547
        %v551 = vshrl.u32 2475754826, %v548
        %v552 = vor.u32 %v550, %v551
        %v553 = vshll.u32 2475754826, %v547
        %v554 = vshrl.u32 2131351028, %v548
        %v555 = vor.u32 %v553, %v554
        %v556 = vshll.u32 2131351028, %v547
        %v557 = vshrl.u32 2102212464, %v548
        %v558 = vor.u32 %v556, %v557
        %v559 = vshll.u32 2102212464, %v547
        %v560 = vshrl.u32 920167782, %v548
        %v561 = vor.u32 %v559, %v560
        %v562 = vshll.u32 920167782, %v547
        %v563 = vshrl.u32 1326507024, %v548
        %v564 = vor.u32 %v562, %v563
        %vm565 = vcmp.lt.s32.totalorder %v546, 1
        %vm566 = vcmp.lt.s32.totalorder %v546, 2
        %vm567 = vcmp.lt.s32.totalorder %v546, 3
        %vm568 = vcmp.lt.s32.totalorder %v546, 4
        %v569 = vsel %vm565, %v549, %v552
        %v570 = vsel %vm568, %v558, 2102212464
        %v571 = vsel %vm567, %v555, %v570
        %v572 = vsel %vm566, %v569, %v571
        %v573 = vsel %vm565, %v552, %v555
        %v574 = vsel %vm568, %v561, 920167782
        %v575 = vsel %vm567, %v558, %v574
        %v576 = vsel %vm566, %v573, %v575
        %v577 = vsel %vm565, %v555, %v558
        %v578 = vsel %vm568, %v564, 1326507024
        %v579 = vsel %vm567, %v561, %v578
        %v580 = vsel %vm566, %v577, %v579
        %v581 = vshll.u32 %v541, 8
        %v582 = vand.u32 %v581, 65535
        %v583 = vshrl.u32 %v581, 16
        %v584 = vand.u32 %v580, 65535
        %v585 = vshrl.u32 %v580, 16
        %v586 = vmul.u32 %v582, %v584
        %v587 = vmul.u32 %v582, %v585
        %v588 = vmul.u32 %v583, %v584
        %v589 = vmul.u32 %v583, %v585
        %v590 = vshll.u32 %v587, 16
        %v591 = vshrl.u32 %v587, 16
        %v592 = vshll.u32 %v588, 16
        %v593 = vshrl.u32 %v588, 16
        %vm594 = vc.u32 %v586, %v590
        %v595 = vsel %vm594, 1, 0
        %v596 = vadd.s32 %v586, %v590
        %v597 = vadd.s32 %v589, %v595
        %vm598 = vc.u32 %v596, %v592
        %v599 = vsel %vm598, 1, 0
        %v600 = vadd.s32 %v596, %v592
        %v601 = vadd.s32 %v597, %v599
        %v602 = vadd.s32 %v601, %v591
        %v603 = vadd.s32 %v602, %v593
        %v604 = vand.u32 %v581, 65535
        %v605 = vshrl.u32 %v581, 16
        %v606 = vand.u32 %v576, 65535
        %v607 = vshrl.u32 %v576, 16
        %v608 = vmul.u32 %v604, %v606
        %v609 = vmul.u32 %v604, %v607
        %v610 = vmul.u32 %v605, %v606
        %v611 = vmul.u32 %v605, %v607
        %v612 = vshll.u32 %v609, 16
        %v613 = vshrl.u32 %v609, 16
        %v614 = vshll.u32 %v610, 16
        %v615 = vshrl.u32 %v610, 16
        %vm616 = vc.u32 %v608, %v612
        %v617 = vsel %vm616, 1, 0
        %v618 = vadd.s32 %v608, %v612
        %v619 = vadd.s32 %v611, %v617
        %vm620 = vc.u32 %v618, %v614
        %v621 = vsel %vm620, 1, 0
        %v622 = vadd.s32 %v618, %v614
        %v623 = vadd.s32 %v619, %v621
        %v624 = vadd.s32 %v623, %v613
        %v625 = vadd.s32 %v624, %v615
        %v626 = vmul.u32 %v581, %v572
        %v627 = vadd.s32 %v603, %v622
        %vm628 = vc.u32 %v603, %v622
        %v629 = vadd.s32 %v625, 1
        %v630 = vsel %vm628, %v629, %v625
        %v631 = vadd.s32 %v626, %v630
        %v632 = vadd.s32 %v631, 536870912
        %v633 = vshrl.u32 %v632, 30
        %v634 = vshll.u32 %v633, 30
        %v635 = vsub.s32 %v631, %v634
        %vm636 = vcmp.lt.s32.totalorder %v635, 0
        %v637 = vsub.s32 0, %v635
        %v638 = vsel %vm636, %v637, %v635
        %v639 = vclz %v638
        %v640 = vsub.s32 %v639, 2
        %vm641 = vcmp.gt.s32.totalorder 0, %v640
        %v642 = vsel %vm641, 0, %v640
        %v643 = vsub.s32 32, %v642
        %v644 = vshll.u32 %v635, %v642
        %v645 = vshrl.u32 %v627, %v643
        %v646 = vor.u32 %v644, %v645
        %v647 = vsub.s32 4294967266, %v642
        %v648 = vadd.s32 %v647, 127
        %v649 = vshll.u32 %v648, 23
        %v650 = vor.u32 4788187, %v649
        %v651 = vand.u32 2147483647, %v650
        %v653 = vcvt.s32.f32 %v646
        %v654 = vmul.f32 %v653, %v651
        %v655 = vxor.u32 %v654, 2147483648
        %v656 = vsel %vm535, %v655, %v654
        %v657 = vsub.s32 4, %v633
        %v658 = vsel %vm535, %v657, %v633
        %v659 = vsel %vm534, %v531, %v656
        %v660 = vsel %vm534, 0, %v658
        %v661 = vmul.f32 %v659, %v659
        %v662 = vmul.f32 %v661, -0.001358992
        %v663 = vadd.f32 %v662, 0.041655596
        %v664 = vmul.f32 %v661, %v663
        %v665 = vadd.f32 %v664, -0.4999988
        %v666 = vmul.f32 %v661, %v665
        %v667 = vadd.f32 1.0, %v666
        %v668 = vmul.f32 %v659, %v659
        %v669 = vmul.f32 %v668, -0.00019511016
        %v670 = vadd.f32 %v669, 0.008332121
        %v671 = vmul.f32 %v668, %v670
        %v672 = vadd.f32 %v671, -0.16666654
        %v673 = vmul.f32 %v668, %v672
        %v674 = vadd.f32 %v673, 1.0
        %v675 = vmul.f32 %v674, %v659
        %vm676 = vweird.f32 %v531
        %v677 = vadd.s32 %v660, 3
        %v678 = vand.u32 %v677, 3
        %vm679 = vcmp.lt.s32.totalorder %v678, 2
        %vm680 = vcmp.eq.s32.totalorder %v678, 0
        %v681 = vxor.u32 %v675, 2147483648
        %v682 = vsel %vm680, %v667, %v681
        %vm683 = vcmp.eq.s32.totalorder %v678, 2
        %v684 = vxor.u32 %v667, 2147483648
        %v685 = vsel %vm683, %v684, %v675
        %v686 = vsel %vm679, %v682, %v685
        %v687 = vsel %vm676, nan, %v686
        %v688 = vand.u32 2147483647, %v532
        %vm689 = vcmp.le.f32.partialorder %v688, 0.7853982
        %vm690 = vcmp.lt.s32.totalorder %v532, 0
        %v691 = vand.u32 %v532, 2139095040
        %v692 = vshrl.u32 %v691, 23
        %v693 = vsub.s32 %v692, 127
        %v694 = vand.u32 2147483647, %v532
        %v695 = vand.u32 %v694, 8388607
        %v696 = vor.u32 %v695, 8388608
        %v697 = vsub.s32 0, %v696
        %v698 = vadd.s32 %v693, 1
        %vm699 = vcmp.gt.s32.totalorder %v698, 0
        %v700 = vsel %vm699, %v698, 0
        %v701 = vshrl.u32 %v700, 5
        %v702 = vand.u32 %v700, 31
        %v703 = vsub.s32 32, %v702
        %v704 = vshrl.u32 683565275, %v703
        %v705 = vshll.u32 683565275, %v702
        %v706 = vshrl.u32 2475754826, %v703
        %v707 = vor.u32 %v705, %v706
        %v708 = vshll.u32 2475754826, %v702
        %v709 = vshrl.u32 2131351028, %v703
        %v710 = vor.u32 %v708, %v709
        %v711 = vshll.u32 2131351028, %v702
        %v712 = vshrl.u32 2102212464, %v703
        %v713 = vor.u32 %v711, %v712
        %v714 = vshll.u32 2102212464, %v702
        %v715 = vshrl.u32 920167782, %v703
        %v716 = vor.u32 %v714, %v715
        %v717 = vshll.u32 920167782, %v702
        %v718 = vshrl.u32 1326507024, %v703
        %v719 = vor.u32 %v717, %v718
        %vm720 = vcmp.lt.s32.totalorder %v701, 1
        %vm721 = vcmp.lt.s32.totalorder %v701, 2
        %vm722 = vcmp.lt.s32.totalorder %v701, 3
        %vm723 = vcmp.lt.s32.totalorder %v701, 4
        %v724 = vsel %vm720, %v704, %v707
        %v725 = vsel %vm723, %v713, 2102212464
        %v726 = vsel %vm722, %v710, %v725
        %v727 = vsel %vm721, %v724, %v726
        %v728 = vsel %vm720, %v707, %v710
        %v729 = vsel %vm723, %v716, 920167782
        %v730 = vsel %vm722, %v713, %v729
        %v731 = vsel %vm721, %v728, %v730
        %v732 = vsel %vm720, %v710, %v713
        %v733 = vsel %vm723, %v719, 1326507024
        %v734 = vsel %vm722, %v716, %v733
        %v735 = vsel %vm721, %v732, %v734
        %v736 = vshll.u32 %v696, 8
        %v737 = vand.u32 %v736, 65535
        %v738 = vshrl.u32 %v736, 16
        %v739 = vand.u32 %v735, 65535
        %v740 = vshrl.u32 %v735, 16
        %v741 = vmul.u32 %v737, %v739
        %v742 = vmul.u32 %v737, %v740
        %v743 = vmul.u32 %v738, %v739
        %v744 = vmul.u32 %v738, %v740
        %v745 = vshll.u32 %v742, 16
        %v746 = vshrl.u32 %v742, 16
        %v747 = vshll.u32 %v743, 16
        %v748 = vshrl.u32 %v743, 16
        %vm749 = vc.u32 %v741, %v745
        %v750 = vsel %vm749, 1, 0
        %v751 = vadd.s32 %v741, %v745
        %v752 = vadd.s32 %v744, %v750
        %vm753 = vc.u32 %v751, %v747
        %v754 = vsel %vm753, 1, 0
        %v755 = vadd.s32 %v751, %v747
        %v756 = vadd.s32 %v752, %v754
        %v757 = vadd.s32 %v756, %v746
        %v758 = vadd.s32 %v757, %v748
        %v759 = vand.u32 %v736, 65535
        %v760 = vshrl.u32 %v736, 16
        %v761 = vand.u32 %v731, 65535
        %v762 = vshrl.u32 %v731, 16
        %v763 = vmul.u32 %v759, %v761
        %v764 = vmul.u32 %v759, %v762
        %v765 = vmul.u32 %v760, %v761
        %v766 = vmul.u32 %v760, %v762
        %v767 = vshll.u32 %v764, 16
        %v768 = vshrl.u32 %v764, 16
        %v769 = vshll.u32 %v765, 16
        %v770 = vshrl.u32 %v765, 16
        %vm771 = vc.u32 %v763, %v767
        %v772 = vsel %vm771, 1, 0
        %v773 = vadd.s32 %v763, %v767
        %v774 = vadd.s32 %v766, %v772
        %vm775 = vc.u32 %v773, %v769
        %v776 = vsel %vm775, 1, 0
        %v777 = vadd.s32 %v773, %v769
        %v778 = vadd.s32 %v774, %v776
        %v779 = vadd.s32 %v778, %v768
        %v780 = vadd.s32 %v779, %v770
        %v781 = vmul.u32 %v736, %v727
        %v782 = vadd.s32 %v758, %v777
        %vm783 = vc.u32 %v758, %v777
        %v784 = vadd.s32 %v780, 1
        %v785 = vsel %vm783, %v784, %v780
        %v786 = vadd.s32 %v781, %v785
        %v787 = vadd.s32 %v786, 536870912
        %v788 = vshrl.u32 %v787, 30
        %v789 = vshll.u32 %v788, 30
        %v790 = vsub.s32 %v786, %v789
        %vm791 = vcmp.lt.s32.totalorder %v790, 0
        %v792 = vsub.s32 0, %v790
        %v793 = vsel %vm791, %v792, %v790
        %v794 = vclz %v793
        %v795 = vsub.s32 %v794, 2
        %vm796 = vcmp.gt.s32.totalorder 0, %v795
        %v797 = vsel %vm796, 0, %v795
        %v798 = vsub.s32 32, %v797
        %v799 = vshll.u32 %v790, %v797
        %v800 = vshrl.u32 %v782, %v798
        %v801 = vor.u32 %v799, %v800
        %v802 = vsub.s32 4294967266, %v797
        %v803 = vadd.s32 %v802, 127
        %v804 = vshll.u32 %v803, 23
        %v805 = vor.u32 4788187, %v804
        %v806 = vand.u32 2147483647, %v805
        %v808 = vcvt.s32.f32 %v801
        %v809 = vmul.f32 %v808, %v806
        %v810 = vxor.u32 %v809, 2147483648
        %v811 = vsel %vm690, %v810, %v809
        %v812 = vsub.s32 4, %v788
        %v813 = vsel %vm690, %v812, %v788
        %v814 = vsel %vm689, %v532, %v811
        %v815 = vsel %vm689, 0, %v813
        %v816 = vmul.f32 %v814, %v814
        %v817 = vmul.f32 %v816, -0.001358992
        %v818 = vadd.f32 %v817, 0.041655596
        %v819 = vmul.f32 %v816, %v818
        %v820 = vadd.f32 %v819, -0.4999988
        %v821 = vmul.f32 %v816, %v820
        %v822 = vadd.f32 1.0, %v821
        %v823 = vmul.f32 %v814, %v814
        %v824 = vmul.f32 %v823, -0.00019511016
        %v825 = vadd.f32 %v824, 0.008332121
        %v826 = vmul.f32 %v823, %v825
        %v827 = vadd.f32 %v826, -0.16666654
        %v828 = vmul.f32 %v823, %v827
        %v829 = vadd.f32 %v828, 1.0
        %v830 = vmul.f32 %v829, %v814
        %vm831 = vweird.f32 %v532
        %v832 = vadd.s32 %v815, 3
        %v833 = vand.u32 %v832, 3
        %vm834 = vcmp.lt.s32.totalorder %v833, 2
        %vm835 = vcmp.eq.s32.totalorder %v833, 0
        %v836 = vxor.u32 %v830, 2147483648
        %v837 = vsel %vm835, %v822, %v836
        %vm838 = vcmp.eq.s32.totalorder %v833, 2
        %v839 = vxor.u32 %v822, 2147483648
        %v840 = vsel %vm838, %v839, %v830
        %v841 = vsel %vm834, %v837, %v840
        %v842 = vsel %vm831, nan, %v841
        %v843 = vmul.f32 %v687, %v687
        %v844 = vmul.f32 %v842, %v842
        %846 = vset.pattern.permute.xlu0 0
        %847 = vperm.xlu0 %846, %v519
        %v848 = vpop.permute.xlu0 %847
        %851 = vset.pattern.permute.xlu0 0
        %852 = vperm.xlu0 %851, %v520
        %v853 = vpop.permute.xlu0 %852
        %v855 = vmul.f32 %v848, %v843
        %v856 = vmul.f32 %v853, %v844
        %v857 = vadd.f32 %v515, %v855
        %v858 = vadd.f32 %v516, %v856
        %v859 = vpack.c.bf16 %v857, %v857
        %v860 = vpack.c.bf16 %v858, %v858
        %v863 = vunpack.c.l.b16 %v859
        %v864 = vunpack.c.l.b16 %v860
        %v865 = vpack.c.b16 %v864, %v863
        %867 = vrot.lane.b32.xlu0 %v865, 127
        %v868 = vpop.permute.xlu0 %867
        %870 = vrot.lane.b32.xlu0 %v865, 126
        %v871 = vpop.permute.xlu0 %870
        %v873 = vld [vmem:[%s3] sm:$0xf]
        %v874 = vld [vmem:[%s3 + $0x4] sm:$0xf]
        %v877 = vunpack.c.l.b16 %v873
        %v878 = vunpack.c.l.b16 %v874
        %v879 = vpack.c.b16 %v878, %v877
        %vm880 = vcmask 392192
        %v882 = vsel %vm880, %v879, 0
        %884 = vmatpush.bf16.msra.mxu0 0
        %885 = vmatpush.bf16.msra.mxu0 0
        %886 = vmatpush.bf16.msra.mxu0 0
        %887 = vmatpush.bf16.msra.mxu0 0
        %888 = vmatpush.bf16.msra.mxu0 0
        %889 = vmatpush.bf16.msra.mxu0 %v871
        %890 = vmatpush.bf16.msra.mxu0 %v868
        %891 = vmatpush.bf16.msra.mxu0 %v865
        %892 = vmatmul.bf16.gmra.mxu0 %v882
        %v893 = vpop.f32.mrf.mxu0
        %v894 = vadd.f32 0.0, %v893
        %v895 = vpop.f32.mrf.mxu0
        %v896 = vadd.f32 0.0, %v895
        %897 = vdwg.mxu0
        %v898 = vld [vmem:[#allocation3] sm:$0xff]
        %v899 = vld [vmem:[#allocation3 + $0x8] sm:$0xff]
        %v900 = vld [vmem:[#allocation3 + $0x10] sm:$0xff]
        %v901 = vld [vmem:[#allocation3 + $0x18] sm:$0xff]
        %v902 = vld [vmem:[#allocation3 + $0x20] sm:$0xff]
        %v903 = vld [vmem:[#allocation3 + $0x28] sm:$0xff]
        %v904 = vld [vmem:[#allocation3 + $0x30] sm:$0xff]
        %v905 = vld [vmem:[#allocation3 + $0x38] sm:$0xff]
        %v906 = vld [vmem:[#allocation3 + $0x40] sm:$0xff]
        %v907 = vld [vmem:[#allocation3 + $0x48] sm:$0xff]
        %v908 = vld [vmem:[#allocation3 + $0x50] sm:$0xff]
        %v909 = vld [vmem:[#allocation3 + $0x58] sm:$0xff]
        %v910 = vld [vmem:[#allocation3 + $0x60] sm:$0xff]
        %v911 = vld [vmem:[#allocation3 + $0x68] sm:$0xff]
        %v912 = vld [vmem:[#allocation3 + $0x70] sm:$0xff]
        %v913 = vld [vmem:[#allocation3 + $0x78] sm:$0xff]
        %v914 = vld [vmem:[#allocation3 + $0x80] sm:$0xff]
        %v915 = vld [vmem:[#allocation3 + $0x88] sm:$0xff]
        %v916 = vld [vmem:[#allocation3 + $0x90] sm:$0xff]
        %v917 = vld [vmem:[#allocation3 + $0x98] sm:$0xff]
        %v918 = vld [vmem:[#allocation3 + $0xa0] sm:$0xff]
        %v919 = vld [vmem:[#allocation3 + $0xa8] sm:$0xff]
        %v920 = vld [vmem:[#allocation3 + $0xb0] sm:$0xff]
        %v921 = vld [vmem:[#allocation3 + $0xb8] sm:$0xff]
        %v922 = vld [vmem:[#allocation3 + $0xc0] sm:$0xff]
        %v923 = vld [vmem:[#allocation3 + $0xc8] sm:$0xff]
        %vm924 = vcmask 850944
        %v926 = vsel %vm924, %v894, 0
        %v929 = vsel %vm924, %v896, 0
        %931 = vmatpush.msra.mxu0 0.0
        %932 = vmatpush.msra.mxu0 0.0
        %933 = vmatpush.msra.mxu0 0.0
        %934 = vmatpush.msra.mxu0 %v922
        %935 = vmatpush.msra.mxu0 %v920
        %936 = vmatpush.msra.mxu0 %v918
        %937 = vmatpush.msra.mxu0 %v916
        %938 = vmatpush.msra.mxu0 %v914
        %939 = vmatpush.msra.mxu0 %v912
        %940 = vmatpush.msra.mxu0 %v910
        %941 = vmatpush.msra.mxu0 %v908
        %942 = vmatpush.msra.mxu0 %v906
        %943 = vmatpush.msra.mxu0 %v904
        %944 = vmatpush.msra.mxu0 %v902
        %945 = vmatpush.msra.mxu0 %v900
        %946 = vmatpush.msra.mxu0 %v898
        %947 = vmatmul.f32.gmra.mxu0 %v926
        %v948 = vpop.f32.mrf.mxu0
        %v949 = vadd.f32 0.0, %v948
        %950 = vmatmul.f32.gmra.mxu0 %v929
        %v951 = vpop.f32.mrf.mxu0
        %v952 = vadd.f32 0.0, %v951
        %953 = vdwg.mxu0
        %954 = vmatpush.msra.mxu0 0.0
        %955 = vmatpush.msra.mxu0 0.0
        %956 = vmatpush.msra.mxu0 0.0
        %957 = vmatpush.msra.mxu0 %v923
        %958 = vmatpush.msra.mxu0 %v921
        %959 = vmatpush.msra.mxu0 %v919
        %960 = vmatpush.msra.mxu0 %v917
        %961 = vmatpush.msra.mxu0 %v915
        %962 = vmatpush.msra.mxu0 %v913
        %963 = vmatpush.msra.mxu0 %v911
        %964 = vmatpush.msra.mxu0 %v909
        %965 = vmatpush.msra.mxu0 %v907
        %966 = vmatpush.msra.mxu0 %v905
        %967 = vmatpush.msra.mxu0 %v903
        %968 = vmatpush.msra.mxu0 %v901
        %969 = vmatpush.msra.mxu0 %v899
        %970 = vmatmul.f32.gmra.mxu0 %v926
        %v971 = vpop.f32.mrf.mxu0
        %v972 = vadd.f32 0.0, %v971
        %973 = vmatmul.f32.gmra.mxu0 %v929
        %v974 = vpop.f32.mrf.mxu0
        %v975 = vadd.f32 0.0, %v974
        %976 = vdwg.mxu0
        %vm977 = vcmp.lt.s32.totalorder %v513, 0
        %v978 = vsub.s32 0, %v513
        %v979 = vsel %vm977, %v978, %v513
        %v980 = vshrl.u32 %v979, 1
        %v981 = vand.u32 %v979, 1
        %v982 = vsub.s32 0, %v981
        %v983 = vsel %vm977, %v982, %v981
        %vm984 = vcmp.lt.s32.totalorder %v514, 0
        %v985 = vsub.s32 0, %v514
        %v986 = vsel %vm984, %v985, %v514
        %v987 = vshrl.u32 %v986, 1
        %v988 = vand.u32 %v986, 1
        %v989 = vsub.s32 0, %v988
        %v990 = vsel %vm984, %v989, %v988
        %vm991 = vcmp.ne.s32.totalorder %v983, 0
        %vm992 = vcmp.ne.s32.totalorder %v990, 0
        %vm993 = vcmp.lt.s32.totalorder %v983, 0
        %vm994 = vcmp.lt.s32.totalorder %v990, 0
        %vm995 = vmand %vm993, %vm991
        %vm996 = vmand %vm994, %vm992
        %v997 = vadd.s32 %v983, 2
        %v998 = vadd.s32 %v990, 2
        %v999 = vsel %vm995, %v997, %v983
        %v1000 = vsel %vm996, %v998, %v990
        %vm1001 = vcmp.eq.s32.totalorder %v999, 0
        %vm1002 = vcmp.eq.s32.totalorder %v1000, 0
        %v1003 = vsel %vm1001, 1, 0
        %v1004 = vsel %vm1002, 1, 0
        %vm1005 = vcmp.eq.s32.totalorder %v1003, 1
        %vm1006 = vcmp.eq.s32.totalorder %v1004, 1
        %v1007 = vsel %vm1005, %v949, 0.0
        %v1008 = vsel %vm1006, %v972, 0.0
        %v1009 = vadd.f32 %v1007, 0.0
        %v1010 = vadd.f32 %v1008, 0.0
        %vm1011 = vcmp.eq.s32.totalorder %v999, 1
        %vm1012 = vcmp.eq.s32.totalorder %v1000, 1
        %v1013 = vsel %vm1011, 1, 0
        %v1014 = vsel %vm1012, 1, 0
        %vm1015 = vcmp.eq.s32.totalorder %v1013, 1
        %vm1016 = vcmp.eq.s32.totalorder %v1014, 1
        %v1017 = vsel %vm1015, %v952, 0.0
        %v1018 = vsel %vm1016, %v975, 0.0
        %v1019 = vadd.f32 %v1009, %v1017
        %v1020 = vadd.f32 %v1010, %v1018
        %v1021 = vld [vmem:[%s4] sm:$0xff]
        %1023 = vset.pattern.permute.xlu0 0
        %1024 = vperm.xlu0 %1023, %v1021
        %v1025 = vpop.permute.xlu0 %1024
        %v1027 = vadd.f32 %v1019, %v1025
        %v1028 = vadd.f32 %v1020, %v1025
        %s1029 = smul.u32 %s34, 128
        %s1030 = ssub.s32 %s1029, 40
        %v1031 = vstv %s1030
        %v1032 = vadd.s32 %v513, %v1031
        %v1033 = vadd.s32 %v514, %v1031
        %vm1034 = vcmp.ge.s32.totalorder %v1032, 0
        %vm1035 = vcmp.ge.s32.totalorder %v1033, 0
        %vm1036 = vcmp.lt.s32.totalorder %v1032, 32
        %vm1037 = vcmp.lt.s32.totalorder %v1033, 32
        %vm1038 = vmand %vm1034, %vm1036
        %vm1039 = vmand %vm1035, %vm1037
        %v1040 = vsel %vm1038, 1, 0
        %v1041 = vsel %vm1039, 1, 0
        %vm1042 = vcmp.eq.s32.totalorder %v1040, 1
        %vm1043 = vcmp.eq.s32.totalorder %v1041, 1
        %v1044 = vsel %vm1042, %v1027, 0.0
        %v1045 = vsel %vm1043, %v1028, 0.0
        %vm1046 = vcmask 216064
        %1047 = vst.msk [vmem:[#allocation2] sm:$0xf] %vm1046, 0
        %vm1048 = vcmask 1044312
        %vm1049 = vcmask 48132
        %vm1050 = vmor %vm1049, %vm1048
        %1051 = vst.msk [vmem:[#allocation2 + $0x4] sm:$0xff] %vm1050, 0
        %v1052 = vld [vmem:[%s6] sm:$0xff]
        %v1053 = vld [vmem:[%s7] sm:$0xff]
        %1055 = vset.pattern.permute.xlu0 0
        %1056 = vperm.xlu0 %1055, %v1052
        %v1057 = vpop.permute.xlu0 %1056
        %v1059 = vmul.f32 %v1057, %v1044
        %v1060 = vmul.f32 %v1057, %v1045
        %v1061 = vand.u32 2147483647, %v1059
        %vm1062 = vcmp.le.f32.partialorder %v1061, 0.7853982
        %vm1063 = vcmp.lt.s32.totalorder %v1059, 0
        %v1064 = vand.u32 %v1059, 2139095040
        %v1065 = vshrl.u32 %v1064, 23
        %v1066 = vsub.s32 %v1065, 127
        %v1067 = vand.u32 2147483647, %v1059
        %v1068 = vand.u32 %v1067, 8388607
        %v1069 = vor.u32 %v1068, 8388608
        %v1070 = vsub.s32 0, %v1069
        %v1071 = vadd.s32 %v1066, 1
        %vm1072 = vcmp.gt.s32.totalorder %v1071, 0
        %v1073 = vsel %vm1072, %v1071, 0
        %v1074 = vshrl.u32 %v1073, 5
        %v1075 = vand.u32 %v1073, 31
        %v1076 = vsub.s32 32, %v1075
        %v1077 = vshrl.u32 683565275, %v1076
        %v1078 = vshll.u32 683565275, %v1075
        %v1079 = vshrl.u32 2475754826, %v1076
        %v1080 = vor.u32 %v1078, %v1079
        %v1081 = vshll.u32 2475754826, %v1075
        %v1082 = vshrl.u32 2131351028, %v1076
        %v1083 = vor.u32 %v1081, %v1082
        %v1084 = vshll.u32 2131351028, %v1075
        %v1085 = vshrl.u32 2102212464, %v1076
        %v1086 = vor.u32 %v1084, %v1085
        %v1087 = vshll.u32 2102212464, %v1075
        %v1088 = vshrl.u32 920167782, %v1076
        %v1089 = vor.u32 %v1087, %v1088
        %v1090 = vshll.u32 920167782, %v1075
        %v1091 = vshrl.u32 1326507024, %v1076
        %v1092 = vor.u32 %v1090, %v1091
        %vm1093 = vcmp.lt.s32.totalorder %v1074, 1
        %vm1094 = vcmp.lt.s32.totalorder %v1074, 2
        %vm1095 = vcmp.lt.s32.totalorder %v1074, 3
        %vm1096 = vcmp.lt.s32.totalorder %v1074, 4
        %v1097 = vsel %vm1093, %v1077, %v1080
        %v1098 = vsel %vm1096, %v1086, 2102212464
        %v1099 = vsel %vm1095, %v1083, %v1098
        %v1100 = vsel %vm1094, %v1097, %v1099
        %v1101 = vsel %vm1093, %v1080, %v1083
        %v1102 = vsel %vm1096, %v1089, 920167782
        %v1103 = vsel %vm1095, %v1086, %v1102
        %v1104 = vsel %vm1094, %v1101, %v1103
        %v1105 = vsel %vm1093, %v1083, %v1086
        %v1106 = vsel %vm1096, %v1092, 1326507024
        %v1107 = vsel %vm1095, %v1089, %v1106
        %v1108 = vsel %vm1094, %v1105, %v1107
        %v1109 = vshll.u32 %v1069, 8
        %v1110 = vand.u32 %v1109, 65535
        %v1111 = vshrl.u32 %v1109, 16
        %v1112 = vand.u32 %v1108, 65535
        %v1113 = vshrl.u32 %v1108, 16
        %v1114 = vmul.u32 %v1110, %v1112
        %v1115 = vmul.u32 %v1110, %v1113
        %v1116 = vmul.u32 %v1111, %v1112
        %v1117 = vmul.u32 %v1111, %v1113
        %v1118 = vshll.u32 %v1115, 16
        %v1119 = vshrl.u32 %v1115, 16
        %v1120 = vshll.u32 %v1116, 16
        %v1121 = vshrl.u32 %v1116, 16
        %vm1122 = vc.u32 %v1114, %v1118
        %v1123 = vsel %vm1122, 1, 0
        %v1124 = vadd.s32 %v1114, %v1118
        %v1125 = vadd.s32 %v1117, %v1123
        %vm1126 = vc.u32 %v1124, %v1120
        %v1127 = vsel %vm1126, 1, 0
        %v1128 = vadd.s32 %v1124, %v1120
        %v1129 = vadd.s32 %v1125, %v1127
        %v1130 = vadd.s32 %v1129, %v1119
        %v1131 = vadd.s32 %v1130, %v1121
        %v1132 = vand.u32 %v1109, 65535
        %v1133 = vshrl.u32 %v1109, 16
        %v1134 = vand.u32 %v1104, 65535
        %v1135 = vshrl.u32 %v1104, 16
        %v1136 = vmul.u32 %v1132, %v1134
        %v1137 = vmul.u32 %v1132, %v1135
        %v1138 = vmul.u32 %v1133, %v1134
        %v1139 = vmul.u32 %v1133, %v1135
        %v1140 = vshll.u32 %v1137, 16
        %v1141 = vshrl.u32 %v1137, 16
        %v1142 = vshll.u32 %v1138, 16
        %v1143 = vshrl.u32 %v1138, 16
        %vm1144 = vc.u32 %v1136, %v1140
        %v1145 = vsel %vm1144, 1, 0
        %v1146 = vadd.s32 %v1136, %v1140
        %v1147 = vadd.s32 %v1139, %v1145
        %vm1148 = vc.u32 %v1146, %v1142
        %v1149 = vsel %vm1148, 1, 0
        %v1150 = vadd.s32 %v1146, %v1142
        %v1151 = vadd.s32 %v1147, %v1149
        %v1152 = vadd.s32 %v1151, %v1141
        %v1153 = vadd.s32 %v1152, %v1143
        %v1154 = vmul.u32 %v1109, %v1100
        %v1155 = vadd.s32 %v1131, %v1150
        %vm1156 = vc.u32 %v1131, %v1150
        %v1157 = vadd.s32 %v1153, 1
        %v1158 = vsel %vm1156, %v1157, %v1153
        %v1159 = vadd.s32 %v1154, %v1158
        %v1160 = vadd.s32 %v1159, 536870912
        %v1161 = vshrl.u32 %v1160, 30
        %v1162 = vshll.u32 %v1161, 30
        %v1163 = vsub.s32 %v1159, %v1162
        %vm1164 = vcmp.lt.s32.totalorder %v1163, 0
        %v1165 = vsub.s32 0, %v1163
        %v1166 = vsel %vm1164, %v1165, %v1163
        %v1167 = vclz %v1166
        %v1168 = vsub.s32 %v1167, 2
        %vm1169 = vcmp.gt.s32.totalorder 0, %v1168
        %v1170 = vsel %vm1169, 0, %v1168
        %v1171 = vsub.s32 32, %v1170
        %v1172 = vshll.u32 %v1163, %v1170
        %v1173 = vshrl.u32 %v1155, %v1171
        %v1174 = vor.u32 %v1172, %v1173
        %v1175 = vsub.s32 4294967266, %v1170
        %v1176 = vadd.s32 %v1175, 127
        %v1177 = vshll.u32 %v1176, 23
        %v1178 = vor.u32 4788187, %v1177
        %v1179 = vand.u32 2147483647, %v1178
        %v1181 = vcvt.s32.f32 %v1174
        %v1182 = vmul.f32 %v1181, %v1179
        %v1183 = vxor.u32 %v1182, 2147483648
        %v1184 = vsel %vm1063, %v1183, %v1182
        %v1185 = vsub.s32 4, %v1161
        %v1186 = vsel %vm1063, %v1185, %v1161
        %v1187 = vsel %vm1062, %v1059, %v1184
        %v1188 = vsel %vm1062, 0, %v1186
        %v1189 = vmul.f32 %v1187, %v1187
        %v1190 = vmul.f32 %v1189, -0.001358992
        %v1191 = vadd.f32 %v1190, 0.041655596
        %v1192 = vmul.f32 %v1189, %v1191
        %v1193 = vadd.f32 %v1192, -0.4999988
        %v1194 = vmul.f32 %v1189, %v1193
        %v1195 = vadd.f32 1.0, %v1194
        %v1196 = vmul.f32 %v1187, %v1187
        %v1197 = vmul.f32 %v1196, -0.00019511016
        %v1198 = vadd.f32 %v1197, 0.008332121
        %v1199 = vmul.f32 %v1196, %v1198
        %v1200 = vadd.f32 %v1199, -0.16666654
        %v1201 = vmul.f32 %v1196, %v1200
        %v1202 = vadd.f32 %v1201, 1.0
        %v1203 = vmul.f32 %v1202, %v1187
        %vm1204 = vweird.f32 %v1059
        %v1205 = vadd.s32 %v1188, 3
        %v1206 = vand.u32 %v1205, 3
        %vm1207 = vcmp.lt.s32.totalorder %v1206, 2
        %vm1208 = vcmp.eq.s32.totalorder %v1206, 0
        %v1209 = vxor.u32 %v1203, 2147483648
        %v1210 = vsel %vm1208, %v1195, %v1209
        %vm1211 = vcmp.eq.s32.totalorder %v1206, 2
        %v1212 = vxor.u32 %v1195, 2147483648
        %v1213 = vsel %vm1211, %v1212, %v1203
        %v1214 = vsel %vm1207, %v1210, %v1213
        %v1215 = vsel %vm1204, nan, %v1214
        %v1216 = vand.u32 2147483647, %v1060
        %vm1217 = vcmp.le.f32.partialorder %v1216, 0.7853982
        %vm1218 = vcmp.lt.s32.totalorder %v1060, 0
        %v1219 = vand.u32 %v1060, 2139095040
        %v1220 = vshrl.u32 %v1219, 23
        %v1221 = vsub.s32 %v1220, 127
        %v1222 = vand.u32 2147483647, %v1060
        %v1223 = vand.u32 %v1222, 8388607
        %v1224 = vor.u32 %v1223, 8388608
        %v1225 = vsub.s32 0, %v1224
        %v1226 = vadd.s32 %v1221, 1
        %vm1227 = vcmp.gt.s32.totalorder %v1226, 0
        %v1228 = vsel %vm1227, %v1226, 0
        %v1229 = vshrl.u32 %v1228, 5
        %v1230 = vand.u32 %v1228, 31
        %v1231 = vsub.s32 32, %v1230
        %v1232 = vshrl.u32 683565275, %v1231
        %v1233 = vshll.u32 683565275, %v1230
        %v1234 = vshrl.u32 2475754826, %v1231
        %v1235 = vor.u32 %v1233, %v1234
        %v1236 = vshll.u32 2475754826, %v1230
        %v1237 = vshrl.u32 2131351028, %v1231
        %v1238 = vor.u32 %v1236, %v1237
        %v1239 = vshll.u32 2131351028, %v1230
        %v1240 = vshrl.u32 2102212464, %v1231
        %v1241 = vor.u32 %v1239, %v1240
        %v1242 = vshll.u32 2102212464, %v1230
        %v1243 = vshrl.u32 920167782, %v1231
        %v1244 = vor.u32 %v1242, %v1243
        %v1245 = vshll.u32 920167782, %v1230
        %v1246 = vshrl.u32 1326507024, %v1231
        %v1247 = vor.u32 %v1245, %v1246
        %vm1248 = vcmp.lt.s32.totalorder %v1229, 1
        %vm1249 = vcmp.lt.s32.totalorder %v1229, 2
        %vm1250 = vcmp.lt.s32.totalorder %v1229, 3
        %vm1251 = vcmp.lt.s32.totalorder %v1229, 4
        %v1252 = vsel %vm1248, %v1232, %v1235
        %v1253 = vsel %vm1251, %v1241, 2102212464
        %v1254 = vsel %vm1250, %v1238, %v1253
        %v1255 = vsel %vm1249, %v1252, %v1254
        %v1256 = vsel %vm1248, %v1235, %v1238
        %v1257 = vsel %vm1251, %v1244, 920167782
        %v1258 = vsel %vm1250, %v1241, %v1257
        %v1259 = vsel %vm1249, %v1256, %v1258
        %v1260 = vsel %vm1248, %v1238, %v1241
        %v1261 = vsel %vm1251, %v1247, 1326507024
        %v1262 = vsel %vm1250, %v1244, %v1261
        %v1263 = vsel %vm1249, %v1260, %v1262
        %v1264 = vshll.u32 %v1224, 8
        %v1265 = vand.u32 %v1264, 65535
        %v1266 = vshrl.u32 %v1264, 16
        %v1267 = vand.u32 %v1263, 65535
        %v1268 = vshrl.u32 %v1263, 16
        %v1269 = vmul.u32 %v1265, %v1267
        %v1270 = vmul.u32 %v1265, %v1268
        %v1271 = vmul.u32 %v1266, %v1267
        %v1272 = vmul.u32 %v1266, %v1268
        %v1273 = vshll.u32 %v1270, 16
        %v1274 = vshrl.u32 %v1270, 16
        %v1275 = vshll.u32 %v1271, 16
        %v1276 = vshrl.u32 %v1271, 16
        %vm1277 = vc.u32 %v1269, %v1273
        %v1278 = vsel %vm1277, 1, 0
        %v1279 = vadd.s32 %v1269, %v1273
        %v1280 = vadd.s32 %v1272, %v1278
        %vm1281 = vc.u32 %v1279, %v1275
        %v1282 = vsel %vm1281, 1, 0
        %v1283 = vadd.s32 %v1279, %v1275
        %v1284 = vadd.s32 %v1280, %v1282
        %v1285 = vadd.s32 %v1284, %v1274
        %v1286 = vadd.s32 %v1285, %v1276
        %v1287 = vand.u32 %v1264, 65535
        %v1288 = vshrl.u32 %v1264, 16
        %v1289 = vand.u32 %v1259, 65535
        %v1290 = vshrl.u32 %v1259, 16
        %v1291 = vmul.u32 %v1287, %v1289
        %v1292 = vmul.u32 %v1287, %v1290
        %v1293 = vmul.u32 %v1288, %v1289
        %v1294 = vmul.u32 %v1288, %v1290
        %v1295 = vshll.u32 %v1292, 16
        %v1296 = vshrl.u32 %v1292, 16
        %v1297 = vshll.u32 %v1293, 16
        %v1298 = vshrl.u32 %v1293, 16
        %vm1299 = vc.u32 %v1291, %v1295
        %v1300 = vsel %vm1299, 1, 0
        %v1301 = vadd.s32 %v1291, %v1295
        %v1302 = vadd.s32 %v1294, %v1300
        %vm1303 = vc.u32 %v1301, %v1297
        %v1304 = vsel %vm1303, 1, 0
        %v1305 = vadd.s32 %v1301, %v1297
        %v1306 = vadd.s32 %v1302, %v1304
        %v1307 = vadd.s32 %v1306, %v1296
        %v1308 = vadd.s32 %v1307, %v1298
        %v1309 = vmul.u32 %v1264, %v1255
        %v1310 = vadd.s32 %v1286, %v1305
        %vm1311 = vc.u32 %v1286, %v1305
        %v1312 = vadd.s32 %v1308, 1
        %v1313 = vsel %vm1311, %v1312, %v1308
        %v1314 = vadd.s32 %v1309, %v1313
        %v1315 = vadd.s32 %v1314, 536870912
        %v1316 = vshrl.u32 %v1315, 30
        %v1317 = vshll.u32 %v1316, 30
        %v1318 = vsub.s32 %v1314, %v1317
        %vm1319 = vcmp.lt.s32.totalorder %v1318, 0
        %v1320 = vsub.s32 0, %v1318
        %v1321 = vsel %vm1319, %v1320, %v1318
        %v1322 = vclz %v1321
        %v1323 = vsub.s32 %v1322, 2
        %vm1324 = vcmp.gt.s32.totalorder 0, %v1323
        %v1325 = vsel %vm1324, 0, %v1323
        %v1326 = vsub.s32 32, %v1325
        %v1327 = vshll.u32 %v1318, %v1325
        %v1328 = vshrl.u32 %v1310, %v1326
        %v1329 = vor.u32 %v1327, %v1328
        %v1330 = vsub.s32 4294967266, %v1325
        %v1331 = vadd.s32 %v1330, 127
        %v1332 = vshll.u32 %v1331, 23
        %v1333 = vor.u32 4788187, %v1332
        %v1334 = vand.u32 2147483647, %v1333
        %v1336 = vcvt.s32.f32 %v1329
        %v1337 = vmul.f32 %v1336, %v1334
        %v1338 = vxor.u32 %v1337, 2147483648
        %v1339 = vsel %vm1218, %v1338, %v1337
        %v1340 = vsub.s32 4, %v1316
        %v1341 = vsel %vm1218, %v1340, %v1316
        %v1342 = vsel %vm1217, %v1060, %v1339
        %v1343 = vsel %vm1217, 0, %v1341
        %v1344 = vmul.f32 %v1342, %v1342
        %v1345 = vmul.f32 %v1344, -0.001358992
        %v1346 = vadd.f32 %v1345, 0.041655596
        %v1347 = vmul.f32 %v1344, %v1346
        %v1348 = vadd.f32 %v1347, -0.4999988
        %v1349 = vmul.f32 %v1344, %v1348
        %v1350 = vadd.f32 1.0, %v1349
        %v1351 = vmul.f32 %v1342, %v1342
        %v1352 = vmul.f32 %v1351, -0.00019511016
        %v1353 = vadd.f32 %v1352, 0.008332121
        %v1354 = vmul.f32 %v1351, %v1353
        %v1355 = vadd.f32 %v1354, -0.16666654
        %v1356 = vmul.f32 %v1351, %v1355
        %v1357 = vadd.f32 %v1356, 1.0
        %v1358 = vmul.f32 %v1357, %v1342
        %vm1359 = vweird.f32 %v1060
        %v1360 = vadd.s32 %v1343, 3
        %v1361 = vand.u32 %v1360, 3
        %vm1362 = vcmp.lt.s32.totalorder %v1361, 2
        %vm1363 = vcmp.eq.s32.totalorder %v1361, 0
        %v1364 = vxor.u32 %v1358, 2147483648
        %v1365 = vsel %vm1363, %v1350, %v1364
        %vm1366 = vcmp.eq.s32.totalorder %v1361, 2
        %v1367 = vxor.u32 %v1350, 2147483648
        %v1368 = vsel %vm1366, %v1367, %v1358
        %v1369 = vsel %vm1362, %v1365, %v1368
        %v1370 = vsel %vm1359, nan, %v1369
        %v1371 = vmul.f32 %v1215, %v1215
        %v1372 = vmul.f32 %v1370, %v1370
        %1374 = vset.pattern.permute.xlu0 0
        %1375 = vperm.xlu0 %1374, %v1053
        %v1376 = vpop.permute.xlu0 %1375
        %v1378 = vmul.f32 %v1376, %v1371
        %v1379 = vmul.f32 %v1376, %v1372
        %v1380 = vadd.f32 %v1044, %v1378
        %v1381 = vadd.f32 %v1045, %v1379
        %v1382 = vpack.c.bf16 %v1381, %v1380
        %1384 = vrot.lane.b32.xlu0 %v1382, 27
        %v1385 = vpop.permute.xlu0 %1384
        %v1386 = vrot.slane %v1385, 4
        %vm1387 = vcmask 220160
        %v1388 = vsel %vm1387, %v1386, %v1385
        %vm1390 = vcmask 1043672
        %vm1391 = vcmask 875524
        %vm1392 = vmor %vm1391, %vm1390
        %1393 = vst.msk [vmem:[#allocation2] sm:$0xff] %vm1392, %v1388
        %v1394 = vld [vmem:[#allocation2] sm:$0xff]
        %v1396 = vunpack.c.l.b16 %v1394
        %v1397 = vunpack.c.h.b16 %v1394
        %v1398 = vpack.c.b16 %v1396, %v1396
        %v1399 = vpack.c.b16 %v1397, %v1397
        %1400 = vrot.lane.b32.xlu0 %v1398, 127
        %v1401 = vpop.permute.xlu0 %1400
        %1402 = vrot.lane.b32.xlu0 %v1399, 127
        %v1403 = vpop.permute.xlu0 %1402
        %vm1404 = vcmask 1039360
        %v1405 = vsel %vm1404, %v1401, %v1403
        %1406 = vrot.lane.b32.xlu0 %v1398, 126
        %v1407 = vpop.permute.xlu0 %1406
        %1408 = vrot.lane.b32.xlu0 %v1399, 126
        %v1409 = vpop.permute.xlu0 %1408
        %vm1410 = vcmask 1031168
        %v1411 = vsel %vm1410, %v1407, %v1409
        %1412 = vrot.lane.b32.xlu0 %v1398, 125
        %v1413 = vpop.permute.xlu0 %1412
        %1414 = vrot.lane.b32.xlu0 %v1399, 125
        %v1415 = vpop.permute.xlu0 %1414
        %vm1416 = vcmask 1022976
        %v1417 = vsel %vm1416, %v1413, %v1415
        %1418 = vrot.lane.b32.xlu0 %v1398, 124
        %v1419 = vpop.permute.xlu0 %1418
        %1420 = vrot.lane.b32.xlu0 %v1399, 124
        %v1421 = vpop.permute.xlu0 %1420
        %vm1422 = vcmask 1014784
        %v1423 = vsel %vm1422, %v1419, %v1421
        %1424 = vrot.lane.b32.xlu0 %v1398, 123
        %v1425 = vpop.permute.xlu0 %1424
        %1426 = vrot.lane.b32.xlu0 %v1399, 123
        %v1427 = vpop.permute.xlu0 %1426
        %vm1428 = vcmask 1006592
        %v1429 = vsel %vm1428, %v1425, %v1427
        %1430 = vrot.lane.b32.xlu0 %v1398, 122
        %v1431 = vpop.permute.xlu0 %1430
        %1432 = vrot.lane.b32.xlu0 %v1399, 122
        %v1433 = vpop.permute.xlu0 %1432
        %vm1434 = vcmask 998400
        %v1435 = vsel %vm1434, %v1431, %v1433
        %vm1436 = vcmask 1043456
        %v1439 = vsel %vm1436, %v1398, %v1405
        %v1442 = vsel %vm1436, %v1399, %v1403
        %v1445 = vsel %vm1436, %v1411, %v1417
        %v1448 = vsel %vm1436, %v1409, %v1415
        %v1451 = vsel %vm1436, %v1423, %v1429
        %v1454 = vsel %vm1436, %v1421, %v1427
        %v1455 = vld [vmem:[%s8] sm:$0xf]
        %v1456 = vld [vmem:[%s9] sm:$0xff]
        %1458 = vset.pattern.permute.xlu0 0
        %1459 = vperm.xlu0 %1458, %v1456
        %v1460 = vpop.permute.xlu0 %1459
        %1468 = vrot.lane.b32.xlu0 %v1439, 104
        %v1469 = vpop.permute.xlu0 %1468
        %1470 = vrot.lane.b32.xlu0 %v1442, 104
        %v1471 = vpop.permute.xlu0 %1470
        %1472 = vrot.lane.b32.xlu0 %v1445, 104
        %v1473 = vpop.permute.xlu0 %1472
        %1474 = vrot.lane.b32.xlu0 %v1448, 104
        %v1475 = vpop.permute.xlu0 %1474
        %1476 = vrot.lane.b32.xlu0 %v1451, 104
        %v1477 = vpop.permute.xlu0 %1476
        %1478 = vrot.lane.b32.xlu0 %v1454, 104
        %v1479 = vpop.permute.xlu0 %1478
        %1480 = vrot.lane.b32.xlu0 %v1435, 104
        %v1481 = vpop.permute.xlu0 %1480
        %1482 = vrot.lane.b32.xlu0 %v1433, 104
        %v1483 = vpop.permute.xlu0 %1482
        %vm1484 = vcmask 850944
        %v1485 = vsel %vm1484, %v1469, %v1471
        %v1486 = vsel %vm1484, %v1473, %v1475
        %v1487 = vsel %vm1484, %v1477, %v1479
        %v1488 = vsel %vm1484, %v1481, %v1483
        %vm1495 = vcmask 457728
        %v1497 = vsel %vm1495, %v1455, 0
        %v1500 = vsel %vm1436, %v1488, 0
        %v1503 = vsel %vm1436, %v1483, 0
        %1505 = vmatpush.bf16.msra.mxu0 0
        %1506 = vmatpush.bf16.msra.mxu0 0
        %1507 = vmatpush.bf16.msra.mxu0 0
        %1508 = vmatpush.bf16.msra.mxu0 0
        %1509 = vmatpush.bf16.msra.mxu0 %v1500
        %1510 = vmatpush.bf16.msra.mxu0 %v1487
        %1511 = vmatpush.bf16.msra.mxu0 %v1486
        %1512 = vmatpush.bf16.msra.mxu0 %v1485
        %1513 = vmatmul.bf16.gmra.mxu0 %v1497
        %v1514 = vpop.f32.mrf.mxu0
        %v1515 = vadd.f32 %v1460, %v1514
        %v1516 = vpop.f32.mrf.mxu0
        %1517 = vdwg.mxu0
        %1518 = vmatpush.bf16.msra.mxu0 0
        %1519 = vmatpush.bf16.msra.mxu0 0
        %1520 = vmatpush.bf16.msra.mxu0 0
        %1521 = vmatpush.bf16.msra.mxu0 0
        %1522 = vmatpush.bf16.msra.mxu0 %v1503
        %1523 = vmatpush.bf16.msra.mxu0 %v1479
        %1524 = vmatpush.bf16.msra.mxu0 %v1475
        %1525 = vmatpush.bf16.msra.mxu0 %v1471
        %1526 = vmatmul.bf16.gmra.mxu0 %v1497
        %v1527 = vpop.f32.mrf.mxu0
        %v1528 = vadd.f32 %v1460, %v1527
        %v1529 = vpop.f32.mrf.mxu0
        %1530 = vdwg.mxu0
        %v1531 = vld [vmem:[%s10] sm:$0xff]
        %v1532 = vld [vmem:[%s11] sm:$0xff]
        %1534 = vset.pattern.permute.xlu0 0
        %1535 = vperm.xlu0 %1534, %v1531
        %v1536 = vpop.permute.xlu0 %1535
        %v1538 = vmul.f32 %v1536, %v1515
        %v1539 = vmul.f32 %v1536, %v1528
        %v1540 = vand.u32 2147483647, %v1538
        %vm1541 = vcmp.le.f32.partialorder %v1540, 0.7853982
        %vm1542 = vcmp.lt.s32.totalorder %v1538, 0
        %v1543 = vand.u32 %v1538, 2139095040
        %v1544 = vshrl.u32 %v1543, 23
        %v1545 = vsub.s32 %v1544, 127
        %v1546 = vand.u32 2147483647, %v1538
        %v1547 = vand.u32 %v1546, 8388607
        %v1548 = vor.u32 %v1547, 8388608
        %v1549 = vsub.s32 0, %v1548
        %v1550 = vadd.s32 %v1545, 1
        %vm1551 = vcmp.gt.s32.totalorder %v1550, 0
        %v1552 = vsel %vm1551, %v1550, 0
        %v1553 = vshrl.u32 %v1552, 5
        %v1554 = vand.u32 %v1552, 31
        %v1555 = vsub.s32 32, %v1554
        %v1556 = vshrl.u32 683565275, %v1555
        %v1557 = vshll.u32 683565275, %v1554
        %v1558 = vshrl.u32 2475754826, %v1555
        %v1559 = vor.u32 %v1557, %v1558
        %v1560 = vshll.u32 2475754826, %v1554
        %v1561 = vshrl.u32 2131351028, %v1555
        %v1562 = vor.u32 %v1560, %v1561
        %v1563 = vshll.u32 2131351028, %v1554
        %v1564 = vshrl.u32 2102212464, %v1555
        %v1565 = vor.u32 %v1563, %v1564
        %v1566 = vshll.u32 2102212464, %v1554
        %v1567 = vshrl.u32 920167782, %v1555
        %v1568 = vor.u32 %v1566, %v1567
        %v1569 = vshll.u32 920167782, %v1554
        %v1570 = vshrl.u32 1326507024, %v1555
        %v1571 = vor.u32 %v1569, %v1570
        %vm1572 = vcmp.lt.s32.totalorder %v1553, 1
        %vm1573 = vcmp.lt.s32.totalorder %v1553, 2
        %vm1574 = vcmp.lt.s32.totalorder %v1553, 3
        %vm1575 = vcmp.lt.s32.totalorder %v1553, 4
        %v1576 = vsel %vm1572, %v1556, %v1559
        %v1577 = vsel %vm1575, %v1565, 2102212464
        %v1578 = vsel %vm1574, %v1562, %v1577
        %v1579 = vsel %vm1573, %v1576, %v1578
        %v1580 = vsel %vm1572, %v1559, %v1562
        %v1581 = vsel %vm1575, %v1568, 920167782
        %v1582 = vsel %vm1574, %v1565, %v1581
        %v1583 = vsel %vm1573, %v1580, %v1582
        %v1584 = vsel %vm1572, %v1562, %v1565
        %v1585 = vsel %vm1575, %v1571, 1326507024
        %v1586 = vsel %vm1574, %v1568, %v1585
        %v1587 = vsel %vm1573, %v1584, %v1586
        %v1588 = vshll.u32 %v1548, 8
        %v1589 = vand.u32 %v1588, 65535
        %v1590 = vshrl.u32 %v1588, 16
        %v1591 = vand.u32 %v1587, 65535
        %v1592 = vshrl.u32 %v1587, 16
        %v1593 = vmul.u32 %v1589, %v1591
        %v1594 = vmul.u32 %v1589, %v1592
        %v1595 = vmul.u32 %v1590, %v1591
        %v1596 = vmul.u32 %v1590, %v1592
        %v1597 = vshll.u32 %v1594, 16
        %v1598 = vshrl.u32 %v1594, 16
        %v1599 = vshll.u32 %v1595, 16
        %v1600 = vshrl.u32 %v1595, 16
        %vm1601 = vc.u32 %v1593, %v1597
        %v1602 = vsel %vm1601, 1, 0
        %v1603 = vadd.s32 %v1593, %v1597
        %v1604 = vadd.s32 %v1596, %v1602
        %vm1605 = vc.u32 %v1603, %v1599
        %v1606 = vsel %vm1605, 1, 0
        %v1607 = vadd.s32 %v1603, %v1599
        %v1608 = vadd.s32 %v1604, %v1606
        %v1609 = vadd.s32 %v1608, %v1598
        %v1610 = vadd.s32 %v1609, %v1600
        %v1611 = vand.u32 %v1588, 65535
        %v1612 = vshrl.u32 %v1588, 16
        %v1613 = vand.u32 %v1583, 65535
        %v1614 = vshrl.u32 %v1583, 16
        %v1615 = vmul.u32 %v1611, %v1613
        %v1616 = vmul.u32 %v1611, %v1614
        %v1617 = vmul.u32 %v1612, %v1613
        %v1618 = vmul.u32 %v1612, %v1614
        %v1619 = vshll.u32 %v1616, 16
        %v1620 = vshrl.u32 %v1616, 16
        %v1621 = vshll.u32 %v1617, 16
        %v1622 = vshrl.u32 %v1617, 16
        %vm1623 = vc.u32 %v1615, %v1619
        %v1624 = vsel %vm1623, 1, 0
        %v1625 = vadd.s32 %v1615, %v1619
        %v1626 = vadd.s32 %v1618, %v1624
        %vm1627 = vc.u32 %v1625, %v1621
        %v1628 = vsel %vm1627, 1, 0
        %v1629 = vadd.s32 %v1625, %v1621
        %v1630 = vadd.s32 %v1626, %v1628
        %v1631 = vadd.s32 %v1630, %v1620
        %v1632 = vadd.s32 %v1631, %v1622
        %v1633 = vmul.u32 %v1588, %v1579
        %v1634 = vadd.s32 %v1610, %v1629
        %vm1635 = vc.u32 %v1610, %v1629
        %v1636 = vadd.s32 %v1632, 1
        %v1637 = vsel %vm1635, %v1636, %v1632
        %v1638 = vadd.s32 %v1633, %v1637
        %v1639 = vadd.s32 %v1638, 536870912
        %v1640 = vshrl.u32 %v1639, 30
        %v1641 = vshll.u32 %v1640, 30
        %v1642 = vsub.s32 %v1638, %v1641
        %vm1643 = vcmp.lt.s32.totalorder %v1642, 0
        %v1644 = vsub.s32 0, %v1642
        %v1645 = vsel %vm1643, %v1644, %v1642
        %v1646 = vclz %v1645
        %v1647 = vsub.s32 %v1646, 2
        %vm1648 = vcmp.gt.s32.totalorder 0, %v1647
        %v1649 = vsel %vm1648, 0, %v1647
        %v1650 = vsub.s32 32, %v1649
        %v1651 = vshll.u32 %v1642, %v1649
        %v1652 = vshrl.u32 %v1634, %v1650
        %v1653 = vor.u32 %v1651, %v1652
        %v1654 = vsub.s32 4294967266, %v1649
        %v1655 = vadd.s32 %v1654, 127
        %v1656 = vshll.u32 %v1655, 23
        %v1657 = vor.u32 4788187, %v1656
        %v1658 = vand.u32 2147483647, %v1657
        %v1660 = vcvt.s32.f32 %v1653
        %v1661 = vmul.f32 %v1660, %v1658
        %v1662 = vxor.u32 %v1661, 2147483648
        %v1663 = vsel %vm1542, %v1662, %v1661
        %v1664 = vsub.s32 4, %v1640
        %v1665 = vsel %vm1542, %v1664, %v1640
        %v1666 = vsel %vm1541, %v1538, %v1663
        %v1667 = vsel %vm1541, 0, %v1665
        %v1668 = vmul.f32 %v1666, %v1666
        %v1669 = vmul.f32 %v1668, -0.001358992
        %v1670 = vadd.f32 %v1669, 0.041655596
        %v1671 = vmul.f32 %v1668, %v1670
        %v1672 = vadd.f32 %v1671, -0.4999988
        %v1673 = vmul.f32 %v1668, %v1672
        %v1674 = vadd.f32 1.0, %v1673
        %v1675 = vmul.f32 %v1666, %v1666
        %v1676 = vmul.f32 %v1675, -0.00019511016
        %v1677 = vadd.f32 %v1676, 0.008332121
        %v1678 = vmul.f32 %v1675, %v1677
        %v1679 = vadd.f32 %v1678, -0.16666654
        %v1680 = vmul.f32 %v1675, %v1679
        %v1681 = vadd.f32 %v1680, 1.0
        %v1682 = vmul.f32 %v1681, %v1666
        %vm1683 = vweird.f32 %v1538
        %v1684 = vadd.s32 %v1667, 3
        %v1685 = vand.u32 %v1684, 3
        %vm1686 = vcmp.lt.s32.totalorder %v1685, 2
        %vm1687 = vcmp.eq.s32.totalorder %v1685, 0
        %v1688 = vxor.u32 %v1682, 2147483648
        %v1689 = vsel %vm1687, %v1674, %v1688
        %vm1690 = vcmp.eq.s32.totalorder %v1685, 2
        %v1691 = vxor.u32 %v1674, 2147483648
        %v1692 = vsel %vm1690, %v1691, %v1682
        %v1693 = vsel %vm1686, %v1689, %v1692
        %v1694 = vsel %vm1683, nan, %v1693
        %v1695 = vand.u32 2147483647, %v1539
        %vm1696 = vcmp.le.f32.partialorder %v1695, 0.7853982
        %vm1697 = vcmp.lt.s32.totalorder %v1539, 0
        %v1698 = vand.u32 %v1539, 2139095040
        %v1699 = vshrl.u32 %v1698, 23
        %v1700 = vsub.s32 %v1699, 127
        %v1701 = vand.u32 2147483647, %v1539
        %v1702 = vand.u32 %v1701, 8388607
        %v1703 = vor.u32 %v1702, 8388608
        %v1704 = vsub.s32 0, %v1703
        %v1705 = vadd.s32 %v1700, 1
        %vm1706 = vcmp.gt.s32.totalorder %v1705, 0
        %v1707 = vsel %vm1706, %v1705, 0
        %v1708 = vshrl.u32 %v1707, 5
        %v1709 = vand.u32 %v1707, 31
        %v1710 = vsub.s32 32, %v1709
        %v1711 = vshrl.u32 683565275, %v1710
        %v1712 = vshll.u32 683565275, %v1709
        %v1713 = vshrl.u32 2475754826, %v1710
        %v1714 = vor.u32 %v1712, %v1713
        %v1715 = vshll.u32 2475754826, %v1709
        %v1716 = vshrl.u32 2131351028, %v1710
        %v1717 = vor.u32 %v1715, %v1716
        %v1718 = vshll.u32 2131351028, %v1709
        %v1719 = vshrl.u32 2102212464, %v1710
        %v1720 = vor.u32 %v1718, %v1719
        %v1721 = vshll.u32 2102212464, %v1709
        %v1722 = vshrl.u32 920167782, %v1710
        %v1723 = vor.u32 %v1721, %v1722
        %v1724 = vshll.u32 920167782, %v1709
        %v1725 = vshrl.u32 1326507024, %v1710
        %v1726 = vor.u32 %v1724, %v1725
        %vm1727 = vcmp.lt.s32.totalorder %v1708, 1
        %vm1728 = vcmp.lt.s32.totalorder %v1708, 2
        %vm1729 = vcmp.lt.s32.totalorder %v1708, 3
        %vm1730 = vcmp.lt.s32.totalorder %v1708, 4
        %v1731 = vsel %vm1727, %v1711, %v1714
        %v1732 = vsel %vm1730, %v1720, 2102212464
        %v1733 = vsel %vm1729, %v1717, %v1732
        %v1734 = vsel %vm1728, %v1731, %v1733
        %v1735 = vsel %vm1727, %v1714, %v1717
        %v1736 = vsel %vm1730, %v1723, 920167782
        %v1737 = vsel %vm1729, %v1720, %v1736
        %v1738 = vsel %vm1728, %v1735, %v1737
        %v1739 = vsel %vm1727, %v1717, %v1720
        %v1740 = vsel %vm1730, %v1726, 1326507024
        %v1741 = vsel %vm1729, %v1723, %v1740
        %v1742 = vsel %vm1728, %v1739, %v1741
        %v1743 = vshll.u32 %v1703, 8
        %v1744 = vand.u32 %v1743, 65535
        %v1745 = vshrl.u32 %v1743, 16
        %v1746 = vand.u32 %v1742, 65535
        %v1747 = vshrl.u32 %v1742, 16
        %v1748 = vmul.u32 %v1744, %v1746
        %v1749 = vmul.u32 %v1744, %v1747
        %v1750 = vmul.u32 %v1745, %v1746
        %v1751 = vmul.u32 %v1745, %v1747
        %v1752 = vshll.u32 %v1749, 16
        %v1753 = vshrl.u32 %v1749, 16
        %v1754 = vshll.u32 %v1750, 16
        %v1755 = vshrl.u32 %v1750, 16
        %vm1756 = vc.u32 %v1748, %v1752
        %v1757 = vsel %vm1756, 1, 0
        %v1758 = vadd.s32 %v1748, %v1752
        %v1759 = vadd.s32 %v1751, %v1757
        %vm1760 = vc.u32 %v1758, %v1754
        %v1761 = vsel %vm1760, 1, 0
        %v1762 = vadd.s32 %v1758, %v1754
        %v1763 = vadd.s32 %v1759, %v1761
        %v1764 = vadd.s32 %v1763, %v1753
        %v1765 = vadd.s32 %v1764, %v1755
        %v1766 = vand.u32 %v1743, 65535
        %v1767 = vshrl.u32 %v1743, 16
        %v1768 = vand.u32 %v1738, 65535
        %v1769 = vshrl.u32 %v1738, 16
        %v1770 = vmul.u32 %v1766, %v1768
        %v1771 = vmul.u32 %v1766, %v1769
        %v1772 = vmul.u32 %v1767, %v1768
        %v1773 = vmul.u32 %v1767, %v1769
        %v1774 = vshll.u32 %v1771, 16
        %v1775 = vshrl.u32 %v1771, 16
        %v1776 = vshll.u32 %v1772, 16
        %v1777 = vshrl.u32 %v1772, 16
        %vm1778 = vc.u32 %v1770, %v1774
        %v1779 = vsel %vm1778, 1, 0
        %v1780 = vadd.s32 %v1770, %v1774
        %v1781 = vadd.s32 %v1773, %v1779
        %vm1782 = vc.u32 %v1780, %v1776
        %v1783 = vsel %vm1782, 1, 0
        %v1784 = vadd.s32 %v1780, %v1776
        %v1785 = vadd.s32 %v1781, %v1783
        %v1786 = vadd.s32 %v1785, %v1775
        %v1787 = vadd.s32 %v1786, %v1777
        %v1788 = vmul.u32 %v1743, %v1734
        %v1789 = vadd.s32 %v1765, %v1784
        %vm1790 = vc.u32 %v1765, %v1784
        %v1791 = vadd.s32 %v1787, 1
        %v1792 = vsel %vm1790, %v1791, %v1787
        %v1793 = vadd.s32 %v1788, %v1792
        %v1794 = vadd.s32 %v1793, 536870912
        %v1795 = vshrl.u32 %v1794, 30
        %v1796 = vshll.u32 %v1795, 30
        %v1797 = vsub.s32 %v1793, %v1796
        %vm1798 = vcmp.lt.s32.totalorder %v1797, 0
        %v1799 = vsub.s32 0, %v1797
        %v1800 = vsel %vm1798, %v1799, %v1797
        %v1801 = vclz %v1800
        %v1802 = vsub.s32 %v1801, 2
        %vm1803 = vcmp.gt.s32.totalorder 0, %v1802
        %v1804 = vsel %vm1803, 0, %v1802
        %v1805 = vsub.s32 32, %v1804
        %v1806 = vshll.u32 %v1797, %v1804
        %v1807 = vshrl.u32 %v1789, %v1805
        %v1808 = vor.u32 %v1806, %v1807
        %v1809 = vsub.s32 4294967266, %v1804
        %v1810 = vadd.s32 %v1809, 127
        %v1811 = vshll.u32 %v1810, 23
        %v1812 = vor.u32 4788187, %v1811
        %v1813 = vand.u32 2147483647, %v1812
        %v1815 = vcvt.s32.f32 %v1808
        %v1816 = vmul.f32 %v1815, %v1813
        %v1817 = vxor.u32 %v1816, 2147483648
        %v1818 = vsel %vm1697, %v1817, %v1816
        %v1819 = vsub.s32 4, %v1795
        %v1820 = vsel %vm1697, %v1819, %v1795
        %v1821 = vsel %vm1696, %v1539, %v1818
        %v1822 = vsel %vm1696, 0, %v1820
        %v1823 = vmul.f32 %v1821, %v1821
        %v1824 = vmul.f32 %v1823, -0.001358992
        %v1825 = vadd.f32 %v1824, 0.041655596
        %v1826 = vmul.f32 %v1823, %v1825
        %v1827 = vadd.f32 %v1826, -0.4999988
        %v1828 = vmul.f32 %v1823, %v1827
        %v1829 = vadd.f32 1.0, %v1828
        %v1830 = vmul.f32 %v1821, %v1821
        %v1831 = vmul.f32 %v1830, -0.00019511016
        %v1832 = vadd.f32 %v1831, 0.008332121
        %v1833 = vmul.f32 %v1830, %v1832
        %v1834 = vadd.f32 %v1833, -0.16666654
        %v1835 = vmul.f32 %v1830, %v1834
        %v1836 = vadd.f32 %v1835, 1.0
        %v1837 = vmul.f32 %v1836, %v1821
        %vm1838 = vweird.f32 %v1539
        %v1839 = vadd.s32 %v1822, 3
        %v1840 = vand.u32 %v1839, 3
        %vm1841 = vcmp.lt.s32.totalorder %v1840, 2
        %vm1842 = vcmp.eq.s32.totalorder %v1840, 0
        %v1843 = vxor.u32 %v1837, 2147483648
        %v1844 = vsel %vm1842, %v1829, %v1843
        %vm1845 = vcmp.eq.s32.totalorder %v1840, 2
        %v1846 = vxor.u32 %v1829, 2147483648
        %v1847 = vsel %vm1845, %v1846, %v1837
        %v1848 = vsel %vm1841, %v1844, %v1847
        %v1849 = vsel %vm1838, nan, %v1848
        %v1850 = vmul.f32 %v1694, %v1694
        %v1851 = vmul.f32 %v1849, %v1849
        %1853 = vset.pattern.permute.xlu0 0
        %1854 = vperm.xlu0 %1853, %v1532
        %v1855 = vpop.permute.xlu0 %1854
        %v1857 = vmul.f32 %v1855, %v1850
        %v1858 = vmul.f32 %v1855, %v1851
        %v1859 = vadd.f32 %v1515, %v1857
        %v1860 = vadd.f32 %v1528, %v1858
        %v1861 = vld [vmem:[%s12] sm:$0xf]
        %v1862 = vpack.c.bf16 %v1859, %v1859
        %v1863 = vpack.c.bf16 %v1860, %v1860
        %v1864 = vld [vmem:[%s13] sm:$0xff]
        %1866 = vset.pattern.permute.xlu0 0
        %1867 = vperm.xlu0 %1866, %v1864
        %v1868 = vpop.permute.xlu0 %1867
        %vm1870 = vcmask 64512
        %v1872 = vsel %vm1870, %v1861, 0
        %v1875 = vsel %vm1436, %v1862, 0
        %v1878 = vsel %vm1436, %v1863, 0
        %1880 = vmatpush.bf16.msra.mxu0 0
        %1881 = vmatpush.bf16.msra.mxu0 0
        %1882 = vmatpush.bf16.msra.mxu0 0
        %1883 = vmatpush.bf16.msra.mxu0 0
        %1884 = vmatpush.bf16.msra.mxu0 0
        %1885 = vmatpush.bf16.msra.mxu0 0
        %1886 = vmatpush.bf16.msra.mxu0 0
        %1887 = vmatpush.bf16.msra.mxu0 %v1875
        %1888 = vmatmul.bf16.gmra.mxu0 %v1872
        %v1889 = vpop.f32.mrf.mxu0
        %v1890 = vadd.f32 %v1868, %v1889
        %v1891 = vpop.f32.mrf.mxu0
        %1892 = vdwg.mxu0
        %1893 = vmatpush.bf16.msra.mxu0 0
        %1894 = vmatpush.bf16.msra.mxu0 0
        %1895 = vmatpush.bf16.msra.mxu0 0
        %1896 = vmatpush.bf16.msra.mxu0 0
        %1897 = vmatpush.bf16.msra.mxu0 0
        %1898 = vmatpush.bf16.msra.mxu0 0
        %1899 = vmatpush.bf16.msra.mxu0 0
        %1900 = vmatpush.bf16.msra.mxu0 %v1878
        %1901 = vmatmul.bf16.gmra.mxu0 %v1872
        %v1902 = vpop.f32.mrf.mxu0
        %v1903 = vadd.f32 %v1868, %v1902
        %v1904 = vpop.f32.mrf.mxu0
        %1905 = vdwg.mxu0
        %v1906 = vadd.f32 %v1044, %v1890
        %v1907 = vadd.f32 %v1045, %v1903
        %v1908 = vsel %vm1042, %v1906, 0.0
        %v1909 = vsel %vm1043, %v1907, 0.0
        %s1910 = scalar_lea.vmem %s6, 8
        %v1911 = vld [vmem:[%s1910] sm:$0xff]
        %s1912 = scalar_lea.vmem %s7, 8
        %v1913 = vld [vmem:[%s1912] sm:$0xff]
        %1915 = vset.pattern.permute.xlu0 0
        %1916 = vperm.xlu0 %1915, %v1911
        %v1917 = vpop.permute.xlu0 %1916
        %v1919 = vmul.f32 %v1917, %v1908
        %v1920 = vmul.f32 %v1917, %v1909
        %v1921 = vand.u32 2147483647, %v1919
        %vm1922 = vcmp.le.f32.partialorder %v1921, 0.7853982
        %vm1923 = vcmp.lt.s32.totalorder %v1919, 0
        %v1924 = vand.u32 %v1919, 2139095040
        %v1925 = vshrl.u32 %v1924, 23
        %v1926 = vsub.s32 %v1925, 127
        %v1927 = vand.u32 2147483647, %v1919
        %v1928 = vand.u32 %v1927, 8388607
        %v1929 = vor.u32 %v1928, 8388608
        %v1930 = vsub.s32 0, %v1929
        %v1931 = vadd.s32 %v1926, 1
        %vm1932 = vcmp.gt.s32.totalorder %v1931, 0
        %v1933 = vsel %vm1932, %v1931, 0
        %v1934 = vshrl.u32 %v1933, 5
        %v1935 = vand.u32 %v1933, 31
        %v1936 = vsub.s32 32, %v1935
        %v1937 = vshrl.u32 683565275, %v1936
        %v1938 = vshll.u32 683565275, %v1935
        %v1939 = vshrl.u32 2475754826, %v1936
        %v1940 = vor.u32 %v1938, %v1939
        %v1941 = vshll.u32 2475754826, %v1935
        %v1942 = vshrl.u32 2131351028, %v1936
        %v1943 = vor.u32 %v1941, %v1942
        %v1944 = vshll.u32 2131351028, %v1935
        %v1945 = vshrl.u32 2102212464, %v1936
        %v1946 = vor.u32 %v1944, %v1945
        %v1947 = vshll.u32 2102212464, %v1935
        %v1948 = vshrl.u32 920167782, %v1936
        %v1949 = vor.u32 %v1947, %v1948
        %v1950 = vshll.u32 920167782, %v1935
        %v1951 = vshrl.u32 1326507024, %v1936
        %v1952 = vor.u32 %v1950, %v1951
        %vm1953 = vcmp.lt.s32.totalorder %v1934, 1
        %vm1954 = vcmp.lt.s32.totalorder %v1934, 2
        %vm1955 = vcmp.lt.s32.totalorder %v1934, 3
        %vm1956 = vcmp.lt.s32.totalorder %v1934, 4
        %v1957 = vsel %vm1953, %v1937, %v1940
        %v1958 = vsel %vm1956, %v1946, 2102212464
        %v1959 = vsel %vm1955, %v1943, %v1958
        %v1960 = vsel %vm1954, %v1957, %v1959
        %v1961 = vsel %vm1953, %v1940, %v1943
        %v1962 = vsel %vm1956, %v1949, 920167782
        %v1963 = vsel %vm1955, %v1946, %v1962
        %v1964 = vsel %vm1954, %v1961, %v1963
        %v1965 = vsel %vm1953, %v1943, %v1946
        %v1966 = vsel %vm1956, %v1952, 1326507024
        %v1967 = vsel %vm1955, %v1949, %v1966
        %v1968 = vsel %vm1954, %v1965, %v1967
        %v1969 = vshll.u32 %v1929, 8
        %v1970 = vand.u32 %v1969, 65535
        %v1971 = vshrl.u32 %v1969, 16
        %v1972 = vand.u32 %v1968, 65535
        %v1973 = vshrl.u32 %v1968, 16
        %v1974 = vmul.u32 %v1970, %v1972
        %v1975 = vmul.u32 %v1970, %v1973
        %v1976 = vmul.u32 %v1971, %v1972
        %v1977 = vmul.u32 %v1971, %v1973
        %v1978 = vshll.u32 %v1975, 16
        %v1979 = vshrl.u32 %v1975, 16
        %v1980 = vshll.u32 %v1976, 16
        %v1981 = vshrl.u32 %v1976, 16
        %vm1982 = vc.u32 %v1974, %v1978
        %v1983 = vsel %vm1982, 1, 0
        %v1984 = vadd.s32 %v1974, %v1978
        %v1985 = vadd.s32 %v1977, %v1983
        %vm1986 = vc.u32 %v1984, %v1980
        %v1987 = vsel %vm1986, 1, 0
        %v1988 = vadd.s32 %v1984, %v1980
        %v1989 = vadd.s32 %v1985, %v1987
        %v1990 = vadd.s32 %v1989, %v1979
        %v1991 = vadd.s32 %v1990, %v1981
        %v1992 = vand.u32 %v1969, 65535
        %v1993 = vshrl.u32 %v1969, 16
        %v1994 = vand.u32 %v1964, 65535
        %v1995 = vshrl.u32 %v1964, 16
        %v1996 = vmul.u32 %v1992, %v1994
        %v1997 = vmul.u32 %v1992, %v1995
        %v1998 = vmul.u32 %v1993, %v1994
        %v1999 = vmul.u32 %v1993, %v1995
        %v2000 = vshll.u32 %v1997, 16
        %v2001 = vshrl.u32 %v1997, 16
        %v2002 = vshll.u32 %v1998, 16
        %v2003 = vshrl.u32 %v1998, 16
        %vm2004 = vc.u32 %v1996, %v2000
        %v2005 = vsel %vm2004, 1, 0
        %v2006 = vadd.s32 %v1996, %v2000
        %v2007 = vadd.s32 %v1999, %v2005
        %vm2008 = vc.u32 %v2006, %v2002
        %v2009 = vsel %vm2008, 1, 0
        %v2010 = vadd.s32 %v2006, %v2002
        %v2011 = vadd.s32 %v2007, %v2009
        %v2012 = vadd.s32 %v2011, %v2001
        %v2013 = vadd.s32 %v2012, %v2003
        %v2014 = vmul.u32 %v1969, %v1960
        %v2015 = vadd.s32 %v1991, %v2010
        %vm2016 = vc.u32 %v1991, %v2010
        %v2017 = vadd.s32 %v2013, 1
        %v2018 = vsel %vm2016, %v2017, %v2013
        %v2019 = vadd.s32 %v2014, %v2018
        %v2020 = vadd.s32 %v2019, 536870912
        %v2021 = vshrl.u32 %v2020, 30
        %v2022 = vshll.u32 %v2021, 30
        %v2023 = vsub.s32 %v2019, %v2022
        %vm2024 = vcmp.lt.s32.totalorder %v2023, 0
        %v2025 = vsub.s32 0, %v2023
        %v2026 = vsel %vm2024, %v2025, %v2023
        %v2027 = vclz %v2026
        %v2028 = vsub.s32 %v2027, 2
        %vm2029 = vcmp.gt.s32.totalorder 0, %v2028
        %v2030 = vsel %vm2029, 0, %v2028
        %v2031 = vsub.s32 32, %v2030
        %v2032 = vshll.u32 %v2023, %v2030
        %v2033 = vshrl.u32 %v2015, %v2031
        %v2034 = vor.u32 %v2032, %v2033
        %v2035 = vsub.s32 4294967266, %v2030
        %v2036 = vadd.s32 %v2035, 127
        %v2037 = vshll.u32 %v2036, 23
        %v2038 = vor.u32 4788187, %v2037
        %v2039 = vand.u32 2147483647, %v2038
        %v2041 = vcvt.s32.f32 %v2034
        %v2042 = vmul.f32 %v2041, %v2039
        %v2043 = vxor.u32 %v2042, 2147483648
        %v2044 = vsel %vm1923, %v2043, %v2042
        %v2045 = vsub.s32 4, %v2021
        %v2046 = vsel %vm1923, %v2045, %v2021
        %v2047 = vsel %vm1922, %v1919, %v2044
        %v2048 = vsel %vm1922, 0, %v2046
        %v2049 = vmul.f32 %v2047, %v2047
        %v2050 = vmul.f32 %v2049, -0.001358992
        %v2051 = vadd.f32 %v2050, 0.041655596
        %v2052 = vmul.f32 %v2049, %v2051
        %v2053 = vadd.f32 %v2052, -0.4999988
        %v2054 = vmul.f32 %v2049, %v2053
        %v2055 = vadd.f32 1.0, %v2054
        %v2056 = vmul.f32 %v2047, %v2047
        %v2057 = vmul.f32 %v2056, -0.00019511016
        %v2058 = vadd.f32 %v2057, 0.008332121
        %v2059 = vmul.f32 %v2056, %v2058
        %v2060 = vadd.f32 %v2059, -0.16666654
        %v2061 = vmul.f32 %v2056, %v2060
        %v2062 = vadd.f32 %v2061, 1.0
        %v2063 = vmul.f32 %v2062, %v2047
        %vm2064 = vweird.f32 %v1919
        %v2065 = vadd.s32 %v2048, 3
        %v2066 = vand.u32 %v2065, 3
        %vm2067 = vcmp.lt.s32.totalorder %v2066, 2
        %vm2068 = vcmp.eq.s32.totalorder %v2066, 0
        %v2069 = vxor.u32 %v2063, 2147483648
        %v2070 = vsel %vm2068, %v2055, %v2069
        %vm2071 = vcmp.eq.s32.totalorder %v2066, 2
        %v2072 = vxor.u32 %v2055, 2147483648
        %v2073 = vsel %vm2071, %v2072, %v2063
        %v2074 = vsel %vm2067, %v2070, %v2073
        %v2075 = vsel %vm2064, nan, %v2074
        %v2076 = vand.u32 2147483647, %v1920
        %vm2077 = vcmp.le.f32.partialorder %v2076, 0.7853982
        %vm2078 = vcmp.lt.s32.totalorder %v1920, 0
        %v2079 = vand.u32 %v1920, 2139095040
        %v2080 = vshrl.u32 %v2079, 23
        %v2081 = vsub.s32 %v2080, 127
        %v2082 = vand.u32 2147483647, %v1920
        %v2083 = vand.u32 %v2082, 8388607
        %v2084 = vor.u32 %v2083, 8388608
        %v2085 = vsub.s32 0, %v2084
        %v2086 = vadd.s32 %v2081, 1
        %vm2087 = vcmp.gt.s32.totalorder %v2086, 0
        %v2088 = vsel %vm2087, %v2086, 0
        %v2089 = vshrl.u32 %v2088, 5
        %v2090 = vand.u32 %v2088, 31
        %v2091 = vsub.s32 32, %v2090
        %v2092 = vshrl.u32 683565275, %v2091
        %v2093 = vshll.u32 683565275, %v2090
        %v2094 = vshrl.u32 2475754826, %v2091
        %v2095 = vor.u32 %v2093, %v2094
        %v2096 = vshll.u32 2475754826, %v2090
        %v2097 = vshrl.u32 2131351028, %v2091
        %v2098 = vor.u32 %v2096, %v2097
        %v2099 = vshll.u32 2131351028, %v2090
        %v2100 = vshrl.u32 2102212464, %v2091
        %v2101 = vor.u32 %v2099, %v2100
        %v2102 = vshll.u32 2102212464, %v2090
        %v2103 = vshrl.u32 920167782, %v2091
        %v2104 = vor.u32 %v2102, %v2103
        %v2105 = vshll.u32 920167782, %v2090
        %v2106 = vshrl.u32 1326507024, %v2091
        %v2107 = vor.u32 %v2105, %v2106
        %vm2108 = vcmp.lt.s32.totalorder %v2089, 1
        %vm2109 = vcmp.lt.s32.totalorder %v2089, 2
        %vm2110 = vcmp.lt.s32.totalorder %v2089, 3
        %vm2111 = vcmp.lt.s32.totalorder %v2089, 4
        %v2112 = vsel %vm2108, %v2092, %v2095
        %v2113 = vsel %vm2111, %v2101, 2102212464
        %v2114 = vsel %vm2110, %v2098, %v2113
        %v2115 = vsel %vm2109, %v2112, %v2114
        %v2116 = vsel %vm2108, %v2095, %v2098
        %v2117 = vsel %vm2111, %v2104, 920167782
        %v2118 = vsel %vm2110, %v2101, %v2117
        %v2119 = vsel %vm2109, %v2116, %v2118
        %v2120 = vsel %vm2108, %v2098, %v2101
        %v2121 = vsel %vm2111, %v2107, 1326507024
        %v2122 = vsel %vm2110, %v2104, %v2121
        %v2123 = vsel %vm2109, %v2120, %v2122
        %v2124 = vshll.u32 %v2084, 8
        %v2125 = vand.u32 %v2124, 65535
        %v2126 = vshrl.u32 %v2124, 16
        %v2127 = vand.u32 %v2123, 65535
        %v2128 = vshrl.u32 %v2123, 16
        %v2129 = vmul.u32 %v2125, %v2127
        %v2130 = vmul.u32 %v2125, %v2128
        %v2131 = vmul.u32 %v2126, %v2127
        %v2132 = vmul.u32 %v2126, %v2128
        %v2133 = vshll.u32 %v2130, 16
        %v2134 = vshrl.u32 %v2130, 16
        %v2135 = vshll.u32 %v2131, 16
        %v2136 = vshrl.u32 %v2131, 16
        %vm2137 = vc.u32 %v2129, %v2133
        %v2138 = vsel %vm2137, 1, 0
        %v2139 = vadd.s32 %v2129, %v2133
        %v2140 = vadd.s32 %v2132, %v2138
        %vm2141 = vc.u32 %v2139, %v2135
        %v2142 = vsel %vm2141, 1, 0
        %v2143 = vadd.s32 %v2139, %v2135
        %v2144 = vadd.s32 %v2140, %v2142
        %v2145 = vadd.s32 %v2144, %v2134
        %v2146 = vadd.s32 %v2145, %v2136
        %v2147 = vand.u32 %v2124, 65535
        %v2148 = vshrl.u32 %v2124, 16
        %v2149 = vand.u32 %v2119, 65535
        %v2150 = vshrl.u32 %v2119, 16
        %v2151 = vmul.u32 %v2147, %v2149
        %v2152 = vmul.u32 %v2147, %v2150
        %v2153 = vmul.u32 %v2148, %v2149
        %v2154 = vmul.u32 %v2148, %v2150
        %v2155 = vshll.u32 %v2152, 16
        %v2156 = vshrl.u32 %v2152, 16
        %v2157 = vshll.u32 %v2153, 16
        %v2158 = vshrl.u32 %v2153, 16
        %vm2159 = vc.u32 %v2151, %v2155
        %v2160 = vsel %vm2159, 1, 0
        %v2161 = vadd.s32 %v2151, %v2155
        %v2162 = vadd.s32 %v2154, %v2160
        %vm2163 = vc.u32 %v2161, %v2157
        %v2164 = vsel %vm2163, 1, 0
        %v2165 = vadd.s32 %v2161, %v2157
        %v2166 = vadd.s32 %v2162, %v2164
        %v2167 = vadd.s32 %v2166, %v2156
        %v2168 = vadd.s32 %v2167, %v2158
        %v2169 = vmul.u32 %v2124, %v2115
        %v2170 = vadd.s32 %v2146, %v2165
        %vm2171 = vc.u32 %v2146, %v2165
        %v2172 = vadd.s32 %v2168, 1
        %v2173 = vsel %vm2171, %v2172, %v2168
        %v2174 = vadd.s32 %v2169, %v2173
        %v2175 = vadd.s32 %v2174, 536870912
        %v2176 = vshrl.u32 %v2175, 30
        %v2177 = vshll.u32 %v2176, 30
        %v2178 = vsub.s32 %v2174, %v2177
        %vm2179 = vcmp.lt.s32.totalorder %v2178, 0
        %v2180 = vsub.s32 0, %v2178
        %v2181 = vsel %vm2179, %v2180, %v2178
        %v2182 = vclz %v2181
        %v2183 = vsub.s32 %v2182, 2
        %vm2184 = vcmp.gt.s32.totalorder 0, %v2183
        %v2185 = vsel %vm2184, 0, %v2183
        %v2186 = vsub.s32 32, %v2185
        %v2187 = vshll.u32 %v2178, %v2185
        %v2188 = vshrl.u32 %v2170, %v2186
        %v2189 = vor.u32 %v2187, %v2188
        %v2190 = vsub.s32 4294967266, %v2185
        %v2191 = vadd.s32 %v2190, 127
        %v2192 = vshll.u32 %v2191, 23
        %v2193 = vor.u32 4788187, %v2192
        %v2194 = vand.u32 2147483647, %v2193
        %v2196 = vcvt.s32.f32 %v2189
        %v2197 = vmul.f32 %v2196, %v2194
        %v2198 = vxor.u32 %v2197, 2147483648
        %v2199 = vsel %vm2078, %v2198, %v2197
        %v2200 = vsub.s32 4, %v2176
        %v2201 = vsel %vm2078, %v2200, %v2176
        %v2202 = vsel %vm2077, %v1920, %v2199
        %v2203 = vsel %vm2077, 0, %v2201
        %v2204 = vmul.f32 %v2202, %v2202
        %v2205 = vmul.f32 %v2204, -0.001358992
        %v2206 = vadd.f32 %v2205, 0.041655596
        %v2207 = vmul.f32 %v2204, %v2206
        %v2208 = vadd.f32 %v2207, -0.4999988
        %v2209 = vmul.f32 %v2204, %v2208
        %v2210 = vadd.f32 1.0, %v2209
        %v2211 = vmul.f32 %v2202, %v2202
        %v2212 = vmul.f32 %v2211, -0.00019511016
        %v2213 = vadd.f32 %v2212, 0.008332121
        %v2214 = vmul.f32 %v2211, %v2213
        %v2215 = vadd.f32 %v2214, -0.16666654
        %v2216 = vmul.f32 %v2211, %v2215
        %v2217 = vadd.f32 %v2216, 1.0
        %v2218 = vmul.f32 %v2217, %v2202
        %vm2219 = vweird.f32 %v1920
        %v2220 = vadd.s32 %v2203, 3
        %v2221 = vand.u32 %v2220, 3
        %vm2222 = vcmp.lt.s32.totalorder %v2221, 2
        %vm2223 = vcmp.eq.s32.totalorder %v2221, 0
        %v2224 = vxor.u32 %v2218, 2147483648
        %v2225 = vsel %vm2223, %v2210, %v2224
        %vm2226 = vcmp.eq.s32.totalorder %v2221, 2
        %v2227 = vxor.u32 %v2210, 2147483648
        %v2228 = vsel %vm2226, %v2227, %v2218
        %v2229 = vsel %vm2222, %v2225, %v2228
        %v2230 = vsel %vm2219, nan, %v2229
        %v2231 = vmul.f32 %v2075, %v2075
        %v2232 = vmul.f32 %v2230, %v2230
        %2234 = vset.pattern.permute.xlu0 0
        %2235 = vperm.xlu0 %2234, %v1913
        %v2236 = vpop.permute.xlu0 %2235
        %v2238 = vmul.f32 %v2236, %v2231
        %v2239 = vmul.f32 %v2236, %v2232
        %v2240 = vadd.f32 %v1908, %v2238
        %v2241 = vadd.f32 %v1909, %v2239
        %v2242 = vpack.c.bf16 %v2241, %v2240
        %2244 = vrot.lane.b32.xlu0 %v2242, 27
        %v2245 = vpop.permute.xlu0 %2244
        %v2246 = vrot.slane %v2245, 4
        %v2247 = vsel %vm1387, %v2246, %v2245
        %2249 = vst.msk [vmem:[#allocation2] sm:$0xff] %vm1392, %v2247
        %v2250 = vld [vmem:[#allocation2] sm:$0xff]
        %v2252 = vunpack.c.l.b16 %v2250
        %v2253 = vunpack.c.h.b16 %v2250
        %v2254 = vpack.c.b16 %v2252, %v2252
        %v2255 = vpack.c.b16 %v2253, %v2253
        %2256 = vrot.lane.b32.xlu0 %v2254, 125
        %v2257 = vpop.permute.xlu0 %2256
        %2258 = vrot.lane.b32.xlu0 %v2255, 125
        %v2259 = vpop.permute.xlu0 %2258
        %v2260 = vsel %vm1416, %v2257, %v2259
        %2261 = vrot.lane.b32.xlu0 %v2254, 122
        %v2262 = vpop.permute.xlu0 %2261
        %2263 = vrot.lane.b32.xlu0 %v2255, 122
        %v2264 = vpop.permute.xlu0 %2263
        %v2265 = vsel %vm1434, %v2262, %v2264
        %2266 = vrot.lane.b32.xlu0 %v2254, 119
        %v2267 = vpop.permute.xlu0 %2266
        %2268 = vrot.lane.b32.xlu0 %v2255, 119
        %v2269 = vpop.permute.xlu0 %2268
        %vm2270 = vcmask 973824
        %v2271 = vsel %vm2270, %v2267, %v2269
        %2272 = vrot.lane.b32.xlu0 %v2254, 116
        %v2273 = vpop.permute.xlu0 %2272
        %2274 = vrot.lane.b32.xlu0 %v2255, 116
        %v2275 = vpop.permute.xlu0 %2274
        %vm2276 = vcmask 949248
        %v2277 = vsel %vm2276, %v2273, %v2275
        %2278 = vrot.lane.b32.xlu0 %v2254, 113
        %v2279 = vpop.permute.xlu0 %2278
        %2280 = vrot.lane.b32.xlu0 %v2255, 113
        %v2281 = vpop.permute.xlu0 %2280
        %vm2282 = vcmask 924672
        %v2283 = vsel %vm2282, %v2279, %v2281
        %2284 = vrot.lane.b32.xlu0 %v2254, 110
        %v2285 = vpop.permute.xlu0 %2284
        %2286 = vrot.lane.b32.xlu0 %v2255, 110
        %v2287 = vpop.permute.xlu0 %2286
        %vm2288 = vcmask 900096
        %v2289 = vsel %vm2288, %v2285, %v2287
        %v2292 = vsel %vm1436, %v2254, %v2260
        %v2295 = vsel %vm1436, %v2255, %v2259
        %v2298 = vsel %vm1436, %v2265, %v2271
        %v2301 = vsel %vm1436, %v2264, %v2269
        %v2304 = vsel %vm1436, %v2277, %v2283
        %v2307 = vsel %vm1436, %v2275, %v2281
        %s2308 = scalar_lea.vmem %s8, 4
        %v2309 = vld [vmem:[%s2308] sm:$0xf]
        %s2310 = scalar_lea.vmem %s9, 8
        %v2311 = vld [vmem:[%s2310] sm:$0xff]
        %2313 = vset.pattern.permute.xlu0 0
        %2314 = vperm.xlu0 %2313, %v2311
        %v2315 = vpop.permute.xlu0 %2314
        %2323 = vrot.lane.b32.xlu0 %v2292, 110
        %v2324 = vpop.permute.xlu0 %2323
        %2325 = vrot.lane.b32.xlu0 %v2295, 110
        %v2326 = vpop.permute.xlu0 %2325
        %2327 = vrot.lane.b32.xlu0 %v2298, 110
        %v2328 = vpop.permute.xlu0 %2327
        %2329 = vrot.lane.b32.xlu0 %v2301, 110
        %v2330 = vpop.permute.xlu0 %2329
        %2331 = vrot.lane.b32.xlu0 %v2304, 110
        %v2332 = vpop.permute.xlu0 %2331
        %2333 = vrot.lane.b32.xlu0 %v2307, 110
        %v2334 = vpop.permute.xlu0 %2333
        %2335 = vrot.lane.b32.xlu0 %v2289, 110
        %v2336 = vpop.permute.xlu0 %2335
        %2337 = vrot.lane.b32.xlu0 %v2287, 110
        %v2338 = vpop.permute.xlu0 %2337
        %v2339 = vsel %vm2288, %v2324, %v2326
        %v2340 = vsel %vm2288, %v2328, %v2330
        %v2341 = vsel %vm2288, %v2332, %v2334
        %v2342 = vsel %vm2288, %v2336, %v2338
        %v2350 = vsel %vm1495, %v2309, 0
        %v2353 = vsel %vm1436, %v2342, 0
        %v2356 = vsel %vm1436, %v2338, 0
        %2358 = vmatpush.bf16.msra.mxu0 0
        %2359 = vmatpush.bf16.msra.mxu0 0
        %2360 = vmatpush.bf16.msra.mxu0 0
        %2361 = vmatpush.bf16.msra.mxu0 0
        %2362 = vmatpush.bf16.msra.mxu0 %v2353
        %2363 = vmatpush.bf16.msra.mxu0 %v2341
        %2364 = vmatpush.bf16.msra.mxu0 %v2340
        %2365 = vmatpush.bf16.msra.mxu0 %v2339
        %2366 = vmatmul.bf16.gmra.mxu0 %v2350
        %v2367 = vpop.f32.mrf.mxu0
        %v2368 = vadd.f32 %v2315, %v2367
        %v2369 = vpop.f32.mrf.mxu0
        %2370 = vdwg.mxu0
        %2371 = vmatpush.bf16.msra.mxu0 0
        %2372 = vmatpush.bf16.msra.mxu0 0
        %2373 = vmatpush.bf16.msra.mxu0 0
        %2374 = vmatpush.bf16.msra.mxu0 0
        %2375 = vmatpush.bf16.msra.mxu0 %v2356
        %2376 = vmatpush.bf16.msra.mxu0 %v2334
        %2377 = vmatpush.bf16.msra.mxu0 %v2330
        %2378 = vmatpush.bf16.msra.mxu0 %v2326
        %2379 = vmatmul.bf16.gmra.mxu0 %v2350
        %v2380 = vpop.f32.mrf.mxu0
        %v2381 = vadd.f32 %v2315, %v2380
        %v2382 = vpop.f32.mrf.mxu0
        %2383 = vdwg.mxu0
        %s2384 = scalar_lea.vmem %s10, 8
        %v2385 = vld [vmem:[%s2384] sm:$0xff]
        %s2386 = scalar_lea.vmem %s11, 8
        %v2387 = vld [vmem:[%s2386] sm:$0xff]
        %2389 = vset.pattern.permute.xlu0 0
        %2390 = vperm.xlu0 %2389, %v2385
        %v2391 = vpop.permute.xlu0 %2390
        %v2393 = vmul.f32 %v2391, %v2368
        %v2394 = vmul.f32 %v2391, %v2381
        %v2395 = vand.u32 2147483647, %v2393
        %vm2396 = vcmp.le.f32.partialorder %v2395, 0.7853982
        %vm2397 = vcmp.lt.s32.totalorder %v2393, 0
        %v2398 = vand.u32 %v2393, 2139095040
        %v2399 = vshrl.u32 %v2398, 23
        %v2400 = vsub.s32 %v2399, 127
        %v2401 = vand.u32 2147483647, %v2393
        %v2402 = vand.u32 %v2401, 8388607
        %v2403 = vor.u32 %v2402, 8388608
        %v2404 = vsub.s32 0, %v2403
        %v2405 = vadd.s32 %v2400, 1
        %vm2406 = vcmp.gt.s32.totalorder %v2405, 0
        %v2407 = vsel %vm2406, %v2405, 0
        %v2408 = vshrl.u32 %v2407, 5
        %v2409 = vand.u32 %v2407, 31
        %v2410 = vsub.s32 32, %v2409
        %v2411 = vshrl.u32 683565275, %v2410
        %v2412 = vshll.u32 683565275, %v2409
        %v2413 = vshrl.u32 2475754826, %v2410
        %v2414 = vor.u32 %v2412, %v2413
        %v2415 = vshll.u32 2475754826, %v2409
        %v2416 = vshrl.u32 2131351028, %v2410
        %v2417 = vor.u32 %v2415, %v2416
        %v2418 = vshll.u32 2131351028, %v2409
        %v2419 = vshrl.u32 2102212464, %v2410
        %v2420 = vor.u32 %v2418, %v2419
        %v2421 = vshll.u32 2102212464, %v2409
        %v2422 = vshrl.u32 920167782, %v2410
        %v2423 = vor.u32 %v2421, %v2422
        %v2424 = vshll.u32 920167782, %v2409
        %v2425 = vshrl.u32 1326507024, %v2410
        %v2426 = vor.u32 %v2424, %v2425
        %vm2427 = vcmp.lt.s32.totalorder %v2408, 1
        %vm2428 = vcmp.lt.s32.totalorder %v2408, 2
        %vm2429 = vcmp.lt.s32.totalorder %v2408, 3
        %vm2430 = vcmp.lt.s32.totalorder %v2408, 4
        %v2431 = vsel %vm2427, %v2411, %v2414
        %v2432 = vsel %vm2430, %v2420, 2102212464
        %v2433 = vsel %vm2429, %v2417, %v2432
        %v2434 = vsel %vm2428, %v2431, %v2433
        %v2435 = vsel %vm2427, %v2414, %v2417
        %v2436 = vsel %vm2430, %v2423, 920167782
        %v2437 = vsel %vm2429, %v2420, %v2436
        %v2438 = vsel %vm2428, %v2435, %v2437
        %v2439 = vsel %vm2427, %v2417, %v2420
        %v2440 = vsel %vm2430, %v2426, 1326507024
        %v2441 = vsel %vm2429, %v2423, %v2440
        %v2442 = vsel %vm2428, %v2439, %v2441
        %v2443 = vshll.u32 %v2403, 8
        %v2444 = vand.u32 %v2443, 65535
        %v2445 = vshrl.u32 %v2443, 16
        %v2446 = vand.u32 %v2442, 65535
        %v2447 = vshrl.u32 %v2442, 16
        %v2448 = vmul.u32 %v2444, %v2446
        %v2449 = vmul.u32 %v2444, %v2447
        %v2450 = vmul.u32 %v2445, %v2446
        %v2451 = vmul.u32 %v2445, %v2447
        %v2452 = vshll.u32 %v2449, 16
        %v2453 = vshrl.u32 %v2449, 16
        %v2454 = vshll.u32 %v2450, 16
        %v2455 = vshrl.u32 %v2450, 16
        %vm2456 = vc.u32 %v2448, %v2452
        %v2457 = vsel %vm2456, 1, 0
        %v2458 = vadd.s32 %v2448, %v2452
        %v2459 = vadd.s32 %v2451, %v2457
        %vm2460 = vc.u32 %v2458, %v2454
        %v2461 = vsel %vm2460, 1, 0
        %v2462 = vadd.s32 %v2458, %v2454
        %v2463 = vadd.s32 %v2459, %v2461
        %v2464 = vadd.s32 %v2463, %v2453
        %v2465 = vadd.s32 %v2464, %v2455
        %v2466 = vand.u32 %v2443, 65535
        %v2467 = vshrl.u32 %v2443, 16
        %v2468 = vand.u32 %v2438, 65535
        %v2469 = vshrl.u32 %v2438, 16
        %v2470 = vmul.u32 %v2466, %v2468
        %v2471 = vmul.u32 %v2466, %v2469
        %v2472 = vmul.u32 %v2467, %v2468
        %v2473 = vmul.u32 %v2467, %v2469
        %v2474 = vshll.u32 %v2471, 16
        %v2475 = vshrl.u32 %v2471, 16
        %v2476 = vshll.u32 %v2472, 16
        %v2477 = vshrl.u32 %v2472, 16
        %vm2478 = vc.u32 %v2470, %v2474
        %v2479 = vsel %vm2478, 1, 0
        %v2480 = vadd.s32 %v2470, %v2474
        %v2481 = vadd.s32 %v2473, %v2479
        %vm2482 = vc.u32 %v2480, %v2476
        %v2483 = vsel %vm2482, 1, 0
        %v2484 = vadd.s32 %v2480, %v2476
        %v2485 = vadd.s32 %v2481, %v2483
        %v2486 = vadd.s32 %v2485, %v2475
        %v2487 = vadd.s32 %v2486, %v2477
        %v2488 = vmul.u32 %v2443, %v2434
        %v2489 = vadd.s32 %v2465, %v2484
        %vm2490 = vc.u32 %v2465, %v2484
        %v2491 = vadd.s32 %v2487, 1
        %v2492 = vsel %vm2490, %v2491, %v2487
        %v2493 = vadd.s32 %v2488, %v2492
        %v2494 = vadd.s32 %v2493, 536870912
        %v2495 = vshrl.u32 %v2494, 30
        %v2496 = vshll.u32 %v2495, 30
        %v2497 = vsub.s32 %v2493, %v2496
        %vm2498 = vcmp.lt.s32.totalorder %v2497, 0
        %v2499 = vsub.s32 0, %v2497
        %v2500 = vsel %vm2498, %v2499, %v2497
        %v2501 = vclz %v2500
        %v2502 = vsub.s32 %v2501, 2
        %vm2503 = vcmp.gt.s32.totalorder 0, %v2502
        %v2504 = vsel %vm2503, 0, %v2502
        %v2505 = vsub.s32 32, %v2504
        %v2506 = vshll.u32 %v2497, %v2504
        %v2507 = vshrl.u32 %v2489, %v2505
        %v2508 = vor.u32 %v2506, %v2507
        %v2509 = vsub.s32 4294967266, %v2504
        %v2510 = vadd.s32 %v2509, 127
        %v2511 = vshll.u32 %v2510, 23
        %v2512 = vor.u32 4788187, %v2511
        %v2513 = vand.u32 2147483647, %v2512
        %v2515 = vcvt.s32.f32 %v2508
        %v2516 = vmul.f32 %v2515, %v2513
        %v2517 = vxor.u32 %v2516, 2147483648
        %v2518 = vsel %vm2397, %v2517, %v2516
        %v2519 = vsub.s32 4, %v2495
        %v2520 = vsel %vm2397, %v2519, %v2495
        %v2521 = vsel %vm2396, %v2393, %v2518
        %v2522 = vsel %vm2396, 0, %v2520
        %v2523 = vmul.f32 %v2521, %v2521
        %v2524 = vmul.f32 %v2523, -0.001358992
        %v2525 = vadd.f32 %v2524, 0.041655596
        %v2526 = vmul.f32 %v2523, %v2525
        %v2527 = vadd.f32 %v2526, -0.4999988
        %v2528 = vmul.f32 %v2523, %v2527
        %v2529 = vadd.f32 1.0, %v2528
        %v2530 = vmul.f32 %v2521, %v2521
        %v2531 = vmul.f32 %v2530, -0.00019511016
        %v2532 = vadd.f32 %v2531, 0.008332121
        %v2533 = vmul.f32 %v2530, %v2532
        %v2534 = vadd.f32 %v2533, -0.16666654
        %v2535 = vmul.f32 %v2530, %v2534
        %v2536 = vadd.f32 %v2535, 1.0
        %v2537 = vmul.f32 %v2536, %v2521
        %vm2538 = vweird.f32 %v2393
        %v2539 = vadd.s32 %v2522, 3
        %v2540 = vand.u32 %v2539, 3
        %vm2541 = vcmp.lt.s32.totalorder %v2540, 2
        %vm2542 = vcmp.eq.s32.totalorder %v2540, 0
        %v2543 = vxor.u32 %v2537, 2147483648
        %v2544 = vsel %vm2542, %v2529, %v2543
        %vm2545 = vcmp.eq.s32.totalorder %v2540, 2
        %v2546 = vxor.u32 %v2529, 2147483648
        %v2547 = vsel %vm2545, %v2546, %v2537
        %v2548 = vsel %vm2541, %v2544, %v2547
        %v2549 = vsel %vm2538, nan, %v2548
        %v2550 = vand.u32 2147483647, %v2394
        %vm2551 = vcmp.le.f32.partialorder %v2550, 0.7853982
        %vm2552 = vcmp.lt.s32.totalorder %v2394, 0
        %v2553 = vand.u32 %v2394, 2139095040
        %v2554 = vshrl.u32 %v2553, 23
        %v2555 = vsub.s32 %v2554, 127
        %v2556 = vand.u32 2147483647, %v2394
        %v2557 = vand.u32 %v2556, 8388607
        %v2558 = vor.u32 %v2557, 8388608
        %v2559 = vsub.s32 0, %v2558
        %v2560 = vadd.s32 %v2555, 1
        %vm2561 = vcmp.gt.s32.totalorder %v2560, 0
        %v2562 = vsel %vm2561, %v2560, 0
        %v2563 = vshrl.u32 %v2562, 5
        %v2564 = vand.u32 %v2562, 31
        %v2565 = vsub.s32 32, %v2564
        %v2566 = vshrl.u32 683565275, %v2565
        %v2567 = vshll.u32 683565275, %v2564
        %v2568 = vshrl.u32 2475754826, %v2565
        %v2569 = vor.u32 %v2567, %v2568
        %v2570 = vshll.u32 2475754826, %v2564
        %v2571 = vshrl.u32 2131351028, %v2565
        %v2572 = vor.u32 %v2570, %v2571
        %v2573 = vshll.u32 2131351028, %v2564
        %v2574 = vshrl.u32 2102212464, %v2565
        %v2575 = vor.u32 %v2573, %v2574
        %v2576 = vshll.u32 2102212464, %v2564
        %v2577 = vshrl.u32 920167782, %v2565
        %v2578 = vor.u32 %v2576, %v2577
        %v2579 = vshll.u32 920167782, %v2564
        %v2580 = vshrl.u32 1326507024, %v2565
        %v2581 = vor.u32 %v2579, %v2580
        %vm2582 = vcmp.lt.s32.totalorder %v2563, 1
        %vm2583 = vcmp.lt.s32.totalorder %v2563, 2
        %vm2584 = vcmp.lt.s32.totalorder %v2563, 3
        %vm2585 = vcmp.lt.s32.totalorder %v2563, 4
        %v2586 = vsel %vm2582, %v2566, %v2569
        %v2587 = vsel %vm2585, %v2575, 2102212464
        %v2588 = vsel %vm2584, %v2572, %v2587
        %v2589 = vsel %vm2583, %v2586, %v2588
        %v2590 = vsel %vm2582, %v2569, %v2572
        %v2591 = vsel %vm2585, %v2578, 920167782
        %v2592 = vsel %vm2584, %v2575, %v2591
        %v2593 = vsel %vm2583, %v2590, %v2592
        %v2594 = vsel %vm2582, %v2572, %v2575
        %v2595 = vsel %vm2585, %v2581, 1326507024
        %v2596 = vsel %vm2584, %v2578, %v2595
        %v2597 = vsel %vm2583, %v2594, %v2596
        %v2598 = vshll.u32 %v2558, 8
        %v2599 = vand.u32 %v2598, 65535
        %v2600 = vshrl.u32 %v2598, 16
        %v2601 = vand.u32 %v2597, 65535
        %v2602 = vshrl.u32 %v2597, 16
        %v2603 = vmul.u32 %v2599, %v2601
        %v2604 = vmul.u32 %v2599, %v2602
        %v2605 = vmul.u32 %v2600, %v2601
        %v2606 = vmul.u32 %v2600, %v2602
        %v2607 = vshll.u32 %v2604, 16
        %v2608 = vshrl.u32 %v2604, 16
        %v2609 = vshll.u32 %v2605, 16
        %v2610 = vshrl.u32 %v2605, 16
        %vm2611 = vc.u32 %v2603, %v2607
        %v2612 = vsel %vm2611, 1, 0
        %v2613 = vadd.s32 %v2603, %v2607
        %v2614 = vadd.s32 %v2606, %v2612
        %vm2615 = vc.u32 %v2613, %v2609
        %v2616 = vsel %vm2615, 1, 0
        %v2617 = vadd.s32 %v2613, %v2609
        %v2618 = vadd.s32 %v2614, %v2616
        %v2619 = vadd.s32 %v2618, %v2608
        %v2620 = vadd.s32 %v2619, %v2610
        %v2621 = vand.u32 %v2598, 65535
        %v2622 = vshrl.u32 %v2598, 16
        %v2623 = vand.u32 %v2593, 65535
        %v2624 = vshrl.u32 %v2593, 16
        %v2625 = vmul.u32 %v2621, %v2623
        %v2626 = vmul.u32 %v2621, %v2624
        %v2627 = vmul.u32 %v2622, %v2623
        %v2628 = vmul.u32 %v2622, %v2624
        %v2629 = vshll.u32 %v2626, 16
        %v2630 = vshrl.u32 %v2626, 16
        %v2631 = vshll.u32 %v2627, 16
        %v2632 = vshrl.u32 %v2627, 16
        %vm2633 = vc.u32 %v2625, %v2629
        %v2634 = vsel %vm2633, 1, 0
        %v2635 = vadd.s32 %v2625, %v2629
        %v2636 = vadd.s32 %v2628, %v2634
        %vm2637 = vc.u32 %v2635, %v2631
        %v2638 = vsel %vm2637, 1, 0
        %v2639 = vadd.s32 %v2635, %v2631
        %v2640 = vadd.s32 %v2636, %v2638
        %v2641 = vadd.s32 %v2640, %v2630
        %v2642 = vadd.s32 %v2641, %v2632
        %v2643 = vmul.u32 %v2598, %v2589
        %v2644 = vadd.s32 %v2620, %v2639
        %vm2645 = vc.u32 %v2620, %v2639
        %v2646 = vadd.s32 %v2642, 1
        %v2647 = vsel %vm2645, %v2646, %v2642
        %v2648 = vadd.s32 %v2643, %v2647
        %v2649 = vadd.s32 %v2648, 536870912
        %v2650 = vshrl.u32 %v2649, 30
        %v2651 = vshll.u32 %v2650, 30
        %v2652 = vsub.s32 %v2648, %v2651
        %vm2653 = vcmp.lt.s32.totalorder %v2652, 0
        %v2654 = vsub.s32 0, %v2652
        %v2655 = vsel %vm2653, %v2654, %v2652
        %v2656 = vclz %v2655
        %v2657 = vsub.s32 %v2656, 2
        %vm2658 = vcmp.gt.s32.totalorder 0, %v2657
        %v2659 = vsel %vm2658, 0, %v2657
        %v2660 = vsub.s32 32, %v2659
        %v2661 = vshll.u32 %v2652, %v2659
        %v2662 = vshrl.u32 %v2644, %v2660
        %v2663 = vor.u32 %v2661, %v2662
        %v2664 = vsub.s32 4294967266, %v2659
        %v2665 = vadd.s32 %v2664, 127
        %v2666 = vshll.u32 %v2665, 23
        %v2667 = vor.u32 4788187, %v2666
        %v2668 = vand.u32 2147483647, %v2667
        %v2670 = vcvt.s32.f32 %v2663
        %v2671 = vmul.f32 %v2670, %v2668
        %v2672 = vxor.u32 %v2671, 2147483648
        %v2673 = vsel %vm2552, %v2672, %v2671
        %v2674 = vsub.s32 4, %v2650
        %v2675 = vsel %vm2552, %v2674, %v2650
        %v2676 = vsel %vm2551, %v2394, %v2673
        %v2677 = vsel %vm2551, 0, %v2675
        %v2678 = vmul.f32 %v2676, %v2676
        %v2679 = vmul.f32 %v2678, -0.001358992
        %v2680 = vadd.f32 %v2679, 0.041655596
        %v2681 = vmul.f32 %v2678, %v2680
        %v2682 = vadd.f32 %v2681, -0.4999988
        %v2683 = vmul.f32 %v2678, %v2682
        %v2684 = vadd.f32 1.0, %v2683
        %v2685 = vmul.f32 %v2676, %v2676
        %v2686 = vmul.f32 %v2685, -0.00019511016
        %v2687 = vadd.f32 %v2686, 0.008332121
        %v2688 = vmul.f32 %v2685, %v2687
        %v2689 = vadd.f32 %v2688, -0.16666654
        %v2690 = vmul.f32 %v2685, %v2689
        %v2691 = vadd.f32 %v2690, 1.0
        %v2692 = vmul.f32 %v2691, %v2676
        %vm2693 = vweird.f32 %v2394
        %v2694 = vadd.s32 %v2677, 3
        %v2695 = vand.u32 %v2694, 3
        %vm2696 = vcmp.lt.s32.totalorder %v2695, 2
        %vm2697 = vcmp.eq.s32.totalorder %v2695, 0
        %v2698 = vxor.u32 %v2692, 2147483648
        %v2699 = vsel %vm2697, %v2684, %v2698
        %vm2700 = vcmp.eq.s32.totalorder %v2695, 2
        %v2701 = vxor.u32 %v2684, 2147483648
        %v2702 = vsel %vm2700, %v2701, %v2692
        %v2703 = vsel %vm2696, %v2699, %v2702
        %v2704 = vsel %vm2693, nan, %v2703
        %v2705 = vmul.f32 %v2549, %v2549
        %v2706 = vmul.f32 %v2704, %v2704
        %2708 = vset.pattern.permute.xlu0 0
        %2709 = vperm.xlu0 %2708, %v2387
        %v2710 = vpop.permute.xlu0 %2709
        %v2712 = vmul.f32 %v2710, %v2705
        %v2713 = vmul.f32 %v2710, %v2706
        %v2714 = vadd.f32 %v2368, %v2712
        %v2715 = vadd.f32 %v2381, %v2713
        %s2716 = scalar_lea.vmem %s12, 4
        %v2717 = vld [vmem:[%s2716] sm:$0xf]
        %v2718 = vpack.c.bf16 %v2714, %v2714
        %v2719 = vpack.c.bf16 %v2715, %v2715
        %s2720 = scalar_lea.vmem %s13, 8
        %v2721 = vld [vmem:[%s2720] sm:$0xff]
        %2723 = vset.pattern.permute.xlu0 0
        %2724 = vperm.xlu0 %2723, %v2721
        %v2725 = vpop.permute.xlu0 %2724
        %v2728 = vsel %vm1870, %v2717, 0
        %v2731 = vsel %vm1436, %v2718, 0
        %v2734 = vsel %vm1436, %v2719, 0
        %2736 = vmatpush.bf16.msra.mxu0 0
        %2737 = vmatpush.bf16.msra.mxu0 0
        %2738 = vmatpush.bf16.msra.mxu0 0
        %2739 = vmatpush.bf16.msra.mxu0 0
        %2740 = vmatpush.bf16.msra.mxu0 0
        %2741 = vmatpush.bf16.msra.mxu0 0
        %2742 = vmatpush.bf16.msra.mxu0 0
        %2743 = vmatpush.bf16.msra.mxu0 %v2731
        %2744 = vmatmul.bf16.gmra.mxu0 %v2728
        %v2745 = vpop.f32.mrf.mxu0
        %v2746 = vadd.f32 %v2725, %v2745
        %v2747 = vpop.f32.mrf.mxu0
        %2748 = vdwg.mxu0
        %2749 = vmatpush.bf16.msra.mxu0 0
        %2750 = vmatpush.bf16.msra.mxu0 0
        %2751 = vmatpush.bf16.msra.mxu0 0
        %2752 = vmatpush.bf16.msra.mxu0 0
        %2753 = vmatpush.bf16.msra.mxu0 0
        %2754 = vmatpush.bf16.msra.mxu0 0
        %2755 = vmatpush.bf16.msra.mxu0 0
        %2756 = vmatpush.bf16.msra.mxu0 %v2734
        %2757 = vmatmul.bf16.gmra.mxu0 %v2728
        %v2758 = vpop.f32.mrf.mxu0
        %v2759 = vadd.f32 %v2725, %v2758
        %v2760 = vpop.f32.mrf.mxu0
        %2761 = vdwg.mxu0
        %v2762 = vadd.f32 %v1908, %v2746
        %v2763 = vadd.f32 %v1909, %v2759
        %v2764 = vsel %vm1042, %v2762, 0.0
        %v2765 = vsel %vm1043, %v2763, 0.0
        %s2766 = scalar_lea.vmem %s6, 16
        %v2767 = vld [vmem:[%s2766] sm:$0xff]
        %s2768 = scalar_lea.vmem %s7, 16
        %v2769 = vld [vmem:[%s2768] sm:$0xff]
        %2771 = vset.pattern.permute.xlu0 0
        %2772 = vperm.xlu0 %2771, %v2767
        %v2773 = vpop.permute.xlu0 %2772
        %v2775 = vmul.f32 %v2773, %v2764
        %v2776 = vmul.f32 %v2773, %v2765
        %v2777 = vand.u32 2147483647, %v2775
        %vm2778 = vcmp.le.f32.partialorder %v2777, 0.7853982
        %vm2779 = vcmp.lt.s32.totalorder %v2775, 0
        %v2780 = vand.u32 %v2775, 2139095040
        %v2781 = vshrl.u32 %v2780, 23
        %v2782 = vsub.s32 %v2781, 127
        %v2783 = vand.u32 2147483647, %v2775
        %v2784 = vand.u32 %v2783, 8388607
        %v2785 = vor.u32 %v2784, 8388608
        %v2786 = vsub.s32 0, %v2785
        %v2787 = vadd.s32 %v2782, 1
        %vm2788 = vcmp.gt.s32.totalorder %v2787, 0
        %v2789 = vsel %vm2788, %v2787, 0
        %v2790 = vshrl.u32 %v2789, 5
        %v2791 = vand.u32 %v2789, 31
        %v2792 = vsub.s32 32, %v2791
        %v2793 = vshrl.u32 683565275, %v2792
        %v2794 = vshll.u32 683565275, %v2791
        %v2795 = vshrl.u32 2475754826, %v2792
        %v2796 = vor.u32 %v2794, %v2795
        %v2797 = vshll.u32 2475754826, %v2791
        %v2798 = vshrl.u32 2131351028, %v2792
        %v2799 = vor.u32 %v2797, %v2798
        %v2800 = vshll.u32 2131351028, %v2791
        %v2801 = vshrl.u32 2102212464, %v2792
        %v2802 = vor.u32 %v2800, %v2801
        %v2803 = vshll.u32 2102212464, %v2791
        %v2804 = vshrl.u32 920167782, %v2792
        %v2805 = vor.u32 %v2803, %v2804
        %v2806 = vshll.u32 920167782, %v2791
        %v2807 = vshrl.u32 1326507024, %v2792
        %v2808 = vor.u32 %v2806, %v2807
        %vm2809 = vcmp.lt.s32.totalorder %v2790, 1
        %vm2810 = vcmp.lt.s32.totalorder %v2790, 2
        %vm2811 = vcmp.lt.s32.totalorder %v2790, 3
        %vm2812 = vcmp.lt.s32.totalorder %v2790, 4
        %v2813 = vsel %vm2809, %v2793, %v2796
        %v2814 = vsel %vm2812, %v2802, 2102212464
        %v2815 = vsel %vm2811, %v2799, %v2814
        %v2816 = vsel %vm2810, %v2813, %v2815
        %v2817 = vsel %vm2809, %v2796, %v2799
        %v2818 = vsel %vm2812, %v2805, 920167782
        %v2819 = vsel %vm2811, %v2802, %v2818
        %v2820 = vsel %vm2810, %v2817, %v2819
        %v2821 = vsel %vm2809, %v2799, %v2802
        %v2822 = vsel %vm2812, %v2808, 1326507024
        %v2823 = vsel %vm2811, %v2805, %v2822
        %v2824 = vsel %vm2810, %v2821, %v2823
        %v2825 = vshll.u32 %v2785, 8
        %v2826 = vand.u32 %v2825, 65535
        %v2827 = vshrl.u32 %v2825, 16
        %v2828 = vand.u32 %v2824, 65535
        %v2829 = vshrl.u32 %v2824, 16
        %v2830 = vmul.u32 %v2826, %v2828
        %v2831 = vmul.u32 %v2826, %v2829
        %v2832 = vmul.u32 %v2827, %v2828
        %v2833 = vmul.u32 %v2827, %v2829
        %v2834 = vshll.u32 %v2831, 16
        %v2835 = vshrl.u32 %v2831, 16
        %v2836 = vshll.u32 %v2832, 16
        %v2837 = vshrl.u32 %v2832, 16
        %vm2838 = vc.u32 %v2830, %v2834
        %v2839 = vsel %vm2838, 1, 0
        %v2840 = vadd.s32 %v2830, %v2834
        %v2841 = vadd.s32 %v2833, %v2839
        %vm2842 = vc.u32 %v2840, %v2836
        %v2843 = vsel %vm2842, 1, 0
        %v2844 = vadd.s32 %v2840, %v2836
        %v2845 = vadd.s32 %v2841, %v2843
        %v2846 = vadd.s32 %v2845, %v2835
        %v2847 = vadd.s32 %v2846, %v2837
        %v2848 = vand.u32 %v2825, 65535
        %v2849 = vshrl.u32 %v2825, 16
        %v2850 = vand.u32 %v2820, 65535
        %v2851 = vshrl.u32 %v2820, 16
        %v2852 = vmul.u32 %v2848, %v2850
        %v2853 = vmul.u32 %v2848, %v2851
        %v2854 = vmul.u32 %v2849, %v2850
        %v2855 = vmul.u32 %v2849, %v2851
        %v2856 = vshll.u32 %v2853, 16
        %v2857 = vshrl.u32 %v2853, 16
        %v2858 = vshll.u32 %v2854, 16
        %v2859 = vshrl.u32 %v2854, 16
        %vm2860 = vc.u32 %v2852, %v2856
        %v2861 = vsel %vm2860, 1, 0
        %v2862 = vadd.s32 %v2852, %v2856
        %v2863 = vadd.s32 %v2855, %v2861
        %vm2864 = vc.u32 %v2862, %v2858
        %v2865 = vsel %vm2864, 1, 0
        %v2866 = vadd.s32 %v2862, %v2858
        %v2867 = vadd.s32 %v2863, %v2865
        %v2868 = vadd.s32 %v2867, %v2857
        %v2869 = vadd.s32 %v2868, %v2859
        %v2870 = vmul.u32 %v2825, %v2816
        %v2871 = vadd.s32 %v2847, %v2866
        %vm2872 = vc.u32 %v2847, %v2866
        %v2873 = vadd.s32 %v2869, 1
        %v2874 = vsel %vm2872, %v2873, %v2869
        %v2875 = vadd.s32 %v2870, %v2874
        %v2876 = vadd.s32 %v2875, 536870912
        %v2877 = vshrl.u32 %v2876, 30
        %v2878 = vshll.u32 %v2877, 30
        %v2879 = vsub.s32 %v2875, %v2878
        %vm2880 = vcmp.lt.s32.totalorder %v2879, 0
        %v2881 = vsub.s32 0, %v2879
        %v2882 = vsel %vm2880, %v2881, %v2879
        %v2883 = vclz %v2882
        %v2884 = vsub.s32 %v2883, 2
        %vm2885 = vcmp.gt.s32.totalorder 0, %v2884
        %v2886 = vsel %vm2885, 0, %v2884
        %v2887 = vsub.s32 32, %v2886
        %v2888 = vshll.u32 %v2879, %v2886
        %v2889 = vshrl.u32 %v2871, %v2887
        %v2890 = vor.u32 %v2888, %v2889
        %v2891 = vsub.s32 4294967266, %v2886
        %v2892 = vadd.s32 %v2891, 127
        %v2893 = vshll.u32 %v2892, 23
        %v2894 = vor.u32 4788187, %v2893
        %v2895 = vand.u32 2147483647, %v2894
        %v2897 = vcvt.s32.f32 %v2890
        %v2898 = vmul.f32 %v2897, %v2895
        %v2899 = vxor.u32 %v2898, 2147483648
        %v2900 = vsel %vm2779, %v2899, %v2898
        %v2901 = vsub.s32 4, %v2877
        %v2902 = vsel %vm2779, %v2901, %v2877
        %v2903 = vsel %vm2778, %v2775, %v2900
        %v2904 = vsel %vm2778, 0, %v2902
        %v2905 = vmul.f32 %v2903, %v2903
        %v2906 = vmul.f32 %v2905, -0.001358992
        %v2907 = vadd.f32 %v2906, 0.041655596
        %v2908 = vmul.f32 %v2905, %v2907
        %v2909 = vadd.f32 %v2908, -0.4999988
        %v2910 = vmul.f32 %v2905, %v2909
        %v2911 = vadd.f32 1.0, %v2910
        %v2912 = vmul.f32 %v2903, %v2903
        %v2913 = vmul.f32 %v2912, -0.00019511016
        %v2914 = vadd.f32 %v2913, 0.008332121
        %v2915 = vmul.f32 %v2912, %v2914
        %v2916 = vadd.f32 %v2915, -0.16666654
        %v2917 = vmul.f32 %v2912, %v2916
        %v2918 = vadd.f32 %v2917, 1.0
        %v2919 = vmul.f32 %v2918, %v2903
        %vm2920 = vweird.f32 %v2775
        %v2921 = vadd.s32 %v2904, 3
        %v2922 = vand.u32 %v2921, 3
        %vm2923 = vcmp.lt.s32.totalorder %v2922, 2
        %vm2924 = vcmp.eq.s32.totalorder %v2922, 0
        %v2925 = vxor.u32 %v2919, 2147483648
        %v2926 = vsel %vm2924, %v2911, %v2925
        %vm2927 = vcmp.eq.s32.totalorder %v2922, 2
        %v2928 = vxor.u32 %v2911, 2147483648
        %v2929 = vsel %vm2927, %v2928, %v2919
        %v2930 = vsel %vm2923, %v2926, %v2929
        %v2931 = vsel %vm2920, nan, %v2930
        %v2932 = vand.u32 2147483647, %v2776
        %vm2933 = vcmp.le.f32.partialorder %v2932, 0.7853982
        %vm2934 = vcmp.lt.s32.totalorder %v2776, 0
        %v2935 = vand.u32 %v2776, 2139095040
        %v2936 = vshrl.u32 %v2935, 23
        %v2937 = vsub.s32 %v2936, 127
        %v2938 = vand.u32 2147483647, %v2776
        %v2939 = vand.u32 %v2938, 8388607
        %v2940 = vor.u32 %v2939, 8388608
        %v2941 = vsub.s32 0, %v2940
        %v2942 = vadd.s32 %v2937, 1
        %vm2943 = vcmp.gt.s32.totalorder %v2942, 0
        %v2944 = vsel %vm2943, %v2942, 0
        %v2945 = vshrl.u32 %v2944, 5
        %v2946 = vand.u32 %v2944, 31
        %v2947 = vsub.s32 32, %v2946
        %v2948 = vshrl.u32 683565275, %v2947
        %v2949 = vshll.u32 683565275, %v2946
        %v2950 = vshrl.u32 2475754826, %v2947
        %v2951 = vor.u32 %v2949, %v2950
        %v2952 = vshll.u32 2475754826, %v2946
        %v2953 = vshrl.u32 2131351028, %v2947
        %v2954 = vor.u32 %v2952, %v2953
        %v2955 = vshll.u32 2131351028, %v2946
        %v2956 = vshrl.u32 2102212464, %v2947
        %v2957 = vor.u32 %v2955, %v2956
        %v2958 = vshll.u32 2102212464, %v2946
        %v2959 = vshrl.u32 920167782, %v2947
        %v2960 = vor.u32 %v2958, %v2959
        %v2961 = vshll.u32 920167782, %v2946
        %v2962 = vshrl.u32 1326507024, %v2947
        %v2963 = vor.u32 %v2961, %v2962
        %vm2964 = vcmp.lt.s32.totalorder %v2945, 1
        %vm2965 = vcmp.lt.s32.totalorder %v2945, 2
        %vm2966 = vcmp.lt.s32.totalorder %v2945, 3
        %vm2967 = vcmp.lt.s32.totalorder %v2945, 4
        %v2968 = vsel %vm2964, %v2948, %v2951
        %v2969 = vsel %vm2967, %v2957, 2102212464
        %v2970 = vsel %vm2966, %v2954, %v2969
        %v2971 = vsel %vm2965, %v2968, %v2970
        %v2972 = vsel %vm2964, %v2951, %v2954
        %v2973 = vsel %vm2967, %v2960, 920167782
        %v2974 = vsel %vm2966, %v2957, %v2973
        %v2975 = vsel %vm2965, %v2972, %v2974
        %v2976 = vsel %vm2964, %v2954, %v2957
        %v2977 = vsel %vm2967, %v2963, 1326507024
        %v2978 = vsel %vm2966, %v2960, %v2977
        %v2979 = vsel %vm2965, %v2976, %v2978
        %v2980 = vshll.u32 %v2940, 8
        %v2981 = vand.u32 %v2980, 65535
        %v2982 = vshrl.u32 %v2980, 16
        %v2983 = vand.u32 %v2979, 65535
        %v2984 = vshrl.u32 %v2979, 16
        %v2985 = vmul.u32 %v2981, %v2983
        %v2986 = vmul.u32 %v2981, %v2984
        %v2987 = vmul.u32 %v2982, %v2983
        %v2988 = vmul.u32 %v2982, %v2984
        %v2989 = vshll.u32 %v2986, 16
        %v2990 = vshrl.u32 %v2986, 16
        %v2991 = vshll.u32 %v2987, 16
        %v2992 = vshrl.u32 %v2987, 16
        %vm2993 = vc.u32 %v2985, %v2989
        %v2994 = vsel %vm2993, 1, 0
        %v2995 = vadd.s32 %v2985, %v2989
        %v2996 = vadd.s32 %v2988, %v2994
        %vm2997 = vc.u32 %v2995, %v2991
        %v2998 = vsel %vm2997, 1, 0
        %v2999 = vadd.s32 %v2995, %v2991
        %v3000 = vadd.s32 %v2996, %v2998
        %v3001 = vadd.s32 %v3000, %v2990
        %v3002 = vadd.s32 %v3001, %v2992
        %v3003 = vand.u32 %v2980, 65535
        %v3004 = vshrl.u32 %v2980, 16
        %v3005 = vand.u32 %v2975, 65535
        %v3006 = vshrl.u32 %v2975, 16
        %v3007 = vmul.u32 %v3003, %v3005
        %v3008 = vmul.u32 %v3003, %v3006
        %v3009 = vmul.u32 %v3004, %v3005
        %v3010 = vmul.u32 %v3004, %v3006
        %v3011 = vshll.u32 %v3008, 16
        %v3012 = vshrl.u32 %v3008, 16
        %v3013 = vshll.u32 %v3009, 16
        %v3014 = vshrl.u32 %v3009, 16
        %vm3015 = vc.u32 %v3007, %v3011
        %v3016 = vsel %vm3015, 1, 0
        %v3017 = vadd.s32 %v3007, %v3011
        %v3018 = vadd.s32 %v3010, %v3016
        %vm3019 = vc.u32 %v3017, %v3013
        %v3020 = vsel %vm3019, 1, 0
        %v3021 = vadd.s32 %v3017, %v3013
        %v3022 = vadd.s32 %v3018, %v3020
        %v3023 = vadd.s32 %v3022, %v3012
        %v3024 = vadd.s32 %v3023, %v3014
        %v3025 = vmul.u32 %v2980, %v2971
        %v3026 = vadd.s32 %v3002, %v3021
        %vm3027 = vc.u32 %v3002, %v3021
        %v3028 = vadd.s32 %v3024, 1
        %v3029 = vsel %vm3027, %v3028, %v3024
        %v3030 = vadd.s32 %v3025, %v3029
        %v3031 = vadd.s32 %v3030, 536870912
        %v3032 = vshrl.u32 %v3031, 30
        %v3033 = vshll.u32 %v3032, 30
        %v3034 = vsub.s32 %v3030, %v3033
        %vm3035 = vcmp.lt.s32.totalorder %v3034, 0
        %v3036 = vsub.s32 0, %v3034
        %v3037 = vsel %vm3035, %v3036, %v3034
        %v3038 = vclz %v3037
        %v3039 = vsub.s32 %v3038, 2
        %vm3040 = vcmp.gt.s32.totalorder 0, %v3039
        %v3041 = vsel %vm3040, 0, %v3039
        %v3042 = vsub.s32 32, %v3041
        %v3043 = vshll.u32 %v3034, %v3041
        %v3044 = vshrl.u32 %v3026, %v3042
        %v3045 = vor.u32 %v3043, %v3044
        %v3046 = vsub.s32 4294967266, %v3041
        %v3047 = vadd.s32 %v3046, 127
        %v3048 = vshll.u32 %v3047, 23
        %v3049 = vor.u32 4788187, %v3048
        %v3050 = vand.u32 2147483647, %v3049
        %v3052 = vcvt.s32.f32 %v3045
        %v3053 = vmul.f32 %v3052, %v3050
        %v3054 = vxor.u32 %v3053, 2147483648
        %v3055 = vsel %vm2934, %v3054, %v3053
        %v3056 = vsub.s32 4, %v3032
        %v3057 = vsel %vm2934, %v3056, %v3032
        %v3058 = vsel %vm2933, %v2776, %v3055
        %v3059 = vsel %vm2933, 0, %v3057
        %v3060 = vmul.f32 %v3058, %v3058
        %v3061 = vmul.f32 %v3060, -0.001358992
        %v3062 = vadd.f32 %v3061, 0.041655596
        %v3063 = vmul.f32 %v3060, %v3062
        %v3064 = vadd.f32 %v3063, -0.4999988
        %v3065 = vmul.f32 %v3060, %v3064
        %v3066 = vadd.f32 1.0, %v3065
        %v3067 = vmul.f32 %v3058, %v3058
        %v3068 = vmul.f32 %v3067, -0.00019511016
        %v3069 = vadd.f32 %v3068, 0.008332121
        %v3070 = vmul.f32 %v3067, %v3069
        %v3071 = vadd.f32 %v3070, -0.16666654
        %v3072 = vmul.f32 %v3067, %v3071
        %v3073 = vadd.f32 %v3072, 1.0
        %v3074 = vmul.f32 %v3073, %v3058
        %vm3075 = vweird.f32 %v2776
        %v3076 = vadd.s32 %v3059, 3
        %v3077 = vand.u32 %v3076, 3
        %vm3078 = vcmp.lt.s32.totalorder %v3077, 2
        %vm3079 = vcmp.eq.s32.totalorder %v3077, 0
        %v3080 = vxor.u32 %v3074, 2147483648
        %v3081 = vsel %vm3079, %v3066, %v3080
        %vm3082 = vcmp.eq.s32.totalorder %v3077, 2
        %v3083 = vxor.u32 %v3066, 2147483648
        %v3084 = vsel %vm3082, %v3083, %v3074
        %v3085 = vsel %vm3078, %v3081, %v3084
        %v3086 = vsel %vm3075, nan, %v3085
        %v3087 = vmul.f32 %v2931, %v2931
        %v3088 = vmul.f32 %v3086, %v3086
        %3090 = vset.pattern.permute.xlu0 0
        %3091 = vperm.xlu0 %3090, %v2769
        %v3092 = vpop.permute.xlu0 %3091
        %v3094 = vmul.f32 %v3092, %v3087
        %v3095 = vmul.f32 %v3092, %v3088
        %v3096 = vadd.f32 %v2764, %v3094
        %v3097 = vadd.f32 %v2765, %v3095
        %v3098 = vpack.c.bf16 %v3097, %v3096
        %3100 = vrot.lane.b32.xlu0 %v3098, 27
        %v3101 = vpop.permute.xlu0 %3100
        %v3102 = vrot.slane %v3101, 4
        %v3103 = vsel %vm1387, %v3102, %v3101
        %3105 = vst.msk [vmem:[#allocation2] sm:$0xff] %vm1392, %v3103
        %v3106 = vld [vmem:[#allocation2] sm:$0xff]
        %v3107 = vld [vmem:[#allocation2 + $0x8] sm:$0xf]
        %v3109 = vunpack.c.l.b16 %v3106
        %v3110 = vunpack.c.h.b16 %v3106
        %v3111 = vpack.c.b16 %v3109, %v3109
        %v3112 = vpack.c.b16 %v3110, %v3110
        %3113 = vrot.lane.b32.xlu0 %v3111, 119
        %v3114 = vpop.permute.xlu0 %3113
        %3115 = vrot.lane.b32.xlu0 %v3112, 119
        %v3116 = vpop.permute.xlu0 %3115
        %v3117 = vsel %vm2270, %v3114, %v3116
        %3118 = vrot.lane.b32.xlu0 %v3111, 110
        %v3119 = vpop.permute.xlu0 %3118
        %3120 = vrot.lane.b32.xlu0 %v3112, 110
        %v3121 = vpop.permute.xlu0 %3120
        %v3122 = vsel %vm2288, %v3119, %v3121
        %3123 = vrot.lane.b32.xlu0 %v3111, 101
        %v3124 = vpop.permute.xlu0 %3123
        %3125 = vrot.lane.b32.xlu0 %v3112, 101
        %v3126 = vpop.permute.xlu0 %3125
        %vm3127 = vcmask 826368
        %v3128 = vsel %vm3127, %v3124, %v3126
        %3129 = vrot.lane.b32.xlu0 %v3111, 92
        %v3130 = vpop.permute.xlu0 %3129
        %3131 = vrot.lane.b32.xlu0 %v3112, 92
        %v3132 = vpop.permute.xlu0 %3131
        %vm3133 = vcmask 752640
        %v3134 = vsel %vm3133, %v3130, %v3132
        %3135 = vrot.lane.b32.xlu0 %v3111, 83
        %v3136 = vpop.permute.xlu0 %3135
        %3137 = vrot.lane.b32.xlu0 %v3112, 83
        %v3138 = vpop.permute.xlu0 %3137
        %vm3139 = vcmask 678912
        %v3140 = vsel %vm3139, %v3136, %v3138
        %v3142 = vunpack.c.l.b16 %v3107
        %v3143 = vpack.c.b16 %v3142, %v3142
        %3144 = vrot.lane.b32.xlu0 %v3111, 74
        %v3145 = vpop.permute.xlu0 %3144
        %3146 = vrot.lane.b32.xlu0 %v3112, 74
        %v3147 = vpop.permute.xlu0 %3146
        %3148 = vrot.lane.b32.xlu0 %v3143, 74
        %v3149 = vpop.permute.xlu0 %3148
        %vm3150 = vcmask 605184
        %v3151 = vsel %vm3150, %v3145, %v3147
        %v3152 = vsel %vm3150, %v3147, %v3149
        %v3155 = vsel %vm1436, %v3111, %v3117
        %v3159 = vsel %vm1436, %v3112, %v3116
        %v3163 = vsel %vm1436, %v3122, %v3128
        %v3167 = vsel %vm1436, %v3121, %v3126
        %v3171 = vsel %vm1436, %v3134, %v3140
        %v3175 = vsel %vm1436, %v3132, %v3138
        %s3177 = scalar_lea.vmem %s8, 8
        %v3178 = vld [vmem:[%s3177] sm:$0xf]
        %s3179 = scalar_lea.vmem %s9, 16
        %v3180 = vld [vmem:[%s3179] sm:$0xff]
        %3182 = vset.pattern.permute.xlu0 0
        %3183 = vperm.xlu0 %3182, %v3180
        %v3184 = vpop.permute.xlu0 %3183
        %v3187 = vsel %vm1495, %v3178, 0
        %v3190 = vsel %vm1436, %v3151, 0
        %v3193 = vsel %vm1436, %v3152, 0
        %3195 = vmatpush.bf16.msra.mxu0 0
        %3196 = vmatpush.bf16.msra.mxu0 0
        %3197 = vmatpush.bf16.msra.mxu0 0
        %3198 = vmatpush.bf16.msra.mxu0 0
        %3199 = vmatpush.bf16.msra.mxu0 %v3190
        %3200 = vmatpush.bf16.msra.mxu0 %v3171
        %3201 = vmatpush.bf16.msra.mxu0 %v3163
        %3202 = vmatpush.bf16.msra.mxu0 %v3155
        %3203 = vmatmul.bf16.gmra.mxu0 %v3187
        %v3204 = vpop.f32.mrf.mxu0
        %v3205 = vadd.f32 %v3184, %v3204
        %v3206 = vpop.f32.mrf.mxu0
        %3207 = vdwg.mxu0
        %3208 = vmatpush.bf16.msra.mxu0 0
        %3209 = vmatpush.bf16.msra.mxu0 0
        %3210 = vmatpush.bf16.msra.mxu0 0
        %3211 = vmatpush.bf16.msra.mxu0 0
        %3212 = vmatpush.bf16.msra.mxu0 %v3193
        %3213 = vmatpush.bf16.msra.mxu0 %v3175
        %3214 = vmatpush.bf16.msra.mxu0 %v3167
        %3215 = vmatpush.bf16.msra.mxu0 %v3159
        %3216 = vmatmul.bf16.gmra.mxu0 %v3187
        %v3217 = vpop.f32.mrf.mxu0
        %v3218 = vadd.f32 %v3184, %v3217
        %v3219 = vpop.f32.mrf.mxu0
        %3220 = vdwg.mxu0
        %s3221 = scalar_lea.vmem %s10, 16
        %v3222 = vld [vmem:[%s3221] sm:$0xff]
        %s3223 = scalar_lea.vmem %s11, 16
        %v3224 = vld [vmem:[%s3223] sm:$0xff]
        %3226 = vset.pattern.permute.xlu0 0
        %3227 = vperm.xlu0 %3226, %v3222
        %v3228 = vpop.permute.xlu0 %3227
        %v3230 = vmul.f32 %v3228, %v3205
        %v3231 = vmul.f32 %v3228, %v3218
        %v3232 = vand.u32 2147483647, %v3230
        %vm3233 = vcmp.le.f32.partialorder %v3232, 0.7853982
        %vm3234 = vcmp.lt.s32.totalorder %v3230, 0
        %v3235 = vand.u32 %v3230, 2139095040
        %v3236 = vshrl.u32 %v3235, 23
        %v3237 = vsub.s32 %v3236, 127
        %v3238 = vand.u32 2147483647, %v3230
        %v3239 = vand.u32 %v3238, 8388607
        %v3240 = vor.u32 %v3239, 8388608
        %v3241 = vsub.s32 0, %v3240
        %v3242 = vadd.s32 %v3237, 1
        %vm3243 = vcmp.gt.s32.totalorder %v3242, 0
        %v3244 = vsel %vm3243, %v3242, 0
        %v3245 = vshrl.u32 %v3244, 5
        %v3246 = vand.u32 %v3244, 31
        %v3247 = vsub.s32 32, %v3246
        %v3248 = vshrl.u32 683565275, %v3247
        %v3249 = vshll.u32 683565275, %v3246
        %v3250 = vshrl.u32 2475754826, %v3247
        %v3251 = vor.u32 %v3249, %v3250
        %v3252 = vshll.u32 2475754826, %v3246
        %v3253 = vshrl.u32 2131351028, %v3247
        %v3254 = vor.u32 %v3252, %v3253
        %v3255 = vshll.u32 2131351028, %v3246
        %v3256 = vshrl.u32 2102212464, %v3247
        %v3257 = vor.u32 %v3255, %v3256
        %v3258 = vshll.u32 2102212464, %v3246
        %v3259 = vshrl.u32 920167782, %v3247
        %v3260 = vor.u32 %v3258, %v3259
        %v3261 = vshll.u32 920167782, %v3246
        %v3262 = vshrl.u32 1326507024, %v3247
        %v3263 = vor.u32 %v3261, %v3262
        %vm3264 = vcmp.lt.s32.totalorder %v3245, 1
        %vm3265 = vcmp.lt.s32.totalorder %v3245, 2
        %vm3266 = vcmp.lt.s32.totalorder %v3245, 3
        %vm3267 = vcmp.lt.s32.totalorder %v3245, 4
        %v3268 = vsel %vm3264, %v3248, %v3251
        %v3269 = vsel %vm3267, %v3257, 2102212464
        %v3270 = vsel %vm3266, %v3254, %v3269
        %v3271 = vsel %vm3265, %v3268, %v3270
        %v3272 = vsel %vm3264, %v3251, %v3254
        %v3273 = vsel %vm3267, %v3260, 920167782
        %v3274 = vsel %vm3266, %v3257, %v3273
        %v3275 = vsel %vm3265, %v3272, %v3274
        %v3276 = vsel %vm3264, %v3254, %v3257
        %v3277 = vsel %vm3267, %v3263, 1326507024
        %v3278 = vsel %vm3266, %v3260, %v3277
        %v3279 = vsel %vm3265, %v3276, %v3278
        %v3280 = vshll.u32 %v3240, 8
        %v3281 = vand.u32 %v3280, 65535
        %v3282 = vshrl.u32 %v3280, 16
        %v3283 = vand.u32 %v3279, 65535
        %v3284 = vshrl.u32 %v3279, 16
        %v3285 = vmul.u32 %v3281, %v3283
        %v3286 = vmul.u32 %v3281, %v3284
        %v3287 = vmul.u32 %v3282, %v3283
        %v3288 = vmul.u32 %v3282, %v3284
        %v3289 = vshll.u32 %v3286, 16
        %v3290 = vshrl.u32 %v3286, 16
        %v3291 = vshll.u32 %v3287, 16
        %v3292 = vshrl.u32 %v3287, 16
        %vm3293 = vc.u32 %v3285, %v3289
        %v3294 = vsel %vm3293, 1, 0
        %v3295 = vadd.s32 %v3285, %v3289
        %v3296 = vadd.s32 %v3288, %v3294
        %vm3297 = vc.u32 %v3295, %v3291
        %v3298 = vsel %vm3297, 1, 0
        %v3299 = vadd.s32 %v3295, %v3291
        %v3300 = vadd.s32 %v3296, %v3298
        %v3301 = vadd.s32 %v3300, %v3290
        %v3302 = vadd.s32 %v3301, %v3292
        %v3303 = vand.u32 %v3280, 65535
        %v3304 = vshrl.u32 %v3280, 16
        %v3305 = vand.u32 %v3275, 65535
        %v3306 = vshrl.u32 %v3275, 16
        %v3307 = vmul.u32 %v3303, %v3305
        %v3308 = vmul.u32 %v3303, %v3306
        %v3309 = vmul.u32 %v3304, %v3305
        %v3310 = vmul.u32 %v3304, %v3306
        %v3311 = vshll.u32 %v3308, 16
        %v3312 = vshrl.u32 %v3308, 16
        %v3313 = vshll.u32 %v3309, 16
        %v3314 = vshrl.u32 %v3309, 16
        %vm3315 = vc.u32 %v3307, %v3311
        %v3316 = vsel %vm3315, 1, 0
        %v3317 = vadd.s32 %v3307, %v3311
        %v3318 = vadd.s32 %v3310, %v3316
        %vm3319 = vc.u32 %v3317, %v3313
        %v3320 = vsel %vm3319, 1, 0
        %v3321 = vadd.s32 %v3317, %v3313
        %v3322 = vadd.s32 %v3318, %v3320
        %v3323 = vadd.s32 %v3322, %v3312
        %v3324 = vadd.s32 %v3323, %v3314
        %v3325 = vmul.u32 %v3280, %v3271
        %v3326 = vadd.s32 %v3302, %v3321
        %vm3327 = vc.u32 %v3302, %v3321
        %v3328 = vadd.s32 %v3324, 1
        %v3329 = vsel %vm3327, %v3328, %v3324
        %v3330 = vadd.s32 %v3325, %v3329
        %v3331 = vadd.s32 %v3330, 536870912
        %v3332 = vshrl.u32 %v3331, 30
        %v3333 = vshll.u32 %v3332, 30
        %v3334 = vsub.s32 %v3330, %v3333
        %vm3335 = vcmp.lt.s32.totalorder %v3334, 0
        %v3336 = vsub.s32 0, %v3334
        %v3337 = vsel %vm3335, %v3336, %v3334
        %v3338 = vclz %v3337
        %v3339 = vsub.s32 %v3338, 2
        %vm3340 = vcmp.gt.s32.totalorder 0, %v3339
        %v3341 = vsel %vm3340, 0, %v3339
        %v3342 = vsub.s32 32, %v3341
        %v3343 = vshll.u32 %v3334, %v3341
        %v3344 = vshrl.u32 %v3326, %v3342
        %v3345 = vor.u32 %v3343, %v3344
        %v3346 = vsub.s32 4294967266, %v3341
        %v3347 = vadd.s32 %v3346, 127
        %v3348 = vshll.u32 %v3347, 23
        %v3349 = vor.u32 4788187, %v3348
        %v3350 = vand.u32 2147483647, %v3349
        %v3352 = vcvt.s32.f32 %v3345
        %v3353 = vmul.f32 %v3352, %v3350
        %v3354 = vxor.u32 %v3353, 2147483648
        %v3355 = vsel %vm3234, %v3354, %v3353
        %v3356 = vsub.s32 4, %v3332
        %v3357 = vsel %vm3234, %v3356, %v3332
        %v3358 = vsel %vm3233, %v3230, %v3355
        %v3359 = vsel %vm3233, 0, %v3357
        %v3360 = vmul.f32 %v3358, %v3358
        %v3361 = vmul.f32 %v3360, -0.001358992
        %v3362 = vadd.f32 %v3361, 0.041655596
        %v3363 = vmul.f32 %v3360, %v3362
        %v3364 = vadd.f32 %v3363, -0.4999988
        %v3365 = vmul.f32 %v3360, %v3364
        %v3366 = vadd.f32 1.0, %v3365
        %v3367 = vmul.f32 %v3358, %v3358
        %v3368 = vmul.f32 %v3367, -0.00019511016
        %v3369 = vadd.f32 %v3368, 0.008332121
        %v3370 = vmul.f32 %v3367, %v3369
        %v3371 = vadd.f32 %v3370, -0.16666654
        %v3372 = vmul.f32 %v3367, %v3371
        %v3373 = vadd.f32 %v3372, 1.0
        %v3374 = vmul.f32 %v3373, %v3358
        %vm3375 = vweird.f32 %v3230
        %v3376 = vadd.s32 %v3359, 3
        %v3377 = vand.u32 %v3376, 3
        %vm3378 = vcmp.lt.s32.totalorder %v3377, 2
        %vm3379 = vcmp.eq.s32.totalorder %v3377, 0
        %v3380 = vxor.u32 %v3374, 2147483648
        %v3381 = vsel %vm3379, %v3366, %v3380
        %vm3382 = vcmp.eq.s32.totalorder %v3377, 2
        %v3383 = vxor.u32 %v3366, 2147483648
        %v3384 = vsel %vm3382, %v3383, %v3374
        %v3385 = vsel %vm3378, %v3381, %v3384
        %v3386 = vsel %vm3375, nan, %v3385
        %v3387 = vand.u32 2147483647, %v3231
        %vm3388 = vcmp.le.f32.partialorder %v3387, 0.7853982
        %vm3389 = vcmp.lt.s32.totalorder %v3231, 0
        %v3390 = vand.u32 %v3231, 2139095040
        %v3391 = vshrl.u32 %v3390, 23
        %v3392 = vsub.s32 %v3391, 127
        %v3393 = vand.u32 2147483647, %v3231
        %v3394 = vand.u32 %v3393, 8388607
        %v3395 = vor.u32 %v3394, 8388608
        %v3396 = vsub.s32 0, %v3395
        %v3397 = vadd.s32 %v3392, 1
        %vm3398 = vcmp.gt.s32.totalorder %v3397, 0
        %v3399 = vsel %vm3398, %v3397, 0
        %v3400 = vshrl.u32 %v3399, 5
        %v3401 = vand.u32 %v3399, 31
        %v3402 = vsub.s32 32, %v3401
        %v3403 = vshrl.u32 683565275, %v3402
        %v3404 = vshll.u32 683565275, %v3401
        %v3405 = vshrl.u32 2475754826, %v3402
        %v3406 = vor.u32 %v3404, %v3405
        %v3407 = vshll.u32 2475754826, %v3401
        %v3408 = vshrl.u32 2131351028, %v3402
        %v3409 = vor.u32 %v3407, %v3408
        %v3410 = vshll.u32 2131351028, %v3401
        %v3411 = vshrl.u32 2102212464, %v3402
        %v3412 = vor.u32 %v3410, %v3411
        %v3413 = vshll.u32 2102212464, %v3401
        %v3414 = vshrl.u32 920167782, %v3402
        %v3415 = vor.u32 %v3413, %v3414
        %v3416 = vshll.u32 920167782, %v3401
        %v3417 = vshrl.u32 1326507024, %v3402
        %v3418 = vor.u32 %v3416, %v3417
        %vm3419 = vcmp.lt.s32.totalorder %v3400, 1
        %vm3420 = vcmp.lt.s32.totalorder %v3400, 2
        %vm3421 = vcmp.lt.s32.totalorder %v3400, 3
        %vm3422 = vcmp.lt.s32.totalorder %v3400, 4
        %v3423 = vsel %vm3419, %v3403, %v3406
        %v3424 = vsel %vm3422, %v3412, 2102212464
        %v3425 = vsel %vm3421, %v3409, %v3424
        %v3426 = vsel %vm3420, %v3423, %v3425
        %v3427 = vsel %vm3419, %v3406, %v3409
        %v3428 = vsel %vm3422, %v3415, 920167782
        %v3429 = vsel %vm3421, %v3412, %v3428
        %v3430 = vsel %vm3420, %v3427, %v3429
        %v3431 = vsel %vm3419, %v3409, %v3412
        %v3432 = vsel %vm3422, %v3418, 1326507024
        %v3433 = vsel %vm3421, %v3415, %v3432
        %v3434 = vsel %vm3420, %v3431, %v3433
        %v3435 = vshll.u32 %v3395, 8
        %v3436 = vand.u32 %v3435, 65535
        %v3437 = vshrl.u32 %v3435, 16
        %v3438 = vand.u32 %v3434, 65535
        %v3439 = vshrl.u32 %v3434, 16
        %v3440 = vmul.u32 %v3436, %v3438
        %v3441 = vmul.u32 %v3436, %v3439
        %v3442 = vmul.u32 %v3437, %v3438
        %v3443 = vmul.u32 %v3437, %v3439
        %v3444 = vshll.u32 %v3441, 16
        %v3445 = vshrl.u32 %v3441, 16
        %v3446 = vshll.u32 %v3442, 16
        %v3447 = vshrl.u32 %v3442, 16
        %vm3448 = vc.u32 %v3440, %v3444
        %v3449 = vsel %vm3448, 1, 0
        %v3450 = vadd.s32 %v3440, %v3444
        %v3451 = vadd.s32 %v3443, %v3449
        %vm3452 = vc.u32 %v3450, %v3446
        %v3453 = vsel %vm3452, 1, 0
        %v3454 = vadd.s32 %v3450, %v3446
        %v3455 = vadd.s32 %v3451, %v3453
        %v3456 = vadd.s32 %v3455, %v3445
        %v3457 = vadd.s32 %v3456, %v3447
        %v3458 = vand.u32 %v3435, 65535
        %v3459 = vshrl.u32 %v3435, 16
        %v3460 = vand.u32 %v3430, 65535
        %v3461 = vshrl.u32 %v3430, 16
        %v3462 = vmul.u32 %v3458, %v3460
        %v3463 = vmul.u32 %v3458, %v3461
        %v3464 = vmul.u32 %v3459, %v3460
        %v3465 = vmul.u32 %v3459, %v3461
        %v3466 = vshll.u32 %v3463, 16
        %v3467 = vshrl.u32 %v3463, 16
        %v3468 = vshll.u32 %v3464, 16
        %v3469 = vshrl.u32 %v3464, 16
        %vm3470 = vc.u32 %v3462, %v3466
        %v3471 = vsel %vm3470, 1, 0
        %v3472 = vadd.s32 %v3462, %v3466
        %v3473 = vadd.s32 %v3465, %v3471
        %vm3474 = vc.u32 %v3472, %v3468
        %v3475 = vsel %vm3474, 1, 0
        %v3476 = vadd.s32 %v3472, %v3468
        %v3477 = vadd.s32 %v3473, %v3475
        %v3478 = vadd.s32 %v3477, %v3467
        %v3479 = vadd.s32 %v3478, %v3469
        %v3480 = vmul.u32 %v3435, %v3426
        %v3481 = vadd.s32 %v3457, %v3476
        %vm3482 = vc.u32 %v3457, %v3476
        %v3483 = vadd.s32 %v3479, 1
        %v3484 = vsel %vm3482, %v3483, %v3479
        %v3485 = vadd.s32 %v3480, %v3484
        %v3486 = vadd.s32 %v3485, 536870912
        %v3487 = vshrl.u32 %v3486, 30
        %v3488 = vshll.u32 %v3487, 30
        %v3489 = vsub.s32 %v3485, %v3488
        %vm3490 = vcmp.lt.s32.totalorder %v3489, 0
        %v3491 = vsub.s32 0, %v3489
        %v3492 = vsel %vm3490, %v3491, %v3489
        %v3493 = vclz %v3492
        %v3494 = vsub.s32 %v3493, 2
        %vm3495 = vcmp.gt.s32.totalorder 0, %v3494
        %v3496 = vsel %vm3495, 0, %v3494
        %v3497 = vsub.s32 32, %v3496
        %v3498 = vshll.u32 %v3489, %v3496
        %v3499 = vshrl.u32 %v3481, %v3497
        %v3500 = vor.u32 %v3498, %v3499
        %v3501 = vsub.s32 4294967266, %v3496
        %v3502 = vadd.s32 %v3501, 127
        %v3503 = vshll.u32 %v3502, 23
        %v3504 = vor.u32 4788187, %v3503
        %v3505 = vand.u32 2147483647, %v3504
        %v3507 = vcvt.s32.f32 %v3500
        %v3508 = vmul.f32 %v3507, %v3505
        %v3509 = vxor.u32 %v3508, 2147483648
        %v3510 = vsel %vm3389, %v3509, %v3508
        %v3511 = vsub.s32 4, %v3487
        %v3512 = vsel %vm3389, %v3511, %v3487
        %v3513 = vsel %vm3388, %v3231, %v3510
        %v3514 = vsel %vm3388, 0, %v3512
        %v3515 = vmul.f32 %v3513, %v3513
        %v3516 = vmul.f32 %v3515, -0.001358992
        %v3517 = vadd.f32 %v3516, 0.041655596
        %v3518 = vmul.f32 %v3515, %v3517
        %v3519 = vadd.f32 %v3518, -0.4999988
        %v3520 = vmul.f32 %v3515, %v3519
        %v3521 = vadd.f32 1.0, %v3520
        %v3522 = vmul.f32 %v3513, %v3513
        %v3523 = vmul.f32 %v3522, -0.00019511016
        %v3524 = vadd.f32 %v3523, 0.008332121
        %v3525 = vmul.f32 %v3522, %v3524
        %v3526 = vadd.f32 %v3525, -0.16666654
        %v3527 = vmul.f32 %v3522, %v3526
        %v3528 = vadd.f32 %v3527, 1.0
        %v3529 = vmul.f32 %v3528, %v3513
        %vm3530 = vweird.f32 %v3231
        %v3531 = vadd.s32 %v3514, 3
        %v3532 = vand.u32 %v3531, 3
        %vm3533 = vcmp.lt.s32.totalorder %v3532, 2
        %vm3534 = vcmp.eq.s32.totalorder %v3532, 0
        %v3535 = vxor.u32 %v3529, 2147483648
        %v3536 = vsel %vm3534, %v3521, %v3535
        %vm3537 = vcmp.eq.s32.totalorder %v3532, 2
        %v3538 = vxor.u32 %v3521, 2147483648
        %v3539 = vsel %vm3537, %v3538, %v3529
        %v3540 = vsel %vm3533, %v3536, %v3539
        %v3541 = vsel %vm3530, nan, %v3540
        %v3542 = vmul.f32 %v3386, %v3386
        %v3543 = vmul.f32 %v3541, %v3541
        %3545 = vset.pattern.permute.xlu0 0
        %3546 = vperm.xlu0 %3545, %v3224
        %v3547 = vpop.permute.xlu0 %3546
        %v3549 = vmul.f32 %v3547, %v3542
        %v3550 = vmul.f32 %v3547, %v3543
        %v3551 = vadd.f32 %v3205, %v3549
        %v3552 = vadd.f32 %v3218, %v3550
        %s3553 = scalar_lea.vmem %s12, 8
        %v3554 = vld [vmem:[%s3553] sm:$0xf]
        %v3555 = vpack.c.bf16 %v3551, %v3551
        %v3556 = vpack.c.bf16 %v3552, %v3552
        %s3557 = scalar_lea.vmem %s13, 16
        %v3558 = vld [vmem:[%s3557] sm:$0xff]
        %3560 = vset.pattern.permute.xlu0 0
        %3561 = vperm.xlu0 %3560, %v3558
        %v3562 = vpop.permute.xlu0 %3561
        %v3565 = vsel %vm1870, %v3554, 0
        %v3568 = vsel %vm1436, %v3555, 0
        %v3571 = vsel %vm1436, %v3556, 0
        %3573 = vmatpush.bf16.msra.mxu0 0
        %3574 = vmatpush.bf16.msra.mxu0 0
        %3575 = vmatpush.bf16.msra.mxu0 0
        %3576 = vmatpush.bf16.msra.mxu0 0
        %3577 = vmatpush.bf16.msra.mxu0 0
        %3578 = vmatpush.bf16.msra.mxu0 0
        %3579 = vmatpush.bf16.msra.mxu0 0
        %3580 = vmatpush.bf16.msra.mxu0 %v3568
        %3581 = vmatmul.bf16.gmra.mxu0 %v3565
        %v3582 = vpop.f32.mrf.mxu0
        %v3583 = vadd.f32 %v3562, %v3582
        %v3584 = vpop.f32.mrf.mxu0
        %3585 = vdwg.mxu0
        %3586 = vmatpush.bf16.msra.mxu0 0
        %3587 = vmatpush.bf16.msra.mxu0 0
        %3588 = vmatpush.bf16.msra.mxu0 0
        %3589 = vmatpush.bf16.msra.mxu0 0
        %3590 = vmatpush.bf16.msra.mxu0 0
        %3591 = vmatpush.bf16.msra.mxu0 0
        %3592 = vmatpush.bf16.msra.mxu0 0
        %3593 = vmatpush.bf16.msra.mxu0 %v3571
        %3594 = vmatmul.bf16.gmra.mxu0 %v3565
        %v3595 = vpop.f32.mrf.mxu0
        %v3596 = vadd.f32 %v3562, %v3595
        %v3597 = vpop.f32.mrf.mxu0
        %3598 = vdwg.mxu0
        %v3599 = vadd.f32 %v2764, %v3583
        %v3600 = vadd.f32 %v2765, %v3596
        %v3601 = vsel %vm1042, %v3599, 0.0
        %v3602 = vsel %vm1043, %v3600, 0.0
        %3605 = vrot.lane.b32.xlu0 %v3601, 88
        %v3606 = vpop.permute.xlu0 %3605
        %3607 = vrot.lane.b32.xlu0 %v3602, 88
        %v3608 = vpop.permute.xlu0 %3607
        %vm3609 = vcmask 719872
        %v3610 = vsel %vm3609, %v3606, %v3608
        %3612 = vst [vmem:[%s501] sm:$0xff] %v3610
        %s3613 = sand.u32 %s352, 1
        %s3614 = scalar_lea.sflag [#allocation5], %s3613
        %s3615 = sand.u32 %s352, 1
        %s3616 = smul.addr %s3615, 8
        %s3617 = scalar_lea.vmem [#allocation6], %s3616
        // Predicated region
        $region81: #{tpu_custom_call.1} parent=75 // pred_check
          %p3618 = pneg %p362
        $region82: #{tpu_custom_call.1} parent=75 // pred_check_branch
          %3620 = sbr.rel (%p3618) target = $region84
        $region83: #{tpu_custom_call.1} parent=75 // pred_region
          %3622 = vsyncadd %s3614, 0
          %s3623 = sadd.s32 %s34, %s33
          %s3624 = smul.addr %s3623, 8
          %s3625 = scalar_lea.hbm %s14, %s3624
          %s3627 = sshll.u32 %s3617, 4
          %s3628 = int_to_ptr.vmem [resolvable:$true] %s3627
          %s3629 = sshll.u32 %s3625, 4
          %s3630 = int_to_ptr.hbm [resolvable:$true] %s3629
          %3632 = dma.vmem_to_hbm [thread:$0]  %s3628, 128, %s3630, %s3614
        $region84: #{tpu_custom_call.1} parent=75 // pred_fallthru
          _
      $region76: #{tpu_custom_call.1} parent=5 // pred_fallthru
        _
      %p3633 = scmp.le.s32.totalorder 2, %s24
      // Predicated region
      $region85: #{tpu_custom_call.1} parent=5 // pred_check
        %p3634 = pneg %p3633
      $region86: #{tpu_custom_call.1} parent=5 // pred_check_branch
        %3636 = sbr.rel (%p3634) target = $region88
      $region87: #{tpu_custom_call.1} parent=5 // pred_region
        %s3637 = ssub.s32 %s24, 2
        // Predicated region
        $region89: #{tpu_custom_call.1} parent=87 // pred_check
          %p3638 = pneg %p368
        $region90: #{tpu_custom_call.1} parent=87 // pred_check_branch
          %3640 = sbr.rel (%p3638) target = $region92
        $region91: #{tpu_custom_call.1} parent=87 // pred_region
          %s3641 = sand.u32 %s353, 1
          %s3642 = scalar_lea.sflag [#allocation5], %s3641
          %s3643 = sand.u32 %s353, 1
          %s3644 = smul.addr %s3643, 8
          %s3645 = scalar_lea.vmem [#allocation6], %s3644
          %3647 = dma.done %s3642, 128
        $region92: #{tpu_custom_call.1} parent=87 // pred_fallthru
          _
      $region88: #{tpu_custom_call.1} parent=5 // pred_fallthru
        _
    $region6: #{tpu_custom_call.1} parent=1 // loop_footer
      %s28 = sadd.s32 1, %s24
    $region7: #{tpu_custom_call.1} parent=1 // loop_footer_branch
      %23 = sbr.rel target = $region3
    $region8: #{tpu_custom_call.1} parent=1 // loop_exit
      _
    %3648 = vsyncpa [#allocation4], 1
    %s3649 = scalar_lea.sflag [#allocation4], 1
    %3650 = vsyncpa %s3649, 1
    %3651 = vsyncpa [#allocation5], 1
    %s3652 = scalar_lea.sflag [#allocation5], 1
    %3653 = vsyncpa %s3652, 1

// kernel: tpu_custom_call.1
$region0: #{tpu_custom_call.1}
  #allocation0 [shape = 'u32[]', space=smem, size = 0x4, offset = 0x4, fixed_abs, tag = 'smem constant byte address 0x4 - core index']
  #allocation1 [shape = 'u32[72,128]{1,0:T(1,128)}', space=vmem, size = 0x9000, scoped, tag = 'internal scratch']
  #allocation2 [shape = 'bf16[8,262]{1,0:T(8,128)(2,1)}', space=vmem, size = 0x1800, scoped, tag = 'scratch operand']
  %s0 = inlined_call_operand.vmem [shape: f32[2,1,16,106], index: 0, kind: input, shape index: {}]
  %s1 = inlined_call_operand.vmem [shape: f32[16,1], index: 1, kind: input, shape index: {}]
  %s2 = inlined_call_operand.vmem [shape: f32[16,1], index: 2, kind: input, shape index: {}]
  %s3 = inlined_call_operand.vmem [shape: bf16[16,48], index: 3, kind: input, shape index: {}]
  %s4 = inlined_call_operand.vmem [shape: f32[8,1], index: 4, kind: input, shape index: {}]
  %s5 = inlined_call_operand.hbm [shape: f32[104,208], index: 5, kind: input, shape index: {}]
  %s6 = inlined_call_operand.vmem [shape: f32[3,8,1], index: 6, kind: input, shape index: {}]
  %s7 = inlined_call_operand.vmem [shape: f32[3,8,1], index: 7, kind: input, shape index: {}]
  %s8 = inlined_call_operand.vmem [shape: bf16[3,8,56], index: 8, kind: input, shape index: {}]
  %s9 = inlined_call_operand.vmem [shape: f32[3,8,1], index: 9, kind: input, shape index: {}]
  %s10 = inlined_call_operand.vmem [shape: f32[3,8,1], index: 10, kind: input, shape index: {}]
  %s11 = inlined_call_operand.vmem [shape: f32[3,8,1], index: 11, kind: input, shape index: {}]
  %s12 = inlined_call_operand.vmem [shape: bf16[3,8,8], index: 12, kind: input, shape index: {}]
  %s13 = inlined_call_operand.vmem [shape: f32[3,8,1], index: 13, kind: input, shape index: {}]
  %s14 = inlined_call_operand.hbm [shape: f32[2,8,128], index: 14, kind: output, shape index: {}]
  %s15 = sld [smem:[#allocation0]]
  $region93: #{tpu_custom_call.1} parent=0
    _
  %s17 = ssub.s32 1, %s15
  %s18 = scalar_select 0, %s17, %s15
  $region1: #{tpu_custom_call.1} parent=0
    #allocation3 [shape = 'u8[106496]{0}', space=vmem, size = 0x1a000, scoped, tag = 'input window, operand 5, single buffered']
    #allocation4 [shape = 's32[2]{0}', space=sflag, size = 0x8, scoped, tag = 'scoped memory for tpu_custom_call.1']
    #allocation5 [shape = 's32[2]{0}', space=sflag, size = 0x8, scoped, tag = 'scoped memory for tpu_custom_call.1']
    #allocation6 [shape = 'u8[8192]{0}', space=vmem, size = 0x2000, scoped, tag = 'output window, operand 0']
    %19 = vsyncpa [#allocation4], 0
    %20 = vsyncpa [#allocation5], 0
    %s21 = scalar_lea.sflag [#allocation5], 1
    %22 = vsyncpa %s21, 0
    loop: start=0, step=1, limit=4
    $region2: #{tpu_custom_call.1} parent=1 // loop_pre_header
      _
    $region3: #{tpu_custom_call.1} parent=1 // loop_header
      %s24 = sphi 0, %s28
      %p25 = scmp.ge.s32.totalorder %s24, 4
      %s31 = sphi 0, %s43
      %s32 = sphi 0, %s39
      %s33 = sphi 0, %s31
      %s34 = sphi 0, %s32
      %s35 = sphi 0, %s33
      %s36 = sphi 0, %s34
      %s48 = sphi 0, %s50
      %s51 = sphi 0, %s48
      %s52 = sphi 0, %s51
      %s68 = sphi 0, %s52
      %s72 = sphi 0, %s72
      %s74 = sphi 0, %s72
      %s75 = sphi 0, %s74
      %s89 = sphi 0, %s75
      %s93 = sphi 0, %s93
      %s95 = sphi 0, %s93
      %s96 = sphi 0, %s95
      %s110 = sphi 0, %s96
      %s114 = sphi 0, %s114
      %s116 = sphi 0, %s114
      %s117 = sphi 0, %s116
      %s131 = sphi 0, %s117
      %s135 = sphi 0, %s135
      %s137 = sphi 0, %s135
      %s138 = sphi 0, %s137
      %s152 = sphi 0, %s138
      %s156 = sphi 0, %s156
      %s158 = sphi 0, %s156
      %s159 = sphi 0, %s158
      %s173 = sphi 0, %s159
      %s177 = sphi 0, %s177
      %s179 = sphi 0, %s177
      %s180 = sphi 0, %s179
      %s194 = sphi 0, %s180
      %s198 = sphi 0, %s198
      %s200 = sphi 0, %s198
      %s201 = sphi 0, %s200
      %s215 = sphi 0, %s201
      %s219 = sphi 0, %s219
      %s221 = sphi 0, %s219
      %s222 = sphi 0, %s221
      %s236 = sphi 0, %s222
      %s240 = sphi 0, %s240
      %s242 = sphi 0, %s240
      %s243 = sphi 0, %s242
      %s257 = sphi 0, %s243
      %s261 = sphi 0, %s261
      %s263 = sphi 0, %s261
      %s264 = sphi 0, %s263
      %s278 = sphi 0, %s264
      %s282 = sphi 0, %s282
      %s284 = sphi 0, %s282
      %s285 = sphi 0, %s284
      %s299 = sphi 0, %s285
      %s303 = sphi 0, %s303
      %s305 = sphi 0, %s303
      %s306 = sphi 0, %s305
      %s320 = sphi 0, %s306
      %s324 = sphi 0, %s324
      %s326 = sphi 0, %s324
      %s327 = sphi 0, %s326
      %s341 = sphi 0, %s327
      %s349 = sphi 0, %s351
      %s352 = sphi 0, %s349
      %s353 = sphi 0, %s352
      %s369 = sphi 0, %s353
    $region4: #{tpu_custom_call.1} parent=1 // loop_header_branch
      %27 = sbr.rel (%p25) target = $region8
    $region5: #{tpu_custom_call.1} parent=1 // loop_body
      %s29 = ssub.s32 %s24, 1
      %s30 = ssub.s32 %s24, 2
      %s37 = sadd.s32 1, %s32
      %p38 = scmp.ge.s32.totalorder %s37, 1
      %s39 = scalar_select %p38, 0, %s37
      %s40 = sadd.s32 1, %s31
      %s41 = scalar_select %p38, %s40, %s31
      %p42 = scmp.ge.s32.totalorder %s41, 2
      %s43 = scalar_select %p42, 0, %s41
      %s44 = ssub.s32 %s31, %s43
      %s45 = ssub.s32 %s32, %s39
      %s46 = sor.u32 %s44, %s45
      %p47 = scmp.eq.s32.totalorder %s46, 0
      %s49 = sadd.s32 %s48, 1
      %s50 = scalar_select %p47, %s48, %s49
      %p53 = pneg %p47
      %p54 = scmp.eq.s32.totalorder %s24, 1
      %p55 = por %p53, %p54
      %p56 = scmp.ne.s32.totalorder %s48, %s51
      %p57 = scmp.eq.s32.totalorder %s24, 0
      %p58 = por %p56, %p57
      %p59 = scmp.ne.s32.totalorder %s48, %s51
      %p60 = scmp.eq.s32.totalorder %s29, 1
      %p61 = por %p59, %p60
      %p62 = scmp.ne.s32.totalorder %s51, %s52
      %p63 = scmp.eq.s32.totalorder %s29, 0
      %p64 = por %p62, %p63
      %p65 = scmp.ne.s32.totalorder %s51, %s52
      %p66 = scmp.eq.s32.totalorder %s30, 1
      %p67 = por %p65, %p66
      %p69 = scmp.ne.s32.totalorder %s52, %s68
      %p70 = scmp.eq.s32.totalorder %s30, 0
      %p71 = por %p69, %p70
      %s73 = sadd.s32 %s72, 1
      %p76 = scmp.eq.s32.totalorder %s24, 1
      %p77 = scmp.ne.s32.totalorder %s72, %s74
      %p78 = scmp.eq.s32.totalorder %s24, 0
      %p79 = por %p77, %p78
      %p80 = scmp.ne.s32.totalorder %s72, %s74
      %p81 = scmp.eq.s32.totalorder %s29, 1
      %p82 = por %p80, %p81
      %p83 = scmp.ne.s32.totalorder %s74, %s75
      %p84 = scmp.eq.s32.totalorder %s29, 0
      %p85 = por %p83, %p84
      %p86 = scmp.ne.s32.totalorder %s74, %s75
      %p87 = scmp.eq.s32.totalorder %s30, 1
      %p88 = por %p86, %p87
      %p90 = scmp.ne.s32.totalorder %s75, %s89
      %p91 = scmp.eq.s32.totalorder %s30, 0
      %p92 = por %p90, %p91
      %s94 = sadd.s32 %s93, 1
      %p97 = scmp.eq.s32.totalorder %s24, 1
      %p98 = scmp.ne.s32.totalorder %s93, %s95
      %p99 = scmp.eq.s32.totalorder %s24, 0
      %p100 = por %p98, %p99
      %p101 = scmp.ne.s32.totalorder %s93, %s95
      %p102 = scmp.eq.s32.totalorder %s29, 1
      %p103 = por %p101, %p102
      %p104 = scmp.ne.s32.totalorder %s95, %s96
      %p105 = scmp.eq.s32.totalorder %s29, 0
      %p106 = por %p104, %p105
      %p107 = scmp.ne.s32.totalorder %s95, %s96
      %p108 = scmp.eq.s32.totalorder %s30, 1
      %p109 = por %p107, %p108
      %p111 = scmp.ne.s32.totalorder %s96, %s110
      %p112 = scmp.eq.s32.totalorder %s30, 0
      %p113 = por %p111, %p112
      %s115 = sadd.s32 %s114, 1
      %p118 = scmp.eq.s32.totalorder %s24, 1
      %p119 = scmp.ne.s32.totalorder %s114, %s116
      %p120 = scmp.eq.s32.totalorder %s24, 0
      %p121 = por %p119, %p120
      %p122 = scmp.ne.s32.totalorder %s114, %s116
      %p123 = scmp.eq.s32.totalorder %s29, 1
      %p124 = por %p122, %p123
      %p125 = scmp.ne.s32.totalorder %s116, %s117
      %p126 = scmp.eq.s32.totalorder %s29, 0
      %p127 = por %p125, %p126
      %p128 = scmp.ne.s32.totalorder %s116, %s117
      %p129 = scmp.eq.s32.totalorder %s30, 1
      %p130 = por %p128, %p129
      %p132 = scmp.ne.s32.totalorder %s117, %s131
      %p133 = scmp.eq.s32.totalorder %s30, 0
      %p134 = por %p132, %p133
      %s136 = sadd.s32 %s135, 1
      %p139 = scmp.eq.s32.totalorder %s24, 1
      %p140 = scmp.ne.s32.totalorder %s135, %s137
      %p141 = scmp.eq.s32.totalorder %s24, 0
      %p142 = por %p140, %p141
      %p143 = scmp.ne.s32.totalorder %s135, %s137
      %p144 = scmp.eq.s32.totalorder %s29, 1
      %p145 = por %p143, %p144
      %p146 = scmp.ne.s32.totalorder %s137, %s138
      %p147 = scmp.eq.s32.totalorder %s29, 0
      %p148 = por %p146, %p147
      %p149 = scmp.ne.s32.totalorder %s137, %s138
      %p150 = scmp.eq.s32.totalorder %s30, 1
      %p151 = por %p149, %p150
      %p153 = scmp.ne.s32.totalorder %s138, %s152
      %p154 = scmp.eq.s32.totalorder %s30, 0
      %p155 = por %p153, %p154
      %s157 = sadd.s32 %s156, 1
      %p160 = scmp.eq.s32.totalorder %s24, 1
      %p161 = scmp.ne.s32.totalorder %s156, %s158
      %p162 = scmp.eq.s32.totalorder %s24, 0
      %p163 = por %p161, %p162
      %p164 = scmp.ne.s32.totalorder %s156, %s158
      %p165 = scmp.eq.s32.totalorder %s29, 1
      %p166 = por %p164, %p165
      %p167 = scmp.ne.s32.totalorder %s158, %s159
      %p168 = scmp.eq.s32.totalorder %s29, 0
      %p169 = por %p167, %p168
      %p170 = scmp.ne.s32.totalorder %s158, %s159
      %p171 = scmp.eq.s32.totalorder %s30, 1
      %p172 = por %p170, %p171
      %p174 = scmp.ne.s32.totalorder %s159, %s173
      %p175 = scmp.eq.s32.totalorder %s30, 0
      %p176 = por %p174, %p175
      %s178 = sadd.s32 %s177, 1
      %p181 = scmp.eq.s32.totalorder %s24, 1
      %p182 = scmp.ne.s32.totalorder %s177, %s179
      %p183 = scmp.eq.s32.totalorder %s24, 0
      %p184 = por %p182, %p183
      %p185 = scmp.ne.s32.totalorder %s177, %s179
      %p186 = scmp.eq.s32.totalorder %s29, 1
      %p187 = por %p185, %p186
      %p188 = scmp.ne.s32.totalorder %s179, %s180
      %p189 = scmp.eq.s32.totalorder %s29, 0
      %p190 = por %p188, %p189
      %p191 = scmp.ne.s32.totalorder %s179, %s180
      %p192 = scmp.eq.s32.totalorder %s30, 1
      %p193 = por %p191, %p192
      %p195 = scmp.ne.s32.totalorder %s180, %s194
      %p196 = scmp.eq.s32.totalorder %s30, 0
      %p197 = por %p195, %p196
      %s199 = sadd.s32 %s198, 1
      %p202 = scmp.eq.s32.totalorder %s24, 1
      %p203 = scmp.ne.s32.totalorder %s198, %s200
      %p204 = scmp.eq.s32.totalorder %s24, 0
      %p205 = por %p203, %p204
      %p206 = scmp.ne.s32.totalorder %s198, %s200
      %p207 = scmp.eq.s32.totalorder %s29, 1
      %p208 = por %p206, %p207
      %p209 = scmp.ne.s32.totalorder %s200, %s201
      %p210 = scmp.eq.s32.totalorder %s29, 0
      %p211 = por %p209, %p210
      %p212 = scmp.ne.s32.totalorder %s200, %s201
      %p213 = scmp.eq.s32.totalorder %s30, 1
      %p214 = por %p212, %p213
      %p216 = scmp.ne.s32.totalorder %s201, %s215
      %p217 = scmp.eq.s32.totalorder %s30, 0
      %p218 = por %p216, %p217
      %s220 = sadd.s32 %s219, 1
      %p223 = scmp.eq.s32.totalorder %s24, 1
      %p224 = scmp.ne.s32.totalorder %s219, %s221
      %p225 = scmp.eq.s32.totalorder %s24, 0
      %p226 = por %p224, %p225
      %p227 = scmp.ne.s32.totalorder %s219, %s221
      %p228 = scmp.eq.s32.totalorder %s29, 1
      %p229 = por %p227, %p228
      %p230 = scmp.ne.s32.totalorder %s221, %s222
      %p231 = scmp.eq.s32.totalorder %s29, 0
      %p232 = por %p230, %p231
      %p233 = scmp.ne.s32.totalorder %s221, %s222
      %p234 = scmp.eq.s32.totalorder %s30, 1
      %p235 = por %p233, %p234
      %p237 = scmp.ne.s32.totalorder %s222, %s236
      %p238 = scmp.eq.s32.totalorder %s30, 0
      %p239 = por %p237, %p238
      %s241 = sadd.s32 %s240, 1
      %p244 = scmp.eq.s32.totalorder %s24, 1
      %p245 = scmp.ne.s32.totalorder %s240, %s242
      %p246 = scmp.eq.s32.totalorder %s24, 0
      %p247 = por %p245, %p246
      %p248 = scmp.ne.s32.totalorder %s240, %s242
      %p249 = scmp.eq.s32.totalorder %s29, 1
      %p250 = por %p248, %p249
      %p251 = scmp.ne.s32.totalorder %s242, %s243
      %p252 = scmp.eq.s32.totalorder %s29, 0
      %p253 = por %p251, %p252
      %p254 = scmp.ne.s32.totalorder %s242, %s243
      %p255 = scmp.eq.s32.totalorder %s30, 1
      %p256 = por %p254, %p255
      %p258 = scmp.ne.s32.totalorder %s243, %s257
      %p259 = scmp.eq.s32.totalorder %s30, 0
      %p260 = por %p258, %p259
      %s262 = sadd.s32 %s261, 1
      %p265 = scmp.eq.s32.totalorder %s24, 1
      %p266 = scmp.ne.s32.totalorder %s261, %s263
      %p267 = scmp.eq.s32.totalorder %s24, 0
      %p268 = por %p266, %p267
      %p269 = scmp.ne.s32.totalorder %s261, %s263
      %p270 = scmp.eq.s32.totalorder %s29, 1
      %p271 = por %p269, %p270
      %p272 = scmp.ne.s32.totalorder %s263, %s264
      %p273 = scmp.eq.s32.totalorder %s29, 0
      %p274 = por %p272, %p273
      %p275 = scmp.ne.s32.totalorder %s263, %s264
      %p276 = scmp.eq.s32.totalorder %s30, 1
      %p277 = por %p275, %p276
      %p279 = scmp.ne.s32.totalorder %s264, %s278
      %p280 = scmp.eq.s32.totalorder %s30, 0
      %p281 = por %p279, %p280
      %s283 = sadd.s32 %s282, 1
      %p286 = scmp.eq.s32.totalorder %s24, 1
      %p287 = scmp.ne.s32.totalorder %s282, %s284
      %p288 = scmp.eq.s32.totalorder %s24, 0
      %p289 = por %p287, %p288
      %p290 = scmp.ne.s32.totalorder %s282, %s284
      %p291 = scmp.eq.s32.totalorder %s29, 1
      %p292 = por %p290, %p291
      %p293 = scmp.ne.s32.totalorder %s284, %s285
      %p294 = scmp.eq.s32.totalorder %s29, 0
      %p295 = por %p293, %p294
      %p296 = scmp.ne.s32.totalorder %s284, %s285
      %p297 = scmp.eq.s32.totalorder %s30, 1
      %p298 = por %p296, %p297
      %p300 = scmp.ne.s32.totalorder %s285, %s299
      %p301 = scmp.eq.s32.totalorder %s30, 0
      %p302 = por %p300, %p301
      %s304 = sadd.s32 %s303, 1
      %p307 = scmp.eq.s32.totalorder %s24, 1
      %p308 = scmp.ne.s32.totalorder %s303, %s305
      %p309 = scmp.eq.s32.totalorder %s24, 0
      %p310 = por %p308, %p309
      %p311 = scmp.ne.s32.totalorder %s303, %s305
      %p312 = scmp.eq.s32.totalorder %s29, 1
      %p313 = por %p311, %p312
      %p314 = scmp.ne.s32.totalorder %s305, %s306
      %p315 = scmp.eq.s32.totalorder %s29, 0
      %p316 = por %p314, %p315
      %p317 = scmp.ne.s32.totalorder %s305, %s306
      %p318 = scmp.eq.s32.totalorder %s30, 1
      %p319 = por %p317, %p318
      %p321 = scmp.ne.s32.totalorder %s306, %s320
      %p322 = scmp.eq.s32.totalorder %s30, 0
      %p323 = por %p321, %p322
      %s325 = sadd.s32 %s324, 1
      %p328 = scmp.eq.s32.totalorder %s24, 1
      %p329 = scmp.ne.s32.totalorder %s324, %s326
      %p330 = scmp.eq.s32.totalorder %s24, 0
      %p331 = por %p329, %p330
      %p332 = scmp.ne.s32.totalorder %s324, %s326
      %p333 = scmp.eq.s32.totalorder %s29, 1
      %p334 = por %p332, %p333
      %p335 = scmp.ne.s32.totalorder %s326, %s327
      %p336 = scmp.eq.s32.totalorder %s29, 0
      %p337 = por %p335, %p336
      %p338 = scmp.ne.s32.totalorder %s326, %s327
      %p339 = scmp.eq.s32.totalorder %s30, 1
      %p340 = por %p338, %p339
      %p342 = scmp.ne.s32.totalorder %s327, %s341
      %p343 = scmp.eq.s32.totalorder %s30, 0
      %p344 = por %p342, %p343
      %s345 = ssub.s32 %s31, %s43
      %s346 = ssub.s32 %s32, %s39
      %s347 = sor.u32 %s345, %s346
      %p348 = scmp.eq.s32.totalorder %s347, 0
      %s350 = sadd.s32 %s349, 1
      %s351 = scalar_select %p348, %s349, %s350
      %p354 = pneg %p348
      %p355 = scmp.eq.s32.totalorder %s24, 1
      %p356 = por %p354, %p355
      %p357 = scmp.ne.s32.totalorder %s349, %s352
      %p358 = scmp.eq.s32.totalorder %s24, 0
      %p359 = por %p357, %p358
      %p360 = scmp.ne.s32.totalorder %s349, %s352
      %p361 = scmp.eq.s32.totalorder %s29, 1
      %p362 = por %p360, %p361
      %p363 = scmp.ne.s32.totalorder %s352, %s353
      %p364 = scmp.eq.s32.totalorder %s29, 0
      %p365 = por %p363, %p364
      %p366 = scmp.ne.s32.totalorder %s352, %s353
      %p367 = scmp.eq.s32.totalorder %s30, 1
      %p368 = por %p366, %p367
      %p370 = scmp.ne.s32.totalorder %s353, %s369
      %p371 = scmp.eq.s32.totalorder %s30, 0
      %p372 = por %p370, %p371
      %p373 = scmp.le.s32.totalorder 1, %s24
      %p374 = scmp.lt.s32.totalorder %s24, 3
      %p375 = pnand %p373, %p374
      %p376 = pneg %p375
      // Predicated region
      $region9: #{tpu_custom_call.1} parent=5 // pred_check
        _
      $region10: #{tpu_custom_call.1} parent=5 // pred_check_branch
        %378 = sbr.rel (%p375) target = $region12
      $region11: #{tpu_custom_call.1} parent=5 // pred_region
        %s379 = ssub.s32 %s24, 1
        // Predicated region
        $region13: #{tpu_custom_call.1} parent=11 // pred_check
          %p380 = pneg %p85
        $region14: #{tpu_custom_call.1} parent=11 // pred_check_branch
          %382 = sbr.rel (%p380) target = $region16
        $region15: #{tpu_custom_call.1} parent=11 // pred_region
          _
        $region16: #{tpu_custom_call.1} parent=11 // pred_fallthru
          _
        // Predicated region
        $region17: #{tpu_custom_call.1} parent=11 // pred_check
          %p383 = pneg %p106
        $region18: #{tpu_custom_call.1} parent=11 // pred_check_branch
          %385 = sbr.rel (%p383) target = $region20
        $region19: #{tpu_custom_call.1} parent=11 // pred_region
          _
        $region20: #{tpu_custom_call.1} parent=11 // pred_fallthru
          _
        // Predicated region
        $region21: #{tpu_custom_call.1} parent=11 // pred_check
          %p386 = pneg %p127
        $region22: #{tpu_custom_call.1} parent=11 // pred_check_branch
          %388 = sbr.rel (%p386) target = $region24
        $region23: #{tpu_custom_call.1} parent=11 // pred_region
          _
        $region24: #{tpu_custom_call.1} parent=11 // pred_fallthru
          _
        // Predicated region
        $region25: #{tpu_custom_call.1} parent=11 // pred_check
          %p389 = pneg %p148
        $region26: #{tpu_custom_call.1} parent=11 // pred_check_branch
          %391 = sbr.rel (%p389) target = $region28
        $region27: #{tpu_custom_call.1} parent=11 // pred_region
          _
        $region28: #{tpu_custom_call.1} parent=11 // pred_fallthru
          _
        // Predicated region
        $region29: #{tpu_custom_call.1} parent=11 // pred_check
          %p392 = pneg %p169
        $region30: #{tpu_custom_call.1} parent=11 // pred_check_branch
          %394 = sbr.rel (%p392) target = $region32
        $region31: #{tpu_custom_call.1} parent=11 // pred_region
          %396 = vsyncadd [#allocation4], 0
          %s397 = sshll.u32 %s5, 4
          %s398 = int_to_ptr.hbm [resolvable:$true] %s397
          %s399 = sshll.u32 [#allocation3], 4
          %s400 = int_to_ptr.vmem [resolvable:$true] %s399
          %405 = dma.hbm_to_vmem [thread:$0]  %s398, 3328, %s400, [#allocation4], 256, 256, 16
        $region32: #{tpu_custom_call.1} parent=11 // pred_fallthru
          _
        // Predicated region
        $region33: #{tpu_custom_call.1} parent=11 // pred_check
          %p406 = pneg %p190
        $region34: #{tpu_custom_call.1} parent=11 // pred_check_branch
          %408 = sbr.rel (%p406) target = $region36
        $region35: #{tpu_custom_call.1} parent=11 // pred_region
          _
        $region36: #{tpu_custom_call.1} parent=11 // pred_fallthru
          _
        // Predicated region
        $region37: #{tpu_custom_call.1} parent=11 // pred_check
          %p409 = pneg %p211
        $region38: #{tpu_custom_call.1} parent=11 // pred_check_branch
          %411 = sbr.rel (%p409) target = $region40
        $region39: #{tpu_custom_call.1} parent=11 // pred_region
          _
        $region40: #{tpu_custom_call.1} parent=11 // pred_fallthru
          _
        // Predicated region
        $region41: #{tpu_custom_call.1} parent=11 // pred_check
          %p412 = pneg %p232
        $region42: #{tpu_custom_call.1} parent=11 // pred_check_branch
          %414 = sbr.rel (%p412) target = $region44
        $region43: #{tpu_custom_call.1} parent=11 // pred_region
          _
        $region44: #{tpu_custom_call.1} parent=11 // pred_fallthru
          _
        // Predicated region
        $region45: #{tpu_custom_call.1} parent=11 // pred_check
          %p415 = pneg %p253
        $region46: #{tpu_custom_call.1} parent=11 // pred_check_branch
          %417 = sbr.rel (%p415) target = $region48
        $region47: #{tpu_custom_call.1} parent=11 // pred_region
          _
        $region48: #{tpu_custom_call.1} parent=11 // pred_fallthru
          _
        // Predicated region
        $region49: #{tpu_custom_call.1} parent=11 // pred_check
          %p418 = pneg %p274
        $region50: #{tpu_custom_call.1} parent=11 // pred_check_branch
          %420 = sbr.rel (%p418) target = $region52
        $region51: #{tpu_custom_call.1} parent=11 // pred_region
          _
        $region52: #{tpu_custom_call.1} parent=11 // pred_fallthru
          _
        // Predicated region
        $region53: #{tpu_custom_call.1} parent=11 // pred_check
          %p421 = pneg %p295
        $region54: #{tpu_custom_call.1} parent=11 // pred_check_branch
          %423 = sbr.rel (%p421) target = $region56
        $region55: #{tpu_custom_call.1} parent=11 // pred_region
          _
        $region56: #{tpu_custom_call.1} parent=11 // pred_fallthru
          _
        // Predicated region
        $region57: #{tpu_custom_call.1} parent=11 // pred_check
          %p424 = pneg %p316
        $region58: #{tpu_custom_call.1} parent=11 // pred_check_branch
          %426 = sbr.rel (%p424) target = $region60
        $region59: #{tpu_custom_call.1} parent=11 // pred_region
          _
        $region60: #{tpu_custom_call.1} parent=11 // pred_fallthru
          _
        // Predicated region
        $region61: #{tpu_custom_call.1} parent=11 // pred_check
          %p427 = pneg %p337
        $region62: #{tpu_custom_call.1} parent=11 // pred_check_branch
          %429 = sbr.rel (%p427) target = $region64
        $region63: #{tpu_custom_call.1} parent=11 // pred_region
          _
        $region64: #{tpu_custom_call.1} parent=11 // pred_fallthru
          _
      $region12: #{tpu_custom_call.1} parent=5 // pred_fallthru
        _
      %p430 = scmp.lt.s32.totalorder %s24, 2
      // Predicated region
      $region65: #{tpu_custom_call.1} parent=5 // pred_check
        %p431 = pneg %p430
      $region66: #{tpu_custom_call.1} parent=5 // pred_check_branch
        %433 = sbr.rel (%p431) target = $region68
      $region67: #{tpu_custom_call.1} parent=5 // pred_region
        // Predicated region
        $region69: #{tpu_custom_call.1} parent=67 // pred_check
          %p434 = pneg %p58
        $region70: #{tpu_custom_call.1} parent=67 // pred_check_branch
          %436 = sbr.rel (%p434) target = $region72
        $region71: #{tpu_custom_call.1} parent=67 // pred_region
          %p437 = scmp.lt.s32.totalorder %s31, 1
          %s438 = scalar_select %p437, %s31, 1
          %p439 = scmp.lt.s32.totalorder %s32, 0
          %s440 = scalar_select %p439, %s32, 0
          %s441 = smul.addr %s440, 2
          %s442 = smul.addr %s438, 2
          %s443 = sadd.s32 %s441, %s442
          %s444 = smul.addr %s443, 8
          %s445 = scalar_lea.vmem %s0, %s444
        $region72: #{tpu_custom_call.1} parent=67 // pred_fallthru
          _
      $region68: #{tpu_custom_call.1} parent=5 // pred_fallthru
        _
      %p446 = scmp.le.s32.totalorder 1, %s24
      %p447 = scmp.lt.s32.totalorder %s24, 3
      %p448 = pnand %p446, %p447
      %p449 = pneg %p448
      // Predicated region
      $region73: #{tpu_custom_call.1} parent=5 // pred_check
        _
      $region74: #{tpu_custom_call.1} parent=5 // pred_check_branch
        %451 = sbr.rel (%p448) target = $region76
      $region75: #{tpu_custom_call.1} parent=5 // pred_region
        %s452 = ssub.s32 %s24, 1
        // Predicated region
        $region77: #{tpu_custom_call.1} parent=75 // pred_check
          %p453 = pneg %p169
        $region78: #{tpu_custom_call.1} parent=75 // pred_check_branch
          %455 = sbr.rel (%p453) target = $region80
        $region79: #{tpu_custom_call.1} parent=75 // pred_region
          %457 = dma.done [#allocation4], 3328
        $region80: #{tpu_custom_call.1} parent=75 // pred_fallthru
          _
        %p458 = scmp.lt.s32.totalorder %s33, 1
        %s459 = scalar_select %p458, %s33, 1
        %p460 = scmp.lt.s32.totalorder %s34, 0
        %s461 = scalar_select %p460, %s34, 0
        %s462 = smul.addr %s461, 2
        %s463 = smul.addr %s459, 2
        %s464 = sadd.s32 %s462, %s463
        %s465 = smul.addr %s464, 8
        %s466 = scalar_lea.vmem %s0, %s465
        %p467 = pneg %p64
        %p468 = pneg %p61
        %p469 = pneg %p85
        %p470 = pneg %p82
        %p471 = pneg %p106
        %p472 = pneg %p103
        %p473 = pneg %p127
        %p474 = pneg %p124
        %p475 = pneg %p148
        %p476 = pneg %p145
        %p477 = pneg %p169
        %p478 = pneg %p166
        %p479 = pneg %p190
        %p480 = pneg %p187
        %p481 = pneg %p211
        %p482 = pneg %p208
        %p483 = pneg %p232
        %p484 = pneg %p229
        %p485 = pneg %p253
        %p486 = pneg %p250
        %p487 = pneg %p274
        %p488 = pneg %p271
        %p489 = pneg %p295
        %p490 = pneg %p292
        %p491 = pneg %p316
        %p492 = pneg %p313
        %p493 = pneg %p337
        %p494 = pneg %p334
        %p495 = pneg %p365
        %p496 = pneg %p362
        %s497 = sand.u32 %s352, 1
        %s498 = scalar_lea.sflag [#allocation5], %s497
        %s499 = sand.u32 %s352, 1
        %s500 = smul.addr %s499, 8
        %s501 = scalar_lea.vmem [#allocation6], %s500
        %p502 = scmp.lt.s32.totalorder %s33, 1
        %s503 = scalar_select %p502, %s33, 1
        %p504 = scmp.lt.s32.totalorder %s34, 0
        %s505 = scalar_select %p504, %s34, 0
        %s506 = smul.addr %s505, 2
        %s507 = smul.addr %s503, 2
        %s508 = sadd.s32 %s506, %s507
        %s509 = smul.addr %s508, 8
        %s510 = scalar_lea.vmem %s0, %s509
        %v512 = vlaneseq
        %v513 = vand.u32 %v512, 127
        %v514 = vadd.s32 %v513, 128
        %v515 = vld [vmem:[%s510] sm:$0xff]
        %v516 = vld [vmem:[%s510 + $0x8] sm:$0xff]
        %v517 = vld [vmem:[%s1] sm:$0xff]
        %v518 = vld [vmem:[%s1 + $0x8] sm:$0xff]
        %v519 = vld [vmem:[%s2] sm:$0xff]
        %v520 = vld [vmem:[%s2 + $0x8] sm:$0xff]
        %522 = vset.pattern.permute.xlu0 0
        %523 = vperm.xlu0 %522, %v517
        %v524 = vpop.permute.xlu0 %523
        %527 = vset.pattern.permute.xlu0 0
        %528 = vperm.xlu0 %527, %v518
        %v529 = vpop.permute.xlu0 %528
        %v531 = vmul.f32 %v524, %v515
        %v532 = vmul.f32 %v529, %v516
        %v533 = vand.u32 2147483647, %v531
        %vm534 = vcmp.le.f32.partialorder %v533, 0.7853982
        %vm535 = vcmp.lt.s32.totalorder %v531, 0
        %v536 = vand.u32 %v531, 2139095040
        %v537 = vshrl.u32 %v536, 23
        %v538 = vsub.s32 %v537, 127
        %v539 = vand.u32 2147483647, %v531
        %v540 = vand.u32 %v539, 8388607
        %v541 = vor.u32 %v540, 8388608
        %v542 = vsub.s32 0, %v541
        %v543 = vadd.s32 %v538, 1
        %vm544 = vcmp.gt.s32.totalorder %v543, 0
        %v545 = vsel %vm544, %v543, 0
        %v546 = vshrl.u32 %v545, 5
        %v547 = vand.u32 %v545, 31
        %v548 = vsub.s32 32, %v547
        %v549 = vshrl.u32 683565275, %v548
        %v550 = vshll.u32 683565275, %v547
        %v551 = vshrl.u32 2475754826, %v548
        %v552 = vor.u32 %v550, %v551
        %v553 = vshll.u32 2475754826, %v547
        %v554 = vshrl.u32 2131351028, %v548
        %v555 = vor.u32 %v553, %v554
        %v556 = vshll.u32 2131351028, %v547
        %v557 = vshrl.u32 2102212464, %v548
        %v558 = vor.u32 %v556, %v557
        %v559 = vshll.u32 2102212464, %v547
        %v560 = vshrl.u32 920167782, %v548
        %v561 = vor.u32 %v559, %v560
        %v562 = vshll.u32 920167782, %v547
        %v563 = vshrl.u32 1326507024, %v548
        %v564 = vor.u32 %v562, %v563
        %vm565 = vcmp.lt.s32.totalorder %v546, 1
        %vm566 = vcmp.lt.s32.totalorder %v546, 2
        %vm567 = vcmp.lt.s32.totalorder %v546, 3
        %vm568 = vcmp.lt.s32.totalorder %v546, 4
        %v569 = vsel %vm565, %v549, %v552
        %v570 = vsel %vm568, %v558, 2102212464
        %v571 = vsel %vm567, %v555, %v570
        %v572 = vsel %vm566, %v569, %v571
        %v573 = vsel %vm565, %v552, %v555
        %v574 = vsel %vm568, %v561, 920167782
        %v575 = vsel %vm567, %v558, %v574
        %v576 = vsel %vm566, %v573, %v575
        %v577 = vsel %vm565, %v555, %v558
        %v578 = vsel %vm568, %v564, 1326507024
        %v579 = vsel %vm567, %v561, %v578
        %v580 = vsel %vm566, %v577, %v579
        %v581 = vshll.u32 %v541, 8
        %v582 = vand.u32 %v581, 65535
        %v583 = vshrl.u32 %v581, 16
        %v584 = vand.u32 %v580, 65535
        %v585 = vshrl.u32 %v580, 16
        %v586 = vmul.u32 %v582, %v584
        %v587 = vmul.u32 %v582, %v585
        %v588 = vmul.u32 %v583, %v584
        %v589 = vmul.u32 %v583, %v585
        %v590 = vshll.u32 %v587, 16
        %v591 = vshrl.u32 %v587, 16
        %v592 = vshll.u32 %v588, 16
        %v593 = vshrl.u32 %v588, 16
        %vm594 = vc.u32 %v586, %v590
        %v595 = vsel %vm594, 1, 0
        %v596 = vadd.s32 %v586, %v590
        %v597 = vadd.s32 %v589, %v595
        %vm598 = vc.u32 %v596, %v592
        %v599 = vsel %vm598, 1, 0
        %v600 = vadd.s32 %v596, %v592
        %v601 = vadd.s32 %v597, %v599
        %v602 = vadd.s32 %v601, %v591
        %v603 = vadd.s32 %v602, %v593
        %v604 = vand.u32 %v581, 65535
        %v605 = vshrl.u32 %v581, 16
        %v606 = vand.u32 %v576, 65535
        %v607 = vshrl.u32 %v576, 16
        %v608 = vmul.u32 %v604, %v606
        %v609 = vmul.u32 %v604, %v607
        %v610 = vmul.u32 %v605, %v606
        %v611 = vmul.u32 %v605, %v607
        %v612 = vshll.u32 %v609, 16
        %v613 = vshrl.u32 %v609, 16
        %v614 = vshll.u32 %v610, 16
        %v615 = vshrl.u32 %v610, 16
        %vm616 = vc.u32 %v608, %v612
        %v617 = vsel %vm616, 1, 0
        %v618 = vadd.s32 %v608, %v612
        %v619 = vadd.s32 %v611, %v617
        %vm620 = vc.u32 %v618, %v614
        %v621 = vsel %vm620, 1, 0
        %v622 = vadd.s32 %v618, %v614
        %v623 = vadd.s32 %v619, %v621
        %v624 = vadd.s32 %v623, %v613
        %v625 = vadd.s32 %v624, %v615
        %v626 = vmul.u32 %v581, %v572
        %v627 = vadd.s32 %v603, %v622
        %vm628 = vc.u32 %v603, %v622
        %v629 = vadd.s32 %v625, 1
        %v630 = vsel %vm628, %v629, %v625
        %v631 = vadd.s32 %v626, %v630
        %v632 = vadd.s32 %v631, 536870912
        %v633 = vshrl.u32 %v632, 30
        %v634 = vshll.u32 %v633, 30
        %v635 = vsub.s32 %v631, %v634
        %vm636 = vcmp.lt.s32.totalorder %v635, 0
        %v637 = vsub.s32 0, %v635
        %v638 = vsel %vm636, %v637, %v635
        %v639 = vclz %v638
        %v640 = vsub.s32 %v639, 2
        %vm641 = vcmp.gt.s32.totalorder 0, %v640
        %v642 = vsel %vm641, 0, %v640
        %v643 = vsub.s32 32, %v642
        %v644 = vshll.u32 %v635, %v642
        %v645 = vshrl.u32 %v627, %v643
        %v646 = vor.u32 %v644, %v645
        %v647 = vsub.s32 4294967266, %v642
        %v648 = vadd.s32 %v647, 127
        %v649 = vshll.u32 %v648, 23
        %v650 = vor.u32 4788187, %v649
        %v651 = vand.u32 2147483647, %v650
        %v653 = vcvt.s32.f32 %v646
        %v654 = vmul.f32 %v653, %v651
        %v655 = vxor.u32 %v654, 2147483648
        %v656 = vsel %vm535, %v655, %v654
        %v657 = vsub.s32 4, %v633
        %v658 = vsel %vm535, %v657, %v633
        %v659 = vsel %vm534, %v531, %v656
        %v660 = vsel %vm534, 0, %v658
        %v661 = vmul.f32 %v659, %v659
        %v662 = vmul.f32 %v661, -0.001358992
        %v663 = vadd.f32 %v662, 0.041655596
        %v664 = vmul.f32 %v661, %v663
        %v665 = vadd.f32 %v664, -0.4999988
        %v666 = vmul.f32 %v661, %v665
        %v667 = vadd.f32 1.0, %v666
        %v668 = vmul.f32 %v659, %v659
        %v669 = vmul.f32 %v668, -0.00019511016
        %v670 = vadd.f32 %v669, 0.008332121
        %v671 = vmul.f32 %v668, %v670
        %v672 = vadd.f32 %v671, -0.16666654
        %v673 = vmul.f32 %v668, %v672
        %v674 = vadd.f32 %v673, 1.0
        %v675 = vmul.f32 %v674, %v659
        %vm676 = vweird.f32 %v531
        %v677 = vadd.s32 %v660, 3
        %v678 = vand.u32 %v677, 3
        %vm679 = vcmp.lt.s32.totalorder %v678, 2
        %vm680 = vcmp.eq.s32.totalorder %v678, 0
        %v681 = vxor.u32 %v675, 2147483648
        %v682 = vsel %vm680, %v667, %v681
        %vm683 = vcmp.eq.s32.totalorder %v678, 2
        %v684 = vxor.u32 %v667, 2147483648
        %v685 = vsel %vm683, %v684, %v675
        %v686 = vsel %vm679, %v682, %v685
        %v687 = vsel %vm676, nan, %v686
        %v688 = vand.u32 2147483647, %v532
        %vm689 = vcmp.le.f32.partialorder %v688, 0.7853982
        %vm690 = vcmp.lt.s32.totalorder %v532, 0
        %v691 = vand.u32 %v532, 2139095040
        %v692 = vshrl.u32 %v691, 23
        %v693 = vsub.s32 %v692, 127
        %v694 = vand.u32 2147483647, %v532
        %v695 = vand.u32 %v694, 8388607
        %v696 = vor.u32 %v695, 8388608
        %v697 = vsub.s32 0, %v696
        %v698 = vadd.s32 %v693, 1
        %vm699 = vcmp.gt.s32.totalorder %v698, 0
        %v700 = vsel %vm699, %v698, 0
        %v701 = vshrl.u32 %v700, 5
        %v702 = vand.u32 %v700, 31
        %v703 = vsub.s32 32, %v702
        %v704 = vshrl.u32 683565275, %v703
        %v705 = vshll.u32 683565275, %v702
        %v706 = vshrl.u32 2475754826, %v703
        %v707 = vor.u32 %v705, %v706
        %v708 = vshll.u32 2475754826, %v702
        %v709 = vshrl.u32 2131351028, %v703
        %v710 = vor.u32 %v708, %v709
        %v711 = vshll.u32 2131351028, %v702
        %v712 = vshrl.u32 2102212464, %v703
        %v713 = vor.u32 %v711, %v712
        %v714 = vshll.u32 2102212464, %v702
        %v715 = vshrl.u32 920167782, %v703
        %v716 = vor.u32 %v714, %v715
        %v717 = vshll.u32 920167782, %v702
        %v718 = vshrl.u32 1326507024, %v703
        %v719 = vor.u32 %v717, %v718
        %vm720 = vcmp.lt.s32.totalorder %v701, 1
        %vm721 = vcmp.lt.s32.totalorder %v701, 2
        %vm722 = vcmp.lt.s32.totalorder %v701, 3
        %vm723 = vcmp.lt.s32.totalorder %v701, 4
        %v724 = vsel %vm720, %v704, %v707
        %v725 = vsel %vm723, %v713, 2102212464
        %v726 = vsel %vm722, %v710, %v725
        %v727 = vsel %vm721, %v724, %v726
        %v728 = vsel %vm720, %v707, %v710
        %v729 = vsel %vm723, %v716, 920167782
        %v730 = vsel %vm722, %v713, %v729
        %v731 = vsel %vm721, %v728, %v730
        %v732 = vsel %vm720, %v710, %v713
        %v733 = vsel %vm723, %v719, 1326507024
        %v734 = vsel %vm722, %v716, %v733
        %v735 = vsel %vm721, %v732, %v734
        %v736 = vshll.u32 %v696, 8
        %v737 = vand.u32 %v736, 65535
        %v738 = vshrl.u32 %v736, 16
        %v739 = vand.u32 %v735, 65535
        %v740 = vshrl.u32 %v735, 16
        %v741 = vmul.u32 %v737, %v739
        %v742 = vmul.u32 %v737, %v740
        %v743 = vmul.u32 %v738, %v739
        %v744 = vmul.u32 %v738, %v740
        %v745 = vshll.u32 %v742, 16
        %v746 = vshrl.u32 %v742, 16
        %v747 = vshll.u32 %v743, 16
        %v748 = vshrl.u32 %v743, 16
        %vm749 = vc.u32 %v741, %v745
        %v750 = vsel %vm749, 1, 0
        %v751 = vadd.s32 %v741, %v745
        %v752 = vadd.s32 %v744, %v750
        %vm753 = vc.u32 %v751, %v747
        %v754 = vsel %vm753, 1, 0
        %v755 = vadd.s32 %v751, %v747
        %v756 = vadd.s32 %v752, %v754
        %v757 = vadd.s32 %v756, %v746
        %v758 = vadd.s32 %v757, %v748
        %v759 = vand.u32 %v736, 65535
        %v760 = vshrl.u32 %v736, 16
        %v761 = vand.u32 %v731, 65535
        %v762 = vshrl.u32 %v731, 16
        %v763 = vmul.u32 %v759, %v761
        %v764 = vmul.u32 %v759, %v762
        %v765 = vmul.u32 %v760, %v761
        %v766 = vmul.u32 %v760, %v762
        %v767 = vshll.u32 %v764, 16
        %v768 = vshrl.u32 %v764, 16
        %v769 = vshll.u32 %v765, 16
        %v770 = vshrl.u32 %v765, 16
        %vm771 = vc.u32 %v763, %v767
        %v772 = vsel %vm771, 1, 0
        %v773 = vadd.s32 %v763, %v767
        %v774 = vadd.s32 %v766, %v772
        %vm775 = vc.u32 %v773, %v769
        %v776 = vsel %vm775, 1, 0
        %v777 = vadd.s32 %v773, %v769
        %v778 = vadd.s32 %v774, %v776
        %v779 = vadd.s32 %v778, %v768
        %v780 = vadd.s32 %v779, %v770
        %v781 = vmul.u32 %v736, %v727
        %v782 = vadd.s32 %v758, %v777
        %vm783 = vc.u32 %v758, %v777
        %v784 = vadd.s32 %v780, 1
        %v785 = vsel %vm783, %v784, %v780
        %v786 = vadd.s32 %v781, %v785
        %v787 = vadd.s32 %v786, 536870912
        %v788 = vshrl.u32 %v787, 30
        %v789 = vshll.u32 %v788, 30
        %v790 = vsub.s32 %v786, %v789
        %vm791 = vcmp.lt.s32.totalorder %v790, 0
        %v792 = vsub.s32 0, %v790
        %v793 = vsel %vm791, %v792, %v790
        %v794 = vclz %v793
        %v795 = vsub.s32 %v794, 2
        %vm796 = vcmp.gt.s32.totalorder 0, %v795
        %v797 = vsel %vm796, 0, %v795
        %v798 = vsub.s32 32, %v797
        %v799 = vshll.u32 %v790, %v797
        %v800 = vshrl.u32 %v782, %v798
        %v801 = vor.u32 %v799, %v800
        %v802 = vsub.s32 4294967266, %v797
        %v803 = vadd.s32 %v802, 127
        %v804 = vshll.u32 %v803, 23
        %v805 = vor.u32 4788187, %v804
        %v806 = vand.u32 2147483647, %v805
        %v808 = vcvt.s32.f32 %v801
        %v809 = vmul.f32 %v808, %v806
        %v810 = vxor.u32 %v809, 2147483648
        %v811 = vsel %vm690, %v810, %v809
        %v812 = vsub.s32 4, %v788
        %v813 = vsel %vm690, %v812, %v788
        %v814 = vsel %vm689, %v532, %v811
        %v815 = vsel %vm689, 0, %v813
        %v816 = vmul.f32 %v814, %v814
        %v817 = vmul.f32 %v816, -0.001358992
        %v818 = vadd.f32 %v817, 0.041655596
        %v819 = vmul.f32 %v816, %v818
        %v820 = vadd.f32 %v819, -0.4999988
        %v821 = vmul.f32 %v816, %v820
        %v822 = vadd.f32 1.0, %v821
        %v823 = vmul.f32 %v814, %v814
        %v824 = vmul.f32 %v823, -0.00019511016
        %v825 = vadd.f32 %v824, 0.008332121
        %v826 = vmul.f32 %v823, %v825
        %v827 = vadd.f32 %v826, -0.16666654
        %v828 = vmul.f32 %v823, %v827
        %v829 = vadd.f32 %v828, 1.0
        %v830 = vmul.f32 %v829, %v814
        %vm831 = vweird.f32 %v532
        %v832 = vadd.s32 %v815, 3
        %v833 = vand.u32 %v832, 3
        %vm834 = vcmp.lt.s32.totalorder %v833, 2
        %vm835 = vcmp.eq.s32.totalorder %v833, 0
        %v836 = vxor.u32 %v830, 2147483648
        %v837 = vsel %vm835, %v822, %v836
        %vm838 = vcmp.eq.s32.totalorder %v833, 2
        %v839 = vxor.u32 %v822, 2147483648
        %v840 = vsel %vm838, %v839, %v830
        %v841 = vsel %vm834, %v837, %v840
        %v842 = vsel %vm831, nan, %v841
        %v843 = vmul.f32 %v687, %v687
        %v844 = vmul.f32 %v842, %v842
        %846 = vset.pattern.permute.xlu0 0
        %847 = vperm.xlu0 %846, %v519
        %v848 = vpop.permute.xlu0 %847
        %851 = vset.pattern.permute.xlu0 0
        %852 = vperm.xlu0 %851, %v520
        %v853 = vpop.permute.xlu0 %852
        %v855 = vmul.f32 %v848, %v843
        %v856 = vmul.f32 %v853, %v844
        %v857 = vadd.f32 %v515, %v855
        %v858 = vadd.f32 %v516, %v856
        %v859 = vpack.c.bf16 %v857, %v857
        %v860 = vpack.c.bf16 %v858, %v858
        %v863 = vunpack.c.l.b16 %v859
        %v864 = vunpack.c.l.b16 %v860
        %v865 = vpack.c.b16 %v864, %v863
        %867 = vrot.lane.b32.xlu0 %v865, 127
        %v868 = vpop.permute.xlu0 %867
        %870 = vrot.lane.b32.xlu0 %v865, 126
        %v871 = vpop.permute.xlu0 %870
        %v873 = vld [vmem:[%s3] sm:$0xf]
        %v874 = vld [vmem:[%s3 + $0x4] sm:$0xf]
        %v877 = vunpack.c.l.b16 %v873
        %v878 = vunpack.c.l.b16 %v874
        %v879 = vpack.c.b16 %v878, %v877
        %vm880 = vcmask 392192
        %v882 = vsel %vm880, %v879, 0
        %884 = vmatpush.bf16.msra.mxu0 0
        %885 = vmatpush.bf16.msra.mxu0 0
        %886 = vmatpush.bf16.msra.mxu0 0
        %887 = vmatpush.bf16.msra.mxu0 0
        %888 = vmatpush.bf16.msra.mxu0 0
        %889 = vmatpush.bf16.msra.mxu0 %v871
        %890 = vmatpush.bf16.msra.mxu0 %v868
        %891 = vmatpush.bf16.msra.mxu0 %v865
        %892 = vmatmul.bf16.gmra.mxu0 %v882
        %v893 = vpop.f32.mrf.mxu0
        %v894 = vadd.f32 0.0, %v893
        %v895 = vpop.f32.mrf.mxu0
        %v896 = vadd.f32 0.0, %v895
        %897 = vdwg.mxu0
        %v898 = vld [vmem:[#allocation3] sm:$0xff]
        %v899 = vld [vmem:[#allocation3 + $0x8] sm:$0xff]
        %v900 = vld [vmem:[#allocation3 + $0x10] sm:$0xff]
        %v901 = vld [vmem:[#allocation3 + $0x18] sm:$0xff]
        %v902 = vld [vmem:[#allocation3 + $0x20] sm:$0xff]
        %v903 = vld [vmem:[#allocation3 + $0x28] sm:$0xff]
        %v904 = vld [vmem:[#allocation3 + $0x30] sm:$0xff]
        %v905 = vld [vmem:[#allocation3 + $0x38] sm:$0xff]
        %v906 = vld [vmem:[#allocation3 + $0x40] sm:$0xff]
        %v907 = vld [vmem:[#allocation3 + $0x48] sm:$0xff]
        %v908 = vld [vmem:[#allocation3 + $0x50] sm:$0xff]
        %v909 = vld [vmem:[#allocation3 + $0x58] sm:$0xff]
        %v910 = vld [vmem:[#allocation3 + $0x60] sm:$0xff]
        %v911 = vld [vmem:[#allocation3 + $0x68] sm:$0xff]
        %v912 = vld [vmem:[#allocation3 + $0x70] sm:$0xff]
        %v913 = vld [vmem:[#allocation3 + $0x78] sm:$0xff]
        %v914 = vld [vmem:[#allocation3 + $0x80] sm:$0xff]
        %v915 = vld [vmem:[#allocation3 + $0x88] sm:$0xff]
        %v916 = vld [vmem:[#allocation3 + $0x90] sm:$0xff]
        %v917 = vld [vmem:[#allocation3 + $0x98] sm:$0xff]
        %v918 = vld [vmem:[#allocation3 + $0xa0] sm:$0xff]
        %v919 = vld [vmem:[#allocation3 + $0xa8] sm:$0xff]
        %v920 = vld [vmem:[#allocation3 + $0xb0] sm:$0xff]
        %v921 = vld [vmem:[#allocation3 + $0xb8] sm:$0xff]
        %v922 = vld [vmem:[#allocation3 + $0xc0] sm:$0xff]
        %v923 = vld [vmem:[#allocation3 + $0xc8] sm:$0xff]
        %vm924 = vcmask 850944
        %v926 = vsel %vm924, %v894, 0
        %v929 = vsel %vm924, %v896, 0
        %931 = vmatpush.msra.mxu0 0.0
        %932 = vmatpush.msra.mxu0 0.0
        %933 = vmatpush.msra.mxu0 0.0
        %934 = vmatpush.msra.mxu0 %v922
        %935 = vmatpush.msra.mxu0 %v920
        %936 = vmatpush.msra.mxu0 %v918
        %937 = vmatpush.msra.mxu0 %v916
        %938 = vmatpush.msra.mxu0 %v914
        %939 = vmatpush.msra.mxu0 %v912
        %940 = vmatpush.msra.mxu0 %v910
        %941 = vmatpush.msra.mxu0 %v908
        %942 = vmatpush.msra.mxu0 %v906
        %943 = vmatpush.msra.mxu0 %v904
        %944 = vmatpush.msra.mxu0 %v902
        %945 = vmatpush.msra.mxu0 %v900
        %946 = vmatpush.msra.mxu0 %v898
        %947 = vmatmul.f32.gmra.mxu0 %v926
        %v948 = vpop.f32.mrf.mxu0
        %v949 = vadd.f32 0.0, %v948
        %950 = vmatmul.f32.gmra.mxu0 %v929
        %v951 = vpop.f32.mrf.mxu0
        %v952 = vadd.f32 0.0, %v951
        %953 = vdwg.mxu0
        %954 = vmatpush.msra.mxu0 0.0
        %955 = vmatpush.msra.mxu0 0.0
        %956 = vmatpush.msra.mxu0 0.0
        %957 = vmatpush.msra.mxu0 %v923
        %958 = vmatpush.msra.mxu0 %v921
        %959 = vmatpush.msra.mxu0 %v919
        %960 = vmatpush.msra.mxu0 %v917
        %961 = vmatpush.msra.mxu0 %v915
        %962 = vmatpush.msra.mxu0 %v913
        %963 = vmatpush.msra.mxu0 %v911
        %964 = vmatpush.msra.mxu0 %v909
        %965 = vmatpush.msra.mxu0 %v907
        %966 = vmatpush.msra.mxu0 %v905
        %967 = vmatpush.msra.mxu0 %v903
        %968 = vmatpush.msra.mxu0 %v901
        %969 = vmatpush.msra.mxu0 %v899
        %970 = vmatmul.f32.gmra.mxu0 %v926
        %v971 = vpop.f32.mrf.mxu0
        %v972 = vadd.f32 0.0, %v971
        %973 = vmatmul.f32.gmra.mxu0 %v929
        %v974 = vpop.f32.mrf.mxu0
        %v975 = vadd.f32 0.0, %v974
        %976 = vdwg.mxu0
        %vm977 = vcmp.lt.s32.totalorder %v513, 0
        %v978 = vsub.s32 0, %v513
        %v979 = vsel %vm977, %v978, %v513
        %v980 = vshrl.u32 %v979, 1
        %v981 = vand.u32 %v979, 1
        %v982 = vsub.s32 0, %v981
        %v983 = vsel %vm977, %v982, %v981
        %vm984 = vcmp.lt.s32.totalorder %v514, 0
        %v985 = vsub.s32 0, %v514
        %v986 = vsel %vm984, %v985, %v514
        %v987 = vshrl.u32 %v986, 1
        %v988 = vand.u32 %v986, 1
        %v989 = vsub.s32 0, %v988
        %v990 = vsel %vm984, %v989, %v988
        %vm991 = vcmp.ne.s32.totalorder %v983, 0
        %vm992 = vcmp.ne.s32.totalorder %v990, 0
        %vm993 = vcmp.lt.s32.totalorder %v983, 0
        %vm994 = vcmp.lt.s32.totalorder %v990, 0
        %vm995 = vmand %vm993, %vm991
        %vm996 = vmand %vm994, %vm992
        %v997 = vadd.s32 %v983, 2
        %v998 = vadd.s32 %v990, 2
        %v999 = vsel %vm995, %v997, %v983
        %v1000 = vsel %vm996, %v998, %v990
        %vm1001 = vcmp.eq.s32.totalorder %v999, 0
        %vm1002 = vcmp.eq.s32.totalorder %v1000, 0
        %v1003 = vsel %vm1001, 1, 0
        %v1004 = vsel %vm1002, 1, 0
        %vm1005 = vcmp.eq.s32.totalorder %v1003, 1
        %vm1006 = vcmp.eq.s32.totalorder %v1004, 1
        %v1007 = vsel %vm1005, %v949, 0.0
        %v1008 = vsel %vm1006, %v972, 0.0
        %v1009 = vadd.f32 %v1007, 0.0
        %v1010 = vadd.f32 %v1008, 0.0
        %vm1011 = vcmp.eq.s32.totalorder %v999, 1
        %vm1012 = vcmp.eq.s32.totalorder %v1000, 1
        %v1013 = vsel %vm1011, 1, 0
        %v1014 = vsel %vm1012, 1, 0
        %vm1015 = vcmp.eq.s32.totalorder %v1013, 1
        %vm1016 = vcmp.eq.s32.totalorder %v1014, 1
        %v1017 = vsel %vm1015, %v952, 0.0
        %v1018 = vsel %vm1016, %v975, 0.0
        %v1019 = vadd.f32 %v1009, %v1017
        %v1020 = vadd.f32 %v1010, %v1018
        %v1021 = vld [vmem:[%s4] sm:$0xff]
        %1023 = vset.pattern.permute.xlu0 0
        %1024 = vperm.xlu0 %1023, %v1021
        %v1025 = vpop.permute.xlu0 %1024
        %v1027 = vadd.f32 %v1019, %v1025
        %v1028 = vadd.f32 %v1020, %v1025
        %s1029 = smul.u32 %s34, 128
        %s1030 = ssub.s32 %s1029, 40
        %v1031 = vstv %s1030
        %v1032 = vadd.s32 %v513, %v1031
        %v1033 = vadd.s32 %v514, %v1031
        %vm1034 = vcmp.ge.s32.totalorder %v1032, 0
        %vm1035 = vcmp.ge.s32.totalorder %v1033, 0
        %vm1036 = vcmp.lt.s32.totalorder %v1032, 32
        %vm1037 = vcmp.lt.s32.totalorder %v1033, 32
        %vm1038 = vmand %vm1034, %vm1036
        %vm1039 = vmand %vm1035, %vm1037
        %v1040 = vsel %vm1038, 1, 0
        %v1041 = vsel %vm1039, 1, 0
        %vm1042 = vcmp.eq.s32.totalorder %v1040, 1
        %vm1043 = vcmp.eq.s32.totalorder %v1041, 1
        %v1044 = vsel %vm1042, %v1027, 0.0
        %v1045 = vsel %vm1043, %v1028, 0.0
        %vm1046 = vcmask 216064
        %1047 = vst.msk [vmem:[#allocation2] sm:$0xf] %vm1046, 0
        %vm1048 = vcmask 1044312
        %vm1049 = vcmask 48132
        %vm1050 = vmor %vm1049, %vm1048
        %1051 = vst.msk [vmem:[#allocation2 + $0x4] sm:$0xff] %vm1050, 0
        %v1052 = vld [vmem:[%s6] sm:$0xff]
        %v1053 = vld [vmem:[%s7] sm:$0xff]
        %1055 = vset.pattern.permute.xlu0 0
        %1056 = vperm.xlu0 %1055, %v1052
        %v1057 = vpop.permute.xlu0 %1056
        %v1059 = vmul.f32 %v1057, %v1044
        %v1060 = vmul.f32 %v1057, %v1045
        %v1061 = vand.u32 2147483647, %v1059
        %vm1062 = vcmp.le.f32.partialorder %v1061, 0.7853982
        %vm1063 = vcmp.lt.s32.totalorder %v1059, 0
        %v1064 = vand.u32 %v1059, 2139095040
        %v1065 = vshrl.u32 %v1064, 23
        %v1066 = vsub.s32 %v1065, 127
        %v1067 = vand.u32 2147483647, %v1059
        %v1068 = vand.u32 %v1067, 8388607
        %v1069 = vor.u32 %v1068, 8388608
        %v1070 = vsub.s32 0, %v1069
        %v1071 = vadd.s32 %v1066, 1
        %vm1072 = vcmp.gt.s32.totalorder %v1071, 0
        %v1073 = vsel %vm1072, %v1071, 0
        %v1074 = vshrl.u32 %v1073, 5
        %v1075 = vand.u32 %v1073, 31
        %v1076 = vsub.s32 32, %v1075
        %v1077 = vshrl.u32 683565275, %v1076
        %v1078 = vshll.u32 683565275, %v1075
        %v1079 = vshrl.u32 2475754826, %v1076
        %v1080 = vor.u32 %v1078, %v1079
        %v1081 = vshll.u32 2475754826, %v1075
        %v1082 = vshrl.u32 2131351028, %v1076
        %v1083 = vor.u32 %v1081, %v1082
        %v1084 = vshll.u32 2131351028, %v1075
        %v1085 = vshrl.u32 2102212464, %v1076
        %v1086 = vor.u32 %v1084, %v1085
        %v1087 = vshll.u32 2102212464, %v1075
        %v1088 = vshrl.u32 920167782, %v1076
        %v1089 = vor.u32 %v1087, %v1088
        %v1090 = vshll.u32 920167782, %v1075
        %v1091 = vshrl.u32 1326507024, %v1076
        %v1092 = vor.u32 %v1090, %v1091
        %vm1093 = vcmp.lt.s32.totalorder %v1074, 1
        %vm1094 = vcmp.lt.s32.totalorder %v1074, 2
        %vm1095 = vcmp.lt.s32.totalorder %v1074, 3
        %vm1096 = vcmp.lt.s32.totalorder %v1074, 4
        %v1097 = vsel %vm1093, %v1077, %v1080
        %v1098 = vsel %vm1096, %v1086, 2102212464
        %v1099 = vsel %vm1095, %v1083, %v1098
        %v1100 = vsel %vm1094, %v1097, %v1099
        %v1101 = vsel %vm1093, %v1080, %v1083
        %v1102 = vsel %vm1096, %v1089, 920167782
        %v1103 = vsel %vm1095, %v1086, %v1102
        %v1104 = vsel %vm1094, %v1101, %v1103
        %v1105 = vsel %vm1093, %v1083, %v1086
        %v1106 = vsel %vm1096, %v1092, 1326507024
        %v1107 = vsel %vm1095, %v1089, %v1106
        %v1108 = vsel %vm1094, %v1105, %v1107
        %v1109 = vshll.u32 %v1069, 8
        %v1110 = vand.u32 %v1109, 65535
        %v1111 = vshrl.u32 %v1109, 16
        %v1112 = vand.u32 %v1108, 65535
        %v1113 = vshrl.u32 %v1108, 16
        %v1114 = vmul.u32 %v1110, %v1112
        %v1115 = vmul.u32 %v1110, %v1113
        %v1116 = vmul.u32 %v1111, %v1112
        %v1117 = vmul.u32 %v1111, %v1113
        %v1118 = vshll.u32 %v1115, 16
        %v1119 = vshrl.u32 %v1115, 16
        %v1120 = vshll.u32 %v1116, 16
        %v1121 = vshrl.u32 %v1116, 16
        %vm1122 = vc.u32 %v1114, %v1118
        %v1123 = vsel %vm1122, 1, 0
        %v1124 = vadd.s32 %v1114, %v1118
        %v1125 = vadd.s32 %v1117, %v1123
        %vm1126 = vc.u32 %v1124, %v1120
        %v1127 = vsel %vm1126, 1, 0
        %v1128 = vadd.s32 %v1124, %v1120
        %v1129 = vadd.s32 %v1125, %v1127
        %v1130 = vadd.s32 %v1129, %v1119
        %v1131 = vadd.s32 %v1130, %v1121
        %v1132 = vand.u32 %v1109, 65535
        %v1133 = vshrl.u32 %v1109, 16
        %v1134 = vand.u32 %v1104, 65535
        %v1135 = vshrl.u32 %v1104, 16
        %v1136 = vmul.u32 %v1132, %v1134
        %v1137 = vmul.u32 %v1132, %v1135
        %v1138 = vmul.u32 %v1133, %v1134
        %v1139 = vmul.u32 %v1133, %v1135
        %v1140 = vshll.u32 %v1137, 16
        %v1141 = vshrl.u32 %v1137, 16
        %v1142 = vshll.u32 %v1138, 16
        %v1143 = vshrl.u32 %v1138, 16
        %vm1144 = vc.u32 %v1136, %v1140
        %v1145 = vsel %vm1144, 1, 0
        %v1146 = vadd.s32 %v1136, %v1140
        %v1147 = vadd.s32 %v1139, %v1145
        %vm1148 = vc.u32 %v1146, %v1142
        %v1149 = vsel %vm1148, 1, 0
        %v1150 = vadd.s32 %v1146, %v1142
        %v1151 = vadd.s32 %v1147, %v1149
        %v1152 = vadd.s32 %v1151, %v1141
        %v1153 = vadd.s32 %v1152, %v1143
        %v1154 = vmul.u32 %v1109, %v1100
        %v1155 = vadd.s32 %v1131, %v1150
        %vm1156 = vc.u32 %v1131, %v1150
        %v1157 = vadd.s32 %v1153, 1
        %v1158 = vsel %vm1156, %v1157, %v1153
        %v1159 = vadd.s32 %v1154, %v1158
        %v1160 = vadd.s32 %v1159, 536870912
        %v1161 = vshrl.u32 %v1160, 30
        %v1162 = vshll.u32 %v1161, 30
        %v1163 = vsub.s32 %v1159, %v1162
        %vm1164 = vcmp.lt.s32.totalorder %v1163, 0
        %v1165 = vsub.s32 0, %v1163
        %v1166 = vsel %vm1164, %v1165, %v1163
        %v1167 = vclz %v1166
        %v1168 = vsub.s32 %v1167, 2
        %vm1169 = vcmp.gt.s32.totalorder 0, %v1168
        %v1170 = vsel %vm1169, 0, %v1168
        %v1171 = vsub.s32 32, %v1170
        %v1172 = vshll.u32 %v1163, %v1170
        %v1173 = vshrl.u32 %v1155, %v1171
        %v1174 = vor.u32 %v1172, %v1173
        %v1175 = vsub.s32 4294967266, %v1170
        %v1176 = vadd.s32 %v1175, 127
        %v1177 = vshll.u32 %v1176, 23
        %v1178 = vor.u32 4788187, %v1177
        %v1179 = vand.u32 2147483647, %v1178
        %v1181 = vcvt.s32.f32 %v1174
        %v1182 = vmul.f32 %v1181, %v1179
        %v1183 = vxor.u32 %v1182, 2147483648
        %v1184 = vsel %vm1063, %v1183, %v1182
        %v1185 = vsub.s32 4, %v1161
        %v1186 = vsel %vm1063, %v1185, %v1161
        %v1187 = vsel %vm1062, %v1059, %v1184
        %v1188 = vsel %vm1062, 0, %v1186
        %v1189 = vmul.f32 %v1187, %v1187
        %v1190 = vmul.f32 %v1189, -0.001358992
        %v1191 = vadd.f32 %v1190, 0.041655596
        %v1192 = vmul.f32 %v1189, %v1191
        %v1193 = vadd.f32 %v1192, -0.4999988
        %v1194 = vmul.f32 %v1189, %v1193
        %v1195 = vadd.f32 1.0, %v1194
        %v1196 = vmul.f32 %v1187, %v1187
        %v1197 = vmul.f32 %v1196, -0.00019511016
        %v1198 = vadd.f32 %v1197, 0.008332121
        %v1199 = vmul.f32 %v1196, %v1198
        %v1200 = vadd.f32 %v1199, -0.16666654
        %v1201 = vmul.f32 %v1196, %v1200
        %v1202 = vadd.f32 %v1201, 1.0
        %v1203 = vmul.f32 %v1202, %v1187
        %vm1204 = vweird.f32 %v1059
        %v1205 = vadd.s32 %v1188, 3
        %v1206 = vand.u32 %v1205, 3
        %vm1207 = vcmp.lt.s32.totalorder %v1206, 2
        %vm1208 = vcmp.eq.s32.totalorder %v1206, 0
        %v1209 = vxor.u32 %v1203, 2147483648
        %v1210 = vsel %vm1208, %v1195, %v1209
        %vm1211 = vcmp.eq.s32.totalorder %v1206, 2
        %v1212 = vxor.u32 %v1195, 2147483648
        %v1213 = vsel %vm1211, %v1212, %v1203
        %v1214 = vsel %vm1207, %v1210, %v1213
        %v1215 = vsel %vm1204, nan, %v1214
        %v1216 = vand.u32 2147483647, %v1060
        %vm1217 = vcmp.le.f32.partialorder %v1216, 0.7853982
        %vm1218 = vcmp.lt.s32.totalorder %v1060, 0
        %v1219 = vand.u32 %v1060, 2139095040
        %v1220 = vshrl.u32 %v1219, 23
        %v1221 = vsub.s32 %v1220, 127
        %v1222 = vand.u32 2147483647, %v1060
        %v1223 = vand.u32 %v1222, 8388607
        %v1224 = vor.u32 %v1223, 8388608
        %v1225 = vsub.s32 0, %v1224
        %v1226 = vadd.s32 %v1221, 1
        %vm1227 = vcmp.gt.s32.totalorder %v1226, 0
        %v1228 = vsel %vm1227, %v1226, 0
        %v1229 = vshrl.u32 %v1228, 5
        %v1230 = vand.u32 %v1228, 31
        %v1231 = vsub.s32 32, %v1230
        %v1232 = vshrl.u32 683565275, %v1231
        %v1233 = vshll.u32 683565275, %v1230
        %v1234 = vshrl.u32 2475754826, %v1231
        %v1235 = vor.u32 %v1233, %v1234
        %v1236 = vshll.u32 2475754826, %v1230
        %v1237 = vshrl.u32 2131351028, %v1231
        %v1238 = vor.u32 %v1236, %v1237
        %v1239 = vshll.u32 2131351028, %v1230
        %v1240 = vshrl.u32 2102212464, %v1231
        %v1241 = vor.u32 %v1239, %v1240
        %v1242 = vshll.u32 2102212464, %v1230
        %v1243 = vshrl.u32 920167782, %v1231
        %v1244 = vor.u32 %v1242, %v1243
        %v1245 = vshll.u32 920167782, %v1230
        %v1246 = vshrl.u32 1326507024, %v1231
        %v1247 = vor.u32 %v1245, %v1246
        %vm1248 = vcmp.lt.s32.totalorder %v1229, 1
        %vm1249 = vcmp.lt.s32.totalorder %v1229, 2
        %vm1250 = vcmp.lt.s32.totalorder %v1229, 3
        %vm1251 = vcmp.lt.s32.totalorder %v1229, 4
        %v1252 = vsel %vm1248, %v1232, %v1235
        %v1253 = vsel %vm1251, %v1241, 2102212464
        %v1254 = vsel %vm1250, %v1238, %v1253
        %v1255 = vsel %vm1249, %v1252, %v1254
        %v1256 = vsel %vm1248, %v1235, %v1238
        %v1257 = vsel %vm1251, %v1244, 920167782
        %v1258 = vsel %vm1250, %v1241, %v1257
        %v1259 = vsel %vm1249, %v1256, %v1258
        %v1260 = vsel %vm1248, %v1238, %v1241
        %v1261 = vsel %vm1251, %v1247, 1326507024
        %v1262 = vsel %vm1250, %v1244, %v1261
        %v1263 = vsel %vm1249, %v1260, %v1262
        %v1264 = vshll.u32 %v1224, 8
        %v1265 = vand.u32 %v1264, 65535
        %v1266 = vshrl.u32 %v1264, 16
        %v1267 = vand.u32 %v1263, 65535
        %v1268 = vshrl.u32 %v1263, 16
        %v1269 = vmul.u32 %v1265, %v1267
        %v1270 = vmul.u32 %v1265, %v1268
        %v1271 = vmul.u32 %v1266, %v1267
        %v1272 = vmul.u32 %v1266, %v1268
        %v1273 = vshll.u32 %v1270, 16
        %v1274 = vshrl.u32 %v1270, 16
        %v1275 = vshll.u32 %v1271, 16
        %v1276 = vshrl.u32 %v1271, 16
        %vm1277 = vc.u32 %v1269, %v1273
        %v1278 = vsel %vm1277, 1, 0
        %v1279 = vadd.s32 %v1269, %v1273
        %v1280 = vadd.s32 %v1272, %v1278
        %vm1281 = vc.u32 %v1279, %v1275
        %v1282 = vsel %vm1281, 1, 0
        %v1283 = vadd.s32 %v1279, %v1275
        %v1284 = vadd.s32 %v1280, %v1282
        %v1285 = vadd.s32 %v1284, %v1274
        %v1286 = vadd.s32 %v1285, %v1276
        %v1287 = vand.u32 %v1264, 65535
        %v1288 = vshrl.u32 %v1264, 16
        %v1289 = vand.u32 %v1259, 65535
        %v1290 = vshrl.u32 %v1259, 16
        %v1291 = vmul.u32 %v1287, %v1289
        %v1292 = vmul.u32 %v1287, %v1290
        %v1293 = vmul.u32 %v1288, %v1289
        %v1294 = vmul.u32 %v1288, %v1290
        %v1295 = vshll.u32 %v1292, 16
        %v1296 = vshrl.u32 %v1292, 16
        %v1297 = vshll.u32 %v1293, 16
        %v1298 = vshrl.u32 %v1293, 16
        %vm1299 = vc.u32 %v1291, %v1295
        %v1300 = vsel %vm1299, 1, 0
        %v1301 = vadd.s32 %v1291, %v1295
        %v1302 = vadd.s32 %v1294, %v1300
        %vm1303 = vc.u32 %v1301, %v1297
        %v1304 = vsel %vm1303, 1, 0
        %v1305 = vadd.s32 %v1301, %v1297
        %v1306 = vadd.s32 %v1302, %v1304
        %v1307 = vadd.s32 %v1306, %v1296
        %v1308 = vadd.s32 %v1307, %v1298
        %v1309 = vmul.u32 %v1264, %v1255
        %v1310 = vadd.s32 %v1286, %v1305
        %vm1311 = vc.u32 %v1286, %v1305
        %v1312 = vadd.s32 %v1308, 1
        %v1313 = vsel %vm1311, %v1312, %v1308
        %v1314 = vadd.s32 %v1309, %v1313
        %v1315 = vadd.s32 %v1314, 536870912
        %v1316 = vshrl.u32 %v1315, 30
        %v1317 = vshll.u32 %v1316, 30
        %v1318 = vsub.s32 %v1314, %v1317
        %vm1319 = vcmp.lt.s32.totalorder %v1318, 0
        %v1320 = vsub.s32 0, %v1318
        %v1321 = vsel %vm1319, %v1320, %v1318
        %v1322 = vclz %v1321
        %v1323 = vsub.s32 %v1322, 2
        %vm1324 = vcmp.gt.s32.totalorder 0, %v1323
        %v1325 = vsel %vm1324, 0, %v1323
        %v1326 = vsub.s32 32, %v1325
        %v1327 = vshll.u32 %v1318, %v1325
        %v1328 = vshrl.u32 %v1310, %v1326
        %v1329 = vor.u32 %v1327, %v1328
        %v1330 = vsub.s32 4294967266, %v1325
        %v1331 = vadd.s32 %v1330, 127
        %v1332 = vshll.u32 %v1331, 23
        %v1333 = vor.u32 4788187, %v1332
        %v1334 = vand.u32 2147483647, %v1333
        %v1336 = vcvt.s32.f32 %v1329
        %v1337 = vmul.f32 %v1336, %v1334
        %v1338 = vxor.u32 %v1337, 2147483648
        %v1339 = vsel %vm1218, %v1338, %v1337
        %v1340 = vsub.s32 4, %v1316
        %v1341 = vsel %vm1218, %v1340, %v1316
        %v1342 = vsel %vm1217, %v1060, %v1339
        %v1343 = vsel %vm1217, 0, %v1341
        %v1344 = vmul.f32 %v1342, %v1342
        %v1345 = vmul.f32 %v1344, -0.001358992
        %v1346 = vadd.f32 %v1345, 0.041655596
        %v1347 = vmul.f32 %v1344, %v1346
        %v1348 = vadd.f32 %v1347, -0.4999988
        %v1349 = vmul.f32 %v1344, %v1348
        %v1350 = vadd.f32 1.0, %v1349
        %v1351 = vmul.f32 %v1342, %v1342
        %v1352 = vmul.f32 %v1351, -0.00019511016
        %v1353 = vadd.f32 %v1352, 0.008332121
        %v1354 = vmul.f32 %v1351, %v1353
        %v1355 = vadd.f32 %v1354, -0.16666654
        %v1356 = vmul.f32 %v1351, %v1355
        %v1357 = vadd.f32 %v1356, 1.0
        %v1358 = vmul.f32 %v1357, %v1342
        %vm1359 = vweird.f32 %v1060
        %v1360 = vadd.s32 %v1343, 3
        %v1361 = vand.u32 %v1360, 3
        %vm1362 = vcmp.lt.s32.totalorder %v1361, 2
        %vm1363 = vcmp.eq.s32.totalorder %v1361, 0
        %v1364 = vxor.u32 %v1358, 2147483648
        %v1365 = vsel %vm1363, %v1350, %v1364
        %vm1366 = vcmp.eq.s32.totalorder %v1361, 2
        %v1367 = vxor.u32 %v1350, 2147483648
        %v1368 = vsel %vm1366, %v1367, %v1358
        %v1369 = vsel %vm1362, %v1365, %v1368
        %v1370 = vsel %vm1359, nan, %v1369
        %v1371 = vmul.f32 %v1215, %v1215
        %v1372 = vmul.f32 %v1370, %v1370
        %1374 = vset.pattern.permute.xlu0 0
        %1375 = vperm.xlu0 %1374, %v1053
        %v1376 = vpop.permute.xlu0 %1375
        %v1378 = vmul.f32 %v1376, %v1371
        %v1379 = vmul.f32 %v1376, %v1372
        %v1380 = vadd.f32 %v1044, %v1378
        %v1381 = vadd.f32 %v1045, %v1379
        %v1382 = vpack.c.bf16 %v1381, %v1380
        %1384 = vrot.lane.b32.xlu0 %v1382, 27
        %v1385 = vpop.permute.xlu0 %1384
        %v1386 = vrot.slane %v1385, 4
        %vm1387 = vcmask 220160
        %v1388 = vsel %vm1387, %v1386, %v1385
        %vm1390 = vcmask 1043672
        %vm1391 = vcmask 875524
        %vm1392 = vmor %vm1391, %vm1390
        %1393 = vst.msk [vmem:[#allocation2] sm:$0xff] %vm1392, %v1388
        %v1394 = vld [vmem:[#allocation2] sm:$0xff]
        %v1396 = vunpack.c.l.b16 %v1394
        %v1397 = vunpack.c.h.b16 %v1394
        %v1398 = vpack.c.b16 %v1396, %v1396
        %v1399 = vpack.c.b16 %v1397, %v1397
        %1400 = vrot.lane.b32.xlu0 %v1398, 127
        %v1401 = vpop.permute.xlu0 %1400
        %1402 = vrot.lane.b32.xlu0 %v1399, 127
        %v1403 = vpop.permute.xlu0 %1402
        %vm1404 = vcmask 1039360
        %v1405 = vsel %vm1404, %v1401, %v1403
        %1406 = vrot.lane.b32.xlu0 %v1398, 126
        %v1407 = vpop.permute.xlu0 %1406
        %1408 = vrot.lane.b32.xlu0 %v1399, 126
        %v1409 = vpop.permute.xlu0 %1408
        %vm1410 = vcmask 1031168
        %v1411 = vsel %vm1410, %v1407, %v1409
        %1412 = vrot.lane.b32.xlu0 %v1398, 125
        %v1413 = vpop.permute.xlu0 %1412
        %1414 = vrot.lane.b32.xlu0 %v1399, 125
        %v1415 = vpop.permute.xlu0 %1414
        %vm1416 = vcmask 1022976
        %v1417 = vsel %vm1416, %v1413, %v1415
        %1418 = vrot.lane.b32.xlu0 %v1398, 124
        %v1419 = vpop.permute.xlu0 %1418
        %1420 = vrot.lane.b32.xlu0 %v1399, 124
        %v1421 = vpop.permute.xlu0 %1420
        %vm1422 = vcmask 1014784
        %v1423 = vsel %vm1422, %v1419, %v1421
        %1424 = vrot.lane.b32.xlu0 %v1398, 123
        %v1425 = vpop.permute.xlu0 %1424
        %1426 = vrot.lane.b32.xlu0 %v1399, 123
        %v1427 = vpop.permute.xlu0 %1426
        %vm1428 = vcmask 1006592
        %v1429 = vsel %vm1428, %v1425, %v1427
        %1430 = vrot.lane.b32.xlu0 %v1398, 122
        %v1431 = vpop.permute.xlu0 %1430
        %1432 = vrot.lane.b32.xlu0 %v1399, 122
        %v1433 = vpop.permute.xlu0 %1432
        %vm1434 = vcmask 998400
        %v1435 = vsel %vm1434, %v1431, %v1433
        %vm1436 = vcmask 1043456
        %v1439 = vsel %vm1436, %v1398, %v1405
        %v1442 = vsel %vm1436, %v1399, %v1403
        %v1445 = vsel %vm1436, %v1411, %v1417
        %v1448 = vsel %vm1436, %v1409, %v1415
        %v1451 = vsel %vm1436, %v1423, %v1429
        %v1454 = vsel %vm1436, %v1421, %v1427
        %v1455 = vld [vmem:[%s8] sm:$0xf]
        %v1456 = vld [vmem:[%s9] sm:$0xff]
        %1458 = vset.pattern.permute.xlu0 0
        %1459 = vperm.xlu0 %1458, %v1456
        %v1460 = vpop.permute.xlu0 %1459
        %1468 = vrot.lane.b32.xlu0 %v1439, 104
        %v1469 = vpop.permute.xlu0 %1468
        %1470 = vrot.lane.b32.xlu0 %v1442, 104
        %v1471 = vpop.permute.xlu0 %1470
        %1472 = vrot.lane.b32.xlu0 %v1445, 104
        %v1473 = vpop.permute.xlu0 %1472
        %1474 = vrot.lane.b32.xlu0 %v1448, 104
        %v1475 = vpop.permute.xlu0 %1474
        %1476 = vrot.lane.b32.xlu0 %v1451, 104
        %v1477 = vpop.permute.xlu0 %1476
        %1478 = vrot.lane.b32.xlu0 %v1454, 104
        %v1479 = vpop.permute.xlu0 %1478
        %1480 = vrot.lane.b32.xlu0 %v1435, 104
        %v1481 = vpop.permute.xlu0 %1480
        %1482 = vrot.lane.b32.xlu0 %v1433, 104
        %v1483 = vpop.permute.xlu0 %1482
        %vm1484 = vcmask 850944
        %v1485 = vsel %vm1484, %v1469, %v1471
        %v1486 = vsel %vm1484, %v1473, %v1475
        %v1487 = vsel %vm1484, %v1477, %v1479
        %v1488 = vsel %vm1484, %v1481, %v1483
        %vm1495 = vcmask 457728
        %v1497 = vsel %vm1495, %v1455, 0
        %v1500 = vsel %vm1436, %v1488, 0
        %v1503 = vsel %vm1436, %v1483, 0
        %1505 = vmatpush.bf16.msra.mxu0 0
        %1506 = vmatpush.bf16.msra.mxu0 0
        %1507 = vmatpush.bf16.msra.mxu0 0
        %1508 = vmatpush.bf16.msra.mxu0 0
        %1509 = vmatpush.bf16.msra.mxu0 %v1500
        %1510 = vmatpush.bf16.msra.mxu0 %v1487
        %1511 = vmatpush.bf16.msra.mxu0 %v1486
        %1512 = vmatpush.bf16.msra.mxu0 %v1485
        %1513 = vmatmul.bf16.gmra.mxu0 %v1497
        %v1514 = vpop.f32.mrf.mxu0
        %v1515 = vadd.f32 %v1460, %v1514
        %v1516 = vpop.f32.mrf.mxu0
        %1517 = vdwg.mxu0
        %1518 = vmatpush.bf16.msra.mxu0 0
        %1519 = vmatpush.bf16.msra.mxu0 0
        %1520 = vmatpush.bf16.msra.mxu0 0
        %1521 = vmatpush.bf16.msra.mxu0 0
        %1522 = vmatpush.bf16.msra.mxu0 %v1503
        %1523 = vmatpush.bf16.msra.mxu0 %v1479
        %1524 = vmatpush.bf16.msra.mxu0 %v1475
        %1525 = vmatpush.bf16.msra.mxu0 %v1471
        %1526 = vmatmul.bf16.gmra.mxu0 %v1497
        %v1527 = vpop.f32.mrf.mxu0
        %v1528 = vadd.f32 %v1460, %v1527
        %v1529 = vpop.f32.mrf.mxu0
        %1530 = vdwg.mxu0
        %v1531 = vld [vmem:[%s10] sm:$0xff]
        %v1532 = vld [vmem:[%s11] sm:$0xff]
        %1534 = vset.pattern.permute.xlu0 0
        %1535 = vperm.xlu0 %1534, %v1531
        %v1536 = vpop.permute.xlu0 %1535
        %v1538 = vmul.f32 %v1536, %v1515
        %v1539 = vmul.f32 %v1536, %v1528
        %v1540 = vand.u32 2147483647, %v1538
        %vm1541 = vcmp.le.f32.partialorder %v1540, 0.7853982
        %vm1542 = vcmp.lt.s32.totalorder %v1538, 0
        %v1543 = vand.u32 %v1538, 2139095040
        %v1544 = vshrl.u32 %v1543, 23
        %v1545 = vsub.s32 %v1544, 127
        %v1546 = vand.u32 2147483647, %v1538
        %v1547 = vand.u32 %v1546, 8388607
        %v1548 = vor.u32 %v1547, 8388608
        %v1549 = vsub.s32 0, %v1548
        %v1550 = vadd.s32 %v1545, 1
        %vm1551 = vcmp.gt.s32.totalorder %v1550, 0
        %v1552 = vsel %vm1551, %v1550, 0
        %v1553 = vshrl.u32 %v1552, 5
        %v1554 = vand.u32 %v1552, 31
        %v1555 = vsub.s32 32, %v1554
        %v1556 = vshrl.u32 683565275, %v1555
        %v1557 = vshll.u32 683565275, %v1554
        %v1558 = vshrl.u32 2475754826, %v1555
        %v1559 = vor.u32 %v1557, %v1558
        %v1560 = vshll.u32 2475754826, %v1554
        %v1561 = vshrl.u32 2131351028, %v1555
        %v1562 = vor.u32 %v1560, %v1561
        %v1563 = vshll.u32 2131351028, %v1554
        %v1564 = vshrl.u32 2102212464, %v1555
        %v1565 = vor.u32 %v1563, %v1564
        %v1566 = vshll.u32 2102212464, %v1554
        %v1567 = vshrl.u32 920167782, %v1555
        %v1568 = vor.u32 %v1566, %v1567
        %v1569 = vshll.u32 920167782, %v1554
        %v1570 = vshrl.u32 1326507024, %v1555
        %v1571 = vor.u32 %v1569, %v1570
        %vm1572 = vcmp.lt.s32.totalorder %v1553, 1
        %vm1573 = vcmp.lt.s32.totalorder %v1553, 2
        %vm1574 = vcmp.lt.s32.totalorder %v1553, 3
        %vm1575 = vcmp.lt.s32.totalorder %v1553, 4
        %v1576 = vsel %vm1572, %v1556, %v1559
        %v1577 = vsel %vm1575, %v1565, 2102212464
        %v1578 = vsel %vm1574, %v1562, %v1577
        %v1579 = vsel %vm1573, %v1576, %v1578
        %v1580 = vsel %vm1572, %v1559, %v1562
        %v1581 = vsel %vm1575, %v1568, 920167782
        %v1582 = vsel %vm1574, %v1565, %v1581
        %v1583 = vsel %vm1573, %v1580, %v1582
        %v1584 = vsel %vm1572, %v1562, %v1565
        %v1585 = vsel %vm1575, %v1571, 1326507024
        %v1586 = vsel %vm1574, %v1568, %v1585
        %v1587 = vsel %vm1573, %v1584, %v1586
        %v1588 = vshll.u32 %v1548, 8
        %v1589 = vand.u32 %v1588, 65535
        %v1590 = vshrl.u32 %v1588, 16
        %v1591 = vand.u32 %v1587, 65535
        %v1592 = vshrl.u32 %v1587, 16
        %v1593 = vmul.u32 %v1589, %v1591
        %v1594 = vmul.u32 %v1589, %v1592
        %v1595 = vmul.u32 %v1590, %v1591
        %v1596 = vmul.u32 %v1590, %v1592
        %v1597 = vshll.u32 %v1594, 16
        %v1598 = vshrl.u32 %v1594, 16
        %v1599 = vshll.u32 %v1595, 16
        %v1600 = vshrl.u32 %v1595, 16
        %vm1601 = vc.u32 %v1593, %v1597
        %v1602 = vsel %vm1601, 1, 0
        %v1603 = vadd.s32 %v1593, %v1597
        %v1604 = vadd.s32 %v1596, %v1602
        %vm1605 = vc.u32 %v1603, %v1599
        %v1606 = vsel %vm1605, 1, 0
        %v1607 = vadd.s32 %v1603, %v1599
        %v1608 = vadd.s32 %v1604, %v1606
        %v1609 = vadd.s32 %v1608, %v1598
        %v1610 = vadd.s32 %v1609, %v1600
        %v1611 = vand.u32 %v1588, 65535
        %v1612 = vshrl.u32 %v1588, 16
        %v1613 = vand.u32 %v1583, 65535
        %v1614 = vshrl.u32 %v1583, 16
        %v1615 = vmul.u32 %v1611, %v1613
        %v1616 = vmul.u32 %v1611, %v1614
        %v1617 = vmul.u32 %v1612, %v1613
        %v1618 = vmul.u32 %v1612, %v1614
        %v1619 = vshll.u32 %v1616, 16
        %v1620 = vshrl.u32 %v1616, 16
        %v1621 = vshll.u32 %v1617, 16
        %v1622 = vshrl.u32 %v1617, 16
        %vm1623 = vc.u32 %v1615, %v1619
        %v1624 = vsel %vm1623, 1, 0
        %v1625 = vadd.s32 %v1615, %v1619
        %v1626 = vadd.s32 %v1618, %v1624
        %vm1627 = vc.u32 %v1625, %v1621
        %v1628 = vsel %vm1627, 1, 0
        %v1629 = vadd.s32 %v1625, %v1621
        %v1630 = vadd.s32 %v1626, %v1628
        %v1631 = vadd.s32 %v1630, %v1620
        %v1632 = vadd.s32 %v1631, %v1622
        %v1633 = vmul.u32 %v1588, %v1579
        %v1634 = vadd.s32 %v1610, %v1629
        %vm1635 = vc.u32 %v1610, %v1629
        %v1636 = vadd.s32 %v1632, 1
        %v1637 = vsel %vm1635, %v1636, %v1632
        %v1638 = vadd.s32 %v1633, %v1637
        %v1639 = vadd.s32 %v1638, 536870912
        %v1640 = vshrl.u32 %v1639, 30
        %v1641 = vshll.u32 %v1640, 30
        %v1642 = vsub.s32 %v1638, %v1641
        %vm1643 = vcmp.lt.s32.totalorder %v1642, 0
        %v1644 = vsub.s32 0, %v1642
        %v1645 = vsel %vm1643, %v1644, %v1642
        %v1646 = vclz %v1645
        %v1647 = vsub.s32 %v1646, 2
        %vm1648 = vcmp.gt.s32.totalorder 0, %v1647
        %v1649 = vsel %vm1648, 0, %v1647
        %v1650 = vsub.s32 32, %v1649
        %v1651 = vshll.u32 %v1642, %v1649
        %v1652 = vshrl.u32 %v1634, %v1650
        %v1653 = vor.u32 %v1651, %v1652
        %v1654 = vsub.s32 4294967266, %v1649
        %v1655 = vadd.s32 %v1654, 127
        %v1656 = vshll.u32 %v1655, 23
        %v1657 = vor.u32 4788187, %v1656
        %v1658 = vand.u32 2147483647, %v1657
        %v1660 = vcvt.s32.f32 %v1653
        %v1661 = vmul.f32 %v1660, %v1658
        %v1662 = vxor.u32 %v1661, 2147483648
        %v1663 = vsel %vm1542, %v1662, %v1661
        %v1664 = vsub.s32 4, %v1640
        %v1665 = vsel %vm1542, %v1664, %v1640
        %v1666 = vsel %vm1541, %v1538, %v1663
        %v1667 = vsel %vm1541, 0, %v1665
        %v1668 = vmul.f32 %v1666, %v1666
        %v1669 = vmul.f32 %v1668, -0.001358992
        %v1670 = vadd.f32 %v1669, 0.041655596
        %v1671 = vmul.f32 %v1668, %v1670
        %v1672 = vadd.f32 %v1671, -0.4999988
        %v1673 = vmul.f32 %v1668, %v1672
        %v1674 = vadd.f32 1.0, %v1673
        %v1675 = vmul.f32 %v1666, %v1666
        %v1676 = vmul.f32 %v1675, -0.00019511016
        %v1677 = vadd.f32 %v1676, 0.008332121
        %v1678 = vmul.f32 %v1675, %v1677
        %v1679 = vadd.f32 %v1678, -0.16666654
        %v1680 = vmul.f32 %v1675, %v1679
        %v1681 = vadd.f32 %v1680, 1.0
        %v1682 = vmul.f32 %v1681, %v1666
        %vm1683 = vweird.f32 %v1538
        %v1684 = vadd.s32 %v1667, 3
        %v1685 = vand.u32 %v1684, 3
        %vm1686 = vcmp.lt.s32.totalorder %v1685, 2
        %vm1687 = vcmp.eq.s32.totalorder %v1685, 0
        %v1688 = vxor.u32 %v1682, 2147483648
        %v1689 = vsel %vm1687, %v1674, %v1688
        %vm1690 = vcmp.eq.s32.totalorder %v1685, 2
        %v1691 = vxor.u32 %v1674, 2147483648
        %v1692 = vsel %vm1690, %v1691, %v1682
        %v1693 = vsel %vm1686, %v1689, %v1692
        %v1694 = vsel %vm1683, nan, %v1693
        %v1695 = vand.u32 2147483647, %v1539
        %vm1696 = vcmp.le.f32.partialorder %v1695, 0.7853982
        %vm1697 = vcmp.lt.s32.totalorder %v1539, 0
        %v1698 = vand.u32 %v1539, 2139095040
        %v1699 = vshrl.u32 %v1698, 23
        %v1700 = vsub.s32 %v1699, 127
        %v1701 = vand.u32 2147483647, %v1539
        %v1702 = vand.u32 %v1701, 8388607
        %v1703 = vor.u32 %v1702, 8388608
        %v1704 = vsub.s32 0, %v1703
        %v1705 = vadd.s32 %v1700, 1
        %vm1706 = vcmp.gt.s32.totalorder %v1705, 0
        %v1707 = vsel %vm1706, %v1705, 0
        %v1708 = vshrl.u32 %v1707, 5
        %v1709 = vand.u32 %v1707, 31
        %v1710 = vsub.s32 32, %v1709
        %v1711 = vshrl.u32 683565275, %v1710
        %v1712 = vshll.u32 683565275, %v1709
        %v1713 = vshrl.u32 2475754826, %v1710
        %v1714 = vor.u32 %v1712, %v1713
        %v1715 = vshll.u32 2475754826, %v1709
        %v1716 = vshrl.u32 2131351028, %v1710
        %v1717 = vor.u32 %v1715, %v1716
        %v1718 = vshll.u32 2131351028, %v1709
        %v1719 = vshrl.u32 2102212464, %v1710
        %v1720 = vor.u32 %v1718, %v1719
        %v1721 = vshll.u32 2102212464, %v1709
        %v1722 = vshrl.u32 920167782, %v1710
        %v1723 = vor.u32 %v1721, %v1722
        %v1724 = vshll.u32 920167782, %v1709
        %v1725 = vshrl.u32 1326507024, %v1710
        %v1726 = vor.u32 %v1724, %v1725
        %vm1727 = vcmp.lt.s32.totalorder %v1708, 1
        %vm1728 = vcmp.lt.s32.totalorder %v1708, 2
        %vm1729 = vcmp.lt.s32.totalorder %v1708, 3
        %vm1730 = vcmp.lt.s32.totalorder %v1708, 4
        %v1731 = vsel %vm1727, %v1711, %v1714
        %v1732 = vsel %vm1730, %v1720, 2102212464
        %v1733 = vsel %vm1729, %v1717, %v1732
        %v1734 = vsel %vm1728, %v1731, %v1733
        %v1735 = vsel %vm1727, %v1714, %v1717
        %v1736 = vsel %vm1730, %v1723, 920167782
        %v1737 = vsel %vm1729, %v1720, %v1736
        %v1738 = vsel %vm1728, %v1735, %v1737
        %v1739 = vsel %vm1727, %v1717, %v1720
        %v1740 = vsel %vm1730, %v1726, 1326507024
        %v1741 = vsel %vm1729, %v1723, %v1740
        %v1742 = vsel %vm1728, %v1739, %v1741
        %v1743 = vshll.u32 %v1703, 8
        %v1744 = vand.u32 %v1743, 65535
        %v1745 = vshrl.u32 %v1743, 16
        %v1746 = vand.u32 %v1742, 65535
        %v1747 = vshrl.u32 %v1742, 16
        %v1748 = vmul.u32 %v1744, %v1746
        %v1749 = vmul.u32 %v1744, %v1747
        %v1750 = vmul.u32 %v1745, %v1746
        %v1751 = vmul.u32 %v1745, %v1747
        %v1752 = vshll.u32 %v1749, 16
        %v1753 = vshrl.u32 %v1749, 16
        %v1754 = vshll.u32 %v1750, 16
        %v1755 = vshrl.u32 %v1750, 16
        %vm1756 = vc.u32 %v1748, %v1752
        %v1757 = vsel %vm1756, 1, 0
        %v1758 = vadd.s32 %v1748, %v1752
        %v1759 = vadd.s32 %v1751, %v1757
        %vm1760 = vc.u32 %v1758, %v1754
        %v1761 = vsel %vm1760, 1, 0
        %v1762 = vadd.s32 %v1758, %v1754
        %v1763 = vadd.s32 %v1759, %v1761
        %v1764 = vadd.s32 %v1763, %v1753
        %v1765 = vadd.s32 %v1764, %v1755
        %v1766 = vand.u32 %v1743, 65535
        %v1767 = vshrl.u32 %v1743, 16
        %v1768 = vand.u32 %v1738, 65535
        %v1769 = vshrl.u32 %v1738, 16
        %v1770 = vmul.u32 %v1766, %v1768
        %v1771 = vmul.u32 %v1766, %v1769
        %v1772 = vmul.u32 %v1767, %v1768
        %v1773 = vmul.u32 %v1767, %v1769
        %v1774 = vshll.u32 %v1771, 16
        %v1775 = vshrl.u32 %v1771, 16
        %v1776 = vshll.u32 %v1772, 16
        %v1777 = vshrl.u32 %v1772, 16
        %vm1778 = vc.u32 %v1770, %v1774
        %v1779 = vsel %vm1778, 1, 0
        %v1780 = vadd.s32 %v1770, %v1774
        %v1781 = vadd.s32 %v1773, %v1779
        %vm1782 = vc.u32 %v1780, %v1776
        %v1783 = vsel %vm1782, 1, 0
        %v1784 = vadd.s32 %v1780, %v1776
        %v1785 = vadd.s32 %v1781, %v1783
        %v1786 = vadd.s32 %v1785, %v1775
        %v1787 = vadd.s32 %v1786, %v1777
        %v1788 = vmul.u32 %v1743, %v1734
        %v1789 = vadd.s32 %v1765, %v1784
        %vm1790 = vc.u32 %v1765, %v1784
        %v1791 = vadd.s32 %v1787, 1
        %v1792 = vsel %vm1790, %v1791, %v1787
        %v1793 = vadd.s32 %v1788, %v1792
        %v1794 = vadd.s32 %v1793, 536870912
        %v1795 = vshrl.u32 %v1794, 30
        %v1796 = vshll.u32 %v1795, 30
        %v1797 = vsub.s32 %v1793, %v1796
        %vm1798 = vcmp.lt.s32.totalorder %v1797, 0
        %v1799 = vsub.s32 0, %v1797
        %v1800 = vsel %vm1798, %v1799, %v1797
        %v1801 = vclz %v1800
        %v1802 = vsub.s32 %v1801, 2
        %vm1803 = vcmp.gt.s32.totalorder 0, %v1802
        %v1804 = vsel %vm1803, 0, %v1802
        %v1805 = vsub.s32 32, %v1804
        %v1806 = vshll.u32 %v1797, %v1804
        %v1807 = vshrl.u32 %v1789, %v1805
        %v1808 = vor.u32 %v1806, %v1807
        %v1809 = vsub.s32 4294967266, %v1804
        %v1810 = vadd.s32 %v1809, 127
        %v1811 = vshll.u32 %v1810, 23
        %v1812 = vor.u32 4788187, %v1811
        %v1813 = vand.u32 2147483647, %v1812
        %v1815 = vcvt.s32.f32 %v1808
        %v1816 = vmul.f32 %v1815, %v1813
        %v1817 = vxor.u32 %v1816, 2147483648
        %v1818 = vsel %vm1697, %v1817, %v1816
        %v1819 = vsub.s32 4, %v1795
        %v1820 = vsel %vm1697, %v1819, %v1795
        %v1821 = vsel %vm1696, %v1539, %v1818
        %v1822 = vsel %vm1696, 0, %v1820
        %v1823 = vmul.f32 %v1821, %v1821
        %v1824 = vmul.f32 %v1823, -0.001358992
        %v1825 = vadd.f32 %v1824, 0.041655596
        %v1826 = vmul.f32 %v1823, %v1825
        %v1827 = vadd.f32 %v1826, -0.4999988
        %v1828 = vmul.f32 %v1823, %v1827
        %v1829 = vadd.f32 1.0, %v1828
        %v1830 = vmul.f32 %v1821, %v1821
        %v1831 = vmul.f32 %v1830, -0.00019511016
        %v1832 = vadd.f32 %v1831, 0.008332121
        %v1833 = vmul.f32 %v1830, %v1832
        %v1834 = vadd.f32 %v1833, -0.16666654
        %v1835 = vmul.f32 %v1830, %v1834
        %v1836 = vadd.f32 %v1835, 1.0
        %v1837 = vmul.f32 %v1836, %v1821
        %vm1838 = vweird.f32 %v1539
        %v1839 = vadd.s32 %v1822, 3
        %v1840 = vand.u32 %v1839, 3
        %vm1841 = vcmp.lt.s32.totalorder %v1840, 2
        %vm1842 = vcmp.eq.s32.totalorder %v1840, 0
        %v1843 = vxor.u32 %v1837, 2147483648
        %v1844 = vsel %vm1842, %v1829, %v1843
        %vm1845 = vcmp.eq.s32.totalorder %v1840, 2
        %v1846 = vxor.u32 %v1829, 2147483648
        %v1847 = vsel %vm1845, %v1846, %v1837
        %v1848 = vsel %vm1841, %v1844, %v1847
        %v1849 = vsel %vm1838, nan, %v1848
        %v1850 = vmul.f32 %v1694, %v1694
        %v1851 = vmul.f32 %v1849, %v1849
        %1853 = vset.pattern.permute.xlu0 0
        %1854 = vperm.xlu0 %1853, %v1532
        %v1855 = vpop.permute.xlu0 %1854
        %v1857 = vmul.f32 %v1855, %v1850
        %v1858 = vmul.f32 %v1855, %v1851
        %v1859 = vadd.f32 %v1515, %v1857
        %v1860 = vadd.f32 %v1528, %v1858
        %v1861 = vld [vmem:[%s12] sm:$0xf]
        %v1862 = vpack.c.bf16 %v1859, %v1859
        %v1863 = vpack.c.bf16 %v1860, %v1860
        %v1864 = vld [vmem:[%s13] sm:$0xff]
        %1866 = vset.pattern.permute.xlu0 0
        %1867 = vperm.xlu0 %1866, %v1864
        %v1868 = vpop.permute.xlu0 %1867
        %vm1870 = vcmask 64512
        %v1872 = vsel %vm1870, %v1861, 0
        %v1875 = vsel %vm1436, %v1862, 0
        %v1878 = vsel %vm1436, %v1863, 0
        %1880 = vmatpush.bf16.msra.mxu0 0
        %1881 = vmatpush.bf16.msra.mxu0 0
        %1882 = vmatpush.bf16.msra.mxu0 0
        %1883 = vmatpush.bf16.msra.mxu0 0
        %1884 = vmatpush.bf16.msra.mxu0 0
        %1885 = vmatpush.bf16.msra.mxu0 0
        %1886 = vmatpush.bf16.msra.mxu0 0
        %1887 = vmatpush.bf16.msra.mxu0 %v1875
        %1888 = vmatmul.bf16.gmra.mxu0 %v1872
        %v1889 = vpop.f32.mrf.mxu0
        %v1890 = vadd.f32 %v1868, %v1889
        %v1891 = vpop.f32.mrf.mxu0
        %1892 = vdwg.mxu0
        %1893 = vmatpush.bf16.msra.mxu0 0
        %1894 = vmatpush.bf16.msra.mxu0 0
        %1895 = vmatpush.bf16.msra.mxu0 0
        %1896 = vmatpush.bf16.msra.mxu0 0
        %1897 = vmatpush.bf16.msra.mxu0 0
        %1898 = vmatpush.bf16.msra.mxu0 0
        %1899 = vmatpush.bf16.msra.mxu0 0
        %1900 = vmatpush.bf16.msra.mxu0 %v1878
        %1901 = vmatmul.bf16.gmra.mxu0 %v1872
        %v1902 = vpop.f32.mrf.mxu0
        %v1903 = vadd.f32 %v1868, %v1902
        %v1904 = vpop.f32.mrf.mxu0
        %1905 = vdwg.mxu0
        %v1906 = vadd.f32 %v1044, %v1890
        %v1907 = vadd.f32 %v1045, %v1903
        %v1908 = vsel %vm1042, %v1906, 0.0
        %v1909 = vsel %vm1043, %v1907, 0.0
        %s1910 = scalar_lea.vmem %s6, 8
        %v1911 = vld [vmem:[%s1910] sm:$0xff]
        %s1912 = scalar_lea.vmem %s7, 8
        %v1913 = vld [vmem:[%s1912] sm:$0xff]
        %1915 = vset.pattern.permute.xlu0 0
        %1916 = vperm.xlu0 %1915, %v1911
        %v1917 = vpop.permute.xlu0 %1916
        %v1919 = vmul.f32 %v1917, %v1908
        %v1920 = vmul.f32 %v1917, %v1909
        %v1921 = vand.u32 2147483647, %v1919
        %vm1922 = vcmp.le.f32.partialorder %v1921, 0.7853982
        %vm1923 = vcmp.lt.s32.totalorder %v1919, 0
        %v1924 = vand.u32 %v1919, 2139095040
        %v1925 = vshrl.u32 %v1924, 23
        %v1926 = vsub.s32 %v1925, 127
        %v1927 = vand.u32 2147483647, %v1919
        %v1928 = vand.u32 %v1927, 8388607
        %v1929 = vor.u32 %v1928, 8388608
        %v1930 = vsub.s32 0, %v1929
        %v1931 = vadd.s32 %v1926, 1
        %vm1932 = vcmp.gt.s32.totalorder %v1931, 0
        %v1933 = vsel %vm1932, %v1931, 0
        %v1934 = vshrl.u32 %v1933, 5
        %v1935 = vand.u32 %v1933, 31
        %v1936 = vsub.s32 32, %v1935
        %v1937 = vshrl.u32 683565275, %v1936
        %v1938 = vshll.u32 683565275, %v1935
        %v1939 = vshrl.u32 2475754826, %v1936
        %v1940 = vor.u32 %v1938, %v1939
        %v1941 = vshll.u32 2475754826, %v1935
        %v1942 = vshrl.u32 2131351028, %v1936
        %v1943 = vor.u32 %v1941, %v1942
        %v1944 = vshll.u32 2131351028, %v1935
        %v1945 = vshrl.u32 2102212464, %v1936
        %v1946 = vor.u32 %v1944, %v1945
        %v1947 = vshll.u32 2102212464, %v1935
        %v1948 = vshrl.u32 920167782, %v1936
        %v1949 = vor.u32 %v1947, %v1948
        %v1950 = vshll.u32 920167782, %v1935
        %v1951 = vshrl.u32 1326507024, %v1936
        %v1952 = vor.u32 %v1950, %v1951
        %vm1953 = vcmp.lt.s32.totalorder %v1934, 1
        %vm1954 = vcmp.lt.s32.totalorder %v1934, 2
        %vm1955 = vcmp.lt.s32.totalorder %v1934, 3
        %vm1956 = vcmp.lt.s32.totalorder %v1934, 4
        %v1957 = vsel %vm1953, %v1937, %v1940
        %v1958 = vsel %vm1956, %v1946, 2102212464
        %v1959 = vsel %vm1955, %v1943, %v1958
        %v1960 = vsel %vm1954, %v1957, %v1959
        %v1961 = vsel %vm1953, %v1940, %v1943
        %v1962 = vsel %vm1956, %v1949, 920167782
        %v1963 = vsel %vm1955, %v1946, %v1962
        %v1964 = vsel %vm1954, %v1961, %v1963
        %v1965 = vsel %vm1953, %v1943, %v1946
        %v1966 = vsel %vm1956, %v1952, 1326507024
        %v1967 = vsel %vm1955, %v1949, %v1966
        %v1968 = vsel %vm1954, %v1965, %v1967
        %v1969 = vshll.u32 %v1929, 8
        %v1970 = vand.u32 %v1969, 65535
        %v1971 = vshrl.u32 %v1969, 16
        %v1972 = vand.u32 %v1968, 65535
        %v1973 = vshrl.u32 %v1968, 16
        %v1974 = vmul.u32 %v1970, %v1972
        %v1975 = vmul.u32 %v1970, %v1973
        %v1976 = vmul.u32 %v1971, %v1972
        %v1977 = vmul.u32 %v1971, %v1973
        %v1978 = vshll.u32 %v1975, 16
        %v1979 = vshrl.u32 %v1975, 16
        %v1980 = vshll.u32 %v1976, 16
        %v1981 = vshrl.u32 %v1976, 16
        %vm1982 = vc.u32 %v1974, %v1978
        %v1983 = vsel %vm1982, 1, 0
        %v1984 = vadd.s32 %v1974, %v1978
        %v1985 = vadd.s32 %v1977, %v1983
        %vm1986 = vc.u32 %v1984, %v1980
        %v1987 = vsel %vm1986, 1, 0
        %v1988 = vadd.s32 %v1984, %v1980
        %v1989 = vadd.s32 %v1985, %v1987
        %v1990 = vadd.s32 %v1989, %v1979
        %v1991 = vadd.s32 %v1990, %v1981
        %v1992 = vand.u32 %v1969, 65535
        %v1993 = vshrl.u32 %v1969, 16
        %v1994 = vand.u32 %v1964, 65535
        %v1995 = vshrl.u32 %v1964, 16
        %v1996 = vmul.u32 %v1992, %v1994
        %v1997 = vmul.u32 %v1992, %v1995
        %v1998 = vmul.u32 %v1993, %v1994
        %v1999 = vmul.u32 %v1993, %v1995
        %v2000 = vshll.u32 %v1997, 16
        %v2001 = vshrl.u32 %v1997, 16
        %v2002 = vshll.u32 %v1998, 16
        %v2003 = vshrl.u32 %v1998, 16
        %vm2004 = vc.u32 %v1996, %v2000
        %v2005 = vsel %vm2004, 1, 0
        %v2006 = vadd.s32 %v1996, %v2000
        %v2007 = vadd.s32 %v1999, %v2005
        %vm2008 = vc.u32 %v2006, %v2002
        %v2009 = vsel %vm2008, 1, 0
        %v2010 = vadd.s32 %v2006, %v2002
        %v2011 = vadd.s32 %v2007, %v2009
        %v2012 = vadd.s32 %v2011, %v2001
        %v2013 = vadd.s32 %v2012, %v2003
        %v2014 = vmul.u32 %v1969, %v1960
        %v2015 = vadd.s32 %v1991, %v2010
        %vm2016 = vc.u32 %v1991, %v2010
        %v2017 = vadd.s32 %v2013, 1
        %v2018 = vsel %vm2016, %v2017, %v2013
        %v2019 = vadd.s32 %v2014, %v2018
        %v2020 = vadd.s32 %v2019, 536870912
        %v2021 = vshrl.u32 %v2020, 30
        %v2022 = vshll.u32 %v2021, 30
        %v2023 = vsub.s32 %v2019, %v2022
        %vm2024 = vcmp.lt.s32.totalorder %v2023, 0
        %v2025 = vsub.s32 0, %v2023
        %v2026 = vsel %vm2024, %v2025, %v2023
        %v2027 = vclz %v2026
        %v2028 = vsub.s32 %v2027, 2
        %vm2029 = vcmp.gt.s32.totalorder 0, %v2028
        %v2030 = vsel %vm2029, 0, %v2028
        %v2031 = vsub.s32 32, %v2030
        %v2032 = vshll.u32 %v2023, %v2030
        %v2033 = vshrl.u32 %v2015, %v2031
        %v2034 = vor.u32 %v2032, %v2033
        %v2035 = vsub.s32 4294967266, %v2030
        %v2036 = vadd.s32 %v2035, 127
        %v2037 = vshll.u32 %v2036, 23
        %v2038 = vor.u32 4788187, %v2037
        %v2039 = vand.u32 2147483647, %v2038
        %v2041 = vcvt.s32.f32 %v2034
        %v2042 = vmul.f32 %v2041, %v2039
        %v2043 = vxor.u32 %v2042, 2147483648
        %v2044 = vsel %vm1923, %v2043, %v2042
        %v2045 = vsub.s32 4, %v2021
        %v2046 = vsel %vm1923, %v2045, %v2021
        %v2047 = vsel %vm1922, %v1919, %v2044
        %v2048 = vsel %vm1922, 0, %v2046
        %v2049 = vmul.f32 %v2047, %v2047
        %v2050 = vmul.f32 %v2049, -0.001358992
        %v2051 = vadd.f32 %v2050, 0.041655596
        %v2052 = vmul.f32 %v2049, %v2051
        %v2053 = vadd.f32 %v2052, -0.4999988
        %v2054 = vmul.f32 %v2049, %v2053
        %v2055 = vadd.f32 1.0, %v2054
        %v2056 = vmul.f32 %v2047, %v2047
        %v2057 = vmul.f32 %v2056, -0.00019511016
        %v2058 = vadd.f32 %v2057, 0.008332121
        %v2059 = vmul.f32 %v2056, %v2058
        %v2060 = vadd.f32 %v2059, -0.16666654
        %v2061 = vmul.f32 %v2056, %v2060
        %v2062 = vadd.f32 %v2061, 1.0
        %v2063 = vmul.f32 %v2062, %v2047
        %vm2064 = vweird.f32 %v1919
        %v2065 = vadd.s32 %v2048, 3
        %v2066 = vand.u32 %v2065, 3
        %vm2067 = vcmp.lt.s32.totalorder %v2066, 2
        %vm2068 = vcmp.eq.s32.totalorder %v2066, 0
        %v2069 = vxor.u32 %v2063, 2147483648
        %v2070 = vsel %vm2068, %v2055, %v2069
        %vm2071 = vcmp.eq.s32.totalorder %v2066, 2
        %v2072 = vxor.u32 %v2055, 2147483648
        %v2073 = vsel %vm2071, %v2072, %v2063
        %v2074 = vsel %vm2067, %v2070, %v2073
        %v2075 = vsel %vm2064, nan, %v2074
        %v2076 = vand.u32 2147483647, %v1920
        %vm2077 = vcmp.le.f32.partialorder %v2076, 0.7853982
        %vm2078 = vcmp.lt.s32.totalorder %v1920, 0
        %v2079 = vand.u32 %v1920, 2139095040
        %v2080 = vshrl.u32 %v2079, 23
        %v2081 = vsub.s32 %v2080, 127
        %v2082 = vand.u32 2147483647, %v1920
        %v2083 = vand.u32 %v2082, 8388607
        %v2084 = vor.u32 %v2083, 8388608
        %v2085 = vsub.s32 0, %v2084
        %v2086 = vadd.s32 %v2081, 1
        %vm2087 = vcmp.gt.s32.totalorder %v2086, 0
        %v2088 = vsel %vm2087, %v2086, 0
        %v2089 = vshrl.u32 %v2088, 5
        %v2090 = vand.u32 %v2088, 31
        %v2091 = vsub.s32 32, %v2090
        %v2092 = vshrl.u32 683565275, %v2091
        %v2093 = vshll.u32 683565275, %v2090
        %v2094 = vshrl.u32 2475754826, %v2091
        %v2095 = vor.u32 %v2093, %v2094
        %v2096 = vshll.u32 2475754826, %v2090
        %v2097 = vshrl.u32 2131351028, %v2091
        %v2098 = vor.u32 %v2096, %v2097
        %v2099 = vshll.u32 2131351028, %v2090
        %v2100 = vshrl.u32 2102212464, %v2091
        %v2101 = vor.u32 %v2099, %v2100
        %v2102 = vshll.u32 2102212464, %v2090
        %v2103 = vshrl.u32 920167782, %v2091
        %v2104 = vor.u32 %v2102, %v2103
        %v2105 = vshll.u32 920167782, %v2090
        %v2106 = vshrl.u32 1326507024, %v2091
        %v2107 = vor.u32 %v2105, %v2106
        %vm2108 = vcmp.lt.s32.totalorder %v2089, 1
        %vm2109 = vcmp.lt.s32.totalorder %v2089, 2
        %vm2110 = vcmp.lt.s32.totalorder %v2089, 3
        %vm2111 = vcmp.lt.s32.totalorder %v2089, 4
        %v2112 = vsel %vm2108, %v2092, %v2095
        %v2113 = vsel %vm2111, %v2101, 2102212464
        %v2114 = vsel %vm2110, %v2098, %v2113
        %v2115 = vsel %vm2109, %v2112, %v2114
        %v2116 = vsel %vm2108, %v2095, %v2098
        %v2117 = vsel %vm2111, %v2104, 920167782
        %v2118 = vsel %vm2110, %v2101, %v2117
        %v2119 = vsel %vm2109, %v2116, %v2118
        %v2120 = vsel %vm2108, %v2098, %v2101
        %v2121 = vsel %vm2111, %v2107, 1326507024
        %v2122 = vsel %vm2110, %v2104, %v2121
        %v2123 = vsel %vm2109, %v2120, %v2122
        %v2124 = vshll.u32 %v2084, 8
        %v2125 = vand.u32 %v2124, 65535
        %v2126 = vshrl.u32 %v2124, 16
        %v2127 = vand.u32 %v2123, 65535
        %v2128 = vshrl.u32 %v2123, 16
        %v2129 = vmul.u32 %v2125, %v2127
        %v2130 = vmul.u32 %v2125, %v2128
        %v2131 = vmul.u32 %v2126, %v2127
        %v2132 = vmul.u32 %v2126, %v2128
        %v2133 = vshll.u32 %v2130, 16
        %v2134 = vshrl.u32 %v2130, 16
        %v2135 = vshll.u32 %v2131, 16
        %v2136 = vshrl.u32 %v2131, 16
        %vm2137 = vc.u32 %v2129, %v2133
        %v2138 = vsel %vm2137, 1, 0
        %v2139 = vadd.s32 %v2129, %v2133
        %v2140 = vadd.s32 %v2132, %v2138
        %vm2141 = vc.u32 %v2139, %v2135
        %v2142 = vsel %vm2141, 1, 0
        %v2143 = vadd.s32 %v2139, %v2135
        %v2144 = vadd.s32 %v2140, %v2142
        %v2145 = vadd.s32 %v2144, %v2134
        %v2146 = vadd.s32 %v2145, %v2136
        %v2147 = vand.u32 %v2124, 65535
        %v2148 = vshrl.u32 %v2124, 16
        %v2149 = vand.u32 %v2119, 65535
        %v2150 = vshrl.u32 %v2119, 16
        %v2151 = vmul.u32 %v2147, %v2149
        %v2152 = vmul.u32 %v2147, %v2150
        %v2153 = vmul.u32 %v2148, %v2149
        %v2154 = vmul.u32 %v2148, %v2150
        %v2155 = vshll.u32 %v2152, 16
        %v2156 = vshrl.u32 %v2152, 16
        %v2157 = vshll.u32 %v2153, 16
        %v2158 = vshrl.u32 %v2153, 16
        %vm2159 = vc.u32 %v2151, %v2155
        %v2160 = vsel %vm2159, 1, 0
        %v2161 = vadd.s32 %v2151, %v2155
        %v2162 = vadd.s32 %v2154, %v2160
        %vm2163 = vc.u32 %v2161, %v2157
        %v2164 = vsel %vm2163, 1, 0
        %v2165 = vadd.s32 %v2161, %v2157
        %v2166 = vadd.s32 %v2162, %v2164
        %v2167 = vadd.s32 %v2166, %v2156
        %v2168 = vadd.s32 %v2167, %v2158
        %v2169 = vmul.u32 %v2124, %v2115
        %v2170 = vadd.s32 %v2146, %v2165
        %vm2171 = vc.u32 %v2146, %v2165
        %v2172 = vadd.s32 %v2168, 1
        %v2173 = vsel %vm2171, %v2172, %v2168
        %v2174 = vadd.s32 %v2169, %v2173
        %v2175 = vadd.s32 %v2174, 536870912
        %v2176 = vshrl.u32 %v2175, 30
        %v2177 = vshll.u32 %v2176, 30
        %v2178 = vsub.s32 %v2174, %v2177
        %vm2179 = vcmp.lt.s32.totalorder %v2178, 0
        %v2180 = vsub.s32 0, %v2178
        %v2181 = vsel %vm2179, %v2180, %v2178
        %v2182 = vclz %v2181
        %v2183 = vsub.s32 %v2182, 2
        %vm2184 = vcmp.gt.s32.totalorder 0, %v2183
        %v2185 = vsel %vm2184, 0, %v2183
        %v2186 = vsub.s32 32, %v2185
        %v2187 = vshll.u32 %v2178, %v2185
        %v2188 = vshrl.u32 %v2170, %v2186
        %v2189 = vor.u32 %v2187, %v2188
        %v2190 = vsub.s32 4294967266, %v2185
        %v2191 = vadd.s32 %v2190, 127
        %v2192 = vshll.u32 %v2191, 23
        %v2193 = vor.u32 4788187, %v2192
        %v2194 = vand.u32 2147483647, %v2193
        %v2196 = vcvt.s32.f32 %v2189
        %v2197 = vmul.f32 %v2196, %v2194
        %v2198 = vxor.u32 %v2197, 2147483648
        %v2199 = vsel %vm2078, %v2198, %v2197
        %v2200 = vsub.s32 4, %v2176
        %v2201 = vsel %vm2078, %v2200, %v2176
        %v2202 = vsel %vm2077, %v1920, %v2199
        %v2203 = vsel %vm2077, 0, %v2201
        %v2204 = vmul.f32 %v2202, %v2202
        %v2205 = vmul.f32 %v2204, -0.001358992
        %v2206 = vadd.f32 %v2205, 0.041655596
        %v2207 = vmul.f32 %v2204, %v2206
        %v2208 = vadd.f32 %v2207, -0.4999988
        %v2209 = vmul.f32 %v2204, %v2208
        %v2210 = vadd.f32 1.0, %v2209
        %v2211 = vmul.f32 %v2202, %v2202
        %v2212 = vmul.f32 %v2211, -0.00019511016
        %v2213 = vadd.f32 %v2212, 0.008332121
        %v2214 = vmul.f32 %v2211, %v2213
        %v2215 = vadd.f32 %v2214, -0.16666654
        %v2216 = vmul.f32 %v2211, %v2215
        %v2217 = vadd.f32 %v2216, 1.0
        %v2218 = vmul.f32 %v2217, %v2202
        %vm2219 = vweird.f32 %v1920
        %v2220 = vadd.s32 %v2203, 3
        %v2221 = vand.u32 %v2220, 3
        %vm2222 = vcmp.lt.s32.totalorder %v2221, 2
        %vm2223 = vcmp.eq.s32.totalorder %v2221, 0
        %v2224 = vxor.u32 %v2218, 2147483648
        %v2225 = vsel %vm2223, %v2210, %v2224
        %vm2226 = vcmp.eq.s32.totalorder %v2221, 2
        %v2227 = vxor.u32 %v2210, 2147483648
        %v2228 = vsel %vm2226, %v2227, %v2218
        %v2229 = vsel %vm2222, %v2225, %v2228
        %v2230 = vsel %vm2219, nan, %v2229
        %v2231 = vmul.f32 %v2075, %v2075
        %v2232 = vmul.f32 %v2230, %v2230
        %2234 = vset.pattern.permute.xlu0 0
        %2235 = vperm.xlu0 %2234, %v1913
        %v2236 = vpop.permute.xlu0 %2235
        %v2238 = vmul.f32 %v2236, %v2231
        %v2239 = vmul.f32 %v2236, %v2232
        %v2240 = vadd.f32 %v1908, %v2238
        %v2241 = vadd.f32 %v1909, %v2239
        %v2242 = vpack.c.bf16 %v2241, %v2240
        %2244 = vrot.lane.b32.xlu0 %v2242, 27
        %v2245 = vpop.permute.xlu0 %2244
        %v2246 = vrot.slane %v2245, 4
        %v2247 = vsel %vm1387, %v2246, %v2245
        %2249 = vst.msk [vmem:[#allocation2] sm:$0xff] %vm1392, %v2247
        %v2250 = vld [vmem:[#allocation2] sm:$0xff]
        %v2252 = vunpack.c.l.b16 %v2250
        %v2253 = vunpack.c.h.b16 %v2250
        %v2254 = vpack.c.b16 %v2252, %v2252
        %v2255 = vpack.c.b16 %v2253, %v2253
        %2256 = vrot.lane.b32.xlu0 %v2254, 125
        %v2257 = vpop.permute.xlu0 %2256
        %2258 = vrot.lane.b32.xlu0 %v2255, 125
        %v2259 = vpop.permute.xlu0 %2258
        %v2260 = vsel %vm1416, %v2257, %v2259
        %2261 = vrot.lane.b32.xlu0 %v2254, 122
        %v2262 = vpop.permute.xlu0 %2261
        %2263 = vrot.lane.b32.xlu0 %v2255, 122
        %v2264 = vpop.permute.xlu0 %2263
        %v2265 = vsel %vm1434, %v2262, %v2264
        %2266 = vrot.lane.b32.xlu0 %v2254, 119
        %v2267 = vpop.permute.xlu0 %2266
        %2268 = vrot.lane.b32.xlu0 %v2255, 119
        %v2269 = vpop.permute.xlu0 %2268
        %vm2270 = vcmask 973824
        %v2271 = vsel %vm2270, %v2267, %v2269
        %2272 = vrot.lane.b32.xlu0 %v2254, 116
        %v2273 = vpop.permute.xlu0 %2272
        %2274 = vrot.lane.b32.xlu0 %v2255, 116
        %v2275 = vpop.permute.xlu0 %2274
        %vm2276 = vcmask 949248
        %v2277 = vsel %vm2276, %v2273, %v2275
        %2278 = vrot.lane.b32.xlu0 %v2254, 113
        %v2279 = vpop.permute.xlu0 %2278
        %2280 = vrot.lane.b32.xlu0 %v2255, 113
        %v2281 = vpop.permute.xlu0 %2280
        %vm2282 = vcmask 924672
        %v2283 = vsel %vm2282, %v2279, %v2281
        %2284 = vrot.lane.b32.xlu0 %v2254, 110
        %v2285 = vpop.permute.xlu0 %2284
        %2286 = vrot.lane.b32.xlu0 %v2255, 110
        %v2287 = vpop.permute.xlu0 %2286
        %vm2288 = vcmask 900096
        %v2289 = vsel %vm2288, %v2285, %v2287
        %v2292 = vsel %vm1436, %v2254, %v2260
        %v2295 = vsel %vm1436, %v2255, %v2259
        %v2298 = vsel %vm1436, %v2265, %v2271
        %v2301 = vsel %vm1436, %v2264, %v2269
        %v2304 = vsel %vm1436, %v2277, %v2283
        %v2307 = vsel %vm1436, %v2275, %v2281
        %s2308 = scalar_lea.vmem %s8, 4
        %v2309 = vld [vmem:[%s2308] sm:$0xf]
        %s2310 = scalar_lea.vmem %s9, 8
        %v2311 = vld [vmem:[%s2310] sm:$0xff]
        %2313 = vset.pattern.permute.xlu0 0
        %2314 = vperm.xlu0 %2313, %v2311
        %v2315 = vpop.permute.xlu0 %2314
        %2323 = vrot.lane.b32.xlu0 %v2292, 110
        %v2324 = vpop.permute.xlu0 %2323
        %2325 = vrot.lane.b32.xlu0 %v2295, 110
        %v2326 = vpop.permute.xlu0 %2325
        %2327 = vrot.lane.b32.xlu0 %v2298, 110
        %v2328 = vpop.permute.xlu0 %2327
        %2329 = vrot.lane.b32.xlu0 %v2301, 110
        %v2330 = vpop.permute.xlu0 %2329
        %2331 = vrot.lane.b32.xlu0 %v2304, 110
        %v2332 = vpop.permute.xlu0 %2331
        %2333 = vrot.lane.b32.xlu0 %v2307, 110
        %v2334 = vpop.permute.xlu0 %2333
        %2335 = vrot.lane.b32.xlu0 %v2289, 110
        %v2336 = vpop.permute.xlu0 %2335
        %2337 = vrot.lane.b32.xlu0 %v2287, 110
        %v2338 = vpop.permute.xlu0 %2337
        %v2339 = vsel %vm2288, %v2324, %v2326
        %v2340 = vsel %vm2288, %v2328, %v2330
        %v2341 = vsel %vm2288, %v2332, %v2334
        %v2342 = vsel %vm2288, %v2336, %v2338
        %v2350 = vsel %vm1495, %v2309, 0
        %v2353 = vsel %vm1436, %v2342, 0
        %v2356 = vsel %vm1436, %v2338, 0
        %2358 = vmatpush.bf16.msra.mxu0 0
        %2359 = vmatpush.bf16.msra.mxu0 0
        %2360 = vmatpush.bf16.msra.mxu0 0
        %2361 = vmatpush.bf16.msra.mxu0 0
        %2362 = vmatpush.bf16.msra.mxu0 %v2353
        %2363 = vmatpush.bf16.msra.mxu0 %v2341
        %2364 = vmatpush.bf16.msra.mxu0 %v2340
        %2365 = vmatpush.bf16.msra.mxu0 %v2339
        %2366 = vmatmul.bf16.gmra.mxu0 %v2350
        %v2367 = vpop.f32.mrf.mxu0
        %v2368 = vadd.f32 %v2315, %v2367
        %v2369 = vpop.f32.mrf.mxu0
        %2370 = vdwg.mxu0
        %2371 = vmatpush.bf16.msra.mxu0 0
        %2372 = vmatpush.bf16.msra.mxu0 0
        %2373 = vmatpush.bf16.msra.mxu0 0
        %2374 = vmatpush.bf16.msra.mxu0 0
        %2375 = vmatpush.bf16.msra.mxu0 %v2356
        %2376 = vmatpush.bf16.msra.mxu0 %v2334
        %2377 = vmatpush.bf16.msra.mxu0 %v2330
        %2378 = vmatpush.bf16.msra.mxu0 %v2326
        %2379 = vmatmul.bf16.gmra.mxu0 %v2350
        %v2380 = vpop.f32.mrf.mxu0
        %v2381 = vadd.f32 %v2315, %v2380
        %v2382 = vpop.f32.mrf.mxu0
        %2383 = vdwg.mxu0
        %s2384 = scalar_lea.vmem %s10, 8
        %v2385 = vld [vmem:[%s2384] sm:$0xff]
        %s2386 = scalar_lea.vmem %s11, 8
        %v2387 = vld [vmem:[%s2386] sm:$0xff]
        %2389 = vset.pattern.permute.xlu0 0
        %2390 = vperm.xlu0 %2389, %v2385
        %v2391 = vpop.permute.xlu0 %2390
        %v2393 = vmul.f32 %v2391, %v2368
        %v2394 = vmul.f32 %v2391, %v2381
        %v2395 = vand.u32 2147483647, %v2393
        %vm2396 = vcmp.le.f32.partialorder %v2395, 0.7853982
        %vm2397 = vcmp.lt.s32.totalorder %v2393, 0
        %v2398 = vand.u32 %v2393, 2139095040
        %v2399 = vshrl.u32 %v2398, 23
        %v2400 = vsub.s32 %v2399, 127
        %v2401 = vand.u32 2147483647, %v2393
        %v2402 = vand.u32 %v2401, 8388607
        %v2403 = vor.u32 %v2402, 8388608
        %v2404 = vsub.s32 0, %v2403
        %v2405 = vadd.s32 %v2400, 1
        %vm2406 = vcmp.gt.s32.totalorder %v2405, 0
        %v2407 = vsel %vm2406, %v2405, 0
        %v2408 = vshrl.u32 %v2407, 5
        %v2409 = vand.u32 %v2407, 31
        %v2410 = vsub.s32 32, %v2409
        %v2411 = vshrl.u32 683565275, %v2410
        %v2412 = vshll.u32 683565275, %v2409
        %v2413 = vshrl.u32 2475754826, %v2410
        %v2414 = vor.u32 %v2412, %v2413
        %v2415 = vshll.u32 2475754826, %v2409
        %v2416 = vshrl.u32 2131351028, %v2410
        %v2417 = vor.u32 %v2415, %v2416
        %v2418 = vshll.u32 2131351028, %v2409
        %v2419 = vshrl.u32 2102212464, %v2410
        %v2420 = vor.u32 %v2418, %v2419
        %v2421 = vshll.u32 2102212464, %v2409
        %v2422 = vshrl.u32 920167782, %v2410
        %v2423 = vor.u32 %v2421, %v2422
        %v2424 = vshll.u32 920167782, %v2409
        %v2425 = vshrl.u32 1326507024, %v2410
        %v2426 = vor.u32 %v2424, %v2425
        %vm2427 = vcmp.lt.s32.totalorder %v2408, 1
        %vm2428 = vcmp.lt.s32.totalorder %v2408, 2
        %vm2429 = vcmp.lt.s32.totalorder %v2408, 3
        %vm2430 = vcmp.lt.s32.totalorder %v2408, 4
        %v2431 = vsel %vm2427, %v2411, %v2414
        %v2432 = vsel %vm2430, %v2420, 2102212464
        %v2433 = vsel %vm2429, %v2417, %v2432
        %v2434 = vsel %vm2428, %v2431, %v2433
        %v2435 = vsel %vm2427, %v2414, %v2417
        %v2436 = vsel %vm2430, %v2423, 920167782
        %v2437 = vsel %vm2429, %v2420, %v2436
        %v2438 = vsel %vm2428, %v2435, %v2437
        %v2439 = vsel %vm2427, %v2417, %v2420
        %v2440 = vsel %vm2430, %v2426, 1326507024
        %v2441 = vsel %vm2429, %v2423, %v2440
        %v2442 = vsel %vm2428, %v2439, %v2441
        %v2443 = vshll.u32 %v2403, 8
        %v2444 = vand.u32 %v2443, 65535
        %v2445 = vshrl.u32 %v2443, 16
        %v2446 = vand.u32 %v2442, 65535
        %v2447 = vshrl.u32 %v2442, 16
        %v2448 = vmul.u32 %v2444, %v2446
        %v2449 = vmul.u32 %v2444, %v2447
        %v2450 = vmul.u32 %v2445, %v2446
        %v2451 = vmul.u32 %v2445, %v2447
        %v2452 = vshll.u32 %v2449, 16
        %v2453 = vshrl.u32 %v2449, 16
        %v2454 = vshll.u32 %v2450, 16
        %v2455 = vshrl.u32 %v2450, 16
        %vm2456 = vc.u32 %v2448, %v2452
        %v2457 = vsel %vm2456, 1, 0
        %v2458 = vadd.s32 %v2448, %v2452
        %v2459 = vadd.s32 %v2451, %v2457
        %vm2460 = vc.u32 %v2458, %v2454
        %v2461 = vsel %vm2460, 1, 0
        %v2462 = vadd.s32 %v2458, %v2454
        %v2463 = vadd.s32 %v2459, %v2461
        %v2464 = vadd.s32 %v2463, %v2453
        %v2465 = vadd.s32 %v2464, %v2455
        %v2466 = vand.u32 %v2443, 65535
        %v2467 = vshrl.u32 %v2443, 16
        %v2468 = vand.u32 %v2438, 65535
        %v2469 = vshrl.u32 %v2438, 16
        %v2470 = vmul.u32 %v2466, %v2468
        %v2471 = vmul.u32 %v2466, %v2469
        %v2472 = vmul.u32 %v2467, %v2468
        %v2473 = vmul.u32 %v2467, %v2469
        %v2474 = vshll.u32 %v2471, 16
        %v2475 = vshrl.u32 %v2471, 16
        %v2476 = vshll.u32 %v2472, 16
        %v2477 = vshrl.u32 %v2472, 16
        %vm2478 = vc.u32 %v2470, %v2474
        %v2479 = vsel %vm2478, 1, 0
        %v2480 = vadd.s32 %v2470, %v2474
        %v2481 = vadd.s32 %v2473, %v2479
        %vm2482 = vc.u32 %v2480, %v2476
        %v2483 = vsel %vm2482, 1, 0
        %v2484 = vadd.s32 %v2480, %v2476
        %v2485 = vadd.s32 %v2481, %v2483
        %v2486 = vadd.s32 %v2485, %v2475
        %v2487 = vadd.s32 %v2486, %v2477
        %v2488 = vmul.u32 %v2443, %v2434
        %v2489 = vadd.s32 %v2465, %v2484
        %vm2490 = vc.u32 %v2465, %v2484
        %v2491 = vadd.s32 %v2487, 1
        %v2492 = vsel %vm2490, %v2491, %v2487
        %v2493 = vadd.s32 %v2488, %v2492
        %v2494 = vadd.s32 %v2493, 536870912
        %v2495 = vshrl.u32 %v2494, 30
        %v2496 = vshll.u32 %v2495, 30
        %v2497 = vsub.s32 %v2493, %v2496
        %vm2498 = vcmp.lt.s32.totalorder %v2497, 0
        %v2499 = vsub.s32 0, %v2497
        %v2500 = vsel %vm2498, %v2499, %v2497
        %v2501 = vclz %v2500
        %v2502 = vsub.s32 %v2501, 2
        %vm2503 = vcmp.gt.s32.totalorder 0, %v2502
        %v2504 = vsel %vm2503, 0, %v2502
        %v2505 = vsub.s32 32, %v2504
        %v2506 = vshll.u32 %v2497, %v2504
        %v2507 = vshrl.u32 %v2489, %v2505
        %v2508 = vor.u32 %v2506, %v2507
        %v2509 = vsub.s32 4294967266, %v2504
        %v2510 = vadd.s32 %v2509, 127
        %v2511 = vshll.u32 %v2510, 23
        %v2512 = vor.u32 4788187, %v2511
        %v2513 = vand.u32 2147483647, %v2512
        %v2515 = vcvt.s32.f32 %v2508
        %v2516 = vmul.f32 %v2515, %v2513
        %v2517 = vxor.u32 %v2516, 2147483648
        %v2518 = vsel %vm2397, %v2517, %v2516
        %v2519 = vsub.s32 4, %v2495
        %v2520 = vsel %vm2397, %v2519, %v2495
        %v2521 = vsel %vm2396, %v2393, %v2518
        %v2522 = vsel %vm2396, 0, %v2520
        %v2523 = vmul.f32 %v2521, %v2521
        %v2524 = vmul.f32 %v2523, -0.001358992
        %v2525 = vadd.f32 %v2524, 0.041655596
        %v2526 = vmul.f32 %v2523, %v2525
        %v2527 = vadd.f32 %v2526, -0.4999988
        %v2528 = vmul.f32 %v2523, %v2527
        %v2529 = vadd.f32 1.0, %v2528
        %v2530 = vmul.f32 %v2521, %v2521
        %v2531 = vmul.f32 %v2530, -0.00019511016
        %v2532 = vadd.f32 %v2531, 0.008332121
        %v2533 = vmul.f32 %v2530, %v2532
        %v2534 = vadd.f32 %v2533, -0.16666654
        %v2535 = vmul.f32 %v2530, %v2534
        %v2536 = vadd.f32 %v2535, 1.0
        %v2537 = vmul.f32 %v2536, %v2521
        %vm2538 = vweird.f32 %v2393
        %v2539 = vadd.s32 %v2522, 3
        %v2540 = vand.u32 %v2539, 3
        %vm2541 = vcmp.lt.s32.totalorder %v2540, 2
        %vm2542 = vcmp.eq.s32.totalorder %v2540, 0
        %v2543 = vxor.u32 %v2537, 2147483648
        %v2544 = vsel %vm2542, %v2529, %v2543
        %vm2545 = vcmp.eq.s32.totalorder %v2540, 2
        %v2546 = vxor.u32 %v2529, 2147483648
        %v2547 = vsel %vm2545, %v2546, %v2537
        %v2548 = vsel %vm2541, %v2544, %v2547
        %v2549 = vsel %vm2538, nan, %v2548
        %v2550 = vand.u32 2147483647, %v2394
        %vm2551 = vcmp.le.f32.partialorder %v2550, 0.7853982
        %vm2552 = vcmp.lt.s32.totalorder %v2394, 0
        %v2553 = vand.u32 %v2394, 2139095040
        %v2554 = vshrl.u32 %v2553, 23
        %v2555 = vsub.s32 %v2554, 127
        %v2556 = vand.u32 2147483647, %v2394
        %v2557 = vand.u32 %v2556, 8388607
        %v2558 = vor.u32 %v2557, 8388608
        %v2559 = vsub.s32 0, %v2558
        %v2560 = vadd.s32 %v2555, 1
        %vm2561 = vcmp.gt.s32.totalorder %v2560, 0
        %v2562 = vsel %vm2561, %v2560, 0
        %v2563 = vshrl.u32 %v2562, 5
        %v2564 = vand.u32 %v2562, 31
        %v2565 = vsub.s32 32, %v2564
        %v2566 = vshrl.u32 683565275, %v2565
        %v2567 = vshll.u32 683565275, %v2564
        %v2568 = vshrl.u32 2475754826, %v2565
        %v2569 = vor.u32 %v2567, %v2568
        %v2570 = vshll.u32 2475754826, %v2564
        %v2571 = vshrl.u32 2131351028, %v2565
        %v2572 = vor.u32 %v2570, %v2571
        %v2573 = vshll.u32 2131351028, %v2564
        %v2574 = vshrl.u32 2102212464, %v2565
        %v2575 = vor.u32 %v2573, %v2574
        %v2576 = vshll.u32 2102212464, %v2564
        %v2577 = vshrl.u32 920167782, %v2565
        %v2578 = vor.u32 %v2576, %v2577
        %v2579 = vshll.u32 920167782, %v2564
        %v2580 = vshrl.u32 1326507024, %v2565
        %v2581 = vor.u32 %v2579, %v2580
        %vm2582 = vcmp.lt.s32.totalorder %v2563, 1
        %vm2583 = vcmp.lt.s32.totalorder %v2563, 2
        %vm2584 = vcmp.lt.s32.totalorder %v2563, 3
        %vm2585 = vcmp.lt.s32.totalorder %v2563, 4
        %v2586 = vsel %vm2582, %v2566, %v2569
        %v2587 = vsel %vm2585, %v2575, 2102212464
        %v2588 = vsel %vm2584, %v2572, %v2587
        %v2589 = vsel %vm2583, %v2586, %v2588
        %v2590 = vsel %vm2582, %v2569, %v2572
        %v2591 = vsel %vm2585, %v2578, 920167782
        %v2592 = vsel %vm2584, %v2575, %v2591
        %v2593 = vsel %vm2583, %v2590, %v2592
        %v2594 = vsel %vm2582, %v2572, %v2575
        %v2595 = vsel %vm2585, %v2581, 1326507024
        %v2596 = vsel %vm2584, %v2578, %v2595
        %v2597 = vsel %vm2583, %v2594, %v2596
        %v2598 = vshll.u32 %v2558, 8
        %v2599 = vand.u32 %v2598, 65535
        %v2600 = vshrl.u32 %v2598, 16
        %v2601 = vand.u32 %v2597, 65535
        %v2602 = vshrl.u32 %v2597, 16
        %v2603 = vmul.u32 %v2599, %v2601
        %v2604 = vmul.u32 %v2599, %v2602
        %v2605 = vmul.u32 %v2600, %v2601
        %v2606 = vmul.u32 %v2600, %v2602
        %v2607 = vshll.u32 %v2604, 16
        %v2608 = vshrl.u32 %v2604, 16
        %v2609 = vshll.u32 %v2605, 16
        %v2610 = vshrl.u32 %v2605, 16
        %vm2611 = vc.u32 %v2603, %v2607
        %v2612 = vsel %vm2611, 1, 0
        %v2613 = vadd.s32 %v2603, %v2607
        %v2614 = vadd.s32 %v2606, %v2612
        %vm2615 = vc.u32 %v2613, %v2609
        %v2616 = vsel %vm2615, 1, 0
        %v2617 = vadd.s32 %v2613, %v2609
        %v2618 = vadd.s32 %v2614, %v2616
        %v2619 = vadd.s32 %v2618, %v2608
        %v2620 = vadd.s32 %v2619, %v2610
        %v2621 = vand.u32 %v2598, 65535
        %v2622 = vshrl.u32 %v2598, 16
        %v2623 = vand.u32 %v2593, 65535
        %v2624 = vshrl.u32 %v2593, 16
        %v2625 = vmul.u32 %v2621, %v2623
        %v2626 = vmul.u32 %v2621, %v2624
        %v2627 = vmul.u32 %v2622, %v2623
        %v2628 = vmul.u32 %v2622, %v2624
        %v2629 = vshll.u32 %v2626, 16
        %v2630 = vshrl.u32 %v2626, 16
        %v2631 = vshll.u32 %v2627, 16
        %v2632 = vshrl.u32 %v2627, 16
        %vm2633 = vc.u32 %v2625, %v2629
        %v2634 = vsel %vm2633, 1, 0
        %v2635 = vadd.s32 %v2625, %v2629
        %v2636 = vadd.s32 %v2628, %v2634
        %vm2637 = vc.u32 %v2635, %v2631
        %v2638 = vsel %vm2637, 1, 0
        %v2639 = vadd.s32 %v2635, %v2631
        %v2640 = vadd.s32 %v2636, %v2638
        %v2641 = vadd.s32 %v2640, %v2630
        %v2642 = vadd.s32 %v2641, %v2632
        %v2643 = vmul.u32 %v2598, %v2589
        %v2644 = vadd.s32 %v2620, %v2639
        %vm2645 = vc.u32 %v2620, %v2639
        %v2646 = vadd.s32 %v2642, 1
        %v2647 = vsel %vm2645, %v2646, %v2642
        %v2648 = vadd.s32 %v2643, %v2647
        %v2649 = vadd.s32 %v2648, 536870912
        %v2650 = vshrl.u32 %v2649, 30
        %v2651 = vshll.u32 %v2650, 30
        %v2652 = vsub.s32 %v2648, %v2651
        %vm2653 = vcmp.lt.s32.totalorder %v2652, 0
        %v2654 = vsub.s32 0, %v2652
        %v2655 = vsel %vm2653, %v2654, %v2652
        %v2656 = vclz %v2655
        %v2657 = vsub.s32 %v2656, 2
        %vm2658 = vcmp.gt.s32.totalorder 0, %v2657
        %v2659 = vsel %vm2658, 0, %v2657
        %v2660 = vsub.s32 32, %v2659
        %v2661 = vshll.u32 %v2652, %v2659
        %v2662 = vshrl.u32 %v2644, %v2660
        %v2663 = vor.u32 %v2661, %v2662
        %v2664 = vsub.s32 4294967266, %v2659
        %v2665 = vadd.s32 %v2664, 127
        %v2666 = vshll.u32 %v2665, 23
        %v2667 = vor.u32 4788187, %v2666
        %v2668 = vand.u32 2147483647, %v2667
        %v2670 = vcvt.s32.f32 %v2663
        %v2671 = vmul.f32 %v2670, %v2668
        %v2672 = vxor.u32 %v2671, 2147483648
        %v2673 = vsel %vm2552, %v2672, %v2671
        %v2674 = vsub.s32 4, %v2650
        %v2675 = vsel %vm2552, %v2674, %v2650
        %v2676 = vsel %vm2551, %v2394, %v2673
        %v2677 = vsel %vm2551, 0, %v2675
        %v2678 = vmul.f32 %v2676, %v2676
        %v2679 = vmul.f32 %v2678, -0.001358992
        %v2680 = vadd.f32 %v2679, 0.041655596
        %v2681 = vmul.f32 %v2678, %v2680
        %v2682 = vadd.f32 %v2681, -0.4999988
        %v2683 = vmul.f32 %v2678, %v2682
        %v2684 = vadd.f32 1.0, %v2683
        %v2685 = vmul.f32 %v2676, %v2676
        %v2686 = vmul.f32 %v2685, -0.00019511016
        %v2687 = vadd.f32 %v2686, 0.008332121
        %v2688 = vmul.f32 %v2685, %v2687
        %v2689 = vadd.f32 %v2688, -0.16666654
        %v2690 = vmul.f32 %v2685, %v2689
        %v2691 = vadd.f32 %v2690, 1.0
        %v2692 = vmul.f32 %v2691, %v2676
        %vm2693 = vweird.f32 %v2394
        %v2694 = vadd.s32 %v2677, 3
        %v2695 = vand.u32 %v2694, 3
        %vm2696 = vcmp.lt.s32.totalorder %v2695, 2
        %vm2697 = vcmp.eq.s32.totalorder %v2695, 0
        %v2698 = vxor.u32 %v2692, 2147483648
        %v2699 = vsel %vm2697, %v2684, %v2698
        %vm2700 = vcmp.eq.s32.totalorder %v2695, 2
        %v2701 = vxor.u32 %v2684, 2147483648
        %v2702 = vsel %vm2700, %v2701, %v2692
        %v2703 = vsel %vm2696, %v2699, %v2702
        %v2704 = vsel %vm2693, nan, %v2703
        %v2705 = vmul.f32 %v2549, %v2549
        %v2706 = vmul.f32 %v2704, %v2704
        %2708 = vset.pattern.permute.xlu0 0
        %2709 = vperm.xlu0 %2708, %v2387
        %v2710 = vpop.permute.xlu0 %2709
        %v2712 = vmul.f32 %v2710, %v2705
        %v2713 = vmul.f32 %v2710, %v2706
        %v2714 = vadd.f32 %v2368, %v2712
        %v2715 = vadd.f32 %v2381, %v2713
        %s2716 = scalar_lea.vmem %s12, 4
        %v2717 = vld [vmem:[%s2716] sm:$0xf]
        %v2718 = vpack.c.bf16 %v2714, %v2714
        %v2719 = vpack.c.bf16 %v2715, %v2715
        %s2720 = scalar_lea.vmem %s13, 8
        %v2721 = vld [vmem:[%s2720] sm:$0xff]
        %2723 = vset.pattern.permute.xlu0 0
        %2724 = vperm.xlu0 %2723, %v2721
        %v2725 = vpop.permute.xlu0 %2724
        %v2728 = vsel %vm1870, %v2717, 0
        %v2731 = vsel %vm1436, %v2718, 0
        %v2734 = vsel %vm1436, %v2719, 0
        %2736 = vmatpush.bf16.msra.mxu0 0
        %2737 = vmatpush.bf16.msra.mxu0 0
        %2738 = vmatpush.bf16.msra.mxu0 0
        %2739 = vmatpush.bf16.msra.mxu0 0
        %2740 = vmatpush.bf16.msra.mxu0 0
        %2741 = vmatpush.bf16.msra.mxu0 0
        %2742 = vmatpush.bf16.msra.mxu0 0
        %2743 = vmatpush.bf16.msra.mxu0 %v2731
        %2744 = vmatmul.bf16.gmra.mxu0 %v2728
        %v2745 = vpop.f32.mrf.mxu0
        %v2746 = vadd.f32 %v2725, %v2745
        %v2747 = vpop.f32.mrf.mxu0
        %2748 = vdwg.mxu0
        %2749 = vmatpush.bf16.msra.mxu0 0
        %2750 = vmatpush.bf16.msra.mxu0 0
        %2751 = vmatpush.bf16.msra.mxu0 0
        %2752 = vmatpush.bf16.msra.mxu0 0
        %2753 = vmatpush.bf16.msra.mxu0 0
        %2754 = vmatpush.bf16.msra.mxu0 0
        %2755 = vmatpush.bf16.msra.mxu0 0
        %2756 = vmatpush.bf16.msra.mxu0 %v2734
        %2757 = vmatmul.bf16.gmra.mxu0 %v2728
        %v2758 = vpop.f32.mrf.mxu0
        %v2759 = vadd.f32 %v2725, %v2758
        %v2760 = vpop.f32.mrf.mxu0
        %2761 = vdwg.mxu0
        %v2762 = vadd.f32 %v1908, %v2746
        %v2763 = vadd.f32 %v1909, %v2759
        %v2764 = vsel %vm1042, %v2762, 0.0
        %v2765 = vsel %vm1043, %v2763, 0.0
        %s2766 = scalar_lea.vmem %s6, 16
        %v2767 = vld [vmem:[%s2766] sm:$0xff]
        %s2768 = scalar_lea.vmem %s7, 16
        %v2769 = vld [vmem:[%s2768] sm:$0xff]
        %2771 = vset.pattern.permute.xlu0 0
        %2772 = vperm.xlu0 %2771, %v2767
        %v2773 = vpop.permute.xlu0 %2772
        %v2775 = vmul.f32 %v2773, %v2764
        %v2776 = vmul.f32 %v2773, %v2765
        %v2777 = vand.u32 2147483647, %v2775
        %vm2778 = vcmp.le.f32.partialorder %v2777, 0.7853982
        %vm2779 = vcmp.lt.s32.totalorder %v2775, 0
        %v2780 = vand.u32 %v2775, 2139095040
        %v2781 = vshrl.u32 %v2780, 23
        %v2782 = vsub.s32 %v2781, 127
        %v2783 = vand.u32 2147483647, %v2775
        %v2784 = vand.u32 %v2783, 8388607
        %v2785 = vor.u32 %v2784, 8388608
        %v2786 = vsub.s32 0, %v2785
        %v2787 = vadd.s32 %v2782, 1
        %vm2788 = vcmp.gt.s32.totalorder %v2787, 0
        %v2789 = vsel %vm2788, %v2787, 0
        %v2790 = vshrl.u32 %v2789, 5
        %v2791 = vand.u32 %v2789, 31
        %v2792 = vsub.s32 32, %v2791
        %v2793 = vshrl.u32 683565275, %v2792
        %v2794 = vshll.u32 683565275, %v2791
        %v2795 = vshrl.u32 2475754826, %v2792
        %v2796 = vor.u32 %v2794, %v2795
        %v2797 = vshll.u32 2475754826, %v2791
        %v2798 = vshrl.u32 2131351028, %v2792
        %v2799 = vor.u32 %v2797, %v2798
        %v2800 = vshll.u32 2131351028, %v2791
        %v2801 = vshrl.u32 2102212464, %v2792
        %v2802 = vor.u32 %v2800, %v2801
        %v2803 = vshll.u32 2102212464, %v2791
        %v2804 = vshrl.u32 920167782, %v2792
        %v2805 = vor.u32 %v2803, %v2804
        %v2806 = vshll.u32 920167782, %v2791
        %v2807 = vshrl.u32 1326507024, %v2792
        %v2808 = vor.u32 %v2806, %v2807
        %vm2809 = vcmp.lt.s32.totalorder %v2790, 1
        %vm2810 = vcmp.lt.s32.totalorder %v2790, 2
        %vm2811 = vcmp.lt.s32.totalorder %v2790, 3
        %vm2812 = vcmp.lt.s32.totalorder %v2790, 4
        %v2813 = vsel %vm2809, %v2793, %v2796
        %v2814 = vsel %vm2812, %v2802, 2102212464
        %v2815 = vsel %vm2811, %v2799, %v2814
        %v2816 = vsel %vm2810, %v2813, %v2815
        %v2817 = vsel %vm2809, %v2796, %v2799
        %v2818 = vsel %vm2812, %v2805, 920167782
        %v2819 = vsel %vm2811, %v2802, %v2818
        %v2820 = vsel %vm2810, %v2817, %v2819
        %v2821 = vsel %vm2809, %v2799, %v2802
        %v2822 = vsel %vm2812, %v2808, 1326507024
        %v2823 = vsel %vm2811, %v2805, %v2822
        %v2824 = vsel %vm2810, %v2821, %v2823
        %v2825 = vshll.u32 %v2785, 8
        %v2826 = vand.u32 %v2825, 65535
        %v2827 = vshrl.u32 %v2825, 16
        %v2828 = vand.u32 %v2824, 65535
        %v2829 = vshrl.u32 %v2824, 16
        %v2830 = vmul.u32 %v2826, %v2828
        %v2831 = vmul.u32 %v2826, %v2829
        %v2832 = vmul.u32 %v2827, %v2828
        %v2833 = vmul.u32 %v2827, %v2829
        %v2834 = vshll.u32 %v2831, 16
        %v2835 = vshrl.u32 %v2831, 16
        %v2836 = vshll.u32 %v2832, 16
        %v2837 = vshrl.u32 %v2832, 16
        %vm2838 = vc.u32 %v2830, %v2834
        %v2839 = vsel %vm2838, 1, 0
        %v2840 = vadd.s32 %v2830, %v2834
        %v2841 = vadd.s32 %v2833, %v2839
        %vm2842 = vc.u32 %v2840, %v2836
        %v2843 = vsel %vm2842, 1, 0
        %v2844 = vadd.s32 %v2840, %v2836
        %v2845 = vadd.s32 %v2841, %v2843
        %v2846 = vadd.s32 %v2845, %v2835
        %v2847 = vadd.s32 %v2846, %v2837
        %v2848 = vand.u32 %v2825, 65535
        %v2849 = vshrl.u32 %v2825, 16
        %v2850 = vand.u32 %v2820, 65535
        %v2851 = vshrl.u32 %v2820, 16
        %v2852 = vmul.u32 %v2848, %v2850
        %v2853 = vmul.u32 %v2848, %v2851
        %v2854 = vmul.u32 %v2849, %v2850
        %v2855 = vmul.u32 %v2849, %v2851
        %v2856 = vshll.u32 %v2853, 16
        %v2857 = vshrl.u32 %v2853, 16
        %v2858 = vshll.u32 %v2854, 16
        %v2859 = vshrl.u32 %v2854, 16
        %vm2860 = vc.u32 %v2852, %v2856
        %v2861 = vsel %vm2860, 1, 0
        %v2862 = vadd.s32 %v2852, %v2856
        %v2863 = vadd.s32 %v2855, %v2861
        %vm2864 = vc.u32 %v2862, %v2858
        %v2865 = vsel %vm2864, 1, 0
        %v2866 = vadd.s32 %v2862, %v2858
        %v2867 = vadd.s32 %v2863, %v2865
        %v2868 = vadd.s32 %v2867, %v2857
        %v2869 = vadd.s32 %v2868, %v2859
        %v2870 = vmul.u32 %v2825, %v2816
        %v2871 = vadd.s32 %v2847, %v2866
        %vm2872 = vc.u32 %v2847, %v2866
        %v2873 = vadd.s32 %v2869, 1
        %v2874 = vsel %vm2872, %v2873, %v2869
        %v2875 = vadd.s32 %v2870, %v2874
        %v2876 = vadd.s32 %v2875, 536870912
        %v2877 = vshrl.u32 %v2876, 30
        %v2878 = vshll.u32 %v2877, 30
        %v2879 = vsub.s32 %v2875, %v2878
        %vm2880 = vcmp.lt.s32.totalorder %v2879, 0
        %v2881 = vsub.s32 0, %v2879
        %v2882 = vsel %vm2880, %v2881, %v2879
        %v2883 = vclz %v2882
        %v2884 = vsub.s32 %v2883, 2
        %vm2885 = vcmp.gt.s32.totalorder 0, %v2884
        %v2886 = vsel %vm2885, 0, %v2884
        %v2887 = vsub.s32 32, %v2886
        %v2888 = vshll.u32 %v2879, %v2886
        %v2889 = vshrl.u32 %v2871, %v2887
        %v2890 = vor.u32 %v2888, %v2889
        %v2891 = vsub.s32 4294967266, %v2886
        %v2892 = vadd.s32 %v2891, 127
        %v2893 = vshll.u32 %v2892, 23
        %v2894 = vor.u32 4788187, %v2893
        %v2895 = vand.u32 2147483647, %v2894
        %v2897 = vcvt.s32.f32 %v2890
        %v2898 = vmul.f32 %v2897, %v2895
        %v2899 = vxor.u32 %v2898, 2147483648
        %v2900 = vsel %vm2779, %v2899, %v2898
        %v2901 = vsub.s32 4, %v2877
        %v2902 = vsel %vm2779, %v2901, %v2877
        %v2903 = vsel %vm2778, %v2775, %v2900
        %v2904 = vsel %vm2778, 0, %v2902
        %v2905 = vmul.f32 %v2903, %v2903
        %v2906 = vmul.f32 %v2905, -0.001358992
        %v2907 = vadd.f32 %v2906, 0.041655596
        %v2908 = vmul.f32 %v2905, %v2907
        %v2909 = vadd.f32 %v2908, -0.4999988
        %v2910 = vmul.f32 %v2905, %v2909
        %v2911 = vadd.f32 1.0, %v2910
        %v2912 = vmul.f32 %v2903, %v2903
        %v2913 = vmul.f32 %v2912, -0.00019511016
        %v2914 = vadd.f32 %v2913, 0.008332121
        %v2915 = vmul.f32 %v2912, %v2914
        %v2916 = vadd.f32 %v2915, -0.16666654
        %v2917 = vmul.f32 %v2912, %v2916
        %v2918 = vadd.f32 %v2917, 1.0
        %v2919 = vmul.f32 %v2918, %v2903
        %vm2920 = vweird.f32 %v2775
        %v2921 = vadd.s32 %v2904, 3
        %v2922 = vand.u32 %v2921, 3
        %vm2923 = vcmp.lt.s32.totalorder %v2922, 2
        %vm2924 = vcmp.eq.s32.totalorder %v2922, 0
        %v2925 = vxor.u32 %v2919, 2147483648
        %v2926 = vsel %vm2924, %v2911, %v2925
        %vm2927 = vcmp.eq.s32.totalorder %v2922, 2
        %v2928 = vxor.u32 %v2911, 2147483648
        %v2929 = vsel %vm2927, %v2928, %v2919
        %v2930 = vsel %vm2923, %v2926, %v2929
        %v2931 = vsel %vm2920, nan, %v2930
        %v2932 = vand.u32 2147483647, %v2776
        %vm2933 = vcmp.le.f32.partialorder %v2932, 0.7853982
        %vm2934 = vcmp.lt.s32.totalorder %v2776, 0
        %v2935 = vand.u32 %v2776, 2139095040
        %v2936 = vshrl.u32 %v2935, 23
        %v2937 = vsub.s32 %v2936, 127
        %v2938 = vand.u32 2147483647, %v2776
        %v2939 = vand.u32 %v2938, 8388607
        %v2940 = vor.u32 %v2939, 8388608
        %v2941 = vsub.s32 0, %v2940
        %v2942 = vadd.s32 %v2937, 1
        %vm2943 = vcmp.gt.s32.totalorder %v2942, 0
        %v2944 = vsel %vm2943, %v2942, 0
        %v2945 = vshrl.u32 %v2944, 5
        %v2946 = vand.u32 %v2944, 31
        %v2947 = vsub.s32 32, %v2946
        %v2948 = vshrl.u32 683565275, %v2947
        %v2949 = vshll.u32 683565275, %v2946
        %v2950 = vshrl.u32 2475754826, %v2947
        %v2951 = vor.u32 %v2949, %v2950
        %v2952 = vshll.u32 2475754826, %v2946
        %v2953 = vshrl.u32 2131351028, %v2947
        %v2954 = vor.u32 %v2952, %v2953
        %v2955 = vshll.u32 2131351028, %v2946
        %v2956 = vshrl.u32 2102212464, %v2947
        %v2957 = vor.u32 %v2955, %v2956
        %v2958 = vshll.u32 2102212464, %v2946
        %v2959 = vshrl.u32 920167782, %v2947
        %v2960 = vor.u32 %v2958, %v2959
        %v2961 = vshll.u32 920167782, %v2946
        %v2962 = vshrl.u32 1326507024, %v2947
        %v2963 = vor.u32 %v2961, %v2962
        %vm2964 = vcmp.lt.s32.totalorder %v2945, 1
        %vm2965 = vcmp.lt.s32.totalorder %v2945, 2
        %vm2966 = vcmp.lt.s32.totalorder %v2945, 3
        %vm2967 = vcmp.lt.s32.totalorder %v2945, 4
        %v2968 = vsel %vm2964, %v2948, %v2951
        %v2969 = vsel %vm2967, %v2957, 2102212464
        %v2970 = vsel %vm2966, %v2954, %v2969
        %v2971 = vsel %vm2965, %v2968, %v2970
        %v2972 = vsel %vm2964, %v2951, %v2954
        %v2973 = vsel %vm2967, %v2960, 920167782
        %v2974 = vsel %vm2966, %v2957, %v2973
        %v2975 = vsel %vm2965, %v2972, %v2974
        %v2976 = vsel %vm2964, %v2954, %v2957
        %v2977 = vsel %vm2967, %v2963, 1326507024
        %v2978 = vsel %vm2966, %v2960, %v2977
        %v2979 = vsel %vm2965, %v2976, %v2978
        %v2980 = vshll.u32 %v2940, 8
        %v2981 = vand.u32 %v2980, 65535
        %v2982 = vshrl.u32 %v2980, 16
        %v2983 = vand.u32 %v2979, 65535
        %v2984 = vshrl.u32 %v2979, 16
        %v2985 = vmul.u32 %v2981, %v2983
        %v2986 = vmul.u32 %v2981, %v2984
        %v2987 = vmul.u32 %v2982, %v2983
        %v2988 = vmul.u32 %v2982, %v2984
        %v2989 = vshll.u32 %v2986, 16
        %v2990 = vshrl.u32 %v2986, 16
        %v2991 = vshll.u32 %v2987, 16
        %v2992 = vshrl.u32 %v2987, 16
        %vm2993 = vc.u32 %v2985, %v2989
        %v2994 = vsel %vm2993, 1, 0
        %v2995 = vadd.s32 %v2985, %v2989
        %v2996 = vadd.s32 %v2988, %v2994
        %vm2997 = vc.u32 %v2995, %v2991
        %v2998 = vsel %vm2997, 1, 0
        %v2999 = vadd.s32 %v2995, %v2991
        %v3000 = vadd.s32 %v2996, %v2998
        %v3001 = vadd.s32 %v3000, %v2990
        %v3002 = vadd.s32 %v3001, %v2992
        %v3003 = vand.u32 %v2980, 65535
        %v3004 = vshrl.u32 %v2980, 16
        %v3005 = vand.u32 %v2975, 65535
        %v3006 = vshrl.u32 %v2975, 16
        %v3007 = vmul.u32 %v3003, %v3005
        %v3008 = vmul.u32 %v3003, %v3006
        %v3009 = vmul.u32 %v3004, %v3005
        %v3010 = vmul.u32 %v3004, %v3006
        %v3011 = vshll.u32 %v3008, 16
        %v3012 = vshrl.u32 %v3008, 16
        %v3013 = vshll.u32 %v3009, 16
        %v3014 = vshrl.u32 %v3009, 16
        %vm3015 = vc.u32 %v3007, %v3011
        %v3016 = vsel %vm3015, 1, 0
        %v3017 = vadd.s32 %v3007, %v3011
        %v3018 = vadd.s32 %v3010, %v3016
        %vm3019 = vc.u32 %v3017, %v3013
        %v3020 = vsel %vm3019, 1, 0
        %v3021 = vadd.s32 %v3017, %v3013
        %v3022 = vadd.s32 %v3018, %v3020
        %v3023 = vadd.s32 %v3022, %v3012
        %v3024 = vadd.s32 %v3023, %v3014
        %v3025 = vmul.u32 %v2980, %v2971
        %v3026 = vadd.s32 %v3002, %v3021
        %vm3027 = vc.u32 %v3002, %v3021
        %v3028 = vadd.s32 %v3024, 1
        %v3029 = vsel %vm3027, %v3028, %v3024
        %v3030 = vadd.s32 %v3025, %v3029
        %v3031 = vadd.s32 %v3030, 536870912
        %v3032 = vshrl.u32 %v3031, 30
        %v3033 = vshll.u32 %v3032, 30
        %v3034 = vsub.s32 %v3030, %v3033
        %vm3035 = vcmp.lt.s32.totalorder %v3034, 0
        %v3036 = vsub.s32 0, %v3034
        %v3037 = vsel %vm3035, %v3036, %v3034
        %v3038 = vclz %v3037
        %v3039 = vsub.s32 %v3038, 2
        %vm3040 = vcmp.gt.s32.totalorder 0, %v3039
        %v3041 = vsel %vm3040, 0, %v3039
        %v3042 = vsub.s32 32, %v3041
        %v3043 = vshll.u32 %v3034, %v3041
        %v3044 = vshrl.u32 %v3026, %v3042
        %v3045 = vor.u32 %v3043, %v3044
        %v3046 = vsub.s32 4294967266, %v3041
        %v3047 = vadd.s32 %v3046, 127
        %v3048 = vshll.u32 %v3047, 23
        %v3049 = vor.u32 4788187, %v3048
        %v3050 = vand.u32 2147483647, %v3049
        %v3052 = vcvt.s32.f32 %v3045
        %v3053 = vmul.f32 %v3052, %v3050
        %v3054 = vxor.u32 %v3053, 2147483648
        %v3055 = vsel %vm2934, %v3054, %v3053
        %v3056 = vsub.s32 4, %v3032
        %v3057 = vsel %vm2934, %v3056, %v3032
        %v3058 = vsel %vm2933, %v2776, %v3055
        %v3059 = vsel %vm2933, 0, %v3057
        %v3060 = vmul.f32 %v3058, %v3058
        %v3061 = vmul.f32 %v3060, -0.001358992
        %v3062 = vadd.f32 %v3061, 0.041655596
        %v3063 = vmul.f32 %v3060, %v3062
        %v3064 = vadd.f32 %v3063, -0.4999988
        %v3065 = vmul.f32 %v3060, %v3064
        %v3066 = vadd.f32 1.0, %v3065
        %v3067 = vmul.f32 %v3058, %v3058
        %v3068 = vmul.f32 %v3067, -0.00019511016
        %v3069 = vadd.f32 %v3068, 0.008332121
        %v3070 = vmul.f32 %v3067, %v3069
        %v3071 = vadd.f32 %v3070, -0.16666654
        %v3072 = vmul.f32 %v3067, %v3071
        %v3073 = vadd.f32 %v3072, 1.0
        %v3074 = vmul.f32 %v3073, %v3058
        %vm3075 = vweird.f32 %v2776
        %v3076 = vadd.s32 %v3059, 3
        %v3077 = vand.u32 %v3076, 3
        %vm3078 = vcmp.lt.s32.totalorder %v3077, 2
        %vm3079 = vcmp.eq.s32.totalorder %v3077, 0
        %v3080 = vxor.u32 %v3074, 2147483648
        %v3081 = vsel %vm3079, %v3066, %v3080
        %vm3082 = vcmp.eq.s32.totalorder %v3077, 2
        %v3083 = vxor.u32 %v3066, 2147483648
        %v3084 = vsel %vm3082, %v3083, %v3074
        %v3085 = vsel %vm3078, %v3081, %v3084
        %v3086 = vsel %vm3075, nan, %v3085
        %v3087 = vmul.f32 %v2931, %v2931
        %v3088 = vmul.f32 %v3086, %v3086
        %3090 = vset.pattern.permute.xlu0 0
        %3091 = vperm.xlu0 %3090, %v2769
        %v3092 = vpop.permute.xlu0 %3091
        %v3094 = vmul.f32 %v3092, %v3087
        %v3095 = vmul.f32 %v3092, %v3088
        %v3096 = vadd.f32 %v2764, %v3094
        %v3097 = vadd.f32 %v2765, %v3095
        %v3098 = vpack.c.bf16 %v3097, %v3096
        %3100 = vrot.lane.b32.xlu0 %v3098, 27
        %v3101 = vpop.permute.xlu0 %3100
        %v3102 = vrot.slane %v3101, 4
        %v3103 = vsel %vm1387, %v3102, %v3101
        %3105 = vst.msk [vmem:[#allocation2] sm:$0xff] %vm1392, %v3103
        %v3106 = vld [vmem:[#allocation2] sm:$0xff]
        %v3107 = vld [vmem:[#allocation2 + $0x8] sm:$0xf]
        %v3109 = vunpack.c.l.b16 %v3106
        %v3110 = vunpack.c.h.b16 %v3106
        %v3111 = vpack.c.b16 %v3109, %v3109
        %v3112 = vpack.c.b16 %v3110, %v3110
        %3113 = vrot.lane.b32.xlu0 %v3111, 119
        %v3114 = vpop.permute.xlu0 %3113
        %3115 = vrot.lane.b32.xlu0 %v3112, 119
        %v3116 = vpop.permute.xlu0 %3115
        %v3117 = vsel %vm2270, %v3114, %v3116
        %3118 = vrot.lane.b32.xlu0 %v3111, 110
        %v3119 = vpop.permute.xlu0 %3118
        %3120 = vrot.lane.b32.xlu0 %v3112, 110
        %v3121 = vpop.permute.xlu0 %3120
        %v3122 = vsel %vm2288, %v3119, %v3121
        %3123 = vrot.lane.b32.xlu0 %v3111, 101
        %v3124 = vpop.permute.xlu0 %3123
        %3125 = vrot.lane.b32.xlu0 %v3112, 101
        %v3126 = vpop.permute.xlu0 %3125
        %vm3127 = vcmask 826368
        %v3128 = vsel %vm3127, %v3124, %v3126
        %3129 = vrot.lane.b32.xlu0 %v3111, 92
        %v3130 = vpop.permute.xlu0 %3129
        %3131 = vrot.lane.b32.xlu0 %v3112, 92
        %v3132 = vpop.permute.xlu0 %3131
        %vm3133 = vcmask 752640
        %v3134 = vsel %vm3133, %v3130, %v3132
        %3135 = vrot.lane.b32.xlu0 %v3111, 83
        %v3136 = vpop.permute.xlu0 %3135
        %3137 = vrot.lane.b32.xlu0 %v3112, 83
        %v3138 = vpop.permute.xlu0 %3137
        %vm3139 = vcmask 678912
        %v3140 = vsel %vm3139, %v3136, %v3138
        %v3142 = vunpack.c.l.b16 %v3107
        %v3143 = vpack.c.b16 %v3142, %v3142
        %3144 = vrot.lane.b32.xlu0 %v3111, 74
        %v3145 = vpop.permute.xlu0 %3144
        %3146 = vrot.lane.b32.xlu0 %v3112, 74
        %v3147 = vpop.permute.xlu0 %3146
        %3148 = vrot.lane.b32.xlu0 %v3143, 74
        %v3149 = vpop.permute.xlu0 %3148
        %vm3150 = vcmask 605184
        %v3151 = vsel %vm3150, %v3145, %v3147
        %v3152 = vsel %vm3150, %v3147, %v3149
        %v3155 = vsel %vm1436, %v3111, %v3117
        %v3159 = vsel %vm1436, %v3112, %v3116
        %v3163 = vsel %vm1436, %v3122, %v3128
        %v3167 = vsel %vm1436, %v3121, %v3126
        %v3171 = vsel %vm1436, %v3134, %v3140
        %v3175 = vsel %vm1436, %v3132, %v3138
        %s3177 = scalar_lea.vmem %s8, 8
        %v3178 = vld [vmem:[%s3177] sm:$0xf]
        %s3179 = scalar_lea.vmem %s9, 16
        %v3180 = vld [vmem:[%s3179] sm:$0xff]
        %3182 = vset.pattern.permute.xlu0 0
        %3183 = vperm.xlu0 %3182, %v3180
        %v3184 = vpop.permute.xlu0 %3183
        %v3187 = vsel %vm1495, %v3178, 0
        %v3190 = vsel %vm1436, %v3151, 0
        %v3193 = vsel %vm1436, %v3152, 0
        %3195 = vmatpush.bf16.msra.mxu0 0
        %3196 = vmatpush.bf16.msra.mxu0 0
        %3197 = vmatpush.bf16.msra.mxu0 0
        %3198 = vmatpush.bf16.msra.mxu0 0
        %3199 = vmatpush.bf16.msra.mxu0 %v3190
        %3200 = vmatpush.bf16.msra.mxu0 %v3171
        %3201 = vmatpush.bf16.msra.mxu0 %v3163
        %3202 = vmatpush.bf16.msra.mxu0 %v3155
        %3203 = vmatmul.bf16.gmra.mxu0 %v3187
        %v3204 = vpop.f32.mrf.mxu0
        %v3205 = vadd.f32 %v3184, %v3204
        %v3206 = vpop.f32.mrf.mxu0
        %3207 = vdwg.mxu0
        %3208 = vmatpush.bf16.msra.mxu0 0
        %3209 = vmatpush.bf16.msra.mxu0 0
        %3210 = vmatpush.bf16.msra.mxu0 0
        %3211 = vmatpush.bf16.msra.mxu0 0
        %3212 = vmatpush.bf16.msra.mxu0 %v3193
        %3213 = vmatpush.bf16.msra.mxu0 %v3175
        %3214 = vmatpush.bf16.msra.mxu0 %v3167
        %3215 = vmatpush.bf16.msra.mxu0 %v3159
        %3216 = vmatmul.bf16.gmra.mxu0 %v3187
        %v3217 = vpop.f32.mrf.mxu0
        %v3218 = vadd.f32 %v3184, %v3217
        %v3219 = vpop.f32.mrf.mxu0
        %3220 = vdwg.mxu0
        %s3221 = scalar_lea.vmem %s10, 16
        %v3222 = vld [vmem:[%s3221] sm:$0xff]
        %s3223 = scalar_lea.vmem %s11, 16
        %v3224 = vld [vmem:[%s3223] sm:$0xff]
        %3226 = vset.pattern.permute.xlu0 0
        %3227 = vperm.xlu0 %3226, %v3222
        %v3228 = vpop.permute.xlu0 %3227
        %v3230 = vmul.f32 %v3228, %v3205
        %v3231 = vmul.f32 %v3228, %v3218
        %v3232 = vand.u32 2147483647, %v3230
        %vm3233 = vcmp.le.f32.partialorder %v3232, 0.7853982
        %vm3234 = vcmp.lt.s32.totalorder %v3230, 0
        %v3235 = vand.u32 %v3230, 2139095040
        %v3236 = vshrl.u32 %v3235, 23
        %v3237 = vsub.s32 %v3236, 127
        %v3238 = vand.u32 2147483647, %v3230
        %v3239 = vand.u32 %v3238, 8388607
        %v3240 = vor.u32 %v3239, 8388608
        %v3241 = vsub.s32 0, %v3240
        %v3242 = vadd.s32 %v3237, 1
        %vm3243 = vcmp.gt.s32.totalorder %v3242, 0
        %v3244 = vsel %vm3243, %v3242, 0
        %v3245 = vshrl.u32 %v3244, 5
        %v3246 = vand.u32 %v3244, 31
        %v3247 = vsub.s32 32, %v3246
        %v3248 = vshrl.u32 683565275, %v3247
        %v3249 = vshll.u32 683565275, %v3246
        %v3250 = vshrl.u32 2475754826, %v3247
        %v3251 = vor.u32 %v3249, %v3250
        %v3252 = vshll.u32 2475754826, %v3246
        %v3253 = vshrl.u32 2131351028, %v3247
        %v3254 = vor.u32 %v3252, %v3253
        %v3255 = vshll.u32 2131351028, %v3246
        %v3256 = vshrl.u32 2102212464, %v3247
        %v3257 = vor.u32 %v3255, %v3256
        %v3258 = vshll.u32 2102212464, %v3246
        %v3259 = vshrl.u32 920167782, %v3247
        %v3260 = vor.u32 %v3258, %v3259
        %v3261 = vshll.u32 920167782, %v3246
        %v3262 = vshrl.u32 1326507024, %v3247
        %v3263 = vor.u32 %v3261, %v3262
        %vm3264 = vcmp.lt.s32.totalorder %v3245, 1
        %vm3265 = vcmp.lt.s32.totalorder %v3245, 2
        %vm3266 = vcmp.lt.s32.totalorder %v3245, 3
        %vm3267 = vcmp.lt.s32.totalorder %v3245, 4
        %v3268 = vsel %vm3264, %v3248, %v3251
        %v3269 = vsel %vm3267, %v3257, 2102212464
        %v3270 = vsel %vm3266, %v3254, %v3269
        %v3271 = vsel %vm3265, %v3268, %v3270
        %v3272 = vsel %vm3264, %v3251, %v3254
        %v3273 = vsel %vm3267, %v3260, 920167782
        %v3274 = vsel %vm3266, %v3257, %v3273
        %v3275 = vsel %vm3265, %v3272, %v3274
        %v3276 = vsel %vm3264, %v3254, %v3257
        %v3277 = vsel %vm3267, %v3263, 1326507024
        %v3278 = vsel %vm3266, %v3260, %v3277
        %v3279 = vsel %vm3265, %v3276, %v3278
        %v3280 = vshll.u32 %v3240, 8
        %v3281 = vand.u32 %v3280, 65535
        %v3282 = vshrl.u32 %v3280, 16
        %v3283 = vand.u32 %v3279, 65535
        %v3284 = vshrl.u32 %v3279, 16
        %v3285 = vmul.u32 %v3281, %v3283
        %v3286 = vmul.u32 %v3281, %v3284
        %v3287 = vmul.u32 %v3282, %v3283
        %v3288 = vmul.u32 %v3282, %v3284
        %v3289 = vshll.u32 %v3286, 16
        %v3290 = vshrl.u32 %v3286, 16
        %v3291 = vshll.u32 %v3287, 16
        %v3292 = vshrl.u32 %v3287, 16
        %vm3293 = vc.u32 %v3285, %v3289
        %v3294 = vsel %vm3293, 1, 0
        %v3295 = vadd.s32 %v3285, %v3289
        %v3296 = vadd.s32 %v3288, %v3294
        %vm3297 = vc.u32 %v3295, %v3291
        %v3298 = vsel %vm3297, 1, 0
        %v3299 = vadd.s32 %v3295, %v3291
        %v3300 = vadd.s32 %v3296, %v3298
        %v3301 = vadd.s32 %v3300, %v3290
        %v3302 = vadd.s32 %v3301, %v3292
        %v3303 = vand.u32 %v3280, 65535
        %v3304 = vshrl.u32 %v3280, 16
        %v3305 = vand.u32 %v3275, 65535
        %v3306 = vshrl.u32 %v3275, 16
        %v3307 = vmul.u32 %v3303, %v3305
        %v3308 = vmul.u32 %v3303, %v3306
        %v3309 = vmul.u32 %v3304, %v3305
        %v3310 = vmul.u32 %v3304, %v3306
        %v3311 = vshll.u32 %v3308, 16
        %v3312 = vshrl.u32 %v3308, 16
        %v3313 = vshll.u32 %v3309, 16
        %v3314 = vshrl.u32 %v3309, 16
        %vm3315 = vc.u32 %v3307, %v3311
        %v3316 = vsel %vm3315, 1, 0
        %v3317 = vadd.s32 %v3307, %v3311
        %v3318 = vadd.s32 %v3310, %v3316
        %vm3319 = vc.u32 %v3317, %v3313
        %v3320 = vsel %vm3319, 1, 0
        %v3321 = vadd.s32 %v3317, %v3313
        %v3322 = vadd.s32 %v3318, %v3320
        %v3323 = vadd.s32 %v3322, %v3312
        %v3324 = vadd.s32 %v3323, %v3314
        %v3325 = vmul.u32 %v3280, %v3271
        %v3326 = vadd.s32 %v3302, %v3321
        %vm3327 = vc.u32 %v3302, %v3321
        %v3328 = vadd.s32 %v3324, 1
        %v3329 = vsel %vm3327, %v3328, %v3324
        %v3330 = vadd.s32 %v3325, %v3329
        %v3331 = vadd.s32 %v3330, 536870912
        %v3332 = vshrl.u32 %v3331, 30
        %v3333 = vshll.u32 %v3332, 30
        %v3334 = vsub.s32 %v3330, %v3333
        %vm3335 = vcmp.lt.s32.totalorder %v3334, 0
        %v3336 = vsub.s32 0, %v3334
        %v3337 = vsel %vm3335, %v3336, %v3334
        %v3338 = vclz %v3337
        %v3339 = vsub.s32 %v3338, 2
        %vm3340 = vcmp.gt.s32.totalorder 0, %v3339
        %v3341 = vsel %vm3340, 0, %v3339
        %v3342 = vsub.s32 32, %v3341
        %v3343 = vshll.u32 %v3334, %v3341
        %v3344 = vshrl.u32 %v3326, %v3342
        %v3345 = vor.u32 %v3343, %v3344
        %v3346 = vsub.s32 4294967266, %v3341
        %v3347 = vadd.s32 %v3346, 127
        %v3348 = vshll.u32 %v3347, 23
        %v3349 = vor.u32 4788187, %v3348
        %v3350 = vand.u32 2147483647, %v3349
        %v3352 = vcvt.s32.f32 %v3345
        %v3353 = vmul.f32 %v3352, %v3350
        %v3354 = vxor.u32 %v3353, 2147483648
        %v3355 = vsel %vm3234, %v3354, %v3353
        %v3356 = vsub.s32 4, %v3332
        %v3357 = vsel %vm3234, %v3356, %v3332
        %v3358 = vsel %vm3233, %v3230, %v3355
        %v3359 = vsel %vm3233, 0, %v3357
        %v3360 = vmul.f32 %v3358, %v3358
        %v3361 = vmul.f32 %v3360, -0.001358992
        %v3362 = vadd.f32 %v3361, 0.041655596
        %v3363 = vmul.f32 %v3360, %v3362
        %v3364 = vadd.f32 %v3363, -0.4999988
        %v3365 = vmul.f32 %v3360, %v3364
        %v3366 = vadd.f32 1.0, %v3365
        %v3367 = vmul.f32 %v3358, %v3358
        %v3368 = vmul.f32 %v3367, -0.00019511016
        %v3369 = vadd.f32 %v3368, 0.008332121
        %v3370 = vmul.f32 %v3367, %v3369
        %v3371 = vadd.f32 %v3370, -0.16666654
        %v3372 = vmul.f32 %v3367, %v3371
        %v3373 = vadd.f32 %v3372, 1.0
        %v3374 = vmul.f32 %v3373, %v3358
        %vm3375 = vweird.f32 %v3230
        %v3376 = vadd.s32 %v3359, 3
        %v3377 = vand.u32 %v3376, 3
        %vm3378 = vcmp.lt.s32.totalorder %v3377, 2
        %vm3379 = vcmp.eq.s32.totalorder %v3377, 0
        %v3380 = vxor.u32 %v3374, 2147483648
        %v3381 = vsel %vm3379, %v3366, %v3380
        %vm3382 = vcmp.eq.s32.totalorder %v3377, 2
        %v3383 = vxor.u32 %v3366, 2147483648
        %v3384 = vsel %vm3382, %v3383, %v3374
        %v3385 = vsel %vm3378, %v3381, %v3384
        %v3386 = vsel %vm3375, nan, %v3385
        %v3387 = vand.u32 2147483647, %v3231
        %vm3388 = vcmp.le.f32.partialorder %v3387, 0.7853982
        %vm3389 = vcmp.lt.s32.totalorder %v3231, 0
        %v3390 = vand.u32 %v3231, 2139095040
        %v3391 = vshrl.u32 %v3390, 23
        %v3392 = vsub.s32 %v3391, 127
        %v3393 = vand.u32 2147483647, %v3231
        %v3394 = vand.u32 %v3393, 8388607
        %v3395 = vor.u32 %v3394, 8388608
        %v3396 = vsub.s32 0, %v3395
        %v3397 = vadd.s32 %v3392, 1
        %vm3398 = vcmp.gt.s32.totalorder %v3397, 0
        %v3399 = vsel %vm3398, %v3397, 0
        %v3400 = vshrl.u32 %v3399, 5
        %v3401 = vand.u32 %v3399, 31
        %v3402 = vsub.s32 32, %v3401
        %v3403 = vshrl.u32 683565275, %v3402
        %v3404 = vshll.u32 683565275, %v3401
        %v3405 = vshrl.u32 2475754826, %v3402
        %v3406 = vor.u32 %v3404, %v3405
        %v3407 = vshll.u32 2475754826, %v3401
        %v3408 = vshrl.u32 2131351028, %v3402
        %v3409 = vor.u32 %v3407, %v3408
        %v3410 = vshll.u32 2131351028, %v3401
        %v3411 = vshrl.u32 2102212464, %v3402
        %v3412 = vor.u32 %v3410, %v3411
        %v3413 = vshll.u32 2102212464, %v3401
        %v3414 = vshrl.u32 920167782, %v3402
        %v3415 = vor.u32 %v3413, %v3414
        %v3416 = vshll.u32 920167782, %v3401
        %v3417 = vshrl.u32 1326507024, %v3402
        %v3418 = vor.u32 %v3416, %v3417
        %vm3419 = vcmp.lt.s32.totalorder %v3400, 1
        %vm3420 = vcmp.lt.s32.totalorder %v3400, 2
        %vm3421 = vcmp.lt.s32.totalorder %v3400, 3
        %vm3422 = vcmp.lt.s32.totalorder %v3400, 4
        %v3423 = vsel %vm3419, %v3403, %v3406
        %v3424 = vsel %vm3422, %v3412, 2102212464
        %v3425 = vsel %vm3421, %v3409, %v3424
        %v3426 = vsel %vm3420, %v3423, %v3425
        %v3427 = vsel %vm3419, %v3406, %v3409
        %v3428 = vsel %vm3422, %v3415, 920167782
        %v3429 = vsel %vm3421, %v3412, %v3428
        %v3430 = vsel %vm3420, %v3427, %v3429
        %v3431 = vsel %vm3419, %v3409, %v3412
        %v3432 = vsel %vm3422, %v3418, 1326507024
        %v3433 = vsel %vm3421, %v3415, %v3432
        %v3434 = vsel %vm3420, %v3431, %v3433
        %v3435 = vshll.u32 %v3395, 8
        %v3436 = vand.u32 %v3435, 65535
        %v3437 = vshrl.u32 %v3435, 16
        %v3438 = vand.u32 %v3434, 65535
        %v3439 = vshrl.u32 %v3434, 16
        %v3440 = vmul.u32 %v3436, %v3438
        %v3441 = vmul.u32 %v3436, %v3439
        %v3442 = vmul.u32 %v3437, %v3438
        %v3443 = vmul.u32 %v3437, %v3439
        %v3444 = vshll.u32 %v3441, 16
        %v3445 = vshrl.u32 %v3441, 16
        %v3446 = vshll.u32 %v3442, 16
        %v3447 = vshrl.u32 %v3442, 16
        %vm3448 = vc.u32 %v3440, %v3444
        %v3449 = vsel %vm3448, 1, 0
        %v3450 = vadd.s32 %v3440, %v3444
        %v3451 = vadd.s32 %v3443, %v3449
        %vm3452 = vc.u32 %v3450, %v3446
        %v3453 = vsel %vm3452, 1, 0
        %v3454 = vadd.s32 %v3450, %v3446
        %v3455 = vadd.s32 %v3451, %v3453
        %v3456 = vadd.s32 %v3455, %v3445
        %v3457 = vadd.s32 %v3456, %v3447
        %v3458 = vand.u32 %v3435, 65535
        %v3459 = vshrl.u32 %v3435, 16
        %v3460 = vand.u32 %v3430, 65535
        %v3461 = vshrl.u32 %v3430, 16
        %v3462 = vmul.u32 %v3458, %v3460
        %v3463 = vmul.u32 %v3458, %v3461
        %v3464 = vmul.u32 %v3459, %v3460
        %v3465 = vmul.u32 %v3459, %v3461
        %v3466 = vshll.u32 %v3463, 16
        %v3467 = vshrl.u32 %v3463, 16
        %v3468 = vshll.u32 %v3464, 16
        %v3469 = vshrl.u32 %v3464, 16
        %vm3470 = vc.u32 %v3462, %v3466
        %v3471 = vsel %vm3470, 1, 0
        %v3472 = vadd.s32 %v3462, %v3466
        %v3473 = vadd.s32 %v3465, %v3471
        %vm3474 = vc.u32 %v3472, %v3468
        %v3475 = vsel %vm3474, 1, 0
        %v3476 = vadd.s32 %v3472, %v3468
        %v3477 = vadd.s32 %v3473, %v3475
        %v3478 = vadd.s32 %v3477, %v3467
        %v3479 = vadd.s32 %v3478, %v3469
        %v3480 = vmul.u32 %v3435, %v3426
        %v3481 = vadd.s32 %v3457, %v3476
        %vm3482 = vc.u32 %v3457, %v3476
        %v3483 = vadd.s32 %v3479, 1
        %v3484 = vsel %vm3482, %v3483, %v3479
        %v3485 = vadd.s32 %v3480, %v3484
        %v3486 = vadd.s32 %v3485, 536870912
        %v3487 = vshrl.u32 %v3486, 30
        %v3488 = vshll.u32 %v3487, 30
        %v3489 = vsub.s32 %v3485, %v3488
        %vm3490 = vcmp.lt.s32.totalorder %v3489, 0
        %v3491 = vsub.s32 0, %v3489
        %v3492 = vsel %vm3490, %v3491, %v3489
        %v3493 = vclz %v3492
        %v3494 = vsub.s32 %v3493, 2
        %vm3495 = vcmp.gt.s32.totalorder 0, %v3494
        %v3496 = vsel %vm3495, 0, %v3494
        %v3497 = vsub.s32 32, %v3496
        %v3498 = vshll.u32 %v3489, %v3496
        %v3499 = vshrl.u32 %v3481, %v3497
        %v3500 = vor.u32 %v3498, %v3499
        %v3501 = vsub.s32 4294967266, %v3496
        %v3502 = vadd.s32 %v3501, 127
        %v3503 = vshll.u32 %v3502, 23
        %v3504 = vor.u32 4788187, %v3503
        %v3505 = vand.u32 2147483647, %v3504
        %v3507 = vcvt.s32.f32 %v3500
        %v3508 = vmul.f32 %v3507, %v3505
        %v3509 = vxor.u32 %v3508, 2147483648
        %v3510 = vsel %vm3389, %v3509, %v3508
        %v3511 = vsub.s32 4, %v3487
        %v3512 = vsel %vm3389, %v3511, %v3487
        %v3513 = vsel %vm3388, %v3231, %v3510
        %v3514 = vsel %vm3388, 0, %v3512
        %v3515 = vmul.f32 %v3513, %v3513
        %v3516 = vmul.f32 %v3515, -0.001358992
        %v3517 = vadd.f32 %v3516, 0.041655596
        %v3518 = vmul.f32 %v3515, %v3517
        %v3519 = vadd.f32 %v3518, -0.4999988
        %v3520 = vmul.f32 %v3515, %v3519
        %v3521 = vadd.f32 1.0, %v3520
        %v3522 = vmul.f32 %v3513, %v3513
        %v3523 = vmul.f32 %v3522, -0.00019511016
        %v3524 = vadd.f32 %v3523, 0.008332121
        %v3525 = vmul.f32 %v3522, %v3524
        %v3526 = vadd.f32 %v3525, -0.16666654
        %v3527 = vmul.f32 %v3522, %v3526
        %v3528 = vadd.f32 %v3527, 1.0
        %v3529 = vmul.f32 %v3528, %v3513
        %vm3530 = vweird.f32 %v3231
        %v3531 = vadd.s32 %v3514, 3
        %v3532 = vand.u32 %v3531, 3
        %vm3533 = vcmp.lt.s32.totalorder %v3532, 2
        %vm3534 = vcmp.eq.s32.totalorder %v3532, 0
        %v3535 = vxor.u32 %v3529, 2147483648
        %v3536 = vsel %vm3534, %v3521, %v3535
        %vm3537 = vcmp.eq.s32.totalorder %v3532, 2
        %v3538 = vxor.u32 %v3521, 2147483648
        %v3539 = vsel %vm3537, %v3538, %v3529
        %v3540 = vsel %vm3533, %v3536, %v3539
        %v3541 = vsel %vm3530, nan, %v3540
        %v3542 = vmul.f32 %v3386, %v3386
        %v3543 = vmul.f32 %v3541, %v3541
        %3545 = vset.pattern.permute.xlu0 0
        %3546 = vperm.xlu0 %3545, %v3224
        %v3547 = vpop.permute.xlu0 %3546
        %v3549 = vmul.f32 %v3547, %v3542
        %v3550 = vmul.f32 %v3547, %v3543
        %v3551 = vadd.f32 %v3205, %v3549
        %v3552 = vadd.f32 %v3218, %v3550
        %s3553 = scalar_lea.vmem %s12, 8
        %v3554 = vld [vmem:[%s3553] sm:$0xf]
        %v3555 = vpack.c.bf16 %v3551, %v3551
        %v3556 = vpack.c.bf16 %v3552, %v3552
        %s3557 = scalar_lea.vmem %s13, 16
        %v3558 = vld [vmem:[%s3557] sm:$0xff]
        %3560 = vset.pattern.permute.xlu0 0
        %3561 = vperm.xlu0 %3560, %v3558
        %v3562 = vpop.permute.xlu0 %3561
        %v3565 = vsel %vm1870, %v3554, 0
        %v3568 = vsel %vm1436, %v3555, 0
        %v3571 = vsel %vm1436, %v3556, 0
        %3573 = vmatpush.bf16.msra.mxu0 0
        %3574 = vmatpush.bf16.msra.mxu0 0
        %3575 = vmatpush.bf16.msra.mxu0 0
        %3576 = vmatpush.bf16.msra.mxu0 0
        %3577 = vmatpush.bf16.msra.mxu0 0
        %3578 = vmatpush.bf16.msra.mxu0 0
        %3579 = vmatpush.bf16.msra.mxu0 0
        %3580 = vmatpush.bf16.msra.mxu0 %v3568
        %3581 = vmatmul.bf16.gmra.mxu0 %v3565
        %v3582 = vpop.f32.mrf.mxu0
        %v3583 = vadd.f32 %v3562, %v3582
        %v3584 = vpop.f32.mrf.mxu0
        %3585 = vdwg.mxu0
        %3586 = vmatpush.bf16.msra.mxu0 0
        %3587 = vmatpush.bf16.msra.mxu0 0
        %3588 = vmatpush.bf16.msra.mxu0 0
        %3589 = vmatpush.bf16.msra.mxu0 0
        %3590 = vmatpush.bf16.msra.mxu0 0
        %3591 = vmatpush.bf16.msra.mxu0 0
        %3592 = vmatpush.bf16.msra.mxu0 0
        %3593 = vmatpush.bf16.msra.mxu0 %v3571
        %3594 = vmatmul.bf16.gmra.mxu0 %v3565
        %v3595 = vpop.f32.mrf.mxu0
        %v3596 = vadd.f32 %v3562, %v3595
        %v3597 = vpop.f32.mrf.mxu0
        %3598 = vdwg.mxu0
        %v3599 = vadd.f32 %v2764, %v3583
        %v3600 = vadd.f32 %v2765, %v3596
        %v3601 = vsel %vm1042, %v3599, 0.0
        %v3602 = vsel %vm1043, %v3600, 0.0
        %3605 = vrot.lane.b32.xlu0 %v3601, 88
        %v3606 = vpop.permute.xlu0 %3605
        %3607 = vrot.lane.b32.xlu0 %v3602, 88
        %v3608 = vpop.permute.xlu0 %3607
        %vm3609 = vcmask 719872
        %v3610 = vsel %vm3609, %v3606, %v3608
        %3612 = vst [vmem:[%s501] sm:$0xff] %v3610
        %s3613 = sand.u32 %s352, 1
        %s3614 = scalar_lea.sflag [#allocation5], %s3613
        %s3615 = sand.u32 %s352, 1
        %s3616 = smul.addr %s3615, 8
        %s3617 = scalar_lea.vmem [#allocation6], %s3616
        // Predicated region
        $region81: #{tpu_custom_call.1} parent=75 // pred_check
          %p3618 = pneg %p362
        $region82: #{tpu_custom_call.1} parent=75 // pred_check_branch
          %3620 = sbr.rel (%p3618) target = $region84
        $region83: #{tpu_custom_call.1} parent=75 // pred_region
          %3622 = vsyncadd %s3614, 0
          %s3623 = sadd.s32 %s34, %s33
          %s3624 = smul.addr %s3623, 8
          %s3625 = scalar_lea.hbm %s14, %s3624
          %s3627 = sshll.u32 %s3617, 4
          %s3628 = int_to_ptr.vmem [resolvable:$true] %s3627
          %s3629 = sshll.u32 %s3625, 4
          %s3630 = int_to_ptr.hbm [resolvable:$true] %s3629
          %3632 = dma.vmem_to_hbm [thread:$0]  %s3628, 128, %s3630, %s3614
        $region84: #{tpu_custom_call.1} parent=75 // pred_fallthru
          _
      $region76: #{tpu_custom_call.1} parent=5 // pred_fallthru
        _
      %p3633 = scmp.le.s32.totalorder 2, %s24
      // Predicated region
      $region85: #{tpu_custom_call.1} parent=5 // pred_check
        %p3634 = pneg %p3633
      $region86: #{tpu_custom_call.1} parent=5 // pred_check_branch
        %3636 = sbr.rel (%p3634) target = $region88
      $region87: #{tpu_custom_call.1} parent=5 // pred_region
        %s3637 = ssub.s32 %s24, 2
        // Predicated region
        $region89: #{tpu_custom_call.1} parent=87 // pred_check
          %p3638 = pneg %p368
        $region90: #{tpu_custom_call.1} parent=87 // pred_check_branch
          %3640 = sbr.rel (%p3638) target = $region92
        $region91: #{tpu_custom_call.1} parent=87 // pred_region
          %s3641 = sand.u32 %s353, 1
          %s3642 = scalar_lea.sflag [#allocation5], %s3641
          %s3643 = sand.u32 %s353, 1
          %s3644 = smul.addr %s3643, 8
          %s3645 = scalar_lea.vmem [#allocation6], %s3644
          %3647 = dma.done %s3642, 128
        $region92: #{tpu_custom_call.1} parent=87 // pred_fallthru
          _
      $region88: #{tpu_custom_call.1} parent=5 // pred_fallthru
        _
    $region6: #{tpu_custom_call.1} parent=1 // loop_footer
      %s28 = sadd.s32 1, %s24
    $region7: #{tpu_custom_call.1} parent=1 // loop_footer_branch
      %23 = sbr.rel target = $region3
    $region8: #{tpu_custom_call.1} parent=1 // loop_exit
      _
    %3648 = vsyncpa [#allocation4], 1
    %s3649 = scalar_lea.sflag [#allocation4], 1
    %3650 = vsyncpa %s3649, 1
    %3651 = vsyncpa [#allocation5], 1
    %s3652 = scalar_lea.sflag [#allocation5], 1
    %3653 = vsyncpa %s3652, 1

</llo_original>
